<compile_context>
chip_gen: v7x
topology: tpu7x:2x2x1
jax: 0.10.0
libtpu: 0.0.40
codegen_flags: <defaults>
</compile_context>

<pallas_src>
import math
from functools import partial

import jax
import jax.numpy as jnp
from jax.experimental import pallas as pl
from jax.experimental.pallas import tpu as pltpu

EPS = 1e-5


# ---------------------------------------------------------------------------
# In-kernel AIBN + affine (+ optional ReLU) on an (N, HW, C) f32 value.
# Two-pass instance stats (ddof=1, matches torch.Tensor.var()); batch stats mixed in via the
# clamped adaptive weight; folded into a single scale/bias FMA sweep; rsqrt on the EUP.
# ---------------------------------------------------------------------------
def _aibn_apply(y, a, gamma, beta, relu):
    N, HW, C = y.shape
    gamma = gamma.reshape(1, 1, C)
    beta = beta.reshape(1, 1, C)
    mean_in = jnp.mean(y, axis=1, keepdims=True)                       # (N, 1, C)
    diff = y - mean_in
    var_in = jnp.sum(diff * diff, axis=1, keepdims=True) * (1.0 / max(HW - 1, 1))
    temp = var_in + mean_in * mean_in
    mean_bn = jnp.mean(mean_in, axis=0, keepdims=True)                 # (1, 1, C)
    var_bn = jnp.maximum(
        jnp.mean(temp, axis=0, keepdims=True) - mean_bn * mean_bn, 0.0)
    mean = (1.0 - a) * mean_in + a * mean_bn                           # (N, 1, C)
    var = (1.0 - a) * var_in + a * var_bn
    inv = jax.lax.rsqrt(var + EPS)                                     # EUP slot (free vs VALU)
    scale = gamma * inv                                                # (N, 1, C)
    bias = beta - mean * scale                                         # (N, 1, C)
    out = y * scale + bias                                             # single FMA sweep
    if relu:
        out = jnp.maximum(out, 0.0)
    return out


# ---------------------------------------------------------------------------
# Fused bottleneck kernel.
#   refs: aw (SMEM), x2d, w1, g1, b1, w2 (9,P,P), g2, b2, w3, g3, b3 (VMEM) -> out2d
#   scratch: bf16 zero-halo padded stage-1 activation
# ---------------------------------------------------------------------------
def aibn_bottleneck_kernel(N, H, W,
                           aw_ref, x_ref, w1_ref, g1_ref, b1_ref,
                           w2_ref, g2_ref, b2_ref, w3_ref, g3_ref, b3_ref,
                           o_ref, y1p_ref):
    HW = H * W
    rows = N * HW
    P = w1_ref.shape[1]
    C3 = w3_ref.shape[1]
    a = jnp.clip(aw_ref[0], 0.0, 1.0)

    x = x_ref[...]                                                     # (rows, C3) f32, reused as residual

    # ---- stage 1: 1x1 conv (bf16 MXU, f32 acc) + AIBN + ReLU -------------------------
    y1 = jnp.dot(x.astype(jnp.bfloat16), w1_ref[...],
                 preferred_element_type=jnp.float32)                   # (rows, P)
    y1n = _aibn_apply(y1.reshape(N, HW, P), a, g1_ref[...], b1_ref[...], relu=True)

    # ---- padding folded into the kernel: zero ONLY the halo border, write interior once,
    #      store as bf16 (it feeds the MXU as bf16 anyway) -------------------------------
    zrow = jnp.zeros((N, 1, W + 2, P), jnp.bfloat16)
    y1p_ref[:, 0:1, :, :] = zrow
    y1p_ref[:, H + 1:H + 2, :, :] = zrow
    zcol = jnp.zeros((N, H, 1, P), jnp.bfloat16)
    y1p_ref[:, 1:H + 1, 0:1, :] = zcol
    y1p_ref[:, 1:H + 1, W + 1:W + 2, :] = zcol
    y1p_ref[:, 1:H + 1, 1:W + 1, :] = y1n.reshape(N, H, W, P).astype(jnp.bfloat16)

    # ---- stage 2: 3x3 conv (stride 1, pad 1) as nine accumulating MXU matmuls ----------
    # (no im2col buffer: each tap is read straight from the halo scratch)
    y2 = None
    for t in range(9):
        dh, dw = divmod(t, 3)
        tap = y1p_ref[:, dh:dh + H, dw:dw + W, :].reshape(rows, P)      # bf16
        part = jnp.dot(tap, w2_ref[t], preferred_element_type=jnp.float32)
        y2 = part if y2 is None else y2 + part
    y2n = _aibn_apply(y2.reshape(N, HW, P), a, g2_ref[...], b2_ref[...], relu=True)

    # ---- stage 3: 1x1 conv + AIBN + residual add + ReLU --------------------------------
    y3 = jnp.dot(y2n.reshape(rows, P).astype(jnp.bfloat16), w3_ref[...],
                 preferred_element_type=jnp.float32)                    # (rows, C3)
    y3n = _aibn_apply(y3.reshape(N, HW, C3), a, g3_ref[...], b3_ref[...], relu=False)
    o_ref[...] = jnp.maximum(y3n.reshape(rows, C3) + x, 0.0).astype(o_ref.dtype)   # lane-dense store


# ---------------------------------------------------------------------------
# Wrapper (NCHW in / NCHW out, PyTorch convention).
# ---------------------------------------------------------------------------
def aibn_bottleneck_forward(x_nchw, params):
    """x_nchw: (N, inplanes, H, W) f32 -> (N, 4*planes, H, W) f32."""
    N, Cin, H, W = x_nchw.shape
    P = params["w1"].shape[1]
    C3 = 4 * P
    HW = H * W
    assert Cin == C3, "identity residual requires inplanes == 4*planes (downsample=None)"
    # TODO(synk): stride>1 / downsample branch not implemented.

    # Layout change + flatten done ONCE in the wrapper.
    x2d = jnp.transpose(x_nchw, (0, 2, 3, 1)).astype(jnp.float32).reshape(N * HW, Cin)

    # Weights pre-packed into matmul layouts, bf16 for the MXU (f32 accumulation in-kernel).
    w1 = params["w1"].astype(jnp.bfloat16)                    # (Cin, P)
    w2 = params["w2"].astype(jnp.bfloat16)                    # (9, P, P) per-tap weights
    w3 = params["w3"].astype(jnp.bfloat16)                    # (P, 4P)
    g1, b1 = params["g1"].reshape(1, P), params["b1"].reshape(1, P)
    g2, b2 = params["g2"].reshape(1, P), params["b2"].reshape(1, P)
    g3, b3 = params["g3"].reshape(1, C3), params["b3"].reshape(1, C3)

    rows = N * HW
    halo_elems = N * (H + 2) * (W + 2) * P
    flops = 2 * rows * (Cin * P + 9 * P * P + P * C3)
    bytes_accessed = (4 * (x2d.size + rows * C3)               # HBM in / out
                      + 2 * (w1.size + w2.size + w3.size)      # bf16 weights
                      + 2 * halo_elems * 10                    # halo scratch: 1 write + 9 tap reads
                      + 4 * 2 * (2 * P + C3) + 4)              # affine params + adaptive weight
    cost = pl.CostEstimate(flops=int(flops),
                           transcendentals=int(N * (2 * P + C3)),
                           bytes_accessed=int(bytes_accessed))

    smem = pl.BlockSpec(memory_space=pltpu.MemorySpace.SMEM)
    vmem = pl.BlockSpec(memory_space=pltpu.MemorySpace.VMEM)

    out2d = pl.pallas_call(
        partial(aibn_bottleneck_kernel, N, H, W),
        out_shape=jax.ShapeDtypeStruct((rows, C3), jnp.float32),
        in_specs=[smem] + [vmem] * 10,
        out_specs=vmem,
        scratch_shapes=[
            pltpu.VMEM((N, H + 2, W + 2, P), jnp.bfloat16),    # bf16 zero-halo padded y1
        ],
        cost_estimate=cost,
        # Working set is tiny at the demo scale; 32 MiB keeps us under every generation's
        # scoped default and far under v7x's 64 MiB physical VMEM.
        compiler_params=pltpu.CompilerParams(vmem_limit_bytes=32 * 1024 * 1024),
    )(params["adaptive_weight"], x2d, w1, g1, b1, w2, g2, b2, w3, g3, b3)

    return jnp.transpose(out2d.reshape(N, H, W, C3), (0, 3, 1, 2))


# ---------------------------------------------------------------------------
# Pure-JAX reference (same module math). matmul_dtype lets us match the kernel's
# bf16-MXU precision choice for a tight structural check.
# ---------------------------------------------------------------------------
def _aibn_ref(y4, aw, gamma, beta):
    N, H, W, C = y4.shape
    yf = y4.reshape(N, H * W, C)
    mean_in = yf.mean(axis=1)
    var_in = ((yf - mean_in[:, None, :]) ** 2).sum(axis=1) / max(H * W - 1, 1)
    temp = var_in + mean_in ** 2
    mean_bn = mean_in.mean(axis=0, keepdims=True)
    var_bn = temp.mean(axis=0, keepdims=True) - mean_bn ** 2
    a = jnp.clip(aw[0], 0.0, 1.0)
    mean = (1 - a) * mean_in + a * mean_bn
    var = (1 - a) * var_in + a * var_bn
    yn = (yf - mean[:, None, :]) / jnp.sqrt(var[:, None, :] + EPS)
    yn = yn * gamma[None, None, :] + beta[None, None, :]
    return yn.reshape(N, H, W, C)


def reference_forward(x_nchw, params, matmul_dtype=jnp.float32):
    x = jnp.transpose(x_nchw, (0, 2, 3, 1)).astype(jnp.float32)
    N, H, W, Cin = x.shape
    P = params["w1"].shape[1]
    aw = params["adaptive_weight"]

    def mm(a, b):
        return jax.lax.dot_general(
            a.astype(matmul_dtype), b.astype(matmul_dtype),
            (((a.ndim - 1,), (0,)), ((), ())),
            preferred_element_type=jnp.float32)

    y1 = jnp.maximum(_aibn_ref(mm(x, params["w1"]), aw, params["g1"], params["b1"]), 0.0)
    y1p = jnp.pad(y1, ((0, 0), (1, 1), (1, 1), (0, 0)))
    acc = jnp.zeros((N, H, W, P), jnp.float32)
    for t in range(9):
        dh, dw = divmod(t, 3)
        acc = acc + mm(y1p[:, dh:dh + H, dw:dw + W, :], params["w2"][t])
    y2 = jnp.maximum(_aibn_ref(acc, aw, params["g2"], params["b2"]), 0.0)
    y3 = _aibn_ref(mm(y2, params["w3"]), aw, params["g3"], params["b3"])
    out = jnp.maximum(y3 + x, 0.0)
    return jnp.transpose(out, (0, 3, 1, 2))


# ---------------------------------------------------------------------------
# Main
# ---------------------------------------------------------------------------
if __name__ == "__main__":
    # Small but lane-friendly: 4*planes = 128 so the residual / final store is lane-dense,
    # inplanes = 4*planes so the identity residual applies (no downsample), H*W % 8 == 0.
    # (Per review: this size is launch/DMA dominated; real perf validation belongs at
    # ResNet-scale shapes with the row-tiled grid — see TODO at top.)
    N, planes, H, W = 2, 32, 16, 16
    inplanes = 4 * planes

    key = jax.random.PRNGKey(0)
    ks = jax.random.split(key, 10)

    params = {
        "adaptive_weight": jnp.full((1,), 0.1, jnp.float32),            # init_weight = 0.1
        # conv weights already in matmul layouts: (Cin, Cout) and (9, Cin, Cout)
        "w1": jax.random.normal(ks[0], (inplanes, planes), jnp.float32)
              * (1.0 / math.sqrt(inplanes)),
        "w2": jax.random.normal(ks[1], (9, planes, planes), jnp.float32)
              * (1.0 / math.sqrt(9 * planes)),
        "w3": jax.random.normal(ks[2], (planes, 4 * planes), jnp.float32)
              * (1.0 / math.sqrt(planes)),
        # AIBN affine params
        "g1": 1.0 + 0.05 * jax.random.normal(ks[3], (planes,), jnp.float32),
        "b1": 0.05 * jax.random.normal(ks[4], (planes,), jnp.float32),
        "g2": 1.0 + 0.05 * jax.random.normal(ks[5], (planes,), jnp.float32),
        "b2": 0.05 * jax.random.normal(ks[6], (planes,), jnp.float32),
        "g3": 1.0 + 0.05 * jax.random.normal(ks[7], (4 * planes,), jnp.float32),
        "b3": 0.05 * jax.random.normal(ks[8], (4 * planes,), jnp.float32),
    }

    x = jax.random.normal(ks[9], (N, inplanes, H, W), jnp.float32)

    out = jax.block_until_ready(aibn_bottleneck_forward(x, params))
    assert out.shape == (N, 4 * planes, H, W), out.shape

    # Structural check: same math, same bf16-matmul precision as the kernel.
    ref_bf16 = jax.block_until_ready(reference_forward(x, params, jnp.bfloat16))
    err_bf16 = float(jnp.max(jnp.abs(out - ref_bf16)))
    # Module-fidelity check: full-f32 reference; slack covers the bf16-MXU precision choice.
    ref_f32 = jax.block_until_ready(reference_forward(x, params, jnp.float32))
    err_f32 = float(jnp.max(jnp.abs(out - ref_f32)))

    assert err_bf16 < 1e-2, f"mismatch vs precision-matched reference: {err_bf16}"
    assert err_f32 < 2e-1, f"mismatch vs f32 reference: {err_f32}"

    print("KERNEL_OK")
</pallas_src>

<mosaic_0001>
module attributes {stable_mosaic.version = 11 : i64} {
  func.func @aibn_bottleneck_kernel(%arg0: memref<1xf32, #tpu.memory_space<smem>>, %arg1: memref<512x128xf32, #tpu.memory_space<vmem>>, %arg2: memref<128x32xbf16, #tpu.memory_space<vmem>>, %arg3: memref<1x32xf32, #tpu.memory_space<vmem>>, %arg4: memref<1x32xf32, #tpu.memory_space<vmem>>, %arg5: memref<9x32x32xbf16, #tpu.memory_space<vmem>>, %arg6: memref<1x32xf32, #tpu.memory_space<vmem>>, %arg7: memref<1x32xf32, #tpu.memory_space<vmem>>, %arg8: memref<32x128xbf16, #tpu.memory_space<vmem>>, %arg9: memref<1x128xf32, #tpu.memory_space<vmem>>, %arg10: memref<1x128xf32, #tpu.memory_space<vmem>>, %arg11: memref<512x128xf32, #tpu.memory_space<vmem>>, %arg12: memref<2x18x18x32xbf16, #tpu.memory_space<vmem>>) attributes {dimension_semantics = [], scalar_prefetch = 0 : i64, scratch_operands = 1 : i64, tpu.core_type = #tpu.core_type<tc>} {
    %c0 = arith.constant 0 : index
    %0 = memref.load %arg0[%c0] : memref<1xf32, #tpu.memory_space<smem>>
    %cst = arith.constant 0.000000e+00 : f32
    %cst_0 = arith.constant 1.000000e+00 : f32
    %1 = arith.maximumf %cst, %0 : f32
    %2 = arith.minimumf %cst_0, %1 : f32
    %c0_1 = arith.constant 0 : index
    %c0_2 = arith.constant 0 : index
    %3 = vector.load %arg1[%c0_1, %c0_2] : memref<512x128xf32, #tpu.memory_space<vmem>>, vector<512x128xf32>
    %4 = arith.truncf %3 : vector<512x128xf32> to vector<512x128xbf16>
    %c0_3 = arith.constant 0 : index
    %c0_4 = arith.constant 0 : index
    %5 = vector.load %arg2[%c0_3, %c0_4] : memref<128x32xbf16, #tpu.memory_space<vmem>>, vector<128x32xbf16>
    %cst_5 = arith.constant dense<0.000000e+00> : vector<512x32xf32>
    %6 = tpu.matmul %4, %5, %cst_5 {dimension_numbers = #tpu.dot_dimension_numbers<[1], [0], [0], [1], [0, 0, 1, 1], [], []>} : vector<512x128xbf16>, vector<128x32xbf16>, vector<512x32xf32> -> vector<512x32xf32>
    %7 = vector.shape_cast %6 : vector<512x32xf32> to vector<2x256x32xf32>
    %c0_6 = arith.constant 0 : index
    %c0_7 = arith.constant 0 : index
    %8 = vector.load %arg3[%c0_6, %c0_7] : memref<1x32xf32, #tpu.memory_space<vmem>>, vector<1x32xf32>
    %c0_8 = arith.constant 0 : index
    %c0_9 = arith.constant 0 : index
    %9 = vector.load %arg4[%c0_8, %c0_9] : memref<1x32xf32, #tpu.memory_space<vmem>>, vector<1x32xf32>
    %10 = vector.shape_cast %8 : vector<1x32xf32> to vector<1x1x32xf32>
    %11 = vector.shape_cast %9 : vector<1x32xf32> to vector<1x1x32xf32>
    %cst_10 = arith.constant dense<0.000000e+00> : vector<2x32xf32>
    %12 = vector.multi_reduction <add>, %7, %cst_10 [1] : vector<2x256x32xf32> to vector<2x32xf32>
    %13 = vector.shape_cast %12 : vector<2x32xf32> to vector<2x1x32xf32>
    %cst_11 = arith.constant 2.560000e+02 : f32
    %14 = vector.broadcast %cst_11 : f32 to vector<2x1x32xf32>
    %15 = arith.divf %13, %14 : vector<2x1x32xf32>
    %16 = vector.broadcast %15 : vector<2x1x32xf32> to vector<2x256x32xf32>
    %17 = arith.subf %7, %16 : vector<2x256x32xf32>
    %18 = arith.mulf %17, %17 : vector<2x256x32xf32>
    %cst_12 = arith.constant dense<0.000000e+00> : vector<2x32xf32>
    %19 = vector.multi_reduction <add>, %18, %cst_12 [1] : vector<2x256x32xf32> to vector<2x32xf32>
    %20 = vector.shape_cast %19 : vector<2x32xf32> to vector<2x1x32xf32>
    %cst_13 = arith.constant 0.00392156886 : f32
    %21 = vector.broadcast %cst_13 : f32 to vector<2x1x32xf32>
    %22 = arith.mulf %20, %21 : vector<2x1x32xf32>
    %23 = arith.mulf %15, %15 : vector<2x1x32xf32>
    %24 = arith.addf %22, %23 : vector<2x1x32xf32>
    %cst_14 = arith.constant dense<0.000000e+00> : vector<1x32xf32>
    %25 = vector.multi_reduction <add>, %15, %cst_14 [0] : vector<2x1x32xf32> to vector<1x32xf32>
    %26 = vector.shape_cast %25 : vector<1x32xf32> to vector<1x1x32xf32>
    %cst_15 = arith.constant 2.000000e+00 : f32
    %27 = vector.broadcast %cst_15 : f32 to vector<1x1x32xf32>
    %28 = arith.divf %26, %27 : vector<1x1x32xf32>
    %cst_16 = arith.constant dense<0.000000e+00> : vector<1x32xf32>
    %29 = vector.multi_reduction <add>, %24, %cst_16 [0] : vector<2x1x32xf32> to vector<1x32xf32>
    %30 = vector.shape_cast %29 : vector<1x32xf32> to vector<1x1x32xf32>
    %cst_17 = arith.constant 2.000000e+00 : f32
    %31 = vector.broadcast %cst_17 : f32 to vector<1x1x32xf32>
    %32 = arith.divf %30, %31 : vector<1x1x32xf32>
    %33 = arith.mulf %28, %28 : vector<1x1x32xf32>
    %34 = arith.subf %32, %33 : vector<1x1x32xf32>
    %cst_18 = arith.constant 0.000000e+00 : f32
    %35 = vector.broadcast %cst_18 : f32 to vector<1x1x32xf32>
    %36 = arith.maximumf %34, %35 : vector<1x1x32xf32>
    %cst_19 = arith.constant 1.000000e+00 : f32
    %37 = arith.subf %cst_19, %2 : f32
    %38 = vector.broadcast %37 : f32 to vector<2x1x32xf32>
    %39 = arith.mulf %38, %15 : vector<2x1x32xf32>
    %40 = vector.broadcast %2 : f32 to vector<1x1x32xf32>
    %41 = arith.mulf %40, %28 : vector<1x1x32xf32>
    %42 = vector.broadcast %41 : vector<1x1x32xf32> to vector<2x1x32xf32>
    %43 = arith.addf %39, %42 : vector<2x1x32xf32>
    %cst_20 = arith.constant 1.000000e+00 : f32
    %44 = arith.subf %cst_20, %2 : f32
    %45 = vector.broadcast %44 : f32 to vector<2x1x32xf32>
    %46 = arith.mulf %45, %22 : vector<2x1x32xf32>
    %47 = vector.broadcast %2 : f32 to vector<1x1x32xf32>
    %48 = arith.mulf %47, %36 : vector<1x1x32xf32>
    %49 = vector.broadcast %48 : vector<1x1x32xf32> to vector<2x1x32xf32>
    %50 = arith.addf %46, %49 : vector<2x1x32xf32>
    %cst_21 = arith.constant 9.99999974E-6 : f32
    %51 = vector.broadcast %cst_21 : f32 to vector<2x1x32xf32>
    %52 = arith.addf %50, %51 : vector<2x1x32xf32>
    %53 = math.rsqrt %52 : vector<2x1x32xf32>
    %54 = vector.broadcast %10 : vector<1x1x32xf32> to vector<2x1x32xf32>
    %55 = arith.mulf %54, %53 : vector<2x1x32xf32>
    %56 = arith.mulf %43, %55 : vector<2x1x32xf32>
    %57 = vector.broadcast %11 : vector<1x1x32xf32> to vector<2x1x32xf32>
    %58 = arith.subf %57, %56 : vector<2x1x32xf32>
    %59 = vector.broadcast %55 : vector<2x1x32xf32> to vector<2x256x32xf32>
    %60 = arith.mulf %7, %59 : vector<2x256x32xf32>
    %61 = vector.broadcast %58 : vector<2x1x32xf32> to vector<2x256x32xf32>
    %62 = arith.addf %60, %61 : vector<2x256x32xf32>
    %cst_22 = arith.constant 0.000000e+00 : f32
    %63 = vector.broadcast %cst_22 : f32 to vector<2x256x32xf32>
    %64 = arith.maximumf %62, %63 : vector<2x256x32xf32>
    %cst_23 = arith.constant 0.000000e+00 : bf16
    %65 = vector.broadcast %cst_23 : bf16 to vector<2x1x18x32xbf16>
    %c0_24 = arith.constant 0 : index
    %c0_25 = arith.constant 0 : index
    %c0_26 = arith.constant 0 : index
    %c0_27 = arith.constant 0 : index
    %66 = vector.load %arg12[%c0_24, %c0_25, %c0_26, %c0_27] : memref<2x18x18x32xbf16, #tpu.memory_space<vmem>>, vector<2x1x18x32xbf16>
    tpu.vector_store %arg12[%c0_24, %c0_25, %c0_26, %c0_27], %65 {strides = array<i32>} : memref<2x18x18x32xbf16, #tpu.memory_space<vmem>>, vector<2x1x18x32xbf16>,
    %c0_28 = arith.constant 0 : index
    %c17 = arith.constant 17 : index
    %c0_29 = arith.constant 0 : index
    %c0_30 = arith.constant 0 : index
    %67 = vector.load %arg12[%c0_28, %c17, %c0_29, %c0_30] : memref<2x18x18x32xbf16, #tpu.memory_space<vmem>>, vector<2x1x18x32xbf16>
    tpu.vector_store %arg12[%c0_28, %c17, %c0_29, %c0_30], %65 {strides = array<i32>} : memref<2x18x18x32xbf16, #tpu.memory_space<vmem>>, vector<2x1x18x32xbf16>,
    %cst_31 = arith.constant 0.000000e+00 : bf16
    %68 = vector.broadcast %cst_31 : bf16 to vector<2x16x1x32xbf16>
    %c0_32 = arith.constant 0 : index
    %c1 = arith.constant 1 : index
    %c0_33 = arith.constant 0 : index
    %c0_34 = arith.constant 0 : index
    %69 = vector.load %arg12[%c0_32, %c1, %c0_33, %c0_34] : memref<2x18x18x32xbf16, #tpu.memory_space<vmem>>, vector<2x16x1x32xbf16>
    tpu.vector_store %arg12[%c0_32, %c1, %c0_33, %c0_34], %68 {strides = array<i32>} : memref<2x18x18x32xbf16, #tpu.memory_space<vmem>>, vector<2x16x1x32xbf16>,
    %c0_35 = arith.constant 0 : index
    %c1_36 = arith.constant 1 : index
    %c17_37 = arith.constant 17 : index
    %c0_38 = arith.constant 0 : index
    %70 = vector.load %arg12[%c0_35, %c1_36, %c17_37, %c0_38] : memref<2x18x18x32xbf16, #tpu.memory_space<vmem>>, vector<2x16x1x32xbf16>
    tpu.vector_store %arg12[%c0_35, %c1_36, %c17_37, %c0_38], %68 {strides = array<i32>} : memref<2x18x18x32xbf16, #tpu.memory_space<vmem>>, vector<2x16x1x32xbf16>,
    %71 = vector.shape_cast %64 : vector<2x256x32xf32> to vector<2x16x16x32xf32>
    %72 = arith.truncf %71 : vector<2x16x16x32xf32> to vector<2x16x16x32xbf16>
    %c0_39 = arith.constant 0 : index
    %c1_40 = arith.constant 1 : index
    %c1_41 = arith.constant 1 : index
    %c0_42 = arith.constant 0 : index
    %73 = vector.load %arg12[%c0_39, %c1_40, %c1_41, %c0_42] : memref<2x18x18x32xbf16, #tpu.memory_space<vmem>>, vector<2x16x16x32xbf16>
    tpu.vector_store %arg12[%c0_39, %c1_40, %c1_41, %c0_42], %72 {strides = array<i32>} : memref<2x18x18x32xbf16, #tpu.memory_space<vmem>>, vector<2x16x16x32xbf16>,
    %c0_43 = arith.constant 0 : index
    %c0_44 = arith.constant 0 : index
    %c0_45 = arith.constant 0 : index
    %c0_46 = arith.constant 0 : index
    %74 = vector.load %arg12[%c0_43, %c0_44, %c0_45, %c0_46] : memref<2x18x18x32xbf16, #tpu.memory_space<vmem>>, vector<2x16x16x32xbf16>
    %75 = vector.shape_cast %74 : vector<2x16x16x32xbf16> to vector<512x32xbf16>
    %c0_47 = arith.constant 0 : index
    %c0_48 = arith.constant 0 : index
    %c0_49 = arith.constant 0 : index
    %76 = vector.load %arg5[%c0_47, %c0_48, %c0_49] : memref<9x32x32xbf16, #tpu.memory_space<vmem>>, vector<1x32x32xbf16>
    %77 = vector.shape_cast %76 : vector<1x32x32xbf16> to vector<32x32xbf16>
    %cst_50 = arith.constant dense<0.000000e+00> : vector<512x32xf32>
    %78 = tpu.matmul %75, %77, %cst_50 {dimension_numbers = #tpu.dot_dimension_numbers<[1], [0], [0], [1], [0, 0, 1, 1], [], []>} : vector<512x32xbf16>, vector<32x32xbf16>, vector<512x32xf32> -> vector<512x32xf32>
    %c0_51 = arith.constant 0 : index
    %c0_52 = arith.constant 0 : index
    %c1_53 = arith.constant 1 : index
    %c0_54 = arith.constant 0 : index
    %79 = vector.load %arg12[%c0_51, %c0_52, %c1_53, %c0_54] : memref<2x18x18x32xbf16, #tpu.memory_space<vmem>>, vector<2x16x16x32xbf16>
    %80 = vector.shape_cast %79 : vector<2x16x16x32xbf16> to vector<512x32xbf16>
    %c1_55 = arith.constant 1 : index
    %c0_56 = arith.constant 0 : index
    %c0_57 = arith.constant 0 : index
    %81 = vector.load %arg5[%c1_55, %c0_56, %c0_57] : memref<9x32x32xbf16, #tpu.memory_space<vmem>>, vector<1x32x32xbf16>
    %82 = vector.shape_cast %81 : vector<1x32x32xbf16> to vector<32x32xbf16>
    %cst_58 = arith.constant dense<0.000000e+00> : vector<512x32xf32>
    %83 = tpu.matmul %80, %82, %cst_58 {dimension_numbers = #tpu.dot_dimension_numbers<[1], [0], [0], [1], [0, 0, 1, 1], [], []>} : vector<512x32xbf16>, vector<32x32xbf16>, vector<512x32xf32> -> vector<512x32xf32>
    %84 = arith.addf %78, %83 : vector<512x32xf32>
    %c0_59 = arith.constant 0 : index
    %c0_60 = arith.constant 0 : index
    %c2 = arith.constant 2 : index
    %c0_61 = arith.constant 0 : index
    %85 = vector.load %arg12[%c0_59, %c0_60, %c2, %c0_61] : memref<2x18x18x32xbf16, #tpu.memory_space<vmem>>, vector<2x16x16x32xbf16>
    %86 = vector.shape_cast %85 : vector<2x16x16x32xbf16> to vector<512x32xbf16>
    %c2_62 = arith.constant 2 : index
    %c0_63 = arith.constant 0 : index
    %c0_64 = arith.constant 0 : index
    %87 = vector.load %arg5[%c2_62, %c0_63, %c0_64] : memref<9x32x32xbf16, #tpu.memory_space<vmem>>, vector<1x32x32xbf16>
    %88 = vector.shape_cast %87 : vector<1x32x32xbf16> to vector<32x32xbf16>
    %cst_65 = arith.constant dense<0.000000e+00> : vector<512x32xf32>
    %89 = tpu.matmul %86, %88, %cst_65 {dimension_numbers = #tpu.dot_dimension_numbers<[1], [0], [0], [1], [0, 0, 1, 1], [], []>} : vector<512x32xbf16>, vector<32x32xbf16>, vector<512x32xf32> -> vector<512x32xf32>
    %90 = arith.addf %84, %89 : vector<512x32xf32>
    %c0_66 = arith.constant 0 : index
    %c1_67 = arith.constant 1 : index
    %c0_68 = arith.constant 0 : index
    %c0_69 = arith.constant 0 : index
    %91 = vector.load %arg12[%c0_66, %c1_67, %c0_68, %c0_69] : memref<2x18x18x32xbf16, #tpu.memory_space<vmem>>, vector<2x16x16x32xbf16>
    %92 = vector.shape_cast %91 : vector<2x16x16x32xbf16> to vector<512x32xbf16>
    %c3 = arith.constant 3 : index
    %c0_70 = arith.constant 0 : index
    %c0_71 = arith.constant 0 : index
    %93 = vector.load %arg5[%c3, %c0_70, %c0_71] : memref<9x32x32xbf16, #tpu.memory_space<vmem>>, vector<1x32x32xbf16>
    %94 = vector.shape_cast %93 : vector<1x32x32xbf16> to vector<32x32xbf16>
    %cst_72 = arith.constant dense<0.000000e+00> : vector<512x32xf32>
    %95 = tpu.matmul %92, %94, %cst_72 {dimension_numbers = #tpu.dot_dimension_numbers<[1], [0], [0], [1], [0, 0, 1, 1], [], []>} : vector<512x32xbf16>, vector<32x32xbf16>, vector<512x32xf32> -> vector<512x32xf32>
    %96 = arith.addf %90, %95 : vector<512x32xf32>
    %c0_73 = arith.constant 0 : index
    %c1_74 = arith.constant 1 : index
    %c1_75 = arith.constant 1 : index
    %c0_76 = arith.constant 0 : index
    %97 = vector.load %arg12[%c0_73, %c1_74, %c1_75, %c0_76] : memref<2x18x18x32xbf16, #tpu.memory_space<vmem>>, vector<2x16x16x32xbf16>
    %98 = vector.shape_cast %97 : vector<2x16x16x32xbf16> to vector<512x32xbf16>
    %c4 = arith.constant 4 : index
    %c0_77 = arith.constant 0 : index
    %c0_78 = arith.constant 0 : index
    %99 = vector.load %arg5[%c4, %c0_77, %c0_78] : memref<9x32x32xbf16, #tpu.memory_space<vmem>>, vector<1x32x32xbf16>
    %100 = vector.shape_cast %99 : vector<1x32x32xbf16> to vector<32x32xbf16>
    %cst_79 = arith.constant dense<0.000000e+00> : vector<512x32xf32>
    %101 = tpu.matmul %98, %100, %cst_79 {dimension_numbers = #tpu.dot_dimension_numbers<[1], [0], [0], [1], [0, 0, 1, 1], [], []>} : vector<512x32xbf16>, vector<32x32xbf16>, vector<512x32xf32> -> vector<512x32xf32>
    %102 = arith.addf %96, %101 : vector<512x32xf32>
    %c0_80 = arith.constant 0 : index
    %c1_81 = arith.constant 1 : index
    %c2_82 = arith.constant 2 : index
    %c0_83 = arith.constant 0 : index
    %103 = vector.load %arg12[%c0_80, %c1_81, %c2_82, %c0_83] : memref<2x18x18x32xbf16, #tpu.memory_space<vmem>>, vector<2x16x16x32xbf16>
    %104 = vector.shape_cast %103 : vector<2x16x16x32xbf16> to vector<512x32xbf16>
    %c5 = arith.constant 5 : index
    %c0_84 = arith.constant 0 : index
    %c0_85 = arith.constant 0 : index
    %105 = vector.load %arg5[%c5, %c0_84, %c0_85] : memref<9x32x32xbf16, #tpu.memory_space<vmem>>, vector<1x32x32xbf16>
    %106 = vector.shape_cast %105 : vector<1x32x32xbf16> to vector<32x32xbf16>
    %cst_86 = arith.constant dense<0.000000e+00> : vector<512x32xf32>
    %107 = tpu.matmul %104, %106, %cst_86 {dimension_numbers = #tpu.dot_dimension_numbers<[1], [0], [0], [1], [0, 0, 1, 1], [], []>} : vector<512x32xbf16>, vector<32x32xbf16>, vector<512x32xf32> -> vector<512x32xf32>
    %108 = arith.addf %102, %107 : vector<512x32xf32>
    %c0_87 = arith.constant 0 : index
    %c2_88 = arith.constant 2 : index
    %c0_89 = arith.constant 0 : index
    %c0_90 = arith.constant 0 : index
    %109 = vector.load %arg12[%c0_87, %c2_88, %c0_89, %c0_90] : memref<2x18x18x32xbf16, #tpu.memory_space<vmem>>, vector<2x16x16x32xbf16>
    %110 = vector.shape_cast %109 : vector<2x16x16x32xbf16> to vector<512x32xbf16>
    %c6 = arith.constant 6 : index
    %c0_91 = arith.constant 0 : index
    %c0_92 = arith.constant 0 : index
    %111 = vector.load %arg5[%c6, %c0_91, %c0_92] : memref<9x32x32xbf16, #tpu.memory_space<vmem>>, vector<1x32x32xbf16>
    %112 = vector.shape_cast %111 : vector<1x32x32xbf16> to vector<32x32xbf16>
    %cst_93 = arith.constant dense<0.000000e+00> : vector<512x32xf32>
    %113 = tpu.matmul %110, %112, %cst_93 {dimension_numbers = #tpu.dot_dimension_numbers<[1], [0], [0], [1], [0, 0, 1, 1], [], []>} : vector<512x32xbf16>, vector<32x32xbf16>, vector<512x32xf32> -> vector<512x32xf32>
    %114 = arith.addf %108, %113 : vector<512x32xf32>
    %c0_94 = arith.constant 0 : index
    %c2_95 = arith.constant 2 : index
    %c1_96 = arith.constant 1 : index
    %c0_97 = arith.constant 0 : index
    %115 = vector.load %arg12[%c0_94, %c2_95, %c1_96, %c0_97] : memref<2x18x18x32xbf16, #tpu.memory_space<vmem>>, vector<2x16x16x32xbf16>
    %116 = vector.shape_cast %115 : vector<2x16x16x32xbf16> to vector<512x32xbf16>
    %c7 = arith.constant 7 : index
    %c0_98 = arith.constant 0 : index
    %c0_99 = arith.constant 0 : index
    %117 = vector.load %arg5[%c7, %c0_98, %c0_99] : memref<9x32x32xbf16, #tpu.memory_space<vmem>>, vector<1x32x32xbf16>
    %118 = vector.shape_cast %117 : vector<1x32x32xbf16> to vector<32x32xbf16>
    %cst_100 = arith.constant dense<0.000000e+00> : vector<512x32xf32>
    %119 = tpu.matmul %116, %118, %cst_100 {dimension_numbers = #tpu.dot_dimension_numbers<[1], [0], [0], [1], [0, 0, 1, 1], [], []>} : vector<512x32xbf16>, vector<32x32xbf16>, vector<512x32xf32> -> vector<512x32xf32>
    %120 = arith.addf %114, %119 : vector<512x32xf32>
    %c0_101 = arith.constant 0 : index
    %c2_102 = arith.constant 2 : index
    %c2_103 = arith.constant 2 : index
    %c0_104 = arith.constant 0 : index
    %121 = vector.load %arg12[%c0_101, %c2_102, %c2_103, %c0_104] : memref<2x18x18x32xbf16, #tpu.memory_space<vmem>>, vector<2x16x16x32xbf16>
    %122 = vector.shape_cast %121 : vector<2x16x16x32xbf16> to vector<512x32xbf16>
    %c8 = arith.constant 8 : index
    %c0_105 = arith.constant 0 : index
    %c0_106 = arith.constant 0 : index
    %123 = vector.load %arg5[%c8, %c0_105, %c0_106] : memref<9x32x32xbf16, #tpu.memory_space<vmem>>, vector<1x32x32xbf16>
    %124 = vector.shape_cast %123 : vector<1x32x32xbf16> to vector<32x32xbf16>
    %cst_107 = arith.constant dense<0.000000e+00> : vector<512x32xf32>
    %125 = tpu.matmul %122, %124, %cst_107 {dimension_numbers = #tpu.dot_dimension_numbers<[1], [0], [0], [1], [0, 0, 1, 1], [], []>} : vector<512x32xbf16>, vector<32x32xbf16>, vector<512x32xf32> -> vector<512x32xf32>
    %126 = arith.addf %120, %125 : vector<512x32xf32>
    %127 = vector.shape_cast %126 : vector<512x32xf32> to vector<2x256x32xf32>
    %c0_108 = arith.constant 0 : index
    %c0_109 = arith.constant 0 : index
    %128 = vector.load %arg6[%c0_108, %c0_109] : memref<1x32xf32, #tpu.memory_space<vmem>>, vector<1x32xf32>
    %c0_110 = arith.constant 0 : index
    %c0_111 = arith.constant 0 : index
    %129 = vector.load %arg7[%c0_110, %c0_111] : memref<1x32xf32, #tpu.memory_space<vmem>>, vector<1x32xf32>
    %130 = vector.shape_cast %128 : vector<1x32xf32> to vector<1x1x32xf32>
    %131 = vector.shape_cast %129 : vector<1x32xf32> to vector<1x1x32xf32>
    %cst_112 = arith.constant dense<0.000000e+00> : vector<2x32xf32>
    %132 = vector.multi_reduction <add>, %127, %cst_112 [1] : vector<2x256x32xf32> to vector<2x32xf32>
    %133 = vector.shape_cast %132 : vector<2x32xf32> to vector<2x1x32xf32>
    %cst_113 = arith.constant 2.560000e+02 : f32
    %134 = vector.broadcast %cst_113 : f32 to vector<2x1x32xf32>
    %135 = arith.divf %133, %134 : vector<2x1x32xf32>
    %136 = vector.broadcast %135 : vector<2x1x32xf32> to vector<2x256x32xf32>
    %137 = arith.subf %127, %136 : vector<2x256x32xf32>
    %138 = arith.mulf %137, %137 : vector<2x256x32xf32>
    %cst_114 = arith.constant dense<0.000000e+00> : vector<2x32xf32>
    %139 = vector.multi_reduction <add>, %138, %cst_114 [1] : vector<2x256x32xf32> to vector<2x32xf32>
    %140 = vector.shape_cast %139 : vector<2x32xf32> to vector<2x1x32xf32>
    %cst_115 = arith.constant 0.00392156886 : f32
    %141 = vector.broadcast %cst_115 : f32 to vector<2x1x32xf32>
    %142 = arith.mulf %140, %141 : vector<2x1x32xf32>
    %143 = arith.mulf %135, %135 : vector<2x1x32xf32>
    %144 = arith.addf %142, %143 : vector<2x1x32xf32>
    %cst_116 = arith.constant dense<0.000000e+00> : vector<1x32xf32>
    %145 = vector.multi_reduction <add>, %135, %cst_116 [0] : vector<2x1x32xf32> to vector<1x32xf32>
    %146 = vector.shape_cast %145 : vector<1x32xf32> to vector<1x1x32xf32>
    %cst_117 = arith.constant 2.000000e+00 : f32
    %147 = vector.broadcast %cst_117 : f32 to vector<1x1x32xf32>
    %148 = arith.divf %146, %147 : vector<1x1x32xf32>
    %cst_118 = arith.constant dense<0.000000e+00> : vector<1x32xf32>
    %149 = vector.multi_reduction <add>, %144, %cst_118 [0] : vector<2x1x32xf32> to vector<1x32xf32>
    %150 = vector.shape_cast %149 : vector<1x32xf32> to vector<1x1x32xf32>
    %cst_119 = arith.constant 2.000000e+00 : f32
    %151 = vector.broadcast %cst_119 : f32 to vector<1x1x32xf32>
    %152 = arith.divf %150, %151 : vector<1x1x32xf32>
    %153 = arith.mulf %148, %148 : vector<1x1x32xf32>
    %154 = arith.subf %152, %153 : vector<1x1x32xf32>
    %cst_120 = arith.constant 0.000000e+00 : f32
    %155 = vector.broadcast %cst_120 : f32 to vector<1x1x32xf32>
    %156 = arith.maximumf %154, %155 : vector<1x1x32xf32>
    %cst_121 = arith.constant 1.000000e+00 : f32
    %157 = arith.subf %cst_121, %2 : f32
    %158 = vector.broadcast %157 : f32 to vector<2x1x32xf32>
    %159 = arith.mulf %158, %135 : vector<2x1x32xf32>
    %160 = vector.broadcast %2 : f32 to vector<1x1x32xf32>
    %161 = arith.mulf %160, %148 : vector<1x1x32xf32>
    %162 = vector.broadcast %161 : vector<1x1x32xf32> to vector<2x1x32xf32>
    %163 = arith.addf %159, %162 : vector<2x1x32xf32>
    %cst_122 = arith.constant 1.000000e+00 : f32
    %164 = arith.subf %cst_122, %2 : f32
    %165 = vector.broadcast %164 : f32 to vector<2x1x32xf32>
    %166 = arith.mulf %165, %142 : vector<2x1x32xf32>
    %167 = vector.broadcast %2 : f32 to vector<1x1x32xf32>
    %168 = arith.mulf %167, %156 : vector<1x1x32xf32>
    %169 = vector.broadcast %168 : vector<1x1x32xf32> to vector<2x1x32xf32>
    %170 = arith.addf %166, %169 : vector<2x1x32xf32>
    %cst_123 = arith.constant 9.99999974E-6 : f32
    %171 = vector.broadcast %cst_123 : f32 to vector<2x1x32xf32>
    %172 = arith.addf %170, %171 : vector<2x1x32xf32>
    %173 = math.rsqrt %172 : vector<2x1x32xf32>
    %174 = vector.broadcast %130 : vector<1x1x32xf32> to vector<2x1x32xf32>
    %175 = arith.mulf %174, %173 : vector<2x1x32xf32>
    %176 = arith.mulf %163, %175 : vector<2x1x32xf32>
    %177 = vector.broadcast %131 : vector<1x1x32xf32> to vector<2x1x32xf32>
    %178 = arith.subf %177, %176 : vector<2x1x32xf32>
    %179 = vector.broadcast %175 : vector<2x1x32xf32> to vector<2x256x32xf32>
    %180 = arith.mulf %127, %179 : vector<2x256x32xf32>
    %181 = vector.broadcast %178 : vector<2x1x32xf32> to vector<2x256x32xf32>
    %182 = arith.addf %180, %181 : vector<2x256x32xf32>
    %cst_124 = arith.constant 0.000000e+00 : f32
    %183 = vector.broadcast %cst_124 : f32 to vector<2x256x32xf32>
    %184 = arith.maximumf %182, %183 : vector<2x256x32xf32>
    %185 = vector.shape_cast %184 : vector<2x256x32xf32> to vector<512x32xf32>
    %186 = arith.truncf %185 : vector<512x32xf32> to vector<512x32xbf16>
    %c0_125 = arith.constant 0 : index
    %c0_126 = arith.constant 0 : index
    %187 = vector.load %arg8[%c0_125, %c0_126] : memref<32x128xbf16, #tpu.memory_space<vmem>>, vector<32x128xbf16>
    %cst_127 = arith.constant dense<0.000000e+00> : vector<512x128xf32>
    %188 = tpu.matmul %186, %187, %cst_127 {dimension_numbers = #tpu.dot_dimension_numbers<[1], [0], [0], [1], [0, 0, 1, 1], [], []>} : vector<512x32xbf16>, vector<32x128xbf16>, vector<512x128xf32> -> vector<512x128xf32>
    %189 = vector.shape_cast %188 : vector<512x128xf32> to vector<2x256x128xf32>
    %c0_128 = arith.constant 0 : index
    %c0_129 = arith.constant 0 : index
    %190 = vector.load %arg9[%c0_128, %c0_129] : memref<1x128xf32, #tpu.memory_space<vmem>>, vector<1x128xf32>
    %c0_130 = arith.constant 0 : index
    %c0_131 = arith.constant 0 : index
    %191 = vector.load %arg10[%c0_130, %c0_131] : memref<1x128xf32, #tpu.memory_space<vmem>>, vector<1x128xf32>
    %192 = vector.shape_cast %190 : vector<1x128xf32> to vector<1x1x128xf32>
    %193 = vector.shape_cast %191 : vector<1x128xf32> to vector<1x1x128xf32>
    %cst_132 = arith.constant dense<0.000000e+00> : vector<2x128xf32>
    %194 = vector.multi_reduction <add>, %189, %cst_132 [1] : vector<2x256x128xf32> to vector<2x128xf32>
    %195 = vector.shape_cast %194 : vector<2x128xf32> to vector<2x1x128xf32>
    %cst_133 = arith.constant 2.560000e+02 : f32
    %196 = vector.broadcast %cst_133 : f32 to vector<2x1x128xf32>
    %197 = arith.divf %195, %196 : vector<2x1x128xf32>
    %198 = vector.broadcast %197 : vector<2x1x128xf32> to vector<2x256x128xf32>
    %199 = arith.subf %189, %198 : vector<2x256x128xf32>
    %200 = arith.mulf %199, %199 : vector<2x256x128xf32>
    %cst_134 = arith.constant dense<0.000000e+00> : vector<2x128xf32>
    %201 = vector.multi_reduction <add>, %200, %cst_134 [1] : vector<2x256x128xf32> to vector<2x128xf32>
    %202 = vector.shape_cast %201 : vector<2x128xf32> to vector<2x1x128xf32>
    %cst_135 = arith.constant 0.00392156886 : f32
    %203 = vector.broadcast %cst_135 : f32 to vector<2x1x128xf32>
    %204 = arith.mulf %202, %203 : vector<2x1x128xf32>
    %205 = arith.mulf %197, %197 : vector<2x1x128xf32>
    %206 = arith.addf %204, %205 : vector<2x1x128xf32>
    %cst_136 = arith.constant dense<0.000000e+00> : vector<1x128xf32>
    %207 = vector.multi_reduction <add>, %197, %cst_136 [0] : vector<2x1x128xf32> to vector<1x128xf32>
    %208 = vector.shape_cast %207 : vector<1x128xf32> to vector<1x1x128xf32>
    %cst_137 = arith.constant 2.000000e+00 : f32
    %209 = vector.broadcast %cst_137 : f32 to vector<1x1x128xf32>
    %210 = arith.divf %208, %209 : vector<1x1x128xf32>
    %cst_138 = arith.constant dense<0.000000e+00> : vector<1x128xf32>
    %211 = vector.multi_reduction <add>, %206, %cst_138 [0] : vector<2x1x128xf32> to vector<1x128xf32>
    %212 = vector.shape_cast %211 : vector<1x128xf32> to vector<1x1x128xf32>
    %cst_139 = arith.constant 2.000000e+00 : f32
    %213 = vector.broadcast %cst_139 : f32 to vector<1x1x128xf32>
    %214 = arith.divf %212, %213 : vector<1x1x128xf32>
    %215 = arith.mulf %210, %210 : vector<1x1x128xf32>
    %216 = arith.subf %214, %215 : vector<1x1x128xf32>
    %cst_140 = arith.constant 0.000000e+00 : f32
    %217 = vector.broadcast %cst_140 : f32 to vector<1x1x128xf32>
    %218 = arith.maximumf %216, %217 : vector<1x1x128xf32>
    %cst_141 = arith.constant 1.000000e+00 : f32
    %219 = arith.subf %cst_141, %2 : f32
    %220 = vector.broadcast %219 : f32 to vector<2x1x128xf32>
    %221 = arith.mulf %220, %197 : vector<2x1x128xf32>
    %222 = vector.broadcast %2 : f32 to vector<1x1x128xf32>
    %223 = arith.mulf %222, %210 : vector<1x1x128xf32>
    %224 = vector.broadcast %223 : vector<1x1x128xf32> to vector<2x1x128xf32>
    %225 = arith.addf %221, %224 : vector<2x1x128xf32>
    %cst_142 = arith.constant 1.000000e+00 : f32
    %226 = arith.subf %cst_142, %2 : f32
    %227 = vector.broadcast %226 : f32 to vector<2x1x128xf32>
    %228 = arith.mulf %227, %204 : vector<2x1x128xf32>
    %229 = vector.broadcast %2 : f32 to vector<1x1x128xf32>
    %230 = arith.mulf %229, %218 : vector<1x1x128xf32>
    %231 = vector.broadcast %230 : vector<1x1x128xf32> to vector<2x1x128xf32>
    %232 = arith.addf %228, %231 : vector<2x1x128xf32>
    %cst_143 = arith.constant 9.99999974E-6 : f32
    %233 = vector.broadcast %cst_143 : f32 to vector<2x1x128xf32>
    %234 = arith.addf %232, %233 : vector<2x1x128xf32>
    %235 = math.rsqrt %234 : vector<2x1x128xf32>
    %236 = vector.broadcast %192 : vector<1x1x128xf32> to vector<2x1x128xf32>
    %237 = arith.mulf %236, %235 : vector<2x1x128xf32>
    %238 = arith.mulf %225, %237 : vector<2x1x128xf32>
    %239 = vector.broadcast %193 : vector<1x1x128xf32> to vector<2x1x128xf32>
    %240 = arith.subf %239, %238 : vector<2x1x128xf32>
    %241 = vector.broadcast %237 : vector<2x1x128xf32> to vector<2x256x128xf32>
    %242 = arith.mulf %189, %241 : vector<2x256x128xf32>
    %243 = vector.broadcast %240 : vector<2x1x128xf32> to vector<2x256x128xf32>
    %244 = arith.addf %242, %243 : vector<2x256x128xf32>
    %245 = vector.shape_cast %244 : vector<2x256x128xf32> to vector<512x128xf32>
    %246 = arith.addf %245, %3 : vector<512x128xf32>
    %cst_144 = arith.constant 0.000000e+00 : f32
    %247 = vector.broadcast %cst_144 : f32 to vector<512x128xf32>
    %248 = arith.maximumf %246, %247 : vector<512x128xf32>
    %c0_145 = arith.constant 0 : index
    %c0_146 = arith.constant 0 : index
    %249 = vector.load %arg11[%c0_145, %c0_146] : memref<512x128xf32, #tpu.memory_space<vmem>>, vector<512x128xf32>
    tpu.vector_store %arg11[%c0_145, %c0_146], %248 {strides = array<i32>} : memref<512x128xf32, #tpu.memory_space<vmem>>, vector<512x128xf32>,
    return
  }
}

</mosaic_0001>

<llo_original>
// kernel: tpu_custom_call.1
$region0: #{tpu_custom_call.1}
  #allocation0 [shape = 'u32[]', space=smem, size = 0x4, offset = 0x4, fixed_abs, tag = 'smem constant byte address 0x4 - core index']
  #allocation1 [shape = 'u32[144,128]{1,0:T(1,128)}', space=vmem, size = 0x12000, scoped, tag = 'internal scratch']
  #allocation2 [shape = 'bf16[2,18,18,32]{3,2,1,0:T(8,128)(2,1)}', space=vmem, size = 0x36000, scoped, tag = 'scratch operand']
  #allocation3 [shape = 'f32[1]{0:T(128)S(6)}', space=smem, size = 0x200, scoped, tag = 'scoped memory for tpu_custom_call.1']
  %s0 = inlined_call_operand.<no memory space> [shape: f32[1], index: 0, kind: input, shape index: {}]
  %s1 = inlined_call_operand.hbm [shape: f32[512,128], index: 1, kind: input, shape index: {}]
  %s2 = inlined_call_operand.vmem [shape: bf16[128,32], index: 2, kind: input, shape index: {}]
  %s3 = inlined_call_operand.vmem [shape: f32[1,32], index: 3, kind: input, shape index: {}]
  %s4 = inlined_call_operand.vmem [shape: f32[1,32], index: 4, kind: input, shape index: {}]
  %s5 = inlined_call_operand.hbm [shape: bf16[9,32,32], index: 5, kind: input, shape index: {}]
  %s6 = inlined_call_operand.vmem [shape: f32[1,32], index: 6, kind: input, shape index: {}]
  %s7 = inlined_call_operand.vmem [shape: f32[1,32], index: 7, kind: input, shape index: {}]
  %s8 = inlined_call_operand.vmem [shape: bf16[32,128], index: 8, kind: input, shape index: {}]
  %s9 = inlined_call_operand.vmem [shape: f32[1,128], index: 9, kind: input, shape index: {}]
  %s10 = inlined_call_operand.vmem [shape: f32[1,128], index: 10, kind: input, shape index: {}]
  %s11 = inlined_call_operand.hbm [shape: f32[512,128], index: 11, kind: output, shape index: {}]
  %s12 = sld [smem:[#allocation0]]
  $region62: #{tpu_custom_call.1} parent=0
    _
  %s14 = ssub.s32 1, %s12
  %s15 = scalar_select 0, %s14, %s12
  %16 = sst [smem:[#allocation3]] %s0
  $region1: #{tpu_custom_call.1} parent=0
    #allocation4 [shape = 'u8[262144]{0}', space=vmem, size = 0x40000, scoped, tag = 'input window, operand 1, single buffered']
    #allocation5 [shape = 's32[1]{0}', space=sflag, size = 0x4, scoped, tag = 'scoped memory for tpu_custom_call.1']
    #allocation6 [shape = 's32[1]{0}', space=sflag, size = 0x4, scoped, tag = 'scoped memory for tpu_custom_call.1']
    #allocation7 [shape = 'u8[73728]{0}', space=vmem, size = 0x12000, scoped, tag = 'input window, operand 5, single buffered']
    #allocation8 [shape = 's32[1]{0}', space=sflag, size = 0x4, scoped, tag = 'scoped memory for tpu_custom_call.1']
    #allocation9 [shape = 'u8[262144]{0}', space=vmem, size = 0x40000, scoped, tag = 'output window, operand 0, single buffered']
    %17 = vsyncpa [#allocation5], 0
    %18 = vsyncpa [#allocation8], 0
    %19 = vsyncpa [#allocation6], 0
    // Predicated region
    $region2: #{tpu_custom_call.1} parent=1 // pred_check
      _
    $region3: #{tpu_custom_call.1} parent=1 // pred_check_branch
      %21 = sbr.rel (0) target = $region5
    $region4: #{tpu_custom_call.1} parent=1 // pred_region
      _
    $region5: #{tpu_custom_call.1} parent=1 // pred_fallthru
      _
    // Predicated region
    $region6: #{tpu_custom_call.1} parent=1 // pred_check
      _
    $region7: #{tpu_custom_call.1} parent=1 // pred_check_branch
      %23 = sbr.rel (0) target = $region9
    $region8: #{tpu_custom_call.1} parent=1 // pred_region
      %s25 = ssub.s32 8192, 8192
      %26 = vsyncadd [#allocation5], %s25
      %s27 = sshll.u32 [#allocation4], 4
      %s28 = int_to_ptr.vmem [resolvable:$true] %s27
      %33 = dma.hbm_to_vmem [thread:$0]  %s1, 8192, %s28, [#allocation5], 128, 128, 8
    $region9: #{tpu_custom_call.1} parent=1 // pred_fallthru
      _
    // Predicated region
    $region10: #{tpu_custom_call.1} parent=1 // pred_check
      _
    $region11: #{tpu_custom_call.1} parent=1 // pred_check_branch
      %35 = sbr.rel (0) target = $region13
    $region12: #{tpu_custom_call.1} parent=1 // pred_region
      _
    $region13: #{tpu_custom_call.1} parent=1 // pred_fallthru
      _
    // Predicated region
    $region14: #{tpu_custom_call.1} parent=1 // pred_check
      _
    $region15: #{tpu_custom_call.1} parent=1 // pred_check_branch
      %37 = sbr.rel (0) target = $region17
    $region16: #{tpu_custom_call.1} parent=1 // pred_region
      _
    $region17: #{tpu_custom_call.1} parent=1 // pred_fallthru
      _
    // Predicated region
    $region18: #{tpu_custom_call.1} parent=1 // pred_check
      _
    $region19: #{tpu_custom_call.1} parent=1 // pred_check_branch
      %39 = sbr.rel (0) target = $region21
    $region20: #{tpu_custom_call.1} parent=1 // pred_region
      _
    $region21: #{tpu_custom_call.1} parent=1 // pred_fallthru
      _
    // Predicated region
    $region22: #{tpu_custom_call.1} parent=1 // pred_check
      _
    $region23: #{tpu_custom_call.1} parent=1 // pred_check_branch
      %41 = sbr.rel (0) target = $region25
    $region24: #{tpu_custom_call.1} parent=1 // pred_region
      %s43 = ssub.s32 2304, 2304
      %44 = vsyncadd [#allocation8], %s43
      %s45 = sshll.u32 [#allocation7], 4
      %s46 = int_to_ptr.vmem [resolvable:$true] %s45
      %51 = dma.hbm_to_vmem [thread:$0]  %s5, 2304, %s46, [#allocation8], 64, 64, 4
    $region25: #{tpu_custom_call.1} parent=1 // pred_fallthru
      _
    // Predicated region
    $region26: #{tpu_custom_call.1} parent=1 // pred_check
      _
    $region27: #{tpu_custom_call.1} parent=1 // pred_check_branch
      %53 = sbr.rel (0) target = $region29
    $region28: #{tpu_custom_call.1} parent=1 // pred_region
      _
    $region29: #{tpu_custom_call.1} parent=1 // pred_fallthru
      _
    // Predicated region
    $region30: #{tpu_custom_call.1} parent=1 // pred_check
      _
    $region31: #{tpu_custom_call.1} parent=1 // pred_check_branch
      %55 = sbr.rel (0) target = $region33
    $region32: #{tpu_custom_call.1} parent=1 // pred_region
      _
    $region33: #{tpu_custom_call.1} parent=1 // pred_fallthru
      _
    // Predicated region
    $region34: #{tpu_custom_call.1} parent=1 // pred_check
      _
    $region35: #{tpu_custom_call.1} parent=1 // pred_check_branch
      %57 = sbr.rel (0) target = $region37
    $region36: #{tpu_custom_call.1} parent=1 // pred_region
      _
    $region37: #{tpu_custom_call.1} parent=1 // pred_fallthru
      _
    // Predicated region
    $region38: #{tpu_custom_call.1} parent=1 // pred_check
      _
    $region39: #{tpu_custom_call.1} parent=1 // pred_check_branch
      %59 = sbr.rel (0) target = $region41
    $region40: #{tpu_custom_call.1} parent=1 // pred_region
      _
    $region41: #{tpu_custom_call.1} parent=1 // pred_fallthru
      _
    // Predicated region
    $region42: #{tpu_custom_call.1} parent=1 // pred_check
      _
    $region43: #{tpu_custom_call.1} parent=1 // pred_check_branch
      %61 = sbr.rel (0) target = $region45
    $region44: #{tpu_custom_call.1} parent=1 // pred_region
      _
    $region45: #{tpu_custom_call.1} parent=1 // pred_fallthru
      _
    // Predicated region
    $region46: #{tpu_custom_call.1} parent=1 // pred_check
      _
    $region47: #{tpu_custom_call.1} parent=1 // pred_check_branch
      %63 = sbr.rel (0) target = $region49
    $region48: #{tpu_custom_call.1} parent=1 // pred_region
      %64 = dma.done [#allocation5], 8192
    $region49: #{tpu_custom_call.1} parent=1 // pred_fallthru
      _
    // Predicated region
    $region50: #{tpu_custom_call.1} parent=1 // pred_check
      _
    $region51: #{tpu_custom_call.1} parent=1 // pred_check_branch
      %66 = sbr.rel (0) target = $region53
    $region52: #{tpu_custom_call.1} parent=1 // pred_region
      %67 = dma.done [#allocation8], 2304
    $region53: #{tpu_custom_call.1} parent=1 // pred_fallthru
      _
    %s69 = sld [smem:[#allocation3]]
    %s70 = smax.f32 %s69, 0.0
    %s71 = smin.f32 %s70, 1.0
    %v72 = vld [vmem:[#allocation4] sm:$0xff]
    %v73 = vld [vmem:[#allocation4 + $0x8] sm:$0xff]
    %v74 = vld [vmem:[#allocation4 + $0x10] sm:$0xff]
    %v75 = vld [vmem:[#allocation4 + $0x18] sm:$0xff]
    %v76 = vld [vmem:[#allocation4 + $0x20] sm:$0xff]
    %v77 = vld [vmem:[#allocation4 + $0x28] sm:$0xff]
    %v78 = vld [vmem:[#allocation4 + $0x30] sm:$0xff]
    %v79 = vld [vmem:[#allocation4 + $0x38] sm:$0xff]
    %v80 = vld [vmem:[#allocation4 + $0x40] sm:$0xff]
    %v81 = vld [vmem:[#allocation4 + $0x48] sm:$0xff]
    %v82 = vld [vmem:[#allocation4 + $0x50] sm:$0xff]
    %v83 = vld [vmem:[#allocation4 + $0x58] sm:$0xff]
    %v84 = vld [vmem:[#allocation4 + $0x60] sm:$0xff]
    %v85 = vld [vmem:[#allocation4 + $0x68] sm:$0xff]
    %v86 = vld [vmem:[#allocation4 + $0x70] sm:$0xff]
    %v87 = vld [vmem:[#allocation4 + $0x78] sm:$0xff]
    %v88 = vld [vmem:[#allocation4 + $0x80] sm:$0xff]
    %v89 = vld [vmem:[#allocation4 + $0x88] sm:$0xff]
    %v90 = vld [vmem:[#allocation4 + $0x90] sm:$0xff]
    %v91 = vld [vmem:[#allocation4 + $0x98] sm:$0xff]
    %v92 = vld [vmem:[#allocation4 + $0xa0] sm:$0xff]
    %v93 = vld [vmem:[#allocation4 + $0xa8] sm:$0xff]
    %v94 = vld [vmem:[#allocation4 + $0xb0] sm:$0xff]
    %v95 = vld [vmem:[#allocation4 + $0xb8] sm:$0xff]
    %v96 = vld [vmem:[#allocation4 + $0xc0] sm:$0xff]
    %v97 = vld [vmem:[#allocation4 + $0xc8] sm:$0xff]
    %v98 = vld [vmem:[#allocation4 + $0xd0] sm:$0xff]
    %v99 = vld [vmem:[#allocation4 + $0xd8] sm:$0xff]
    %v100 = vld [vmem:[#allocation4 + $0xe0] sm:$0xff]
    %v101 = vld [vmem:[#allocation4 + $0xe8] sm:$0xff]
    %v102 = vld [vmem:[#allocation4 + $0xf0] sm:$0xff]
    %v103 = vld [vmem:[#allocation4 + $0xf8] sm:$0xff]
    %v104 = vld [vmem:[#allocation4 + $0x100] sm:$0xff]
    %v105 = vld [vmem:[#allocation4 + $0x108] sm:$0xff]
    %v106 = vld [vmem:[#allocation4 + $0x110] sm:$0xff]
    %v107 = vld [vmem:[#allocation4 + $0x118] sm:$0xff]
    %v108 = vld [vmem:[#allocation4 + $0x120] sm:$0xff]
    %v109 = vld [vmem:[#allocation4 + $0x128] sm:$0xff]
    %v110 = vld [vmem:[#allocation4 + $0x130] sm:$0xff]
    %v111 = vld [vmem:[#allocation4 + $0x138] sm:$0xff]
    %v112 = vld [vmem:[#allocation4 + $0x140] sm:$0xff]
    %v113 = vld [vmem:[#allocation4 + $0x148] sm:$0xff]
    %v114 = vld [vmem:[#allocation4 + $0x150] sm:$0xff]
    %v115 = vld [vmem:[#allocation4 + $0x158] sm:$0xff]
    %v116 = vld [vmem:[#allocation4 + $0x160] sm:$0xff]
    %v117 = vld [vmem:[#allocation4 + $0x168] sm:$0xff]
    %v118 = vld [vmem:[#allocation4 + $0x170] sm:$0xff]
    %v119 = vld [vmem:[#allocation4 + $0x178] sm:$0xff]
    %v120 = vld [vmem:[#allocation4 + $0x180] sm:$0xff]
    %v121 = vld [vmem:[#allocation4 + $0x188] sm:$0xff]
    %v122 = vld [vmem:[#allocation4 + $0x190] sm:$0xff]
    %v123 = vld [vmem:[#allocation4 + $0x198] sm:$0xff]
    %v124 = vld [vmem:[#allocation4 + $0x1a0] sm:$0xff]
    %v125 = vld [vmem:[#allocation4 + $0x1a8] sm:$0xff]
    %v126 = vld [vmem:[#allocation4 + $0x1b0] sm:$0xff]
    %v127 = vld [vmem:[#allocation4 + $0x1b8] sm:$0xff]
    %v128 = vld [vmem:[#allocation4 + $0x1c0] sm:$0xff]
    %v129 = vld [vmem:[#allocation4 + $0x1c8] sm:$0xff]
    %v130 = vld [vmem:[#allocation4 + $0x1d0] sm:$0xff]
    %v131 = vld [vmem:[#allocation4 + $0x1d8] sm:$0xff]
    %v132 = vld [vmem:[#allocation4 + $0x1e0] sm:$0xff]
    %v133 = vld [vmem:[#allocation4 + $0x1e8] sm:$0xff]
    %v134 = vld [vmem:[#allocation4 + $0x1f0] sm:$0xff]
    %v135 = vld [vmem:[#allocation4 + $0x1f8] sm:$0xff]
    %v136 = vpack.c.bf16 %v73, %v72
    %v137 = vpack.c.bf16 %v75, %v74
    %v138 = vpack.c.bf16 %v77, %v76
    %v139 = vpack.c.bf16 %v79, %v78
    %v140 = vpack.c.bf16 %v81, %v80
    %v141 = vpack.c.bf16 %v83, %v82
    %v142 = vpack.c.bf16 %v85, %v84
    %v143 = vpack.c.bf16 %v87, %v86
    %v144 = vpack.c.bf16 %v89, %v88
    %v145 = vpack.c.bf16 %v91, %v90
    %v146 = vpack.c.bf16 %v93, %v92
    %v147 = vpack.c.bf16 %v95, %v94
    %v148 = vpack.c.bf16 %v97, %v96
    %v149 = vpack.c.bf16 %v99, %v98
    %v150 = vpack.c.bf16 %v101, %v100
    %v151 = vpack.c.bf16 %v103, %v102
    %v152 = vpack.c.bf16 %v105, %v104
    %v153 = vpack.c.bf16 %v107, %v106
    %v154 = vpack.c.bf16 %v109, %v108
    %v155 = vpack.c.bf16 %v111, %v110
    %v156 = vpack.c.bf16 %v113, %v112
    %v157 = vpack.c.bf16 %v115, %v114
    %v158 = vpack.c.bf16 %v117, %v116
    %v159 = vpack.c.bf16 %v119, %v118
    %v160 = vpack.c.bf16 %v121, %v120
    %v161 = vpack.c.bf16 %v123, %v122
    %v162 = vpack.c.bf16 %v125, %v124
    %v163 = vpack.c.bf16 %v127, %v126
    %v164 = vpack.c.bf16 %v129, %v128
    %v165 = vpack.c.bf16 %v131, %v130
    %v166 = vpack.c.bf16 %v133, %v132
    %v167 = vpack.c.bf16 %v135, %v134
    %v168 = vld [vmem:[%s2] sm:$0xf]
    %v169 = vld [vmem:[%s2 + $0x4] sm:$0xf]
    %v170 = vld [vmem:[%s2 + $0x8] sm:$0xf]
    %v171 = vld [vmem:[%s2 + $0xc] sm:$0xf]
    %v172 = vld [vmem:[%s2 + $0x10] sm:$0xf]
    %v173 = vld [vmem:[%s2 + $0x14] sm:$0xf]
    %v174 = vld [vmem:[%s2 + $0x18] sm:$0xf]
    %v175 = vld [vmem:[%s2 + $0x1c] sm:$0xf]
    %v176 = vld [vmem:[%s2 + $0x20] sm:$0xf]
    %v177 = vld [vmem:[%s2 + $0x24] sm:$0xf]
    %v178 = vld [vmem:[%s2 + $0x28] sm:$0xf]
    %v179 = vld [vmem:[%s2 + $0x2c] sm:$0xf]
    %v180 = vld [vmem:[%s2 + $0x30] sm:$0xf]
    %v181 = vld [vmem:[%s2 + $0x34] sm:$0xf]
    %v182 = vld [vmem:[%s2 + $0x38] sm:$0xf]
    %v183 = vld [vmem:[%s2 + $0x3c] sm:$0xf]
    %v200 = vunpack.c.l.b16 %v168
    %v201 = vunpack.c.l.b16 %v169
    %v202 = vunpack.c.l.b16 %v170
    %v203 = vunpack.c.l.b16 %v171
    %v204 = vunpack.c.l.b16 %v172
    %v205 = vunpack.c.l.b16 %v173
    %v206 = vunpack.c.l.b16 %v174
    %v207 = vunpack.c.l.b16 %v175
    %v208 = vunpack.c.l.b16 %v176
    %v209 = vunpack.c.l.b16 %v177
    %v210 = vunpack.c.l.b16 %v178
    %v211 = vunpack.c.l.b16 %v179
    %v212 = vunpack.c.l.b16 %v180
    %v213 = vunpack.c.l.b16 %v181
    %v214 = vunpack.c.l.b16 %v182
    %v215 = vunpack.c.l.b16 %v183
    %v216 = vpack.c.b16 %v201, %v200
    %v217 = vpack.c.b16 %v203, %v202
    %v218 = vpack.c.b16 %v205, %v204
    %v219 = vpack.c.b16 %v207, %v206
    %v220 = vpack.c.b16 %v209, %v208
    %v221 = vpack.c.b16 %v211, %v210
    %v222 = vpack.c.b16 %v213, %v212
    %v223 = vpack.c.b16 %v215, %v214
    %232 = vmatprep.subr.bf16.mxu0 0
    %233 = vmatpush1.bf16.msra.mxu0 %v216
    %234 = vmatprep.subr.bf16.mxu0 0
    %235 = vmatpush1.bf16.msra.mxu0 %v217
    %236 = vmatprep.subr.bf16.mxu0 0
    %237 = vmatpush1.bf16.msra.mxu0 %v218
    %238 = vmatprep.subr.bf16.mxu0 0
    %239 = vmatpush1.bf16.msra.mxu0 %v219
    %240 = vmatprep.subr.bf16.mxu0 0
    %241 = vmatpush1.bf16.msra.mxu0 %v220
    %242 = vmatprep.subr.bf16.mxu0 0
    %243 = vmatpush1.bf16.msra.mxu0 %v221
    %244 = vmatprep.subr.bf16.mxu0 0
    %245 = vmatpush1.bf16.msra.mxu0 %v222
    %246 = vmatprep.subr.bf16.mxu0 0
    %247 = vmatpush1.bf16.msra.mxu0 %v223
    %248 = vmatprep.subr.bf16.mxu0 0
    %249 = vmatpush1.bf16.msra.mxu0 0
    %250 = vmatprep.subr.bf16.mxu0 0
    %251 = vmatpush1.bf16.msra.mxu0 0
    %252 = vmatprep.subr.bf16.mxu0 0
    %253 = vmatpush1.bf16.msra.mxu0 0
    %254 = vmatprep.subr.bf16.mxu0 0
    %255 = vmatpush1.bf16.msra.mxu0 0
    %256 = vmatprep.subr.bf16.mxu0 0
    %257 = vmatpush1.bf16.msra.mxu0 0
    %258 = vmatprep.subr.bf16.mxu0 0
    %259 = vmatpush1.bf16.msra.mxu0 0
    %260 = vmatprep.subr.bf16.mxu0 0
    %261 = vmatpush1.bf16.msra.mxu0 0
    %262 = vmatprep.subr.bf16.mxu0 0
    %263 = vmatpush1.bf16.msra.mxu0 0
    %264 = vmatprep.mubr.bf16.mxu0 0
    %265 = vmatmul.mubr.bf16.gmra.mrb[0].mxu0 %v136
    %v266 = vpop.f32.mrb[0].mxu0
    %v267 = vadd.f32 0.0, %v266
    %v268 = vpop.f32.mrb[0].mxu0
    %v269 = vpop.f32.mrb[0].mxu0
    %v270 = vadd.f32 0.0, %v269
    %v271 = vpop.f32.mrb[0].mxu0
    %272 = vmatprep.mubr.bf16.mxu0 0
    %273 = vmatmul.mubr.bf16.gmra.mrb[0].mxu0 %v137
    %v274 = vpop.f32.mrb[0].mxu0
    %v275 = vadd.f32 0.0, %v274
    %v276 = vpop.f32.mrb[0].mxu0
    %v277 = vpop.f32.mrb[0].mxu0
    %v278 = vadd.f32 0.0, %v277
    %v279 = vpop.f32.mrb[0].mxu0
    %280 = vmatprep.mubr.bf16.mxu0 0
    %281 = vmatmul.mubr.bf16.gmra.mrb[0].mxu0 %v138
    %v282 = vpop.f32.mrb[0].mxu0
    %v283 = vadd.f32 0.0, %v282
    %v284 = vpop.f32.mrb[0].mxu0
    %v285 = vpop.f32.mrb[0].mxu0
    %v286 = vadd.f32 0.0, %v285
    %v287 = vpop.f32.mrb[0].mxu0
    %288 = vmatprep.mubr.bf16.mxu0 0
    %289 = vmatmul.mubr.bf16.gmra.mrb[0].mxu0 %v139
    %v290 = vpop.f32.mrb[0].mxu0
    %v291 = vadd.f32 0.0, %v290
    %v292 = vpop.f32.mrb[0].mxu0
    %v293 = vpop.f32.mrb[0].mxu0
    %v294 = vadd.f32 0.0, %v293
    %v295 = vpop.f32.mrb[0].mxu0
    %296 = vmatprep.mubr.bf16.mxu0 0
    %297 = vmatmul.mubr.bf16.gmra.mrb[0].mxu0 %v140
    %v298 = vpop.f32.mrb[0].mxu0
    %v299 = vadd.f32 0.0, %v298
    %v300 = vpop.f32.mrb[0].mxu0
    %v301 = vpop.f32.mrb[0].mxu0
    %v302 = vadd.f32 0.0, %v301
    %v303 = vpop.f32.mrb[0].mxu0
    %304 = vmatprep.mubr.bf16.mxu0 0
    %305 = vmatmul.mubr.bf16.gmra.mrb[0].mxu0 %v141
    %v306 = vpop.f32.mrb[0].mxu0
    %v307 = vadd.f32 0.0, %v306
    %v308 = vpop.f32.mrb[0].mxu0
    %v309 = vpop.f32.mrb[0].mxu0
    %v310 = vadd.f32 0.0, %v309
    %v311 = vpop.f32.mrb[0].mxu0
    %312 = vmatprep.mubr.bf16.mxu0 0
    %313 = vmatmul.mubr.bf16.gmra.mrb[0].mxu0 %v142
    %v314 = vpop.f32.mrb[0].mxu0
    %v315 = vadd.f32 0.0, %v314
    %v316 = vpop.f32.mrb[0].mxu0
    %v317 = vpop.f32.mrb[0].mxu0
    %v318 = vadd.f32 0.0, %v317
    %v319 = vpop.f32.mrb[0].mxu0
    %320 = vmatprep.mubr.bf16.mxu0 0
    %321 = vmatmul.mubr.bf16.gmra.mrb[0].mxu0 %v143
    %v322 = vpop.f32.mrb[0].mxu0
    %v323 = vadd.f32 0.0, %v322
    %v324 = vpop.f32.mrb[0].mxu0
    %v325 = vpop.f32.mrb[0].mxu0
    %v326 = vadd.f32 0.0, %v325
    %v327 = vpop.f32.mrb[0].mxu0
    %328 = vmatprep.mubr.bf16.mxu0 0
    %329 = vmatmul.mubr.bf16.gmra.mrb[0].mxu0 %v144
    %v330 = vpop.f32.mrb[0].mxu0
    %v331 = vadd.f32 0.0, %v330
    %v332 = vpop.f32.mrb[0].mxu0
    %v333 = vpop.f32.mrb[0].mxu0
    %v334 = vadd.f32 0.0, %v333
    %v335 = vpop.f32.mrb[0].mxu0
    %336 = vmatprep.mubr.bf16.mxu0 0
    %337 = vmatmul.mubr.bf16.gmra.mrb[0].mxu0 %v145
    %v338 = vpop.f32.mrb[0].mxu0
    %v339 = vadd.f32 0.0, %v338
    %v340 = vpop.f32.mrb[0].mxu0
    %v341 = vpop.f32.mrb[0].mxu0
    %v342 = vadd.f32 0.0, %v341
    %v343 = vpop.f32.mrb[0].mxu0
    %344 = vmatprep.mubr.bf16.mxu0 0
    %345 = vmatmul.mubr.bf16.gmra.mrb[0].mxu0 %v146
    %v346 = vpop.f32.mrb[0].mxu0
    %v347 = vadd.f32 0.0, %v346
    %v348 = vpop.f32.mrb[0].mxu0
    %v349 = vpop.f32.mrb[0].mxu0
    %v350 = vadd.f32 0.0, %v349
    %v351 = vpop.f32.mrb[0].mxu0
    %352 = vmatprep.mubr.bf16.mxu0 0
    %353 = vmatmul.mubr.bf16.gmra.mrb[0].mxu0 %v147
    %v354 = vpop.f32.mrb[0].mxu0
    %v355 = vadd.f32 0.0, %v354
    %v356 = vpop.f32.mrb[0].mxu0
    %v357 = vpop.f32.mrb[0].mxu0
    %v358 = vadd.f32 0.0, %v357
    %v359 = vpop.f32.mrb[0].mxu0
    %360 = vmatprep.mubr.bf16.mxu0 0
    %361 = vmatmul.mubr.bf16.gmra.mrb[0].mxu0 %v148
    %v362 = vpop.f32.mrb[0].mxu0
    %v363 = vadd.f32 0.0, %v362
    %v364 = vpop.f32.mrb[0].mxu0
    %v365 = vpop.f32.mrb[0].mxu0
    %v366 = vadd.f32 0.0, %v365
    %v367 = vpop.f32.mrb[0].mxu0
    %368 = vmatprep.mubr.bf16.mxu0 0
    %369 = vmatmul.mubr.bf16.gmra.mrb[0].mxu0 %v149
    %v370 = vpop.f32.mrb[0].mxu0
    %v371 = vadd.f32 0.0, %v370
    %v372 = vpop.f32.mrb[0].mxu0
    %v373 = vpop.f32.mrb[0].mxu0
    %v374 = vadd.f32 0.0, %v373
    %v375 = vpop.f32.mrb[0].mxu0
    %376 = vmatprep.mubr.bf16.mxu0 0
    %377 = vmatmul.mubr.bf16.gmra.mrb[0].mxu0 %v150
    %v378 = vpop.f32.mrb[0].mxu0
    %v379 = vadd.f32 0.0, %v378
    %v380 = vpop.f32.mrb[0].mxu0
    %v381 = vpop.f32.mrb[0].mxu0
    %v382 = vadd.f32 0.0, %v381
    %v383 = vpop.f32.mrb[0].mxu0
    %384 = vmatprep.mubr.bf16.mxu0 0
    %385 = vmatmul.mubr.bf16.gmra.mrb[0].mxu0 %v151
    %v386 = vpop.f32.mrb[0].mxu0
    %v387 = vadd.f32 0.0, %v386
    %v388 = vpop.f32.mrb[0].mxu0
    %v389 = vpop.f32.mrb[0].mxu0
    %v390 = vadd.f32 0.0, %v389
    %v391 = vpop.f32.mrb[0].mxu0
    %392 = vmatprep.mubr.bf16.mxu0 0
    %393 = vmatmul.mubr.bf16.gmra.mrb[0].mxu0 %v152
    %v394 = vpop.f32.mrb[0].mxu0
    %v395 = vadd.f32 0.0, %v394
    %v396 = vpop.f32.mrb[0].mxu0
    %v397 = vpop.f32.mrb[0].mxu0
    %v398 = vadd.f32 0.0, %v397
    %v399 = vpop.f32.mrb[0].mxu0
    %400 = vmatprep.mubr.bf16.mxu0 0
    %401 = vmatmul.mubr.bf16.gmra.mrb[0].mxu0 %v153
    %v402 = vpop.f32.mrb[0].mxu0
    %v403 = vadd.f32 0.0, %v402
    %v404 = vpop.f32.mrb[0].mxu0
    %v405 = vpop.f32.mrb[0].mxu0
    %v406 = vadd.f32 0.0, %v405
    %v407 = vpop.f32.mrb[0].mxu0
    %408 = vmatprep.mubr.bf16.mxu0 0
    %409 = vmatmul.mubr.bf16.gmra.mrb[0].mxu0 %v154
    %v410 = vpop.f32.mrb[0].mxu0
    %v411 = vadd.f32 0.0, %v410
    %v412 = vpop.f32.mrb[0].mxu0
    %v413 = vpop.f32.mrb[0].mxu0
    %v414 = vadd.f32 0.0, %v413
    %v415 = vpop.f32.mrb[0].mxu0
    %416 = vmatprep.mubr.bf16.mxu0 0
    %417 = vmatmul.mubr.bf16.gmra.mrb[0].mxu0 %v155
    %v418 = vpop.f32.mrb[0].mxu0
    %v419 = vadd.f32 0.0, %v418
    %v420 = vpop.f32.mrb[0].mxu0
    %v421 = vpop.f32.mrb[0].mxu0
    %v422 = vadd.f32 0.0, %v421
    %v423 = vpop.f32.mrb[0].mxu0
    %424 = vmatprep.mubr.bf16.mxu0 0
    %425 = vmatmul.mubr.bf16.gmra.mrb[0].mxu0 %v156
    %v426 = vpop.f32.mrb[0].mxu0
    %v427 = vadd.f32 0.0, %v426
    %v428 = vpop.f32.mrb[0].mxu0
    %v429 = vpop.f32.mrb[0].mxu0
    %v430 = vadd.f32 0.0, %v429
    %v431 = vpop.f32.mrb[0].mxu0
    %432 = vmatprep.mubr.bf16.mxu0 0
    %433 = vmatmul.mubr.bf16.gmra.mrb[0].mxu0 %v157
    %v434 = vpop.f32.mrb[0].mxu0
    %v435 = vadd.f32 0.0, %v434
    %v436 = vpop.f32.mrb[0].mxu0
    %v437 = vpop.f32.mrb[0].mxu0
    %v438 = vadd.f32 0.0, %v437
    %v439 = vpop.f32.mrb[0].mxu0
    %440 = vmatprep.mubr.bf16.mxu0 0
    %441 = vmatmul.mubr.bf16.gmra.mrb[0].mxu0 %v158
    %v442 = vpop.f32.mrb[0].mxu0
    %v443 = vadd.f32 0.0, %v442
    %v444 = vpop.f32.mrb[0].mxu0
    %v445 = vpop.f32.mrb[0].mxu0
    %v446 = vadd.f32 0.0, %v445
    %v447 = vpop.f32.mrb[0].mxu0
    %448 = vmatprep.mubr.bf16.mxu0 0
    %449 = vmatmul.mubr.bf16.gmra.mrb[0].mxu0 %v159
    %v450 = vpop.f32.mrb[0].mxu0
    %v451 = vadd.f32 0.0, %v450
    %v452 = vpop.f32.mrb[0].mxu0
    %v453 = vpop.f32.mrb[0].mxu0
    %v454 = vadd.f32 0.0, %v453
    %v455 = vpop.f32.mrb[0].mxu0
    %456 = vmatprep.mubr.bf16.mxu0 0
    %457 = vmatmul.mubr.bf16.gmra.mrb[0].mxu0 %v160
    %v458 = vpop.f32.mrb[0].mxu0
    %v459 = vadd.f32 0.0, %v458
    %v460 = vpop.f32.mrb[0].mxu0
    %v461 = vpop.f32.mrb[0].mxu0
    %v462 = vadd.f32 0.0, %v461
    %v463 = vpop.f32.mrb[0].mxu0
    %464 = vmatprep.mubr.bf16.mxu0 0
    %465 = vmatmul.mubr.bf16.gmra.mrb[0].mxu0 %v161
    %v466 = vpop.f32.mrb[0].mxu0
    %v467 = vadd.f32 0.0, %v466
    %v468 = vpop.f32.mrb[0].mxu0
    %v469 = vpop.f32.mrb[0].mxu0
    %v470 = vadd.f32 0.0, %v469
    %v471 = vpop.f32.mrb[0].mxu0
    %472 = vmatprep.mubr.bf16.mxu0 0
    %473 = vmatmul.mubr.bf16.gmra.mrb[0].mxu0 %v162
    %v474 = vpop.f32.mrb[0].mxu0
    %v475 = vadd.f32 0.0, %v474
    %v476 = vpop.f32.mrb[0].mxu0
    %v477 = vpop.f32.mrb[0].mxu0
    %v478 = vadd.f32 0.0, %v477
    %v479 = vpop.f32.mrb[0].mxu0
    %480 = vmatprep.mubr.bf16.mxu0 0
    %481 = vmatmul.mubr.bf16.gmra.mrb[0].mxu0 %v163
    %v482 = vpop.f32.mrb[0].mxu0
    %v483 = vadd.f32 0.0, %v482
    %v484 = vpop.f32.mrb[0].mxu0
    %v485 = vpop.f32.mrb[0].mxu0
    %v486 = vadd.f32 0.0, %v485
    %v487 = vpop.f32.mrb[0].mxu0
    %488 = vmatprep.mubr.bf16.mxu0 0
    %489 = vmatmul.mubr.bf16.gmra.mrb[0].mxu0 %v164
    %v490 = vpop.f32.mrb[0].mxu0
    %v491 = vadd.f32 0.0, %v490
    %v492 = vpop.f32.mrb[0].mxu0
    %v493 = vpop.f32.mrb[0].mxu0
    %v494 = vadd.f32 0.0, %v493
    %v495 = vpop.f32.mrb[0].mxu0
    %496 = vmatprep.mubr.bf16.mxu0 0
    %497 = vmatmul.mubr.bf16.gmra.mrb[0].mxu0 %v165
    %v498 = vpop.f32.mrb[0].mxu0
    %v499 = vadd.f32 0.0, %v498
    %v500 = vpop.f32.mrb[0].mxu0
    %v501 = vpop.f32.mrb[0].mxu0
    %v502 = vadd.f32 0.0, %v501
    %v503 = vpop.f32.mrb[0].mxu0
    %504 = vmatprep.mubr.bf16.mxu0 0
    %505 = vmatmul.mubr.bf16.gmra.mrb[0].mxu0 %v166
    %v506 = vpop.f32.mrb[0].mxu0
    %v507 = vadd.f32 0.0, %v506
    %v508 = vpop.f32.mrb[0].mxu0
    %v509 = vpop.f32.mrb[0].mxu0
    %v510 = vadd.f32 0.0, %v509
    %v511 = vpop.f32.mrb[0].mxu0
    %512 = vmatprep.mubr.bf16.mxu0 0
    %513 = vmatmul.mubr.bf16.gmra.mrb[0].mxu0 %v167
    %v514 = vpop.f32.mrb[0].mxu0
    %v515 = vadd.f32 0.0, %v514
    %v516 = vpop.f32.mrb[0].mxu0
    %v517 = vpop.f32.mrb[0].mxu0
    %v518 = vadd.f32 0.0, %v517
    %v519 = vpop.f32.mrb[0].mxu0
    %520 = vdwg.mxu0
    %v521 = vld [vmem:[%s3] sm:$0x1]
    %v522 = vld [vmem:[%s4] sm:$0x1]
    %vm523 = vcmask 261120
    %v524 = vsel %vm523, %v267, 0.0
    %v525 = vsel %vm523, %v270, 0.0
    %v526 = vadd.f32 %v524, %v525
    %v527 = vsel %vm523, %v275, 0.0
    %v528 = vadd.f32 %v526, %v527
    %v529 = vsel %vm523, %v278, 0.0
    %v530 = vadd.f32 %v528, %v529
    %v531 = vsel %vm523, %v283, 0.0
    %v532 = vadd.f32 %v530, %v531
    %v533 = vsel %vm523, %v286, 0.0
    %v534 = vadd.f32 %v532, %v533
    %v535 = vsel %vm523, %v291, 0.0
    %v536 = vadd.f32 %v534, %v535
    %v537 = vsel %vm523, %v294, 0.0
    %v538 = vadd.f32 %v536, %v537
    %v539 = vsel %vm523, %v299, 0.0
    %v540 = vadd.f32 %v538, %v539
    %v541 = vsel %vm523, %v302, 0.0
    %v542 = vadd.f32 %v540, %v541
    %v543 = vsel %vm523, %v307, 0.0
    %v544 = vadd.f32 %v542, %v543
    %v545 = vsel %vm523, %v310, 0.0
    %v546 = vadd.f32 %v544, %v545
    %v547 = vsel %vm523, %v315, 0.0
    %v548 = vadd.f32 %v546, %v547
    %v549 = vsel %vm523, %v318, 0.0
    %v550 = vadd.f32 %v548, %v549
    %v551 = vsel %vm523, %v323, 0.0
    %v552 = vadd.f32 %v550, %v551
    %v553 = vsel %vm523, %v326, 0.0
    %v554 = vadd.f32 %v552, %v553
    %v555 = vsel %vm523, %v331, 0.0
    %v556 = vadd.f32 %v554, %v555
    %v557 = vsel %vm523, %v334, 0.0
    %v558 = vadd.f32 %v556, %v557
    %v559 = vsel %vm523, %v339, 0.0
    %v560 = vadd.f32 %v558, %v559
    %v561 = vsel %vm523, %v342, 0.0
    %v562 = vadd.f32 %v560, %v561
    %v563 = vsel %vm523, %v347, 0.0
    %v564 = vadd.f32 %v562, %v563
    %v565 = vsel %vm523, %v350, 0.0
    %v566 = vadd.f32 %v564, %v565
    %v567 = vsel %vm523, %v355, 0.0
    %v568 = vadd.f32 %v566, %v567
    %v569 = vsel %vm523, %v358, 0.0
    %v570 = vadd.f32 %v568, %v569
    %v571 = vsel %vm523, %v363, 0.0
    %v572 = vadd.f32 %v570, %v571
    %v573 = vsel %vm523, %v366, 0.0
    %v574 = vadd.f32 %v572, %v573
    %v575 = vsel %vm523, %v371, 0.0
    %v576 = vadd.f32 %v574, %v575
    %v577 = vsel %vm523, %v374, 0.0
    %v578 = vadd.f32 %v576, %v577
    %v579 = vsel %vm523, %v379, 0.0
    %v580 = vadd.f32 %v578, %v579
    %v581 = vsel %vm523, %v382, 0.0
    %v582 = vadd.f32 %v580, %v581
    %v583 = vsel %vm523, %v387, 0.0
    %v584 = vadd.f32 %v582, %v583
    %v585 = vsel %vm523, %v390, 0.0
    %v586 = vadd.f32 %v584, %v585
    %v587 = vrot.slane %v586, 4
    %v588 = vadd.f32 %v586, %v587
    %v589 = vrot.slane %v588, 2
    %v590 = vadd.f32 %v588, %v589
    %v591 = vrot.slane %v590, 1
    %v592 = vadd.f32 %v590, %v591
    %v593 = vsel %vm523, %v395, 0.0
    %v594 = vsel %vm523, %v398, 0.0
    %v595 = vadd.f32 %v593, %v594
    %v596 = vsel %vm523, %v403, 0.0
    %v597 = vadd.f32 %v595, %v596
    %v598 = vsel %vm523, %v406, 0.0
    %v599 = vadd.f32 %v597, %v598
    %v600 = vsel %vm523, %v411, 0.0
    %v601 = vadd.f32 %v599, %v600
    %v602 = vsel %vm523, %v414, 0.0
    %v603 = vadd.f32 %v601, %v602
    %v604 = vsel %vm523, %v419, 0.0
    %v605 = vadd.f32 %v603, %v604
    %v606 = vsel %vm523, %v422, 0.0
    %v607 = vadd.f32 %v605, %v606
    %v608 = vsel %vm523, %v427, 0.0
    %v609 = vadd.f32 %v607, %v608
    %v610 = vsel %vm523, %v430, 0.0
    %v611 = vadd.f32 %v609, %v610
    %v612 = vsel %vm523, %v435, 0.0
    %v613 = vadd.f32 %v611, %v612
    %v614 = vsel %vm523, %v438, 0.0
    %v615 = vadd.f32 %v613, %v614
    %v616 = vsel %vm523, %v443, 0.0
    %v617 = vadd.f32 %v615, %v616
    %v618 = vsel %vm523, %v446, 0.0
    %v619 = vadd.f32 %v617, %v618
    %v620 = vsel %vm523, %v451, 0.0
    %v621 = vadd.f32 %v619, %v620
    %v622 = vsel %vm523, %v454, 0.0
    %v623 = vadd.f32 %v621, %v622
    %v624 = vsel %vm523, %v459, 0.0
    %v625 = vadd.f32 %v623, %v624
    %v626 = vsel %vm523, %v462, 0.0
    %v627 = vadd.f32 %v625, %v626
    %v628 = vsel %vm523, %v467, 0.0
    %v629 = vadd.f32 %v627, %v628
    %v630 = vsel %vm523, %v470, 0.0
    %v631 = vadd.f32 %v629, %v630
    %v632 = vsel %vm523, %v475, 0.0
    %v633 = vadd.f32 %v631, %v632
    %v634 = vsel %vm523, %v478, 0.0
    %v635 = vadd.f32 %v633, %v634
    %v636 = vsel %vm523, %v483, 0.0
    %v637 = vadd.f32 %v635, %v636
    %v638 = vsel %vm523, %v486, 0.0
    %v639 = vadd.f32 %v637, %v638
    %v640 = vsel %vm523, %v491, 0.0
    %v641 = vadd.f32 %v639, %v640
    %v642 = vsel %vm523, %v494, 0.0
    %v643 = vadd.f32 %v641, %v642
    %v644 = vsel %vm523, %v499, 0.0
    %v645 = vadd.f32 %v643, %v644
    %v646 = vsel %vm523, %v502, 0.0
    %v647 = vadd.f32 %v645, %v646
    %v648 = vsel %vm523, %v507, 0.0
    %v649 = vadd.f32 %v647, %v648
    %v650 = vsel %vm523, %v510, 0.0
    %v651 = vadd.f32 %v649, %v650
    %v652 = vsel %vm523, %v515, 0.0
    %v653 = vadd.f32 %v651, %v652
    %v654 = vsel %vm523, %v518, 0.0
    %v655 = vadd.f32 %v653, %v654
    %v656 = vrot.slane %v655, 4
    %v657 = vadd.f32 %v655, %v656
    %v658 = vrot.slane %v657, 2
    %v659 = vadd.f32 %v657, %v658
    %v660 = vrot.slane %v659, 1
    %v661 = vadd.f32 %v659, %v660
    %v662 = vrcp.pop 256.0
    %v663 = vmul.f32 %v592, %v662
    %v664 = vmul.f32 %v661, %v662
    %v665 = vsub.f32 %v267, %v663
    %v666 = vsub.f32 %v270, %v663
    %v667 = vsub.f32 %v275, %v663
    %v668 = vsub.f32 %v278, %v663
    %v669 = vsub.f32 %v283, %v663
    %v670 = vsub.f32 %v286, %v663
    %v671 = vsub.f32 %v291, %v663
    %v672 = vsub.f32 %v294, %v663
    %v673 = vsub.f32 %v299, %v663
    %v674 = vsub.f32 %v302, %v663
    %v675 = vsub.f32 %v307, %v663
    %v676 = vsub.f32 %v310, %v663
    %v677 = vsub.f32 %v315, %v663
    %v678 = vsub.f32 %v318, %v663
    %v679 = vsub.f32 %v323, %v663
    %v680 = vsub.f32 %v326, %v663
    %v681 = vsub.f32 %v331, %v663
    %v682 = vsub.f32 %v334, %v663
    %v683 = vsub.f32 %v339, %v663
    %v684 = vsub.f32 %v342, %v663
    %v685 = vsub.f32 %v347, %v663
    %v686 = vsub.f32 %v350, %v663
    %v687 = vsub.f32 %v355, %v663
    %v688 = vsub.f32 %v358, %v663
    %v689 = vsub.f32 %v363, %v663
    %v690 = vsub.f32 %v366, %v663
    %v691 = vsub.f32 %v371, %v663
    %v692 = vsub.f32 %v374, %v663
    %v693 = vsub.f32 %v379, %v663
    %v694 = vsub.f32 %v382, %v663
    %v695 = vsub.f32 %v387, %v663
    %v696 = vsub.f32 %v390, %v663
    %v697 = vsub.f32 %v395, %v664
    %v698 = vsub.f32 %v398, %v664
    %v699 = vsub.f32 %v403, %v664
    %v700 = vsub.f32 %v406, %v664
    %v701 = vsub.f32 %v411, %v664
    %v702 = vsub.f32 %v414, %v664
    %v703 = vsub.f32 %v419, %v664
    %v704 = vsub.f32 %v422, %v664
    %v705 = vsub.f32 %v427, %v664
    %v706 = vsub.f32 %v430, %v664
    %v707 = vsub.f32 %v435, %v664
    %v708 = vsub.f32 %v438, %v664
    %v709 = vsub.f32 %v443, %v664
    %v710 = vsub.f32 %v446, %v664
    %v711 = vsub.f32 %v451, %v664
    %v712 = vsub.f32 %v454, %v664
    %v713 = vsub.f32 %v459, %v664
    %v714 = vsub.f32 %v462, %v664
    %v715 = vsub.f32 %v467, %v664
    %v716 = vsub.f32 %v470, %v664
    %v717 = vsub.f32 %v475, %v664
    %v718 = vsub.f32 %v478, %v664
    %v719 = vsub.f32 %v483, %v664
    %v720 = vsub.f32 %v486, %v664
    %v721 = vsub.f32 %v491, %v664
    %v722 = vsub.f32 %v494, %v664
    %v723 = vsub.f32 %v499, %v664
    %v724 = vsub.f32 %v502, %v664
    %v725 = vsub.f32 %v507, %v664
    %v726 = vsub.f32 %v510, %v664
    %v727 = vsub.f32 %v515, %v664
    %v728 = vsub.f32 %v518, %v664
    %v729 = vmul.f32 %v665, %v665
    %v730 = vmul.f32 %v666, %v666
    %v731 = vmul.f32 %v667, %v667
    %v732 = vmul.f32 %v668, %v668
    %v733 = vmul.f32 %v669, %v669
    %v734 = vmul.f32 %v670, %v670
    %v735 = vmul.f32 %v671, %v671
    %v736 = vmul.f32 %v672, %v672
    %v737 = vmul.f32 %v673, %v673
    %v738 = vmul.f32 %v674, %v674
    %v739 = vmul.f32 %v675, %v675
    %v740 = vmul.f32 %v676, %v676
    %v741 = vmul.f32 %v677, %v677
    %v742 = vmul.f32 %v678, %v678
    %v743 = vmul.f32 %v679, %v679
    %v744 = vmul.f32 %v680, %v680
    %v745 = vmul.f32 %v681, %v681
    %v746 = vmul.f32 %v682, %v682
    %v747 = vmul.f32 %v683, %v683
    %v748 = vmul.f32 %v684, %v684
    %v749 = vmul.f32 %v685, %v685
    %v750 = vmul.f32 %v686, %v686
    %v751 = vmul.f32 %v687, %v687
    %v752 = vmul.f32 %v688, %v688
    %v753 = vmul.f32 %v689, %v689
    %v754 = vmul.f32 %v690, %v690
    %v755 = vmul.f32 %v691, %v691
    %v756 = vmul.f32 %v692, %v692
    %v757 = vmul.f32 %v693, %v693
    %v758 = vmul.f32 %v694, %v694
    %v759 = vmul.f32 %v695, %v695
    %v760 = vmul.f32 %v696, %v696
    %v761 = vmul.f32 %v697, %v697
    %v762 = vmul.f32 %v698, %v698
    %v763 = vmul.f32 %v699, %v699
    %v764 = vmul.f32 %v700, %v700
    %v765 = vmul.f32 %v701, %v701
    %v766 = vmul.f32 %v702, %v702
    %v767 = vmul.f32 %v703, %v703
    %v768 = vmul.f32 %v704, %v704
    %v769 = vmul.f32 %v705, %v705
    %v770 = vmul.f32 %v706, %v706
    %v771 = vmul.f32 %v707, %v707
    %v772 = vmul.f32 %v708, %v708
    %v773 = vmul.f32 %v709, %v709
    %v774 = vmul.f32 %v710, %v710
    %v775 = vmul.f32 %v711, %v711
    %v776 = vmul.f32 %v712, %v712
    %v777 = vmul.f32 %v713, %v713
    %v778 = vmul.f32 %v714, %v714
    %v779 = vmul.f32 %v715, %v715
    %v780 = vmul.f32 %v716, %v716
    %v781 = vmul.f32 %v717, %v717
    %v782 = vmul.f32 %v718, %v718
    %v783 = vmul.f32 %v719, %v719
    %v784 = vmul.f32 %v720, %v720
    %v785 = vmul.f32 %v721, %v721
    %v786 = vmul.f32 %v722, %v722
    %v787 = vmul.f32 %v723, %v723
    %v788 = vmul.f32 %v724, %v724
    %v789 = vmul.f32 %v725, %v725
    %v790 = vmul.f32 %v726, %v726
    %v791 = vmul.f32 %v727, %v727
    %v792 = vmul.f32 %v728, %v728
    %v793 = vsel %vm523, %v729, 0.0
    %v794 = vsel %vm523, %v730, 0.0
    %v795 = vadd.f32 %v793, %v794
    %v796 = vsel %vm523, %v731, 0.0
    %v797 = vadd.f32 %v795, %v796
    %v798 = vsel %vm523, %v732, 0.0
    %v799 = vadd.f32 %v797, %v798
    %v800 = vsel %vm523, %v733, 0.0
    %v801 = vadd.f32 %v799, %v800
    %v802 = vsel %vm523, %v734, 0.0
    %v803 = vadd.f32 %v801, %v802
    %v804 = vsel %vm523, %v735, 0.0
    %v805 = vadd.f32 %v803, %v804
    %v806 = vsel %vm523, %v736, 0.0
    %v807 = vadd.f32 %v805, %v806
    %v808 = vsel %vm523, %v737, 0.0
    %v809 = vadd.f32 %v807, %v808
    %v810 = vsel %vm523, %v738, 0.0
    %v811 = vadd.f32 %v809, %v810
    %v812 = vsel %vm523, %v739, 0.0
    %v813 = vadd.f32 %v811, %v812
    %v814 = vsel %vm523, %v740, 0.0
    %v815 = vadd.f32 %v813, %v814
    %v816 = vsel %vm523, %v741, 0.0
    %v817 = vadd.f32 %v815, %v816
    %v818 = vsel %vm523, %v742, 0.0
    %v819 = vadd.f32 %v817, %v818
    %v820 = vsel %vm523, %v743, 0.0
    %v821 = vadd.f32 %v819, %v820
    %v822 = vsel %vm523, %v744, 0.0
    %v823 = vadd.f32 %v821, %v822
    %v824 = vsel %vm523, %v745, 0.0
    %v825 = vadd.f32 %v823, %v824
    %v826 = vsel %vm523, %v746, 0.0
    %v827 = vadd.f32 %v825, %v826
    %v828 = vsel %vm523, %v747, 0.0
    %v829 = vadd.f32 %v827, %v828
    %v830 = vsel %vm523, %v748, 0.0
    %v831 = vadd.f32 %v829, %v830
    %v832 = vsel %vm523, %v749, 0.0
    %v833 = vadd.f32 %v831, %v832
    %v834 = vsel %vm523, %v750, 0.0
    %v835 = vadd.f32 %v833, %v834
    %v836 = vsel %vm523, %v751, 0.0
    %v837 = vadd.f32 %v835, %v836
    %v838 = vsel %vm523, %v752, 0.0
    %v839 = vadd.f32 %v837, %v838
    %v840 = vsel %vm523, %v753, 0.0
    %v841 = vadd.f32 %v839, %v840
    %v842 = vsel %vm523, %v754, 0.0
    %v843 = vadd.f32 %v841, %v842
    %v844 = vsel %vm523, %v755, 0.0
    %v845 = vadd.f32 %v843, %v844
    %v846 = vsel %vm523, %v756, 0.0
    %v847 = vadd.f32 %v845, %v846
    %v848 = vsel %vm523, %v757, 0.0
    %v849 = vadd.f32 %v847, %v848
    %v850 = vsel %vm523, %v758, 0.0
    %v851 = vadd.f32 %v849, %v850
    %v852 = vsel %vm523, %v759, 0.0
    %v853 = vadd.f32 %v851, %v852
    %v854 = vsel %vm523, %v760, 0.0
    %v855 = vadd.f32 %v853, %v854
    %v856 = vrot.slane %v855, 4
    %v857 = vadd.f32 %v855, %v856
    %v858 = vrot.slane %v857, 2
    %v859 = vadd.f32 %v857, %v858
    %v860 = vrot.slane %v859, 1
    %v861 = vadd.f32 %v859, %v860
    %v862 = vsel %vm523, %v761, 0.0
    %v863 = vsel %vm523, %v762, 0.0
    %v864 = vadd.f32 %v862, %v863
    %v865 = vsel %vm523, %v763, 0.0
    %v866 = vadd.f32 %v864, %v865
    %v867 = vsel %vm523, %v764, 0.0
    %v868 = vadd.f32 %v866, %v867
    %v869 = vsel %vm523, %v765, 0.0
    %v870 = vadd.f32 %v868, %v869
    %v871 = vsel %vm523, %v766, 0.0
    %v872 = vadd.f32 %v870, %v871
    %v873 = vsel %vm523, %v767, 0.0
    %v874 = vadd.f32 %v872, %v873
    %v875 = vsel %vm523, %v768, 0.0
    %v876 = vadd.f32 %v874, %v875
    %v877 = vsel %vm523, %v769, 0.0
    %v878 = vadd.f32 %v876, %v877
    %v879 = vsel %vm523, %v770, 0.0
    %v880 = vadd.f32 %v878, %v879
    %v881 = vsel %vm523, %v771, 0.0
    %v882 = vadd.f32 %v880, %v881
    %v883 = vsel %vm523, %v772, 0.0
    %v884 = vadd.f32 %v882, %v883
    %v885 = vsel %vm523, %v773, 0.0
    %v886 = vadd.f32 %v884, %v885
    %v887 = vsel %vm523, %v774, 0.0
    %v888 = vadd.f32 %v886, %v887
    %v889 = vsel %vm523, %v775, 0.0
    %v890 = vadd.f32 %v888, %v889
    %v891 = vsel %vm523, %v776, 0.0
    %v892 = vadd.f32 %v890, %v891
    %v893 = vsel %vm523, %v777, 0.0
    %v894 = vadd.f32 %v892, %v893
    %v895 = vsel %vm523, %v778, 0.0
    %v896 = vadd.f32 %v894, %v895
    %v897 = vsel %vm523, %v779, 0.0
    %v898 = vadd.f32 %v896, %v897
    %v899 = vsel %vm523, %v780, 0.0
    %v900 = vadd.f32 %v898, %v899
    %v901 = vsel %vm523, %v781, 0.0
    %v902 = vadd.f32 %v900, %v901
    %v903 = vsel %vm523, %v782, 0.0
    %v904 = vadd.f32 %v902, %v903
    %v905 = vsel %vm523, %v783, 0.0
    %v906 = vadd.f32 %v904, %v905
    %v907 = vsel %vm523, %v784, 0.0
    %v908 = vadd.f32 %v906, %v907
    %v909 = vsel %vm523, %v785, 0.0
    %v910 = vadd.f32 %v908, %v909
    %v911 = vsel %vm523, %v786, 0.0
    %v912 = vadd.f32 %v910, %v911
    %v913 = vsel %vm523, %v787, 0.0
    %v914 = vadd.f32 %v912, %v913
    %v915 = vsel %vm523, %v788, 0.0
    %v916 = vadd.f32 %v914, %v915
    %v917 = vsel %vm523, %v789, 0.0
    %v918 = vadd.f32 %v916, %v917
    %v919 = vsel %vm523, %v790, 0.0
    %v920 = vadd.f32 %v918, %v919
    %v921 = vsel %vm523, %v791, 0.0
    %v922 = vadd.f32 %v920, %v921
    %v923 = vsel %vm523, %v792, 0.0
    %v924 = vadd.f32 %v922, %v923
    %v925 = vrot.slane %v924, 4
    %v926 = vadd.f32 %v924, %v925
    %v927 = vrot.slane %v926, 2
    %v928 = vadd.f32 %v926, %v927
    %v929 = vrot.slane %v928, 1
    %v930 = vadd.f32 %v928, %v929
    %v931 = vmul.f32 %v861, 0.003921569
    %v932 = vmul.f32 %v930, 0.003921569
    %v933 = vmul.f32 %v663, %v663
    %v934 = vmul.f32 %v664, %v664
    %v935 = vadd.f32 %v931, %v933
    %v936 = vadd.f32 %v932, %v934
    %v937 = vsel %vm523, %v663, 0.0
    %v938 = vsel %vm523, %v664, 0.0
    %v939 = vadd.f32 %v937, %v938
    %v940 = vrcp.pop 2.0
    %v941 = vmul.f32 %v939, %v940
    %v942 = vsel %vm523, %v935, 0.0
    %v943 = vsel %vm523, %v936, 0.0
    %v944 = vadd.f32 %v942, %v943
    %v945 = vmul.f32 %v944, %v940
    %v946 = vmul.f32 %v941, %v941
    %v947 = vsub.f32 %v945, %v946
    %v948 = vmax.f32 %v947, 0.0
    %s949 = ssub.f32 1.0, %s71
    %v950 = vstv %s949
    %v951 = vmul.f32 %v950, %v663
    %v952 = vmul.f32 %v950, %v664
    %v953 = vstv %s71
    %v954 = vmul.f32 %v953, %v941
    %v955 = vadd.f32 %v951, %v954
    %v956 = vadd.f32 %v952, %v954
    %v957 = vmul.f32 %v950, %v931
    %v958 = vmul.f32 %v950, %v932
    %v959 = vmul.f32 %v953, %v948
    %v960 = vadd.f32 %v957, %v959
    %v961 = vadd.f32 %v958, %v959
    %v962 = vadd.f32 %v960, 1e-05
    %v963 = vadd.f32 %v961, 1e-05
    %v964 = vrsqrt.pop %v962
    %v965 = vrsqrt.pop %v963
    %v966 = vmul.f32 %v521, %v964
    %v967 = vmul.f32 %v521, %v965
    %v968 = vmul.f32 %v955, %v966
    %v969 = vmul.f32 %v956, %v967
    %v970 = vsub.f32 %v522, %v968
    %v971 = vsub.f32 %v522, %v969
    %v974 = vlaneseq
    %v975 = vshrl.u32 %v974, 7
    %v976 = vsub.s32 0, %v975
    %v977 = vrot.slane %v966, %v976
    %v978 = vlaneseq
    %v979 = vshrl.u32 %v978, 7
    %v980 = vsub.s32 0, %v979
    %v981 = vrot.slane %v967, %v980
    %v984 = vmul.f32 %v267, %v977
    %v985 = vmul.f32 %v270, %v977
    %v986 = vmul.f32 %v275, %v977
    %v987 = vmul.f32 %v278, %v977
    %v988 = vmul.f32 %v283, %v977
    %v989 = vmul.f32 %v286, %v977
    %v990 = vmul.f32 %v291, %v977
    %v991 = vmul.f32 %v294, %v977
    %v992 = vmul.f32 %v299, %v977
    %v993 = vmul.f32 %v302, %v977
    %v994 = vmul.f32 %v307, %v977
    %v995 = vmul.f32 %v310, %v977
    %v996 = vmul.f32 %v315, %v977
    %v997 = vmul.f32 %v318, %v977
    %v998 = vmul.f32 %v323, %v977
    %v999 = vmul.f32 %v326, %v977
    %v1000 = vmul.f32 %v331, %v977
    %v1001 = vmul.f32 %v334, %v977
    %v1002 = vmul.f32 %v339, %v977
    %v1003 = vmul.f32 %v342, %v977
    %v1004 = vmul.f32 %v347, %v977
    %v1005 = vmul.f32 %v350, %v977
    %v1006 = vmul.f32 %v355, %v977
    %v1007 = vmul.f32 %v358, %v977
    %v1008 = vmul.f32 %v363, %v977
    %v1009 = vmul.f32 %v366, %v977
    %v1010 = vmul.f32 %v371, %v977
    %v1011 = vmul.f32 %v374, %v977
    %v1012 = vmul.f32 %v379, %v977
    %v1013 = vmul.f32 %v382, %v977
    %v1014 = vmul.f32 %v387, %v977
    %v1015 = vmul.f32 %v390, %v977
    %v1016 = vmul.f32 %v395, %v981
    %v1017 = vmul.f32 %v398, %v981
    %v1018 = vmul.f32 %v403, %v981
    %v1019 = vmul.f32 %v406, %v981
    %v1020 = vmul.f32 %v411, %v981
    %v1021 = vmul.f32 %v414, %v981
    %v1022 = vmul.f32 %v419, %v981
    %v1023 = vmul.f32 %v422, %v981
    %v1024 = vmul.f32 %v427, %v981
    %v1025 = vmul.f32 %v430, %v981
    %v1026 = vmul.f32 %v435, %v981
    %v1027 = vmul.f32 %v438, %v981
    %v1028 = vmul.f32 %v443, %v981
    %v1029 = vmul.f32 %v446, %v981
    %v1030 = vmul.f32 %v451, %v981
    %v1031 = vmul.f32 %v454, %v981
    %v1032 = vmul.f32 %v459, %v981
    %v1033 = vmul.f32 %v462, %v981
    %v1034 = vmul.f32 %v467, %v981
    %v1035 = vmul.f32 %v470, %v981
    %v1036 = vmul.f32 %v475, %v981
    %v1037 = vmul.f32 %v478, %v981
    %v1038 = vmul.f32 %v483, %v981
    %v1039 = vmul.f32 %v486, %v981
    %v1040 = vmul.f32 %v491, %v981
    %v1041 = vmul.f32 %v494, %v981
    %v1042 = vmul.f32 %v499, %v981
    %v1043 = vmul.f32 %v502, %v981
    %v1044 = vmul.f32 %v507, %v981
    %v1045 = vmul.f32 %v510, %v981
    %v1046 = vmul.f32 %v515, %v981
    %v1047 = vmul.f32 %v518, %v981
    %v1050 = vlaneseq
    %v1051 = vshrl.u32 %v1050, 7
    %v1052 = vsub.s32 0, %v1051
    %v1053 = vrot.slane %v970, %v1052
    %v1054 = vlaneseq
    %v1055 = vshrl.u32 %v1054, 7
    %v1056 = vsub.s32 0, %v1055
    %v1057 = vrot.slane %v971, %v1056
    %v1060 = vadd.f32 %v984, %v1053
    %v1061 = vadd.f32 %v985, %v1053
    %v1062 = vadd.f32 %v986, %v1053
    %v1063 = vadd.f32 %v987, %v1053
    %v1064 = vadd.f32 %v988, %v1053
    %v1065 = vadd.f32 %v989, %v1053
    %v1066 = vadd.f32 %v990, %v1053
    %v1067 = vadd.f32 %v991, %v1053
    %v1068 = vadd.f32 %v992, %v1053
    %v1069 = vadd.f32 %v993, %v1053
    %v1070 = vadd.f32 %v994, %v1053
    %v1071 = vadd.f32 %v995, %v1053
    %v1072 = vadd.f32 %v996, %v1053
    %v1073 = vadd.f32 %v997, %v1053
    %v1074 = vadd.f32 %v998, %v1053
    %v1075 = vadd.f32 %v999, %v1053
    %v1076 = vadd.f32 %v1000, %v1053
    %v1077 = vadd.f32 %v1001, %v1053
    %v1078 = vadd.f32 %v1002, %v1053
    %v1079 = vadd.f32 %v1003, %v1053
    %v1080 = vadd.f32 %v1004, %v1053
    %v1081 = vadd.f32 %v1005, %v1053
    %v1082 = vadd.f32 %v1006, %v1053
    %v1083 = vadd.f32 %v1007, %v1053
    %v1084 = vadd.f32 %v1008, %v1053
    %v1085 = vadd.f32 %v1009, %v1053
    %v1086 = vadd.f32 %v1010, %v1053
    %v1087 = vadd.f32 %v1011, %v1053
    %v1088 = vadd.f32 %v1012, %v1053
    %v1089 = vadd.f32 %v1013, %v1053
    %v1090 = vadd.f32 %v1014, %v1053
    %v1091 = vadd.f32 %v1015, %v1053
    %v1092 = vadd.f32 %v1016, %v1057
    %v1093 = vadd.f32 %v1017, %v1057
    %v1094 = vadd.f32 %v1018, %v1057
    %v1095 = vadd.f32 %v1019, %v1057
    %v1096 = vadd.f32 %v1020, %v1057
    %v1097 = vadd.f32 %v1021, %v1057
    %v1098 = vadd.f32 %v1022, %v1057
    %v1099 = vadd.f32 %v1023, %v1057
    %v1100 = vadd.f32 %v1024, %v1057
    %v1101 = vadd.f32 %v1025, %v1057
    %v1102 = vadd.f32 %v1026, %v1057
    %v1103 = vadd.f32 %v1027, %v1057
    %v1104 = vadd.f32 %v1028, %v1057
    %v1105 = vadd.f32 %v1029, %v1057
    %v1106 = vadd.f32 %v1030, %v1057
    %v1107 = vadd.f32 %v1031, %v1057
    %v1108 = vadd.f32 %v1032, %v1057
    %v1109 = vadd.f32 %v1033, %v1057
    %v1110 = vadd.f32 %v1034, %v1057
    %v1111 = vadd.f32 %v1035, %v1057
    %v1112 = vadd.f32 %v1036, %v1057
    %v1113 = vadd.f32 %v1037, %v1057
    %v1114 = vadd.f32 %v1038, %v1057
    %v1115 = vadd.f32 %v1039, %v1057
    %v1116 = vadd.f32 %v1040, %v1057
    %v1117 = vadd.f32 %v1041, %v1057
    %v1118 = vadd.f32 %v1042, %v1057
    %v1119 = vadd.f32 %v1043, %v1057
    %v1120 = vadd.f32 %v1044, %v1057
    %v1121 = vadd.f32 %v1045, %v1057
    %v1122 = vadd.f32 %v1046, %v1057
    %v1123 = vadd.f32 %v1047, %v1057
    %v1124 = vmax.f32 %v1060, 0.0
    %v1125 = vmax.f32 %v1061, 0.0
    %v1126 = vmax.f32 %v1062, 0.0
    %v1127 = vmax.f32 %v1063, 0.0
    %v1128 = vmax.f32 %v1064, 0.0
    %v1129 = vmax.f32 %v1065, 0.0
    %v1130 = vmax.f32 %v1066, 0.0
    %v1131 = vmax.f32 %v1067, 0.0
    %v1132 = vmax.f32 %v1068, 0.0
    %v1133 = vmax.f32 %v1069, 0.0
    %v1134 = vmax.f32 %v1070, 0.0
    %v1135 = vmax.f32 %v1071, 0.0
    %v1136 = vmax.f32 %v1072, 0.0
    %v1137 = vmax.f32 %v1073, 0.0
    %v1138 = vmax.f32 %v1074, 0.0
    %v1139 = vmax.f32 %v1075, 0.0
    %v1140 = vmax.f32 %v1076, 0.0
    %v1141 = vmax.f32 %v1077, 0.0
    %v1142 = vmax.f32 %v1078, 0.0
    %v1143 = vmax.f32 %v1079, 0.0
    %v1144 = vmax.f32 %v1080, 0.0
    %v1145 = vmax.f32 %v1081, 0.0
    %v1146 = vmax.f32 %v1082, 0.0
    %v1147 = vmax.f32 %v1083, 0.0
    %v1148 = vmax.f32 %v1084, 0.0
    %v1149 = vmax.f32 %v1085, 0.0
    %v1150 = vmax.f32 %v1086, 0.0
    %v1151 = vmax.f32 %v1087, 0.0
    %v1152 = vmax.f32 %v1088, 0.0
    %v1153 = vmax.f32 %v1089, 0.0
    %v1154 = vmax.f32 %v1090, 0.0
    %v1155 = vmax.f32 %v1091, 0.0
    %v1156 = vmax.f32 %v1092, 0.0
    %v1157 = vmax.f32 %v1093, 0.0
    %v1158 = vmax.f32 %v1094, 0.0
    %v1159 = vmax.f32 %v1095, 0.0
    %v1160 = vmax.f32 %v1096, 0.0
    %v1161 = vmax.f32 %v1097, 0.0
    %v1162 = vmax.f32 %v1098, 0.0
    %v1163 = vmax.f32 %v1099, 0.0
    %v1164 = vmax.f32 %v1100, 0.0
    %v1165 = vmax.f32 %v1101, 0.0
    %v1166 = vmax.f32 %v1102, 0.0
    %v1167 = vmax.f32 %v1103, 0.0
    %v1168 = vmax.f32 %v1104, 0.0
    %v1169 = vmax.f32 %v1105, 0.0
    %v1170 = vmax.f32 %v1106, 0.0
    %v1171 = vmax.f32 %v1107, 0.0
    %v1172 = vmax.f32 %v1108, 0.0
    %v1173 = vmax.f32 %v1109, 0.0
    %v1174 = vmax.f32 %v1110, 0.0
    %v1175 = vmax.f32 %v1111, 0.0
    %v1176 = vmax.f32 %v1112, 0.0
    %v1177 = vmax.f32 %v1113, 0.0
    %v1178 = vmax.f32 %v1114, 0.0
    %v1179 = vmax.f32 %v1115, 0.0
    %v1180 = vmax.f32 %v1116, 0.0
    %v1181 = vmax.f32 %v1117, 0.0
    %v1182 = vmax.f32 %v1118, 0.0
    %v1183 = vmax.f32 %v1119, 0.0
    %v1184 = vmax.f32 %v1120, 0.0
    %v1185 = vmax.f32 %v1121, 0.0
    %v1186 = vmax.f32 %v1122, 0.0
    %v1187 = vmax.f32 %v1123, 0.0
    %vm1188 = vcmask 257024
    %1189 = vst.msk [vmem:[#allocation2] sm:$0xf] %vm1188, 0
    %1190 = vst.msk [vmem:[#allocation2 + $0x4] sm:$0xf] %vm1188, 0
    %vm1191 = vcmask 253952
    %1192 = vst.msk [vmem:[#allocation2 + $0x8] sm:$0x1] %vm1191, 0
    %1193 = vst.msk [vmem:[#allocation2 + $0xd8] sm:$0xf] %vm1188, 0
    %1194 = vst.msk [vmem:[#allocation2 + $0xdc] sm:$0xf] %vm1188, 0
    %1195 = vst.msk [vmem:[#allocation2 + $0xe0] sm:$0x1] %vm1191, 0
    %s1196 = scalar_lea.vmem [#allocation2], 204
    %1197 = vst.msk [vmem:[%s1196] sm:$0xf] %vm1188, 0
    %1198 = vst.msk [vmem:[%s1196 + $0x4] sm:$0xf] %vm1188, 0
    %1199 = vst.msk [vmem:[%s1196 + $0x8] sm:$0x1] %vm1191, 0
    %1200 = vst.msk [vmem:[%s1196 + $0xd8] sm:$0xf] %vm1188, 0
    %1201 = vst.msk [vmem:[%s1196 + $0xdc] sm:$0xf] %vm1188, 0
    %1202 = vst.msk [vmem:[%s1196 + $0xe0] sm:$0x1] %vm1191, 0
    %s1203 = scalar_lea.vmem [#allocation2], 12
    %vm1204 = vcmask 253952
    %vm1205 = vsmask.f32 256
    %vm1206 = vmand %vm1204, %vm1205
    %v1207 = vld [vmem:[%s1203] sm:$0x1]
    %v1208 = vsel %vm1206, 0, %v1207
    %1209 = vst [vmem:[%s1203] sm:$0x1] %v1208
    %v1210 = vld [vmem:[%s1203 + $0xc] sm:$0x1]
    %v1211 = vsel %vm1206, 0, %v1210
    %1212 = vst [vmem:[%s1203 + $0xc] sm:$0x1] %v1211
    %v1213 = vld [vmem:[%s1203 + $0x18] sm:$0x1]
    %v1214 = vsel %vm1206, 0, %v1213
    %1215 = vst [vmem:[%s1203 + $0x18] sm:$0x1] %v1214
    %v1216 = vld [vmem:[%s1203 + $0x24] sm:$0x1]
    %v1217 = vsel %vm1206, 0, %v1216
    %1218 = vst [vmem:[%s1203 + $0x24] sm:$0x1] %v1217
    %v1219 = vld [vmem:[%s1203 + $0x30] sm:$0x1]
    %v1220 = vsel %vm1206, 0, %v1219
    %1221 = vst [vmem:[%s1203 + $0x30] sm:$0x1] %v1220
    %v1222 = vld [vmem:[%s1203 + $0x3c] sm:$0x1]
    %v1223 = vsel %vm1206, 0, %v1222
    %1224 = vst [vmem:[%s1203 + $0x3c] sm:$0x1] %v1223
    %v1225 = vld [vmem:[%s1203 + $0x48] sm:$0x1]
    %v1226 = vsel %vm1206, 0, %v1225
    %1227 = vst [vmem:[%s1203 + $0x48] sm:$0x1] %v1226
    %v1228 = vld [vmem:[%s1203 + $0x54] sm:$0x1]
    %v1229 = vsel %vm1206, 0, %v1228
    %1230 = vst [vmem:[%s1203 + $0x54] sm:$0x1] %v1229
    %v1231 = vld [vmem:[%s1203 + $0x60] sm:$0x1]
    %v1232 = vsel %vm1206, 0, %v1231
    %1233 = vst [vmem:[%s1203 + $0x60] sm:$0x1] %v1232
    %v1234 = vld [vmem:[%s1203 + $0x6c] sm:$0x1]
    %v1235 = vsel %vm1206, 0, %v1234
    %1236 = vst [vmem:[%s1203 + $0x6c] sm:$0x1] %v1235
    %v1237 = vld [vmem:[%s1203 + $0x78] sm:$0x1]
    %v1238 = vsel %vm1206, 0, %v1237
    %1239 = vst [vmem:[%s1203 + $0x78] sm:$0x1] %v1238
    %v1240 = vld [vmem:[%s1203 + $0x84] sm:$0x1]
    %v1241 = vsel %vm1206, 0, %v1240
    %1242 = vst [vmem:[%s1203 + $0x84] sm:$0x1] %v1241
    %v1243 = vld [vmem:[%s1203 + $0x90] sm:$0x1]
    %v1244 = vsel %vm1206, 0, %v1243
    %1245 = vst [vmem:[%s1203 + $0x90] sm:$0x1] %v1244
    %v1246 = vld [vmem:[%s1203 + $0x9c] sm:$0x1]
    %v1247 = vsel %vm1206, 0, %v1246
    %1248 = vst [vmem:[%s1203 + $0x9c] sm:$0x1] %v1247
    %v1249 = vld [vmem:[%s1203 + $0xa8] sm:$0x1]
    %v1250 = vsel %vm1206, 0, %v1249
    %1251 = vst [vmem:[%s1203 + $0xa8] sm:$0x1] %v1250
    %v1252 = vld [vmem:[%s1203 + $0xb4] sm:$0x1]
    %v1253 = vsel %vm1206, 0, %v1252
    %1254 = vst [vmem:[%s1203 + $0xb4] sm:$0x1] %v1253
    %v1255 = vld [vmem:[%s1203 + $0xd8] sm:$0x1]
    %v1256 = vsel %vm1206, 0, %v1255
    %1257 = vst [vmem:[%s1203 + $0xd8] sm:$0x1] %v1256
    %v1258 = vld [vmem:[%s1203 + $0xe4] sm:$0x1]
    %v1259 = vsel %vm1206, 0, %v1258
    %1260 = vst [vmem:[%s1203 + $0xe4] sm:$0x1] %v1259
    %v1261 = vld [vmem:[%s1203 + $0xf0] sm:$0x1]
    %v1262 = vsel %vm1206, 0, %v1261
    %1263 = vst [vmem:[%s1203 + $0xf0] sm:$0x1] %v1262
    %v1264 = vld [vmem:[%s1203 + $0xfc] sm:$0x1]
    %v1265 = vsel %vm1206, 0, %v1264
    %1266 = vst [vmem:[%s1203 + $0xfc] sm:$0x1] %v1265
    %v1267 = vld [vmem:[%s1203 + $0x108] sm:$0x1]
    %v1268 = vsel %vm1206, 0, %v1267
    %1269 = vst [vmem:[%s1203 + $0x108] sm:$0x1] %v1268
    %v1270 = vld [vmem:[%s1203 + $0x114] sm:$0x1]
    %v1271 = vsel %vm1206, 0, %v1270
    %1272 = vst [vmem:[%s1203 + $0x114] sm:$0x1] %v1271
    %v1273 = vld [vmem:[%s1203 + $0x120] sm:$0x1]
    %v1274 = vsel %vm1206, 0, %v1273
    %1275 = vst [vmem:[%s1203 + $0x120] sm:$0x1] %v1274
    %v1276 = vld [vmem:[%s1203 + $0x12c] sm:$0x1]
    %v1277 = vsel %vm1206, 0, %v1276
    %1278 = vst [vmem:[%s1203 + $0x12c] sm:$0x1] %v1277
    %v1279 = vld [vmem:[%s1203 + $0x138] sm:$0x1]
    %v1280 = vsel %vm1206, 0, %v1279
    %1281 = vst [vmem:[%s1203 + $0x138] sm:$0x1] %v1280
    %v1282 = vld [vmem:[%s1203 + $0x144] sm:$0x1]
    %v1283 = vsel %vm1206, 0, %v1282
    %1284 = vst [vmem:[%s1203 + $0x144] sm:$0x1] %v1283
    %v1285 = vld [vmem:[%s1203 + $0x150] sm:$0x1]
    %v1286 = vsel %vm1206, 0, %v1285
    %1287 = vst [vmem:[%s1203 + $0x150] sm:$0x1] %v1286
    %v1288 = vld [vmem:[%s1203 + $0x15c] sm:$0x1]
    %v1289 = vsel %vm1206, 0, %v1288
    %1290 = vst [vmem:[%s1203 + $0x15c] sm:$0x1] %v1289
    %v1291 = vld [vmem:[%s1203 + $0x168] sm:$0x1]
    %v1292 = vsel %vm1206, 0, %v1291
    %1293 = vst [vmem:[%s1203 + $0x168] sm:$0x1] %v1292
    %v1294 = vld [vmem:[%s1203 + $0x174] sm:$0x1]
    %v1295 = vsel %vm1206, 0, %v1294
    %1296 = vst [vmem:[%s1203 + $0x174] sm:$0x1] %v1295
    %v1297 = vld [vmem:[%s1203 + $0x180] sm:$0x1]
    %v1298 = vsel %vm1206, 0, %v1297
    %1299 = vst [vmem:[%s1203 + $0x180] sm:$0x1] %v1298
    %v1300 = vld [vmem:[%s1203 + $0x18c] sm:$0x1]
    %v1301 = vsel %vm1206, 0, %v1300
    %1302 = vst [vmem:[%s1203 + $0x18c] sm:$0x1] %v1301
    %vm1303 = vsmask.f32 7938
    %vm1304 = vmand %vm1204, %vm1303
    %v1305 = vld [vmem:[%s1203 + $0x8] sm:$0x1]
    %v1306 = vsel %vm1304, 0, %v1305
    %1307 = vst [vmem:[%s1203 + $0x8] sm:$0x1] %v1306
    %v1308 = vld [vmem:[%s1203 + $0x14] sm:$0x1]
    %v1309 = vsel %vm1304, 0, %v1308
    %1310 = vst [vmem:[%s1203 + $0x14] sm:$0x1] %v1309
    %v1311 = vld [vmem:[%s1203 + $0x20] sm:$0x1]
    %v1312 = vsel %vm1304, 0, %v1311
    %1313 = vst [vmem:[%s1203 + $0x20] sm:$0x1] %v1312
    %v1314 = vld [vmem:[%s1203 + $0x2c] sm:$0x1]
    %v1315 = vsel %vm1304, 0, %v1314
    %1316 = vst [vmem:[%s1203 + $0x2c] sm:$0x1] %v1315
    %v1317 = vld [vmem:[%s1203 + $0x38] sm:$0x1]
    %v1318 = vsel %vm1304, 0, %v1317
    %1319 = vst [vmem:[%s1203 + $0x38] sm:$0x1] %v1318
    %v1320 = vld [vmem:[%s1203 + $0x44] sm:$0x1]
    %v1321 = vsel %vm1304, 0, %v1320
    %1322 = vst [vmem:[%s1203 + $0x44] sm:$0x1] %v1321
    %v1323 = vld [vmem:[%s1203 + $0x50] sm:$0x1]
    %v1324 = vsel %vm1304, 0, %v1323
    %1325 = vst [vmem:[%s1203 + $0x50] sm:$0x1] %v1324
    %v1326 = vld [vmem:[%s1203 + $0x5c] sm:$0x1]
    %v1327 = vsel %vm1304, 0, %v1326
    %1328 = vst [vmem:[%s1203 + $0x5c] sm:$0x1] %v1327
    %v1329 = vld [vmem:[%s1203 + $0x68] sm:$0x1]
    %v1330 = vsel %vm1304, 0, %v1329
    %1331 = vst [vmem:[%s1203 + $0x68] sm:$0x1] %v1330
    %v1332 = vld [vmem:[%s1203 + $0x74] sm:$0x1]
    %v1333 = vsel %vm1304, 0, %v1332
    %1334 = vst [vmem:[%s1203 + $0x74] sm:$0x1] %v1333
    %v1335 = vld [vmem:[%s1203 + $0x80] sm:$0x1]
    %v1336 = vsel %vm1304, 0, %v1335
    %1337 = vst [vmem:[%s1203 + $0x80] sm:$0x1] %v1336
    %v1338 = vld [vmem:[%s1203 + $0x8c] sm:$0x1]
    %v1339 = vsel %vm1304, 0, %v1338
    %1340 = vst [vmem:[%s1203 + $0x8c] sm:$0x1] %v1339
    %v1341 = vld [vmem:[%s1203 + $0x98] sm:$0x1]
    %v1342 = vsel %vm1304, 0, %v1341
    %1343 = vst [vmem:[%s1203 + $0x98] sm:$0x1] %v1342
    %v1344 = vld [vmem:[%s1203 + $0xa4] sm:$0x1]
    %v1345 = vsel %vm1304, 0, %v1344
    %1346 = vst [vmem:[%s1203 + $0xa4] sm:$0x1] %v1345
    %v1347 = vld [vmem:[%s1203 + $0xb0] sm:$0x1]
    %v1348 = vsel %vm1304, 0, %v1347
    %1349 = vst [vmem:[%s1203 + $0xb0] sm:$0x1] %v1348
    %v1350 = vld [vmem:[%s1203 + $0xbc] sm:$0x1]
    %v1351 = vsel %vm1304, 0, %v1350
    %1352 = vst [vmem:[%s1203 + $0xbc] sm:$0x1] %v1351
    %v1353 = vld [vmem:[%s1203 + $0xe0] sm:$0x1]
    %v1354 = vsel %vm1304, 0, %v1353
    %1355 = vst [vmem:[%s1203 + $0xe0] sm:$0x1] %v1354
    %v1356 = vld [vmem:[%s1203 + $0xec] sm:$0x1]
    %v1357 = vsel %vm1304, 0, %v1356
    %1358 = vst [vmem:[%s1203 + $0xec] sm:$0x1] %v1357
    %v1359 = vld [vmem:[%s1203 + $0xf8] sm:$0x1]
    %v1360 = vsel %vm1304, 0, %v1359
    %1361 = vst [vmem:[%s1203 + $0xf8] sm:$0x1] %v1360
    %v1362 = vld [vmem:[%s1203 + $0x104] sm:$0x1]
    %v1363 = vsel %vm1304, 0, %v1362
    %1364 = vst [vmem:[%s1203 + $0x104] sm:$0x1] %v1363
    %v1365 = vld [vmem:[%s1203 + $0x110] sm:$0x1]
    %v1366 = vsel %vm1304, 0, %v1365
    %1367 = vst [vmem:[%s1203 + $0x110] sm:$0x1] %v1366
    %v1368 = vld [vmem:[%s1203 + $0x11c] sm:$0x1]
    %v1369 = vsel %vm1304, 0, %v1368
    %1370 = vst [vmem:[%s1203 + $0x11c] sm:$0x1] %v1369
    %v1371 = vld [vmem:[%s1203 + $0x128] sm:$0x1]
    %v1372 = vsel %vm1304, 0, %v1371
    %1373 = vst [vmem:[%s1203 + $0x128] sm:$0x1] %v1372
    %v1374 = vld [vmem:[%s1203 + $0x134] sm:$0x1]
    %v1375 = vsel %vm1304, 0, %v1374
    %1376 = vst [vmem:[%s1203 + $0x134] sm:$0x1] %v1375
    %v1377 = vld [vmem:[%s1203 + $0x140] sm:$0x1]
    %v1378 = vsel %vm1304, 0, %v1377
    %1379 = vst [vmem:[%s1203 + $0x140] sm:$0x1] %v1378
    %v1380 = vld [vmem:[%s1203 + $0x14c] sm:$0x1]
    %v1381 = vsel %vm1304, 0, %v1380
    %1382 = vst [vmem:[%s1203 + $0x14c] sm:$0x1] %v1381
    %v1383 = vld [vmem:[%s1203 + $0x158] sm:$0x1]
    %v1384 = vsel %vm1304, 0, %v1383
    %1385 = vst [vmem:[%s1203 + $0x158] sm:$0x1] %v1384
    %v1386 = vld [vmem:[%s1203 + $0x164] sm:$0x1]
    %v1387 = vsel %vm1304, 0, %v1386
    %1388 = vst [vmem:[%s1203 + $0x164] sm:$0x1] %v1387
    %v1389 = vld [vmem:[%s1203 + $0x170] sm:$0x1]
    %v1390 = vsel %vm1304, 0, %v1389
    %1391 = vst [vmem:[%s1203 + $0x170] sm:$0x1] %v1390
    %v1392 = vld [vmem:[%s1203 + $0x17c] sm:$0x1]
    %v1393 = vsel %vm1304, 0, %v1392
    %1394 = vst [vmem:[%s1203 + $0x17c] sm:$0x1] %v1393
    %v1395 = vld [vmem:[%s1203 + $0x188] sm:$0x1]
    %v1396 = vsel %vm1304, 0, %v1395
    %1397 = vst [vmem:[%s1203 + $0x188] sm:$0x1] %v1396
    %v1398 = vld [vmem:[%s1203 + $0x194] sm:$0x1]
    %v1399 = vsel %vm1304, 0, %v1398
    %1400 = vst [vmem:[%s1203 + $0x194] sm:$0x1] %v1399
    %v1401 = vpack.c.bf16 %v1125, %v1124
    %v1402 = vpack.c.bf16 %v1127, %v1126
    %v1403 = vpack.c.bf16 %v1129, %v1128
    %v1404 = vpack.c.bf16 %v1131, %v1130
    %v1405 = vpack.c.bf16 %v1133, %v1132
    %v1406 = vpack.c.bf16 %v1135, %v1134
    %v1407 = vpack.c.bf16 %v1137, %v1136
    %v1408 = vpack.c.bf16 %v1139, %v1138
    %v1409 = vpack.c.bf16 %v1141, %v1140
    %v1410 = vpack.c.bf16 %v1143, %v1142
    %v1411 = vpack.c.bf16 %v1145, %v1144
    %v1412 = vpack.c.bf16 %v1147, %v1146
    %v1413 = vpack.c.bf16 %v1149, %v1148
    %v1414 = vpack.c.bf16 %v1151, %v1150
    %v1415 = vpack.c.bf16 %v1153, %v1152
    %v1416 = vpack.c.bf16 %v1155, %v1154
    %v1417 = vpack.c.bf16 %v1157, %v1156
    %v1418 = vpack.c.bf16 %v1159, %v1158
    %v1419 = vpack.c.bf16 %v1161, %v1160
    %v1420 = vpack.c.bf16 %v1163, %v1162
    %v1421 = vpack.c.bf16 %v1165, %v1164
    %v1422 = vpack.c.bf16 %v1167, %v1166
    %v1423 = vpack.c.bf16 %v1169, %v1168
    %v1424 = vpack.c.bf16 %v1171, %v1170
    %v1425 = vpack.c.bf16 %v1173, %v1172
    %v1426 = vpack.c.bf16 %v1175, %v1174
    %v1427 = vpack.c.bf16 %v1177, %v1176
    %v1428 = vpack.c.bf16 %v1179, %v1178
    %v1429 = vpack.c.bf16 %v1181, %v1180
    %v1430 = vpack.c.bf16 %v1183, %v1182
    %v1431 = vpack.c.bf16 %v1185, %v1184
    %v1432 = vpack.c.bf16 %v1187, %v1186
    %v1465 = vunpack.c.l.b16 %v1401
    %v1466 = vunpack.c.h.b16 %v1401
    %v1467 = vunpack.c.l.b16 %v1402
    %v1468 = vunpack.c.h.b16 %v1402
    %v1469 = vunpack.c.l.b16 %v1403
    %v1470 = vunpack.c.h.b16 %v1403
    %v1471 = vunpack.c.l.b16 %v1404
    %v1472 = vunpack.c.h.b16 %v1404
    %v1473 = vunpack.c.l.b16 %v1405
    %v1474 = vunpack.c.h.b16 %v1405
    %v1475 = vunpack.c.l.b16 %v1406
    %v1476 = vunpack.c.h.b16 %v1406
    %v1477 = vunpack.c.l.b16 %v1407
    %v1478 = vunpack.c.h.b16 %v1407
    %v1479 = vunpack.c.l.b16 %v1408
    %v1480 = vunpack.c.h.b16 %v1408
    %v1481 = vunpack.c.l.b16 %v1409
    %v1482 = vunpack.c.h.b16 %v1409
    %v1483 = vunpack.c.l.b16 %v1410
    %v1484 = vunpack.c.h.b16 %v1410
    %v1485 = vunpack.c.l.b16 %v1411
    %v1486 = vunpack.c.h.b16 %v1411
    %v1487 = vunpack.c.l.b16 %v1412
    %v1488 = vunpack.c.h.b16 %v1412
    %v1489 = vunpack.c.l.b16 %v1413
    %v1490 = vunpack.c.h.b16 %v1413
    %v1491 = vunpack.c.l.b16 %v1414
    %v1492 = vunpack.c.h.b16 %v1414
    %v1493 = vunpack.c.l.b16 %v1415
    %v1494 = vunpack.c.h.b16 %v1415
    %v1495 = vunpack.c.l.b16 %v1416
    %v1496 = vunpack.c.h.b16 %v1416
    %v1497 = vunpack.c.l.b16 %v1417
    %v1498 = vunpack.c.h.b16 %v1417
    %v1499 = vunpack.c.l.b16 %v1418
    %v1500 = vunpack.c.h.b16 %v1418
    %v1501 = vunpack.c.l.b16 %v1419
    %v1502 = vunpack.c.h.b16 %v1419
    %v1503 = vunpack.c.l.b16 %v1420
    %v1504 = vunpack.c.h.b16 %v1420
    %v1505 = vunpack.c.l.b16 %v1421
    %v1506 = vunpack.c.h.b16 %v1421
    %v1507 = vunpack.c.l.b16 %v1422
    %v1508 = vunpack.c.h.b16 %v1422
    %v1509 = vunpack.c.l.b16 %v1423
    %v1510 = vunpack.c.h.b16 %v1423
    %v1511 = vunpack.c.l.b16 %v1424
    %v1512 = vunpack.c.h.b16 %v1424
    %v1513 = vunpack.c.l.b16 %v1425
    %v1514 = vunpack.c.h.b16 %v1425
    %v1515 = vunpack.c.l.b16 %v1426
    %v1516 = vunpack.c.h.b16 %v1426
    %v1517 = vunpack.c.l.b16 %v1427
    %v1518 = vunpack.c.h.b16 %v1427
    %v1519 = vunpack.c.l.b16 %v1428
    %v1520 = vunpack.c.h.b16 %v1428
    %v1521 = vunpack.c.l.b16 %v1429
    %v1522 = vunpack.c.h.b16 %v1429
    %v1523 = vunpack.c.l.b16 %v1430
    %v1524 = vunpack.c.h.b16 %v1430
    %v1525 = vunpack.c.l.b16 %v1431
    %v1526 = vunpack.c.h.b16 %v1431
    %v1527 = vunpack.c.l.b16 %v1432
    %v1528 = vunpack.c.h.b16 %v1432
    %v1529 = vpack.c.b16 %v1465, %v1465
    %v1530 = vpack.c.b16 %v1466, %v1466
    %v1531 = vpack.c.b16 %v1467, %v1467
    %v1532 = vpack.c.b16 %v1468, %v1468
    %v1533 = vpack.c.b16 %v1469, %v1469
    %v1534 = vpack.c.b16 %v1470, %v1470
    %v1535 = vpack.c.b16 %v1471, %v1471
    %v1536 = vpack.c.b16 %v1472, %v1472
    %v1537 = vpack.c.b16 %v1473, %v1473
    %v1538 = vpack.c.b16 %v1474, %v1474
    %v1539 = vpack.c.b16 %v1475, %v1475
    %v1540 = vpack.c.b16 %v1476, %v1476
    %v1541 = vpack.c.b16 %v1477, %v1477
    %v1542 = vpack.c.b16 %v1478, %v1478
    %v1543 = vpack.c.b16 %v1479, %v1479
    %v1544 = vpack.c.b16 %v1480, %v1480
    %v1545 = vpack.c.b16 %v1481, %v1481
    %v1546 = vpack.c.b16 %v1482, %v1482
    %v1547 = vpack.c.b16 %v1483, %v1483
    %v1548 = vpack.c.b16 %v1484, %v1484
    %v1549 = vpack.c.b16 %v1485, %v1485
    %v1550 = vpack.c.b16 %v1486, %v1486
    %v1551 = vpack.c.b16 %v1487, %v1487
    %v1552 = vpack.c.b16 %v1488, %v1488
    %v1553 = vpack.c.b16 %v1489, %v1489
    %v1554 = vpack.c.b16 %v1490, %v1490
    %v1555 = vpack.c.b16 %v1491, %v1491
    %v1556 = vpack.c.b16 %v1492, %v1492
    %v1557 = vpack.c.b16 %v1493, %v1493
    %v1558 = vpack.c.b16 %v1494, %v1494
    %v1559 = vpack.c.b16 %v1495, %v1495
    %v1560 = vpack.c.b16 %v1496, %v1496
    %v1561 = vpack.c.b16 %v1497, %v1497
    %v1562 = vpack.c.b16 %v1498, %v1498
    %v1563 = vpack.c.b16 %v1499, %v1499
    %v1564 = vpack.c.b16 %v1500, %v1500
    %v1565 = vpack.c.b16 %v1501, %v1501
    %v1566 = vpack.c.b16 %v1502, %v1502
    %v1567 = vpack.c.b16 %v1503, %v1503
    %v1568 = vpack.c.b16 %v1504, %v1504
    %v1569 = vpack.c.b16 %v1505, %v1505
    %v1570 = vpack.c.b16 %v1506, %v1506
    %v1571 = vpack.c.b16 %v1507, %v1507
    %v1572 = vpack.c.b16 %v1508, %v1508
    %v1573 = vpack.c.b16 %v1509, %v1509
    %v1574 = vpack.c.b16 %v1510, %v1510
    %v1575 = vpack.c.b16 %v1511, %v1511
    %v1576 = vpack.c.b16 %v1512, %v1512
    %v1577 = vpack.c.b16 %v1513, %v1513
    %v1578 = vpack.c.b16 %v1514, %v1514
    %v1579 = vpack.c.b16 %v1515, %v1515
    %v1580 = vpack.c.b16 %v1516, %v1516
    %v1581 = vpack.c.b16 %v1517, %v1517
    %v1582 = vpack.c.b16 %v1518, %v1518
    %v1583 = vpack.c.b16 %v1519, %v1519
    %v1584 = vpack.c.b16 %v1520, %v1520
    %v1585 = vpack.c.b16 %v1521, %v1521
    %v1586 = vpack.c.b16 %v1522, %v1522
    %v1587 = vpack.c.b16 %v1523, %v1523
    %v1588 = vpack.c.b16 %v1524, %v1524
    %v1589 = vpack.c.b16 %v1525, %v1525
    %v1590 = vpack.c.b16 %v1526, %v1526
    %v1591 = vpack.c.b16 %v1527, %v1527
    %v1592 = vpack.c.b16 %v1528, %v1528
    %vm1593 = vsmask.f32 4368
    %vm1594 = vmor %vm1205, %vm1593
    %v1596 = vshrl.u32 %v1529, 16
    %v1598 = vrot.slane %v1596, 7
    %v1599 = vshll.u32 %v1529, 16
    %v1601 = vor.u32 %v1598, %v1599
    %v1602 = vrot.slane %v1598, 4
    %v1604 = vshrl.u32 %v1530, 16
    %v1606 = vrot.slane %v1604, 7
    %v1607 = vshll.u32 %v1530, 16
    %v1609 = vor.u32 %v1606, %v1607
    %v1610 = vsel %vm1594, %v1602, %v1609
    %v1611 = vrot.slane %v1606, 4
    %v1613 = vshrl.u32 %v1531, 16
    %v1615 = vrot.slane %v1613, 7
    %v1616 = vshll.u32 %v1531, 16
    %v1618 = vor.u32 %v1615, %v1616
    %v1619 = vrot.slane %v1615, 4
    %v1621 = vshrl.u32 %v1532, 16
    %v1623 = vrot.slane %v1621, 7
    %v1624 = vshll.u32 %v1532, 16
    %v1626 = vor.u32 %v1623, %v1624
    %v1627 = vsel %vm1594, %v1619, %v1626
    %v1628 = vrot.slane %v1623, 4
    %v1630 = vshrl.u32 %v1533, 16
    %v1632 = vrot.slane %v1630, 7
    %v1633 = vshll.u32 %v1533, 16
    %v1635 = vor.u32 %v1632, %v1633
    %v1636 = vrot.slane %v1632, 4
    %v1638 = vshrl.u32 %v1534, 16
    %v1640 = vrot.slane %v1638, 7
    %v1641 = vshll.u32 %v1534, 16
    %v1643 = vor.u32 %v1640, %v1641
    %v1644 = vsel %vm1594, %v1636, %v1643
    %v1645 = vrot.slane %v1640, 4
    %v1647 = vshrl.u32 %v1535, 16
    %v1649 = vrot.slane %v1647, 7
    %v1650 = vshll.u32 %v1535, 16
    %v1652 = vor.u32 %v1649, %v1650
    %v1653 = vrot.slane %v1649, 4
    %v1655 = vshrl.u32 %v1536, 16
    %v1657 = vrot.slane %v1655, 7
    %v1658 = vshll.u32 %v1536, 16
    %v1660 = vor.u32 %v1657, %v1658
    %v1661 = vsel %vm1594, %v1653, %v1660
    %v1662 = vrot.slane %v1657, 4
    %v1664 = vshrl.u32 %v1537, 16
    %v1666 = vrot.slane %v1664, 7
    %v1667 = vshll.u32 %v1537, 16
    %v1669 = vor.u32 %v1666, %v1667
    %v1670 = vrot.slane %v1666, 4
    %v1672 = vshrl.u32 %v1538, 16
    %v1674 = vrot.slane %v1672, 7
    %v1675 = vshll.u32 %v1538, 16
    %v1677 = vor.u32 %v1674, %v1675
    %v1678 = vsel %vm1594, %v1670, %v1677
    %v1679 = vrot.slane %v1674, 4
    %v1681 = vshrl.u32 %v1539, 16
    %v1683 = vrot.slane %v1681, 7
    %v1684 = vshll.u32 %v1539, 16
    %v1686 = vor.u32 %v1683, %v1684
    %v1687 = vrot.slane %v1683, 4
    %v1689 = vshrl.u32 %v1540, 16
    %v1691 = vrot.slane %v1689, 7
    %v1692 = vshll.u32 %v1540, 16
    %v1694 = vor.u32 %v1691, %v1692
    %v1695 = vsel %vm1594, %v1687, %v1694
    %v1696 = vrot.slane %v1691, 4
    %v1698 = vshrl.u32 %v1541, 16
    %v1700 = vrot.slane %v1698, 7
    %v1701 = vshll.u32 %v1541, 16
    %v1703 = vor.u32 %v1700, %v1701
    %v1704 = vrot.slane %v1700, 4
    %v1706 = vshrl.u32 %v1542, 16
    %v1708 = vrot.slane %v1706, 7
    %v1709 = vshll.u32 %v1542, 16
    %v1711 = vor.u32 %v1708, %v1709
    %v1712 = vsel %vm1594, %v1704, %v1711
    %v1713 = vrot.slane %v1708, 4
    %v1715 = vshrl.u32 %v1543, 16
    %v1717 = vrot.slane %v1715, 7
    %v1718 = vshll.u32 %v1543, 16
    %v1720 = vor.u32 %v1717, %v1718
    %v1721 = vrot.slane %v1717, 4
    %v1723 = vshrl.u32 %v1544, 16
    %v1725 = vrot.slane %v1723, 7
    %v1726 = vshll.u32 %v1544, 16
    %v1728 = vor.u32 %v1725, %v1726
    %v1729 = vsel %vm1594, %v1721, %v1728
    %v1730 = vrot.slane %v1725, 4
    %v1732 = vshrl.u32 %v1545, 16
    %v1734 = vrot.slane %v1732, 7
    %v1735 = vshll.u32 %v1545, 16
    %v1737 = vor.u32 %v1734, %v1735
    %v1738 = vrot.slane %v1734, 4
    %v1740 = vshrl.u32 %v1546, 16
    %v1742 = vrot.slane %v1740, 7
    %v1743 = vshll.u32 %v1546, 16
    %v1745 = vor.u32 %v1742, %v1743
    %v1746 = vsel %vm1594, %v1738, %v1745
    %v1747 = vrot.slane %v1742, 4
    %v1749 = vshrl.u32 %v1547, 16
    %v1751 = vrot.slane %v1749, 7
    %v1752 = vshll.u32 %v1547, 16
    %v1754 = vor.u32 %v1751, %v1752
    %v1755 = vrot.slane %v1751, 4
    %v1757 = vshrl.u32 %v1548, 16
    %v1759 = vrot.slane %v1757, 7
    %v1760 = vshll.u32 %v1548, 16
    %v1762 = vor.u32 %v1759, %v1760
    %v1763 = vsel %vm1594, %v1755, %v1762
    %v1764 = vrot.slane %v1759, 4
    %v1766 = vshrl.u32 %v1549, 16
    %v1768 = vrot.slane %v1766, 7
    %v1769 = vshll.u32 %v1549, 16
    %v1771 = vor.u32 %v1768, %v1769
    %v1772 = vrot.slane %v1768, 4
    %v1774 = vshrl.u32 %v1550, 16
    %v1776 = vrot.slane %v1774, 7
    %v1777 = vshll.u32 %v1550, 16
    %v1779 = vor.u32 %v1776, %v1777
    %v1780 = vsel %vm1594, %v1772, %v1779
    %v1781 = vrot.slane %v1776, 4
    %v1783 = vshrl.u32 %v1551, 16
    %v1785 = vrot.slane %v1783, 7
    %v1786 = vshll.u32 %v1551, 16
    %v1788 = vor.u32 %v1785, %v1786
    %v1789 = vrot.slane %v1785, 4
    %v1791 = vshrl.u32 %v1552, 16
    %v1793 = vrot.slane %v1791, 7
    %v1794 = vshll.u32 %v1552, 16
    %v1796 = vor.u32 %v1793, %v1794
    %v1797 = vsel %vm1594, %v1789, %v1796
    %v1798 = vrot.slane %v1793, 4
    %v1800 = vshrl.u32 %v1553, 16
    %v1802 = vrot.slane %v1800, 7
    %v1803 = vshll.u32 %v1553, 16
    %v1805 = vor.u32 %v1802, %v1803
    %v1806 = vrot.slane %v1802, 4
    %v1808 = vshrl.u32 %v1554, 16
    %v1810 = vrot.slane %v1808, 7
    %v1811 = vshll.u32 %v1554, 16
    %v1813 = vor.u32 %v1810, %v1811
    %v1814 = vsel %vm1594, %v1806, %v1813
    %v1815 = vrot.slane %v1810, 4
    %v1817 = vshrl.u32 %v1555, 16
    %v1819 = vrot.slane %v1817, 7
    %v1820 = vshll.u32 %v1555, 16
    %v1822 = vor.u32 %v1819, %v1820
    %v1823 = vrot.slane %v1819, 4
    %v1825 = vshrl.u32 %v1556, 16
    %v1827 = vrot.slane %v1825, 7
    %v1828 = vshll.u32 %v1556, 16
    %v1830 = vor.u32 %v1827, %v1828
    %v1831 = vsel %vm1594, %v1823, %v1830
    %v1832 = vrot.slane %v1827, 4
    %v1834 = vshrl.u32 %v1557, 16
    %v1836 = vrot.slane %v1834, 7
    %v1837 = vshll.u32 %v1557, 16
    %v1839 = vor.u32 %v1836, %v1837
    %v1840 = vrot.slane %v1836, 4
    %v1842 = vshrl.u32 %v1558, 16
    %v1844 = vrot.slane %v1842, 7
    %v1845 = vshll.u32 %v1558, 16
    %v1847 = vor.u32 %v1844, %v1845
    %v1848 = vsel %vm1594, %v1840, %v1847
    %v1849 = vrot.slane %v1844, 4
    %v1851 = vshrl.u32 %v1559, 16
    %v1853 = vrot.slane %v1851, 7
    %v1854 = vshll.u32 %v1559, 16
    %v1856 = vor.u32 %v1853, %v1854
    %v1857 = vrot.slane %v1853, 4
    %v1859 = vshrl.u32 %v1560, 16
    %v1861 = vrot.slane %v1859, 7
    %v1862 = vshll.u32 %v1560, 16
    %v1864 = vor.u32 %v1861, %v1862
    %v1865 = vsel %vm1594, %v1857, %v1864
    %v1866 = vrot.slane %v1861, 4
    %v1868 = vshrl.u32 %v1561, 16
    %v1870 = vrot.slane %v1868, 7
    %v1871 = vshll.u32 %v1561, 16
    %v1873 = vor.u32 %v1870, %v1871
    %v1874 = vrot.slane %v1870, 4
    %v1876 = vshrl.u32 %v1562, 16
    %v1878 = vrot.slane %v1876, 7
    %v1879 = vshll.u32 %v1562, 16
    %v1881 = vor.u32 %v1878, %v1879
    %v1882 = vsel %vm1594, %v1874, %v1881
    %v1883 = vrot.slane %v1878, 4
    %v1885 = vshrl.u32 %v1563, 16
    %v1887 = vrot.slane %v1885, 7
    %v1888 = vshll.u32 %v1563, 16
    %v1890 = vor.u32 %v1887, %v1888
    %v1891 = vrot.slane %v1887, 4
    %v1893 = vshrl.u32 %v1564, 16
    %v1895 = vrot.slane %v1893, 7
    %v1896 = vshll.u32 %v1564, 16
    %v1898 = vor.u32 %v1895, %v1896
    %v1899 = vsel %vm1594, %v1891, %v1898
    %v1900 = vrot.slane %v1895, 4
    %v1902 = vshrl.u32 %v1565, 16
    %v1904 = vrot.slane %v1902, 7
    %v1905 = vshll.u32 %v1565, 16
    %v1907 = vor.u32 %v1904, %v1905
    %v1908 = vrot.slane %v1904, 4
    %v1910 = vshrl.u32 %v1566, 16
    %v1912 = vrot.slane %v1910, 7
    %v1913 = vshll.u32 %v1566, 16
    %v1915 = vor.u32 %v1912, %v1913
    %v1916 = vsel %vm1594, %v1908, %v1915
    %v1917 = vrot.slane %v1912, 4
    %v1919 = vshrl.u32 %v1567, 16
    %v1921 = vrot.slane %v1919, 7
    %v1922 = vshll.u32 %v1567, 16
    %v1924 = vor.u32 %v1921, %v1922
    %v1925 = vrot.slane %v1921, 4
    %v1927 = vshrl.u32 %v1568, 16
    %v1929 = vrot.slane %v1927, 7
    %v1930 = vshll.u32 %v1568, 16
    %v1932 = vor.u32 %v1929, %v1930
    %v1933 = vsel %vm1594, %v1925, %v1932
    %v1934 = vrot.slane %v1929, 4
    %v1936 = vshrl.u32 %v1569, 16
    %v1938 = vrot.slane %v1936, 7
    %v1939 = vshll.u32 %v1569, 16
    %v1941 = vor.u32 %v1938, %v1939
    %v1942 = vrot.slane %v1938, 4
    %v1944 = vshrl.u32 %v1570, 16
    %v1946 = vrot.slane %v1944, 7
    %v1947 = vshll.u32 %v1570, 16
    %v1949 = vor.u32 %v1946, %v1947
    %v1950 = vsel %vm1594, %v1942, %v1949
    %v1951 = vrot.slane %v1946, 4
    %v1953 = vshrl.u32 %v1571, 16
    %v1955 = vrot.slane %v1953, 7
    %v1956 = vshll.u32 %v1571, 16
    %v1958 = vor.u32 %v1955, %v1956
    %v1959 = vrot.slane %v1955, 4
    %v1961 = vshrl.u32 %v1572, 16
    %v1963 = vrot.slane %v1961, 7
    %v1964 = vshll.u32 %v1572, 16
    %v1966 = vor.u32 %v1963, %v1964
    %v1967 = vsel %vm1594, %v1959, %v1966
    %v1968 = vrot.slane %v1963, 4
    %v1970 = vshrl.u32 %v1573, 16
    %v1972 = vrot.slane %v1970, 7
    %v1973 = vshll.u32 %v1573, 16
    %v1975 = vor.u32 %v1972, %v1973
    %v1976 = vrot.slane %v1972, 4
    %v1978 = vshrl.u32 %v1574, 16
    %v1980 = vrot.slane %v1978, 7
    %v1981 = vshll.u32 %v1574, 16
    %v1983 = vor.u32 %v1980, %v1981
    %v1984 = vsel %vm1594, %v1976, %v1983
    %v1985 = vrot.slane %v1980, 4
    %v1987 = vshrl.u32 %v1575, 16
    %v1989 = vrot.slane %v1987, 7
    %v1990 = vshll.u32 %v1575, 16
    %v1992 = vor.u32 %v1989, %v1990
    %v1993 = vrot.slane %v1989, 4
    %v1995 = vshrl.u32 %v1576, 16
    %v1997 = vrot.slane %v1995, 7
    %v1998 = vshll.u32 %v1576, 16
    %v2000 = vor.u32 %v1997, %v1998
    %v2001 = vsel %vm1594, %v1993, %v2000
    %v2002 = vrot.slane %v1997, 4
    %v2004 = vshrl.u32 %v1577, 16
    %v2006 = vrot.slane %v2004, 7
    %v2007 = vshll.u32 %v1577, 16
    %v2009 = vor.u32 %v2006, %v2007
    %v2010 = vrot.slane %v2006, 4
    %v2012 = vshrl.u32 %v1578, 16
    %v2014 = vrot.slane %v2012, 7
    %v2015 = vshll.u32 %v1578, 16
    %v2017 = vor.u32 %v2014, %v2015
    %v2018 = vsel %vm1594, %v2010, %v2017
    %v2019 = vrot.slane %v2014, 4
    %v2021 = vshrl.u32 %v1579, 16
    %v2023 = vrot.slane %v2021, 7
    %v2024 = vshll.u32 %v1579, 16
    %v2026 = vor.u32 %v2023, %v2024
    %v2027 = vrot.slane %v2023, 4
    %v2029 = vshrl.u32 %v1580, 16
    %v2031 = vrot.slane %v2029, 7
    %v2032 = vshll.u32 %v1580, 16
    %v2034 = vor.u32 %v2031, %v2032
    %v2035 = vsel %vm1594, %v2027, %v2034
    %v2036 = vrot.slane %v2031, 4
    %v2038 = vshrl.u32 %v1581, 16
    %v2040 = vrot.slane %v2038, 7
    %v2041 = vshll.u32 %v1581, 16
    %v2043 = vor.u32 %v2040, %v2041
    %v2044 = vrot.slane %v2040, 4
    %v2046 = vshrl.u32 %v1582, 16
    %v2048 = vrot.slane %v2046, 7
    %v2049 = vshll.u32 %v1582, 16
    %v2051 = vor.u32 %v2048, %v2049
    %v2052 = vsel %vm1594, %v2044, %v2051
    %v2053 = vrot.slane %v2048, 4
    %v2055 = vshrl.u32 %v1583, 16
    %v2057 = vrot.slane %v2055, 7
    %v2058 = vshll.u32 %v1583, 16
    %v2060 = vor.u32 %v2057, %v2058
    %v2061 = vrot.slane %v2057, 4
    %v2063 = vshrl.u32 %v1584, 16
    %v2065 = vrot.slane %v2063, 7
    %v2066 = vshll.u32 %v1584, 16
    %v2068 = vor.u32 %v2065, %v2066
    %v2069 = vsel %vm1594, %v2061, %v2068
    %v2070 = vrot.slane %v2065, 4
    %v2072 = vshrl.u32 %v1585, 16
    %v2074 = vrot.slane %v2072, 7
    %v2075 = vshll.u32 %v1585, 16
    %v2077 = vor.u32 %v2074, %v2075
    %v2078 = vrot.slane %v2074, 4
    %v2080 = vshrl.u32 %v1586, 16
    %v2082 = vrot.slane %v2080, 7
    %v2083 = vshll.u32 %v1586, 16
    %v2085 = vor.u32 %v2082, %v2083
    %v2086 = vsel %vm1594, %v2078, %v2085
    %v2087 = vrot.slane %v2082, 4
    %v2089 = vshrl.u32 %v1587, 16
    %v2091 = vrot.slane %v2089, 7
    %v2092 = vshll.u32 %v1587, 16
    %v2094 = vor.u32 %v2091, %v2092
    %v2095 = vrot.slane %v2091, 4
    %v2097 = vshrl.u32 %v1588, 16
    %v2099 = vrot.slane %v2097, 7
    %v2100 = vshll.u32 %v1588, 16
    %v2102 = vor.u32 %v2099, %v2100
    %v2103 = vsel %vm1594, %v2095, %v2102
    %v2104 = vrot.slane %v2099, 4
    %v2106 = vshrl.u32 %v1589, 16
    %v2108 = vrot.slane %v2106, 7
    %v2109 = vshll.u32 %v1589, 16
    %v2111 = vor.u32 %v2108, %v2109
    %v2112 = vrot.slane %v2108, 4
    %v2114 = vshrl.u32 %v1590, 16
    %v2116 = vrot.slane %v2114, 7
    %v2117 = vshll.u32 %v1590, 16
    %v2119 = vor.u32 %v2116, %v2117
    %v2120 = vsel %vm1594, %v2112, %v2119
    %v2121 = vrot.slane %v2116, 4
    %v2123 = vshrl.u32 %v1591, 16
    %v2125 = vrot.slane %v2123, 7
    %v2126 = vshll.u32 %v1591, 16
    %v2128 = vor.u32 %v2125, %v2126
    %v2129 = vrot.slane %v2125, 4
    %v2131 = vshrl.u32 %v1592, 16
    %v2133 = vrot.slane %v2131, 7
    %v2134 = vshll.u32 %v1592, 16
    %v2136 = vor.u32 %v2133, %v2134
    %v2137 = vsel %vm1594, %v2129, %v2136
    %v2138 = vrot.slane %v2133, 4
    %vm2235 = vcmask 257024
    %vm2236 = vmand %vm2235, %vm1303
    %v2237 = vld [vmem:[%s1203] sm:$0xf]
    %v2238 = vsel %vm2236, %v1601, %v2237
    %2239 = vst [vmem:[%s1203] sm:$0xf] %v2238
    %2240 = vst.msk [vmem:[%s1203 + $0x4] sm:$0xf] %vm1188, %v1610
    %v2241 = vld [vmem:[%s1203 + $0x8] sm:$0x1]
    %v2242 = vsel %vm1206, %v1611, %v2241
    %2243 = vst [vmem:[%s1203 + $0x8] sm:$0x1] %v2242
    %v2244 = vld [vmem:[%s1203 + $0xc] sm:$0xf]
    %v2245 = vsel %vm2236, %v1618, %v2244
    %2246 = vst [vmem:[%s1203 + $0xc] sm:$0xf] %v2245
    %2247 = vst.msk [vmem:[%s1203 + $0x10] sm:$0xf] %vm1188, %v1627
    %v2248 = vld [vmem:[%s1203 + $0x14] sm:$0x1]
    %v2249 = vsel %vm1206, %v1628, %v2248
    %2250 = vst [vmem:[%s1203 + $0x14] sm:$0x1] %v2249
    %v2251 = vld [vmem:[%s1203 + $0x18] sm:$0xf]
    %v2252 = vsel %vm2236, %v1635, %v2251
    %2253 = vst [vmem:[%s1203 + $0x18] sm:$0xf] %v2252
    %2254 = vst.msk [vmem:[%s1203 + $0x1c] sm:$0xf] %vm1188, %v1644
    %v2255 = vld [vmem:[%s1203 + $0x20] sm:$0x1]
    %v2256 = vsel %vm1206, %v1645, %v2255
    %2257 = vst [vmem:[%s1203 + $0x20] sm:$0x1] %v2256
    %v2258 = vld [vmem:[%s1203 + $0x24] sm:$0xf]
    %v2259 = vsel %vm2236, %v1652, %v2258
    %2260 = vst [vmem:[%s1203 + $0x24] sm:$0xf] %v2259
    %2261 = vst.msk [vmem:[%s1203 + $0x28] sm:$0xf] %vm1188, %v1661
    %v2262 = vld [vmem:[%s1203 + $0x2c] sm:$0x1]
    %v2263 = vsel %vm1206, %v1662, %v2262
    %2264 = vst [vmem:[%s1203 + $0x2c] sm:$0x1] %v2263
    %v2265 = vld [vmem:[%s1203 + $0x30] sm:$0xf]
    %v2266 = vsel %vm2236, %v1669, %v2265
    %2267 = vst [vmem:[%s1203 + $0x30] sm:$0xf] %v2266
    %2268 = vst.msk [vmem:[%s1203 + $0x34] sm:$0xf] %vm1188, %v1678
    %v2269 = vld [vmem:[%s1203 + $0x38] sm:$0x1]
    %v2270 = vsel %vm1206, %v1679, %v2269
    %2271 = vst [vmem:[%s1203 + $0x38] sm:$0x1] %v2270
    %v2272 = vld [vmem:[%s1203 + $0x3c] sm:$0xf]
    %v2273 = vsel %vm2236, %v1686, %v2272
    %2274 = vst [vmem:[%s1203 + $0x3c] sm:$0xf] %v2273
    %2275 = vst.msk [vmem:[%s1203 + $0x40] sm:$0xf] %vm1188, %v1695
    %v2276 = vld [vmem:[%s1203 + $0x44] sm:$0x1]
    %v2277 = vsel %vm1206, %v1696, %v2276
    %2278 = vst [vmem:[%s1203 + $0x44] sm:$0x1] %v2277
    %v2279 = vld [vmem:[%s1203 + $0x48] sm:$0xf]
    %v2280 = vsel %vm2236, %v1703, %v2279
    %2281 = vst [vmem:[%s1203 + $0x48] sm:$0xf] %v2280
    %2282 = vst.msk [vmem:[%s1203 + $0x4c] sm:$0xf] %vm1188, %v1712
    %v2283 = vld [vmem:[%s1203 + $0x50] sm:$0x1]
    %v2284 = vsel %vm1206, %v1713, %v2283
    %2285 = vst [vmem:[%s1203 + $0x50] sm:$0x1] %v2284
    %v2286 = vld [vmem:[%s1203 + $0x54] sm:$0xf]
    %v2287 = vsel %vm2236, %v1720, %v2286
    %2288 = vst [vmem:[%s1203 + $0x54] sm:$0xf] %v2287
    %2289 = vst.msk [vmem:[%s1203 + $0x58] sm:$0xf] %vm1188, %v1729
    %v2290 = vld [vmem:[%s1203 + $0x5c] sm:$0x1]
    %v2291 = vsel %vm1206, %v1730, %v2290
    %2292 = vst [vmem:[%s1203 + $0x5c] sm:$0x1] %v2291
    %v2293 = vld [vmem:[%s1203 + $0x60] sm:$0xf]
    %v2294 = vsel %vm2236, %v1737, %v2293
    %2295 = vst [vmem:[%s1203 + $0x60] sm:$0xf] %v2294
    %2296 = vst.msk [vmem:[%s1203 + $0x64] sm:$0xf] %vm1188, %v1746
    %v2297 = vld [vmem:[%s1203 + $0x68] sm:$0x1]
    %v2298 = vsel %vm1206, %v1747, %v2297
    %2299 = vst [vmem:[%s1203 + $0x68] sm:$0x1] %v2298
    %v2300 = vld [vmem:[%s1203 + $0x6c] sm:$0xf]
    %v2301 = vsel %vm2236, %v1754, %v2300
    %2302 = vst [vmem:[%s1203 + $0x6c] sm:$0xf] %v2301
    %2303 = vst.msk [vmem:[%s1203 + $0x70] sm:$0xf] %vm1188, %v1763
    %v2304 = vld [vmem:[%s1203 + $0x74] sm:$0x1]
    %v2305 = vsel %vm1206, %v1764, %v2304
    %2306 = vst [vmem:[%s1203 + $0x74] sm:$0x1] %v2305
    %v2307 = vld [vmem:[%s1203 + $0x78] sm:$0xf]
    %v2308 = vsel %vm2236, %v1771, %v2307
    %2309 = vst [vmem:[%s1203 + $0x78] sm:$0xf] %v2308
    %2310 = vst.msk [vmem:[%s1203 + $0x7c] sm:$0xf] %vm1188, %v1780
    %v2311 = vld [vmem:[%s1203 + $0x80] sm:$0x1]
    %v2312 = vsel %vm1206, %v1781, %v2311
    %2313 = vst [vmem:[%s1203 + $0x80] sm:$0x1] %v2312
    %v2314 = vld [vmem:[%s1203 + $0x84] sm:$0xf]
    %v2315 = vsel %vm2236, %v1788, %v2314
    %2316 = vst [vmem:[%s1203 + $0x84] sm:$0xf] %v2315
    %2317 = vst.msk [vmem:[%s1203 + $0x88] sm:$0xf] %vm1188, %v1797
    %v2318 = vld [vmem:[%s1203 + $0x8c] sm:$0x1]
    %v2319 = vsel %vm1206, %v1798, %v2318
    %2320 = vst [vmem:[%s1203 + $0x8c] sm:$0x1] %v2319
    %v2321 = vld [vmem:[%s1203 + $0x90] sm:$0xf]
    %v2322 = vsel %vm2236, %v1805, %v2321
    %2323 = vst [vmem:[%s1203 + $0x90] sm:$0xf] %v2322
    %2324 = vst.msk [vmem:[%s1203 + $0x94] sm:$0xf] %vm1188, %v1814
    %v2325 = vld [vmem:[%s1203 + $0x98] sm:$0x1]
    %v2326 = vsel %vm1206, %v1815, %v2325
    %2327 = vst [vmem:[%s1203 + $0x98] sm:$0x1] %v2326
    %v2328 = vld [vmem:[%s1203 + $0x9c] sm:$0xf]
    %v2329 = vsel %vm2236, %v1822, %v2328
    %2330 = vst [vmem:[%s1203 + $0x9c] sm:$0xf] %v2329
    %2331 = vst.msk [vmem:[%s1203 + $0xa0] sm:$0xf] %vm1188, %v1831
    %v2332 = vld [vmem:[%s1203 + $0xa4] sm:$0x1]
    %v2333 = vsel %vm1206, %v1832, %v2332
    %2334 = vst [vmem:[%s1203 + $0xa4] sm:$0x1] %v2333
    %v2335 = vld [vmem:[%s1203 + $0xa8] sm:$0xf]
    %v2336 = vsel %vm2236, %v1839, %v2335
    %2337 = vst [vmem:[%s1203 + $0xa8] sm:$0xf] %v2336
    %2338 = vst.msk [vmem:[%s1203 + $0xac] sm:$0xf] %vm1188, %v1848
    %v2339 = vld [vmem:[%s1203 + $0xb0] sm:$0x1]
    %v2340 = vsel %vm1206, %v1849, %v2339
    %2341 = vst [vmem:[%s1203 + $0xb0] sm:$0x1] %v2340
    %v2342 = vld [vmem:[%s1203 + $0xb4] sm:$0xf]
    %v2343 = vsel %vm2236, %v1856, %v2342
    %2344 = vst [vmem:[%s1203 + $0xb4] sm:$0xf] %v2343
    %2345 = vst.msk [vmem:[%s1203 + $0xb8] sm:$0xf] %vm1188, %v1865
    %v2346 = vld [vmem:[%s1203 + $0xbc] sm:$0x1]
    %v2347 = vsel %vm1206, %v1866, %v2346
    %2348 = vst [vmem:[%s1203 + $0xbc] sm:$0x1] %v2347
    %v2349 = vld [vmem:[%s1203 + $0xd8] sm:$0xf]
    %v2350 = vsel %vm2236, %v1873, %v2349
    %2351 = vst [vmem:[%s1203 + $0xd8] sm:$0xf] %v2350
    %2352 = vst.msk [vmem:[%s1203 + $0xdc] sm:$0xf] %vm1188, %v1882
    %v2353 = vld [vmem:[%s1203 + $0xe0] sm:$0x1]
    %v2354 = vsel %vm1206, %v1883, %v2353
    %2355 = vst [vmem:[%s1203 + $0xe0] sm:$0x1] %v2354
    %v2356 = vld [vmem:[%s1203 + $0xe4] sm:$0xf]
    %v2357 = vsel %vm2236, %v1890, %v2356
    %2358 = vst [vmem:[%s1203 + $0xe4] sm:$0xf] %v2357
    %2359 = vst.msk [vmem:[%s1203 + $0xe8] sm:$0xf] %vm1188, %v1899
    %v2360 = vld [vmem:[%s1203 + $0xec] sm:$0x1]
    %v2361 = vsel %vm1206, %v1900, %v2360
    %2362 = vst [vmem:[%s1203 + $0xec] sm:$0x1] %v2361
    %v2363 = vld [vmem:[%s1203 + $0xf0] sm:$0xf]
    %v2364 = vsel %vm2236, %v1907, %v2363
    %2365 = vst [vmem:[%s1203 + $0xf0] sm:$0xf] %v2364
    %2366 = vst.msk [vmem:[%s1203 + $0xf4] sm:$0xf] %vm1188, %v1916
    %v2367 = vld [vmem:[%s1203 + $0xf8] sm:$0x1]
    %v2368 = vsel %vm1206, %v1917, %v2367
    %2369 = vst [vmem:[%s1203 + $0xf8] sm:$0x1] %v2368
    %v2370 = vld [vmem:[%s1203 + $0xfc] sm:$0xf]
    %v2371 = vsel %vm2236, %v1924, %v2370
    %2372 = vst [vmem:[%s1203 + $0xfc] sm:$0xf] %v2371
    %2373 = vst.msk [vmem:[%s1203 + $0x100] sm:$0xf] %vm1188, %v1933
    %v2374 = vld [vmem:[%s1203 + $0x104] sm:$0x1]
    %v2375 = vsel %vm1206, %v1934, %v2374
    %2376 = vst [vmem:[%s1203 + $0x104] sm:$0x1] %v2375
    %v2377 = vld [vmem:[%s1203 + $0x108] sm:$0xf]
    %v2378 = vsel %vm2236, %v1941, %v2377
    %2379 = vst [vmem:[%s1203 + $0x108] sm:$0xf] %v2378
    %2380 = vst.msk [vmem:[%s1203 + $0x10c] sm:$0xf] %vm1188, %v1950
    %v2381 = vld [vmem:[%s1203 + $0x110] sm:$0x1]
    %v2382 = vsel %vm1206, %v1951, %v2381
    %2383 = vst [vmem:[%s1203 + $0x110] sm:$0x1] %v2382
    %v2384 = vld [vmem:[%s1203 + $0x114] sm:$0xf]
    %v2385 = vsel %vm2236, %v1958, %v2384
    %2386 = vst [vmem:[%s1203 + $0x114] sm:$0xf] %v2385
    %2387 = vst.msk [vmem:[%s1203 + $0x118] sm:$0xf] %vm1188, %v1967
    %v2388 = vld [vmem:[%s1203 + $0x11c] sm:$0x1]
    %v2389 = vsel %vm1206, %v1968, %v2388
    %2390 = vst [vmem:[%s1203 + $0x11c] sm:$0x1] %v2389
    %v2391 = vld [vmem:[%s1203 + $0x120] sm:$0xf]
    %v2392 = vsel %vm2236, %v1975, %v2391
    %2393 = vst [vmem:[%s1203 + $0x120] sm:$0xf] %v2392
    %2394 = vst.msk [vmem:[%s1203 + $0x124] sm:$0xf] %vm1188, %v1984
    %v2395 = vld [vmem:[%s1203 + $0x128] sm:$0x1]
    %v2396 = vsel %vm1206, %v1985, %v2395
    %2397 = vst [vmem:[%s1203 + $0x128] sm:$0x1] %v2396
    %v2398 = vld [vmem:[%s1203 + $0x12c] sm:$0xf]
    %v2399 = vsel %vm2236, %v1992, %v2398
    %2400 = vst [vmem:[%s1203 + $0x12c] sm:$0xf] %v2399
    %2401 = vst.msk [vmem:[%s1203 + $0x130] sm:$0xf] %vm1188, %v2001
    %v2402 = vld [vmem:[%s1203 + $0x134] sm:$0x1]
    %v2403 = vsel %vm1206, %v2002, %v2402
    %2404 = vst [vmem:[%s1203 + $0x134] sm:$0x1] %v2403
    %v2405 = vld [vmem:[%s1203 + $0x138] sm:$0xf]
    %v2406 = vsel %vm2236, %v2009, %v2405
    %2407 = vst [vmem:[%s1203 + $0x138] sm:$0xf] %v2406
    %2408 = vst.msk [vmem:[%s1203 + $0x13c] sm:$0xf] %vm1188, %v2018
    %v2409 = vld [vmem:[%s1203 + $0x140] sm:$0x1]
    %v2410 = vsel %vm1206, %v2019, %v2409
    %2411 = vst [vmem:[%s1203 + $0x140] sm:$0x1] %v2410
    %v2412 = vld [vmem:[%s1203 + $0x144] sm:$0xf]
    %v2413 = vsel %vm2236, %v2026, %v2412
    %2414 = vst [vmem:[%s1203 + $0x144] sm:$0xf] %v2413
    %2415 = vst.msk [vmem:[%s1203 + $0x148] sm:$0xf] %vm1188, %v2035
    %v2416 = vld [vmem:[%s1203 + $0x14c] sm:$0x1]
    %v2417 = vsel %vm1206, %v2036, %v2416
    %2418 = vst [vmem:[%s1203 + $0x14c] sm:$0x1] %v2417
    %v2419 = vld [vmem:[%s1203 + $0x150] sm:$0xf]
    %v2420 = vsel %vm2236, %v2043, %v2419
    %2421 = vst [vmem:[%s1203 + $0x150] sm:$0xf] %v2420
    %2422 = vst.msk [vmem:[%s1203 + $0x154] sm:$0xf] %vm1188, %v2052
    %v2423 = vld [vmem:[%s1203 + $0x158] sm:$0x1]
    %v2424 = vsel %vm1206, %v2053, %v2423
    %2425 = vst [vmem:[%s1203 + $0x158] sm:$0x1] %v2424
    %v2426 = vld [vmem:[%s1203 + $0x15c] sm:$0xf]
    %v2427 = vsel %vm2236, %v2060, %v2426
    %2428 = vst [vmem:[%s1203 + $0x15c] sm:$0xf] %v2427
    %2429 = vst.msk [vmem:[%s1203 + $0x160] sm:$0xf] %vm1188, %v2069
    %v2430 = vld [vmem:[%s1203 + $0x164] sm:$0x1]
    %v2431 = vsel %vm1206, %v2070, %v2430
    %2432 = vst [vmem:[%s1203 + $0x164] sm:$0x1] %v2431
    %v2433 = vld [vmem:[%s1203 + $0x168] sm:$0xf]
    %v2434 = vsel %vm2236, %v2077, %v2433
    %2435 = vst [vmem:[%s1203 + $0x168] sm:$0xf] %v2434
    %2436 = vst.msk [vmem:[%s1203 + $0x16c] sm:$0xf] %vm1188, %v2086
    %v2437 = vld [vmem:[%s1203 + $0x170] sm:$0x1]
    %v2438 = vsel %vm1206, %v2087, %v2437
    %2439 = vst [vmem:[%s1203 + $0x170] sm:$0x1] %v2438
    %v2440 = vld [vmem:[%s1203 + $0x174] sm:$0xf]
    %v2441 = vsel %vm2236, %v2094, %v2440
    %2442 = vst [vmem:[%s1203 + $0x174] sm:$0xf] %v2441
    %2443 = vst.msk [vmem:[%s1203 + $0x178] sm:$0xf] %vm1188, %v2103
    %v2444 = vld [vmem:[%s1203 + $0x17c] sm:$0x1]
    %v2445 = vsel %vm1206, %v2104, %v2444
    %2446 = vst [vmem:[%s1203 + $0x17c] sm:$0x1] %v2445
    %v2447 = vld [vmem:[%s1203 + $0x180] sm:$0xf]
    %v2448 = vsel %vm2236, %v2111, %v2447
    %2449 = vst [vmem:[%s1203 + $0x180] sm:$0xf] %v2448
    %2450 = vst.msk [vmem:[%s1203 + $0x184] sm:$0xf] %vm1188, %v2120
    %v2451 = vld [vmem:[%s1203 + $0x188] sm:$0x1]
    %v2452 = vsel %vm1206, %v2121, %v2451
    %2453 = vst [vmem:[%s1203 + $0x188] sm:$0x1] %v2452
    %v2454 = vld [vmem:[%s1203 + $0x18c] sm:$0xf]
    %v2455 = vsel %vm2236, %v2128, %v2454
    %2456 = vst [vmem:[%s1203 + $0x18c] sm:$0xf] %v2455
    %2457 = vst.msk [vmem:[%s1203 + $0x190] sm:$0xf] %vm1188, %v2137
    %v2458 = vld [vmem:[%s1203 + $0x194] sm:$0x1]
    %v2459 = vsel %vm1206, %v2138, %v2458
    %2460 = vst [vmem:[%s1203 + $0x194] sm:$0x1] %v2459
    %v2461 = vld [vmem:[#allocation2] sm:$0xf]
    %v2462 = vld [vmem:[#allocation2 + $0x4] sm:$0xf]
    %v2463 = vld [vmem:[#allocation2 + $0xc] sm:$0xf]
    %v2464 = vld [vmem:[#allocation2 + $0x10] sm:$0xf]
    %v2465 = vld [vmem:[#allocation2 + $0x18] sm:$0xf]
    %v2466 = vld [vmem:[#allocation2 + $0x1c] sm:$0xf]
    %v2467 = vld [vmem:[#allocation2 + $0x24] sm:$0xf]
    %v2468 = vld [vmem:[#allocation2 + $0x28] sm:$0xf]
    %v2469 = vld [vmem:[#allocation2 + $0x30] sm:$0xf]
    %v2470 = vld [vmem:[#allocation2 + $0x34] sm:$0xf]
    %v2471 = vld [vmem:[#allocation2 + $0x3c] sm:$0xf]
    %v2472 = vld [vmem:[#allocation2 + $0x40] sm:$0xf]
    %v2473 = vld [vmem:[#allocation2 + $0x48] sm:$0xf]
    %v2474 = vld [vmem:[#allocation2 + $0x4c] sm:$0xf]
    %v2475 = vld [vmem:[#allocation2 + $0x54] sm:$0xf]
    %v2476 = vld [vmem:[#allocation2 + $0x58] sm:$0xf]
    %v2477 = vld [vmem:[#allocation2 + $0x60] sm:$0xf]
    %v2478 = vld [vmem:[#allocation2 + $0x64] sm:$0xf]
    %v2479 = vld [vmem:[#allocation2 + $0x6c] sm:$0xf]
    %v2480 = vld [vmem:[#allocation2 + $0x70] sm:$0xf]
    %v2481 = vld [vmem:[#allocation2 + $0x78] sm:$0xf]
    %v2482 = vld [vmem:[#allocation2 + $0x7c] sm:$0xf]
    %v2483 = vld [vmem:[#allocation2 + $0x84] sm:$0xf]
    %v2484 = vld [vmem:[#allocation2 + $0x88] sm:$0xf]
    %v2485 = vld [vmem:[#allocation2 + $0x90] sm:$0xf]
    %v2486 = vld [vmem:[#allocation2 + $0x94] sm:$0xf]
    %v2487 = vld [vmem:[#allocation2 + $0x9c] sm:$0xf]
    %v2488 = vld [vmem:[#allocation2 + $0xa0] sm:$0xf]
    %v2489 = vld [vmem:[#allocation2 + $0xa8] sm:$0xf]
    %v2490 = vld [vmem:[#allocation2 + $0xac] sm:$0xf]
    %v2491 = vld [vmem:[#allocation2 + $0xb4] sm:$0xf]
    %v2492 = vld [vmem:[#allocation2 + $0xb8] sm:$0xf]
    %v2493 = vld [vmem:[#allocation2 + $0xd8] sm:$0xf]
    %v2494 = vld [vmem:[#allocation2 + $0xdc] sm:$0xf]
    %v2495 = vld [vmem:[#allocation2 + $0xe4] sm:$0xf]
    %v2496 = vld [vmem:[#allocation2 + $0xe8] sm:$0xf]
    %v2497 = vld [vmem:[#allocation2 + $0xf0] sm:$0xf]
    %v2498 = vld [vmem:[#allocation2 + $0xf4] sm:$0xf]
    %v2499 = vld [vmem:[#allocation2 + $0xfc] sm:$0xf]
    %v2500 = vld [vmem:[#allocation2 + $0x100] sm:$0xf]
    %v2501 = vld [vmem:[#allocation2 + $0x108] sm:$0xf]
    %v2502 = vld [vmem:[#allocation2 + $0x10c] sm:$0xf]
    %v2503 = vld [vmem:[#allocation2 + $0x114] sm:$0xf]
    %v2504 = vld [vmem:[#allocation2 + $0x118] sm:$0xf]
    %v2505 = vld [vmem:[#allocation2 + $0x120] sm:$0xf]
    %v2506 = vld [vmem:[#allocation2 + $0x124] sm:$0xf]
    %v2507 = vld [vmem:[#allocation2 + $0x12c] sm:$0xf]
    %v2508 = vld [vmem:[#allocation2 + $0x130] sm:$0xf]
    %v2509 = vld [vmem:[#allocation2 + $0x138] sm:$0xf]
    %v2510 = vld [vmem:[#allocation2 + $0x13c] sm:$0xf]
    %v2511 = vld [vmem:[#allocation2 + $0x144] sm:$0xf]
    %v2512 = vld [vmem:[#allocation2 + $0x148] sm:$0xf]
    %v2513 = vld [vmem:[#allocation2 + $0x150] sm:$0xf]
    %v2514 = vld [vmem:[#allocation2 + $0x154] sm:$0xf]
    %v2515 = vld [vmem:[#allocation2 + $0x15c] sm:$0xf]
    %v2516 = vld [vmem:[#allocation2 + $0x160] sm:$0xf]
    %v2517 = vld [vmem:[#allocation2 + $0x168] sm:$0xf]
    %v2518 = vld [vmem:[#allocation2 + $0x16c] sm:$0xf]
    %v2519 = vld [vmem:[#allocation2 + $0x174] sm:$0xf]
    %v2520 = vld [vmem:[#allocation2 + $0x178] sm:$0xf]
    %v2521 = vld [vmem:[#allocation2 + $0x180] sm:$0xf]
    %v2522 = vld [vmem:[#allocation2 + $0x184] sm:$0xf]
    %v2523 = vld [vmem:[#allocation2 + $0x18c] sm:$0xf]
    %v2524 = vld [vmem:[#allocation2 + $0x190] sm:$0xf]
    %v2525 = vld [vmem:[#allocation7] sm:$0xf]
    %v2526 = vld [vmem:[#allocation7 + $0x4] sm:$0xf]
    %v2527 = vld [vmem:[#allocation7 + $0x8] sm:$0xf]
    %v2528 = vld [vmem:[#allocation7 + $0xc] sm:$0xf]
    %v2529 = vld [vmem:[#allocation2 + $0x8] sm:$0x1]
    %v2530 = vld [vmem:[#allocation2 + $0x14] sm:$0x1]
    %v2531 = vld [vmem:[#allocation2 + $0x20] sm:$0x1]
    %v2532 = vld [vmem:[#allocation2 + $0x2c] sm:$0x1]
    %v2533 = vld [vmem:[#allocation2 + $0x38] sm:$0x1]
    %v2534 = vld [vmem:[#allocation2 + $0x44] sm:$0x1]
    %v2535 = vld [vmem:[#allocation2 + $0x50] sm:$0x1]
    %v2536 = vld [vmem:[#allocation2 + $0x5c] sm:$0x1]
    %v2537 = vld [vmem:[#allocation2 + $0x68] sm:$0x1]
    %v2538 = vld [vmem:[#allocation2 + $0x74] sm:$0x1]
    %v2539 = vld [vmem:[#allocation2 + $0x80] sm:$0x1]
    %v2540 = vld [vmem:[#allocation2 + $0x8c] sm:$0x1]
    %v2541 = vld [vmem:[#allocation2 + $0x98] sm:$0x1]
    %v2542 = vld [vmem:[#allocation2 + $0xa4] sm:$0x1]
    %v2543 = vld [vmem:[#allocation2 + $0xb0] sm:$0x1]
    %v2544 = vld [vmem:[#allocation2 + $0xbc] sm:$0x1]
    %v2545 = vld [vmem:[#allocation2 + $0xe0] sm:$0x1]
    %v2546 = vld [vmem:[#allocation2 + $0xec] sm:$0x1]
    %v2547 = vld [vmem:[#allocation2 + $0xf8] sm:$0x1]
    %v2548 = vld [vmem:[#allocation2 + $0x104] sm:$0x1]
    %v2549 = vld [vmem:[#allocation2 + $0x110] sm:$0x1]
    %v2550 = vld [vmem:[#allocation2 + $0x11c] sm:$0x1]
    %v2551 = vld [vmem:[#allocation2 + $0x128] sm:$0x1]
    %v2552 = vld [vmem:[#allocation2 + $0x134] sm:$0x1]
    %v2553 = vld [vmem:[#allocation2 + $0x140] sm:$0x1]
    %v2554 = vld [vmem:[#allocation2 + $0x14c] sm:$0x1]
    %v2555 = vld [vmem:[#allocation2 + $0x158] sm:$0x1]
    %v2556 = vld [vmem:[#allocation2 + $0x164] sm:$0x1]
    %v2557 = vld [vmem:[#allocation2 + $0x170] sm:$0x1]
    %v2558 = vld [vmem:[#allocation2 + $0x17c] sm:$0x1]
    %v2559 = vld [vmem:[#allocation2 + $0x188] sm:$0x1]
    %v2560 = vld [vmem:[#allocation2 + $0x194] sm:$0x1]
    %vm2561 = vsmask.f32 3328
    %vm2562 = vsmask.f32 7440
    %vm2563 = vmor %vm2561, %vm2562
    %v2565 = vshrl.u32 %v2461, 16
    %v2567 = vrot.slane %v2565, 4
    %v2568 = vshll.u32 %v2461, 16
    %v2570 = vrot.slane %v2568, 5
    %v2571 = vor.u32 %v2567, %v2570
    %v2572 = vrot.slane %v2571, 4
    %v2574 = vshll.u32 %v2462, 16
    %v2576 = vrot.slane %v2574, 5
    %v2577 = vsel %vm2563, %v2572, %v2576
    %v2578 = vshrl.u32 %v2462, 16
    %v2580 = vrot.slane %v2578, 4
    %v2581 = vor.u32 %v2580, %v2576
    %v2582 = vrot.slane %v2581, 4
    %v2584 = vshll.u32 %v2529, 16
    %v2586 = vrot.slane %v2584, 5
    %v2587 = vsel %vm2563, %v2582, %v2586
    %v2589 = vshrl.u32 %v2463, 16
    %v2591 = vrot.slane %v2589, 4
    %v2592 = vshll.u32 %v2463, 16
    %v2594 = vrot.slane %v2592, 5
    %v2595 = vor.u32 %v2591, %v2594
    %v2596 = vrot.slane %v2595, 4
    %v2598 = vshll.u32 %v2464, 16
    %v2600 = vrot.slane %v2598, 5
    %v2601 = vsel %vm2563, %v2596, %v2600
    %v2602 = vshrl.u32 %v2464, 16
    %v2604 = vrot.slane %v2602, 4
    %v2605 = vor.u32 %v2604, %v2600
    %v2606 = vrot.slane %v2605, 4
    %v2608 = vshll.u32 %v2530, 16
    %v2610 = vrot.slane %v2608, 5
    %v2611 = vsel %vm2563, %v2606, %v2610
    %v2613 = vshrl.u32 %v2465, 16
    %v2615 = vrot.slane %v2613, 4
    %v2616 = vshll.u32 %v2465, 16
    %v2618 = vrot.slane %v2616, 5
    %v2619 = vor.u32 %v2615, %v2618
    %v2620 = vrot.slane %v2619, 4
    %v2622 = vshll.u32 %v2466, 16
    %v2624 = vrot.slane %v2622, 5
    %v2625 = vsel %vm2563, %v2620, %v2624
    %v2626 = vshrl.u32 %v2466, 16
    %v2628 = vrot.slane %v2626, 4
    %v2629 = vor.u32 %v2628, %v2624
    %v2630 = vrot.slane %v2629, 4
    %v2632 = vshll.u32 %v2531, 16
    %v2634 = vrot.slane %v2632, 5
    %v2635 = vsel %vm2563, %v2630, %v2634
    %v2637 = vshrl.u32 %v2467, 16
    %v2639 = vrot.slane %v2637, 4
    %v2640 = vshll.u32 %v2467, 16
    %v2642 = vrot.slane %v2640, 5
    %v2643 = vor.u32 %v2639, %v2642
    %v2644 = vrot.slane %v2643, 4
    %v2646 = vshll.u32 %v2468, 16
    %v2648 = vrot.slane %v2646, 5
    %v2649 = vsel %vm2563, %v2644, %v2648
    %v2650 = vshrl.u32 %v2468, 16
    %v2652 = vrot.slane %v2650, 4
    %v2653 = vor.u32 %v2652, %v2648
    %v2654 = vrot.slane %v2653, 4
    %v2656 = vshll.u32 %v2532, 16
    %v2658 = vrot.slane %v2656, 5
    %v2659 = vsel %vm2563, %v2654, %v2658
    %v2661 = vshrl.u32 %v2469, 16
    %v2663 = vrot.slane %v2661, 4
    %v2664 = vshll.u32 %v2469, 16
    %v2666 = vrot.slane %v2664, 5
    %v2667 = vor.u32 %v2663, %v2666
    %v2668 = vrot.slane %v2667, 4
    %v2670 = vshll.u32 %v2470, 16
    %v2672 = vrot.slane %v2670, 5
    %v2673 = vsel %vm2563, %v2668, %v2672
    %v2674 = vshrl.u32 %v2470, 16
    %v2676 = vrot.slane %v2674, 4
    %v2677 = vor.u32 %v2676, %v2672
    %v2678 = vrot.slane %v2677, 4
    %v2680 = vshll.u32 %v2533, 16
    %v2682 = vrot.slane %v2680, 5
    %v2683 = vsel %vm2563, %v2678, %v2682
    %v2685 = vshrl.u32 %v2471, 16
    %v2687 = vrot.slane %v2685, 4
    %v2688 = vshll.u32 %v2471, 16
    %v2690 = vrot.slane %v2688, 5
    %v2691 = vor.u32 %v2687, %v2690
    %v2692 = vrot.slane %v2691, 4
    %v2694 = vshll.u32 %v2472, 16
    %v2696 = vrot.slane %v2694, 5
    %v2697 = vsel %vm2563, %v2692, %v2696
    %v2698 = vshrl.u32 %v2472, 16
    %v2700 = vrot.slane %v2698, 4
    %v2701 = vor.u32 %v2700, %v2696
    %v2702 = vrot.slane %v2701, 4
    %v2704 = vshll.u32 %v2534, 16
    %v2706 = vrot.slane %v2704, 5
    %v2707 = vsel %vm2563, %v2702, %v2706
    %v2709 = vshrl.u32 %v2473, 16
    %v2711 = vrot.slane %v2709, 4
    %v2712 = vshll.u32 %v2473, 16
    %v2714 = vrot.slane %v2712, 5
    %v2715 = vor.u32 %v2711, %v2714
    %v2716 = vrot.slane %v2715, 4
    %v2718 = vshll.u32 %v2474, 16
    %v2720 = vrot.slane %v2718, 5
    %v2721 = vsel %vm2563, %v2716, %v2720
    %v2722 = vshrl.u32 %v2474, 16
    %v2724 = vrot.slane %v2722, 4
    %v2725 = vor.u32 %v2724, %v2720
    %v2726 = vrot.slane %v2725, 4
    %v2728 = vshll.u32 %v2535, 16
    %v2730 = vrot.slane %v2728, 5
    %v2731 = vsel %vm2563, %v2726, %v2730
    %v2733 = vshrl.u32 %v2475, 16
    %v2735 = vrot.slane %v2733, 4
    %v2736 = vshll.u32 %v2475, 16
    %v2738 = vrot.slane %v2736, 5
    %v2739 = vor.u32 %v2735, %v2738
    %v2740 = vrot.slane %v2739, 4
    %v2742 = vshll.u32 %v2476, 16
    %v2744 = vrot.slane %v2742, 5
    %v2745 = vsel %vm2563, %v2740, %v2744
    %v2746 = vshrl.u32 %v2476, 16
    %v2748 = vrot.slane %v2746, 4
    %v2749 = vor.u32 %v2748, %v2744
    %v2750 = vrot.slane %v2749, 4
    %v2752 = vshll.u32 %v2536, 16
    %v2754 = vrot.slane %v2752, 5
    %v2755 = vsel %vm2563, %v2750, %v2754
    %v2757 = vshrl.u32 %v2477, 16
    %v2759 = vrot.slane %v2757, 4
    %v2760 = vshll.u32 %v2477, 16
    %v2762 = vrot.slane %v2760, 5
    %v2763 = vor.u32 %v2759, %v2762
    %v2764 = vrot.slane %v2763, 4
    %v2766 = vshll.u32 %v2478, 16
    %v2768 = vrot.slane %v2766, 5
    %v2769 = vsel %vm2563, %v2764, %v2768
    %v2770 = vshrl.u32 %v2478, 16
    %v2772 = vrot.slane %v2770, 4
    %v2773 = vor.u32 %v2772, %v2768
    %v2774 = vrot.slane %v2773, 4
    %v2776 = vshll.u32 %v2537, 16
    %v2778 = vrot.slane %v2776, 5
    %v2779 = vsel %vm2563, %v2774, %v2778
    %v2781 = vshrl.u32 %v2479, 16
    %v2783 = vrot.slane %v2781, 4
    %v2784 = vshll.u32 %v2479, 16
    %v2786 = vrot.slane %v2784, 5
    %v2787 = vor.u32 %v2783, %v2786
    %v2788 = vrot.slane %v2787, 4
    %v2790 = vshll.u32 %v2480, 16
    %v2792 = vrot.slane %v2790, 5
    %v2793 = vsel %vm2563, %v2788, %v2792
    %v2794 = vshrl.u32 %v2480, 16
    %v2796 = vrot.slane %v2794, 4
    %v2797 = vor.u32 %v2796, %v2792
    %v2798 = vrot.slane %v2797, 4
    %v2800 = vshll.u32 %v2538, 16
    %v2802 = vrot.slane %v2800, 5
    %v2803 = vsel %vm2563, %v2798, %v2802
    %v2805 = vshrl.u32 %v2481, 16
    %v2807 = vrot.slane %v2805, 4
    %v2808 = vshll.u32 %v2481, 16
    %v2810 = vrot.slane %v2808, 5
    %v2811 = vor.u32 %v2807, %v2810
    %v2812 = vrot.slane %v2811, 4
    %v2814 = vshll.u32 %v2482, 16
    %v2816 = vrot.slane %v2814, 5
    %v2817 = vsel %vm2563, %v2812, %v2816
    %v2818 = vshrl.u32 %v2482, 16
    %v2820 = vrot.slane %v2818, 4
    %v2821 = vor.u32 %v2820, %v2816
    %v2822 = vrot.slane %v2821, 4
    %v2824 = vshll.u32 %v2539, 16
    %v2826 = vrot.slane %v2824, 5
    %v2827 = vsel %vm2563, %v2822, %v2826
    %v2829 = vshrl.u32 %v2483, 16
    %v2831 = vrot.slane %v2829, 4
    %v2832 = vshll.u32 %v2483, 16
    %v2834 = vrot.slane %v2832, 5
    %v2835 = vor.u32 %v2831, %v2834
    %v2836 = vrot.slane %v2835, 4
    %v2838 = vshll.u32 %v2484, 16
    %v2840 = vrot.slane %v2838, 5
    %v2841 = vsel %vm2563, %v2836, %v2840
    %v2842 = vshrl.u32 %v2484, 16
    %v2844 = vrot.slane %v2842, 4
    %v2845 = vor.u32 %v2844, %v2840
    %v2846 = vrot.slane %v2845, 4
    %v2848 = vshll.u32 %v2540, 16
    %v2850 = vrot.slane %v2848, 5
    %v2851 = vsel %vm2563, %v2846, %v2850
    %v2853 = vshrl.u32 %v2485, 16
    %v2855 = vrot.slane %v2853, 4
    %v2856 = vshll.u32 %v2485, 16
    %v2858 = vrot.slane %v2856, 5
    %v2859 = vor.u32 %v2855, %v2858
    %v2860 = vrot.slane %v2859, 4
    %v2862 = vshll.u32 %v2486, 16
    %v2864 = vrot.slane %v2862, 5
    %v2865 = vsel %vm2563, %v2860, %v2864
    %v2866 = vshrl.u32 %v2486, 16
    %v2868 = vrot.slane %v2866, 4
    %v2869 = vor.u32 %v2868, %v2864
    %v2870 = vrot.slane %v2869, 4
    %v2872 = vshll.u32 %v2541, 16
    %v2874 = vrot.slane %v2872, 5
    %v2875 = vsel %vm2563, %v2870, %v2874
    %v2877 = vshrl.u32 %v2487, 16
    %v2879 = vrot.slane %v2877, 4
    %v2880 = vshll.u32 %v2487, 16
    %v2882 = vrot.slane %v2880, 5
    %v2883 = vor.u32 %v2879, %v2882
    %v2884 = vrot.slane %v2883, 4
    %v2886 = vshll.u32 %v2488, 16
    %v2888 = vrot.slane %v2886, 5
    %v2889 = vsel %vm2563, %v2884, %v2888
    %v2890 = vshrl.u32 %v2488, 16
    %v2892 = vrot.slane %v2890, 4
    %v2893 = vor.u32 %v2892, %v2888
    %v2894 = vrot.slane %v2893, 4
    %v2896 = vshll.u32 %v2542, 16
    %v2898 = vrot.slane %v2896, 5
    %v2899 = vsel %vm2563, %v2894, %v2898
    %v2901 = vshrl.u32 %v2489, 16
    %v2903 = vrot.slane %v2901, 4
    %v2904 = vshll.u32 %v2489, 16
    %v2906 = vrot.slane %v2904, 5
    %v2907 = vor.u32 %v2903, %v2906
    %v2908 = vrot.slane %v2907, 4
    %v2910 = vshll.u32 %v2490, 16
    %v2912 = vrot.slane %v2910, 5
    %v2913 = vsel %vm2563, %v2908, %v2912
    %v2914 = vshrl.u32 %v2490, 16
    %v2916 = vrot.slane %v2914, 4
    %v2917 = vor.u32 %v2916, %v2912
    %v2918 = vrot.slane %v2917, 4
    %v2920 = vshll.u32 %v2543, 16
    %v2922 = vrot.slane %v2920, 5
    %v2923 = vsel %vm2563, %v2918, %v2922
    %v2925 = vshrl.u32 %v2491, 16
    %v2927 = vrot.slane %v2925, 4
    %v2928 = vshll.u32 %v2491, 16
    %v2930 = vrot.slane %v2928, 5
    %v2931 = vor.u32 %v2927, %v2930
    %v2932 = vrot.slane %v2931, 4
    %v2934 = vshll.u32 %v2492, 16
    %v2936 = vrot.slane %v2934, 5
    %v2937 = vsel %vm2563, %v2932, %v2936
    %v2938 = vshrl.u32 %v2492, 16
    %v2940 = vrot.slane %v2938, 4
    %v2941 = vor.u32 %v2940, %v2936
    %v2942 = vrot.slane %v2941, 4
    %v2944 = vshll.u32 %v2544, 16
    %v2946 = vrot.slane %v2944, 5
    %v2947 = vsel %vm2563, %v2942, %v2946
    %v2949 = vshrl.u32 %v2493, 16
    %v2951 = vrot.slane %v2949, 4
    %v2952 = vshll.u32 %v2493, 16
    %v2954 = vrot.slane %v2952, 5
    %v2955 = vor.u32 %v2951, %v2954
    %v2956 = vrot.slane %v2955, 4
    %v2958 = vshll.u32 %v2494, 16
    %v2960 = vrot.slane %v2958, 5
    %v2961 = vsel %vm2563, %v2956, %v2960
    %v2962 = vshrl.u32 %v2494, 16
    %v2964 = vrot.slane %v2962, 4
    %v2965 = vor.u32 %v2964, %v2960
    %v2966 = vrot.slane %v2965, 4
    %v2968 = vshll.u32 %v2545, 16
    %v2970 = vrot.slane %v2968, 5
    %v2971 = vsel %vm2563, %v2966, %v2970
    %v2973 = vshrl.u32 %v2495, 16
    %v2975 = vrot.slane %v2973, 4
    %v2976 = vshll.u32 %v2495, 16
    %v2978 = vrot.slane %v2976, 5
    %v2979 = vor.u32 %v2975, %v2978
    %v2980 = vrot.slane %v2979, 4
    %v2982 = vshll.u32 %v2496, 16
    %v2984 = vrot.slane %v2982, 5
    %v2985 = vsel %vm2563, %v2980, %v2984
    %v2986 = vshrl.u32 %v2496, 16
    %v2988 = vrot.slane %v2986, 4
    %v2989 = vor.u32 %v2988, %v2984
    %v2990 = vrot.slane %v2989, 4
    %v2992 = vshll.u32 %v2546, 16
    %v2994 = vrot.slane %v2992, 5
    %v2995 = vsel %vm2563, %v2990, %v2994
    %v2997 = vshrl.u32 %v2497, 16
    %v2999 = vrot.slane %v2997, 4
    %v3000 = vshll.u32 %v2497, 16
    %v3002 = vrot.slane %v3000, 5
    %v3003 = vor.u32 %v2999, %v3002
    %v3004 = vrot.slane %v3003, 4
    %v3006 = vshll.u32 %v2498, 16
    %v3008 = vrot.slane %v3006, 5
    %v3009 = vsel %vm2563, %v3004, %v3008
    %v3010 = vshrl.u32 %v2498, 16
    %v3012 = vrot.slane %v3010, 4
    %v3013 = vor.u32 %v3012, %v3008
    %v3014 = vrot.slane %v3013, 4
    %v3016 = vshll.u32 %v2547, 16
    %v3018 = vrot.slane %v3016, 5
    %v3019 = vsel %vm2563, %v3014, %v3018
    %v3021 = vshrl.u32 %v2499, 16
    %v3023 = vrot.slane %v3021, 4
    %v3024 = vshll.u32 %v2499, 16
    %v3026 = vrot.slane %v3024, 5
    %v3027 = vor.u32 %v3023, %v3026
    %v3028 = vrot.slane %v3027, 4
    %v3030 = vshll.u32 %v2500, 16
    %v3032 = vrot.slane %v3030, 5
    %v3033 = vsel %vm2563, %v3028, %v3032
    %v3034 = vshrl.u32 %v2500, 16
    %v3036 = vrot.slane %v3034, 4
    %v3037 = vor.u32 %v3036, %v3032
    %v3038 = vrot.slane %v3037, 4
    %v3040 = vshll.u32 %v2548, 16
    %v3042 = vrot.slane %v3040, 5
    %v3043 = vsel %vm2563, %v3038, %v3042
    %v3045 = vshrl.u32 %v2501, 16
    %v3047 = vrot.slane %v3045, 4
    %v3048 = vshll.u32 %v2501, 16
    %v3050 = vrot.slane %v3048, 5
    %v3051 = vor.u32 %v3047, %v3050
    %v3052 = vrot.slane %v3051, 4
    %v3054 = vshll.u32 %v2502, 16
    %v3056 = vrot.slane %v3054, 5
    %v3057 = vsel %vm2563, %v3052, %v3056
    %v3058 = vshrl.u32 %v2502, 16
    %v3060 = vrot.slane %v3058, 4
    %v3061 = vor.u32 %v3060, %v3056
    %v3062 = vrot.slane %v3061, 4
    %v3064 = vshll.u32 %v2549, 16
    %v3066 = vrot.slane %v3064, 5
    %v3067 = vsel %vm2563, %v3062, %v3066
    %v3069 = vshrl.u32 %v2503, 16
    %v3071 = vrot.slane %v3069, 4
    %v3072 = vshll.u32 %v2503, 16
    %v3074 = vrot.slane %v3072, 5
    %v3075 = vor.u32 %v3071, %v3074
    %v3076 = vrot.slane %v3075, 4
    %v3078 = vshll.u32 %v2504, 16
    %v3080 = vrot.slane %v3078, 5
    %v3081 = vsel %vm2563, %v3076, %v3080
    %v3082 = vshrl.u32 %v2504, 16
    %v3084 = vrot.slane %v3082, 4
    %v3085 = vor.u32 %v3084, %v3080
    %v3086 = vrot.slane %v3085, 4
    %v3088 = vshll.u32 %v2550, 16
    %v3090 = vrot.slane %v3088, 5
    %v3091 = vsel %vm2563, %v3086, %v3090
    %v3093 = vshrl.u32 %v2505, 16
    %v3095 = vrot.slane %v3093, 4
    %v3096 = vshll.u32 %v2505, 16
    %v3098 = vrot.slane %v3096, 5
    %v3099 = vor.u32 %v3095, %v3098
    %v3100 = vrot.slane %v3099, 4
    %v3102 = vshll.u32 %v2506, 16
    %v3104 = vrot.slane %v3102, 5
    %v3105 = vsel %vm2563, %v3100, %v3104
    %v3106 = vshrl.u32 %v2506, 16
    %v3108 = vrot.slane %v3106, 4
    %v3109 = vor.u32 %v3108, %v3104
    %v3110 = vrot.slane %v3109, 4
    %v3112 = vshll.u32 %v2551, 16
    %v3114 = vrot.slane %v3112, 5
    %v3115 = vsel %vm2563, %v3110, %v3114
    %v3117 = vshrl.u32 %v2507, 16
    %v3119 = vrot.slane %v3117, 4
    %v3120 = vshll.u32 %v2507, 16
    %v3122 = vrot.slane %v3120, 5
    %v3123 = vor.u32 %v3119, %v3122
    %v3124 = vrot.slane %v3123, 4
    %v3126 = vshll.u32 %v2508, 16
    %v3128 = vrot.slane %v3126, 5
    %v3129 = vsel %vm2563, %v3124, %v3128
    %v3130 = vshrl.u32 %v2508, 16
    %v3132 = vrot.slane %v3130, 4
    %v3133 = vor.u32 %v3132, %v3128
    %v3134 = vrot.slane %v3133, 4
    %v3136 = vshll.u32 %v2552, 16
    %v3138 = vrot.slane %v3136, 5
    %v3139 = vsel %vm2563, %v3134, %v3138
    %v3141 = vshrl.u32 %v2509, 16
    %v3143 = vrot.slane %v3141, 4
    %v3144 = vshll.u32 %v2509, 16
    %v3146 = vrot.slane %v3144, 5
    %v3147 = vor.u32 %v3143, %v3146
    %v3148 = vrot.slane %v3147, 4
    %v3150 = vshll.u32 %v2510, 16
    %v3152 = vrot.slane %v3150, 5
    %v3153 = vsel %vm2563, %v3148, %v3152
    %v3154 = vshrl.u32 %v2510, 16
    %v3156 = vrot.slane %v3154, 4
    %v3157 = vor.u32 %v3156, %v3152
    %v3158 = vrot.slane %v3157, 4
    %v3160 = vshll.u32 %v2553, 16
    %v3162 = vrot.slane %v3160, 5
    %v3163 = vsel %vm2563, %v3158, %v3162
    %v3165 = vshrl.u32 %v2511, 16
    %v3167 = vrot.slane %v3165, 4
    %v3168 = vshll.u32 %v2511, 16
    %v3170 = vrot.slane %v3168, 5
    %v3171 = vor.u32 %v3167, %v3170
    %v3172 = vrot.slane %v3171, 4
    %v3174 = vshll.u32 %v2512, 16
    %v3176 = vrot.slane %v3174, 5
    %v3177 = vsel %vm2563, %v3172, %v3176
    %v3178 = vshrl.u32 %v2512, 16
    %v3180 = vrot.slane %v3178, 4
    %v3181 = vor.u32 %v3180, %v3176
    %v3182 = vrot.slane %v3181, 4
    %v3184 = vshll.u32 %v2554, 16
    %v3186 = vrot.slane %v3184, 5
    %v3187 = vsel %vm2563, %v3182, %v3186
    %v3189 = vshrl.u32 %v2513, 16
    %v3191 = vrot.slane %v3189, 4
    %v3192 = vshll.u32 %v2513, 16
    %v3194 = vrot.slane %v3192, 5
    %v3195 = vor.u32 %v3191, %v3194
    %v3196 = vrot.slane %v3195, 4
    %v3198 = vshll.u32 %v2514, 16
    %v3200 = vrot.slane %v3198, 5
    %v3201 = vsel %vm2563, %v3196, %v3200
    %v3202 = vshrl.u32 %v2514, 16
    %v3204 = vrot.slane %v3202, 4
    %v3205 = vor.u32 %v3204, %v3200
    %v3206 = vrot.slane %v3205, 4
    %v3208 = vshll.u32 %v2555, 16
    %v3210 = vrot.slane %v3208, 5
    %v3211 = vsel %vm2563, %v3206, %v3210
    %v3213 = vshrl.u32 %v2515, 16
    %v3215 = vrot.slane %v3213, 4
    %v3216 = vshll.u32 %v2515, 16
    %v3218 = vrot.slane %v3216, 5
    %v3219 = vor.u32 %v3215, %v3218
    %v3220 = vrot.slane %v3219, 4
    %v3222 = vshll.u32 %v2516, 16
    %v3224 = vrot.slane %v3222, 5
    %v3225 = vsel %vm2563, %v3220, %v3224
    %v3226 = vshrl.u32 %v2516, 16
    %v3228 = vrot.slane %v3226, 4
    %v3229 = vor.u32 %v3228, %v3224
    %v3230 = vrot.slane %v3229, 4
    %v3232 = vshll.u32 %v2556, 16
    %v3234 = vrot.slane %v3232, 5
    %v3235 = vsel %vm2563, %v3230, %v3234
    %v3237 = vshrl.u32 %v2517, 16
    %v3239 = vrot.slane %v3237, 4
    %v3240 = vshll.u32 %v2517, 16
    %v3242 = vrot.slane %v3240, 5
    %v3243 = vor.u32 %v3239, %v3242
    %v3244 = vrot.slane %v3243, 4
    %v3246 = vshll.u32 %v2518, 16
    %v3248 = vrot.slane %v3246, 5
    %v3249 = vsel %vm2563, %v3244, %v3248
    %v3250 = vshrl.u32 %v2518, 16
    %v3252 = vrot.slane %v3250, 4
    %v3253 = vor.u32 %v3252, %v3248
    %v3254 = vrot.slane %v3253, 4
    %v3256 = vshll.u32 %v2557, 16
    %v3258 = vrot.slane %v3256, 5
    %v3259 = vsel %vm2563, %v3254, %v3258
    %v3261 = vshrl.u32 %v2519, 16
    %v3263 = vrot.slane %v3261, 4
    %v3264 = vshll.u32 %v2519, 16
    %v3266 = vrot.slane %v3264, 5
    %v3267 = vor.u32 %v3263, %v3266
    %v3268 = vrot.slane %v3267, 4
    %v3270 = vshll.u32 %v2520, 16
    %v3272 = vrot.slane %v3270, 5
    %v3273 = vsel %vm2563, %v3268, %v3272
    %v3274 = vshrl.u32 %v2520, 16
    %v3276 = vrot.slane %v3274, 4
    %v3277 = vor.u32 %v3276, %v3272
    %v3278 = vrot.slane %v3277, 4
    %v3280 = vshll.u32 %v2558, 16
    %v3282 = vrot.slane %v3280, 5
    %v3283 = vsel %vm2563, %v3278, %v3282
    %v3285 = vshrl.u32 %v2521, 16
    %v3287 = vrot.slane %v3285, 4
    %v3288 = vshll.u32 %v2521, 16
    %v3290 = vrot.slane %v3288, 5
    %v3291 = vor.u32 %v3287, %v3290
    %v3292 = vrot.slane %v3291, 4
    %v3294 = vshll.u32 %v2522, 16
    %v3296 = vrot.slane %v3294, 5
    %v3297 = vsel %vm2563, %v3292, %v3296
    %v3298 = vshrl.u32 %v2522, 16
    %v3300 = vrot.slane %v3298, 4
    %v3301 = vor.u32 %v3300, %v3296
    %v3302 = vrot.slane %v3301, 4
    %v3304 = vshll.u32 %v2559, 16
    %v3306 = vrot.slane %v3304, 5
    %v3307 = vsel %vm2563, %v3302, %v3306
    %v3309 = vshrl.u32 %v2523, 16
    %v3311 = vrot.slane %v3309, 4
    %v3312 = vshll.u32 %v2523, 16
    %v3314 = vrot.slane %v3312, 5
    %v3315 = vor.u32 %v3311, %v3314
    %v3316 = vrot.slane %v3315, 4
    %v3318 = vshll.u32 %v2524, 16
    %v3320 = vrot.slane %v3318, 5
    %v3321 = vsel %vm2563, %v3316, %v3320
    %v3322 = vshrl.u32 %v2524, 16
    %v3324 = vrot.slane %v3322, 4
    %v3325 = vor.u32 %v3324, %v3320
    %v3326 = vrot.slane %v3325, 4
    %v3328 = vshll.u32 %v2560, 16
    %v3330 = vrot.slane %v3328, 5
    %v3331 = vsel %vm2563, %v3326, %v3330
    %s3332 = scalar_lea.vmem [#allocation7], 16
    %v3333 = vld [vmem:[%s3332] sm:$0xf]
    %v3334 = vld [vmem:[%s3332 + $0x4] sm:$0xf]
    %v3335 = vld [vmem:[%s3332 + $0x8] sm:$0xf]
    %v3336 = vld [vmem:[%s3332 + $0xc] sm:$0xf]
    %v3337 = vunpack.c.l.b16 %v2577
    %v3338 = vunpack.c.l.b16 %v2587
    %v3339 = vunpack.c.l.b16 %v2601
    %v3340 = vunpack.c.l.b16 %v2611
    %v3341 = vunpack.c.l.b16 %v2625
    %v3342 = vunpack.c.l.b16 %v2635
    %v3343 = vunpack.c.l.b16 %v2649
    %v3344 = vunpack.c.l.b16 %v2659
    %v3345 = vunpack.c.l.b16 %v2673
    %v3346 = vunpack.c.l.b16 %v2683
    %v3347 = vunpack.c.l.b16 %v2697
    %v3348 = vunpack.c.l.b16 %v2707
    %v3349 = vunpack.c.l.b16 %v2721
    %v3350 = vunpack.c.l.b16 %v2731
    %v3351 = vunpack.c.l.b16 %v2745
    %v3352 = vunpack.c.l.b16 %v2755
    %v3353 = vunpack.c.l.b16 %v2769
    %v3354 = vunpack.c.l.b16 %v2779
    %v3355 = vunpack.c.l.b16 %v2793
    %v3356 = vunpack.c.l.b16 %v2803
    %v3357 = vunpack.c.l.b16 %v2817
    %v3358 = vunpack.c.l.b16 %v2827
    %v3359 = vunpack.c.l.b16 %v2841
    %v3360 = vunpack.c.l.b16 %v2851
    %v3361 = vunpack.c.l.b16 %v2865
    %v3362 = vunpack.c.l.b16 %v2875
    %v3363 = vunpack.c.l.b16 %v2889
    %v3364 = vunpack.c.l.b16 %v2899
    %v3365 = vunpack.c.l.b16 %v2913
    %v3366 = vunpack.c.l.b16 %v2923
    %v3367 = vunpack.c.l.b16 %v2937
    %v3368 = vunpack.c.l.b16 %v2947
    %v3369 = vunpack.c.l.b16 %v2961
    %v3370 = vunpack.c.l.b16 %v2971
    %v3371 = vunpack.c.l.b16 %v2985
    %v3372 = vunpack.c.l.b16 %v2995
    %v3373 = vunpack.c.l.b16 %v3009
    %v3374 = vunpack.c.l.b16 %v3019
    %v3375 = vunpack.c.l.b16 %v3033
    %v3376 = vunpack.c.l.b16 %v3043
    %v3377 = vunpack.c.l.b16 %v3057
    %v3378 = vunpack.c.l.b16 %v3067
    %v3379 = vunpack.c.l.b16 %v3081
    %v3380 = vunpack.c.l.b16 %v3091
    %v3381 = vunpack.c.l.b16 %v3105
    %v3382 = vunpack.c.l.b16 %v3115
    %v3383 = vunpack.c.l.b16 %v3129
    %v3384 = vunpack.c.l.b16 %v3139
    %v3385 = vunpack.c.l.b16 %v3153
    %v3386 = vunpack.c.l.b16 %v3163
    %v3387 = vunpack.c.l.b16 %v3177
    %v3388 = vunpack.c.l.b16 %v3187
    %v3389 = vunpack.c.l.b16 %v3201
    %v3390 = vunpack.c.l.b16 %v3211
    %v3391 = vunpack.c.l.b16 %v3225
    %v3392 = vunpack.c.l.b16 %v3235
    %v3393 = vunpack.c.l.b16 %v3249
    %v3394 = vunpack.c.l.b16 %v3259
    %v3395 = vunpack.c.l.b16 %v3273
    %v3396 = vunpack.c.l.b16 %v3283
    %v3397 = vunpack.c.l.b16 %v3297
    %v3398 = vunpack.c.l.b16 %v3307
    %v3399 = vunpack.c.l.b16 %v3321
    %v3400 = vunpack.c.l.b16 %v3331
    %v3401 = vpack.c.b16 %v3338, %v3337
    %v3402 = vpack.c.b16 %v3340, %v3339
    %v3403 = vpack.c.b16 %v3342, %v3341
    %v3404 = vpack.c.b16 %v3344, %v3343
    %v3405 = vpack.c.b16 %v3346, %v3345
    %v3406 = vpack.c.b16 %v3348, %v3347
    %v3407 = vpack.c.b16 %v3350, %v3349
    %v3408 = vpack.c.b16 %v3352, %v3351
    %v3409 = vpack.c.b16 %v3354, %v3353
    %v3410 = vpack.c.b16 %v3356, %v3355
    %v3411 = vpack.c.b16 %v3358, %v3357
    %v3412 = vpack.c.b16 %v3360, %v3359
    %v3413 = vpack.c.b16 %v3362, %v3361
    %v3414 = vpack.c.b16 %v3364, %v3363
    %v3415 = vpack.c.b16 %v3366, %v3365
    %v3416 = vpack.c.b16 %v3368, %v3367
    %v3417 = vpack.c.b16 %v3370, %v3369
    %v3418 = vpack.c.b16 %v3372, %v3371
    %v3419 = vpack.c.b16 %v3374, %v3373
    %v3420 = vpack.c.b16 %v3376, %v3375
    %v3421 = vpack.c.b16 %v3378, %v3377
    %v3422 = vpack.c.b16 %v3380, %v3379
    %v3423 = vpack.c.b16 %v3382, %v3381
    %v3424 = vpack.c.b16 %v3384, %v3383
    %v3425 = vpack.c.b16 %v3386, %v3385
    %v3426 = vpack.c.b16 %v3388, %v3387
    %v3427 = vpack.c.b16 %v3390, %v3389
    %v3428 = vpack.c.b16 %v3392, %v3391
    %v3429 = vpack.c.b16 %v3394, %v3393
    %v3430 = vpack.c.b16 %v3396, %v3395
    %v3431 = vpack.c.b16 %v3398, %v3397
    %v3432 = vpack.c.b16 %v3400, %v3399
    %v3437 = vunpack.c.l.b16 %v3333
    %v3438 = vunpack.c.l.b16 %v3334
    %v3439 = vunpack.c.l.b16 %v3335
    %v3440 = vunpack.c.l.b16 %v3336
    %v3441 = vpack.c.b16 %v3438, %v3437
    %v3442 = vpack.c.b16 %v3440, %v3439
    %v3446 = vsel %vm523, %v3401, 0
    %v3449 = vsel %vm523, %v3402, 0
    %v3452 = vsel %vm523, %v3403, 0
    %v3455 = vsel %vm523, %v3404, 0
    %v3458 = vsel %vm523, %v3405, 0
    %v3461 = vsel %vm523, %v3406, 0
    %v3464 = vsel %vm523, %v3407, 0
    %v3467 = vsel %vm523, %v3408, 0
    %v3470 = vsel %vm523, %v3409, 0
    %v3473 = vsel %vm523, %v3410, 0
    %v3476 = vsel %vm523, %v3411, 0
    %v3479 = vsel %vm523, %v3412, 0
    %v3482 = vsel %vm523, %v3413, 0
    %v3485 = vsel %vm523, %v3414, 0
    %v3488 = vsel %vm523, %v3415, 0
    %v3491 = vsel %vm523, %v3416, 0
    %v3494 = vsel %vm523, %v3417, 0
    %v3497 = vsel %vm523, %v3418, 0
    %v3500 = vsel %vm523, %v3419, 0
    %v3503 = vsel %vm523, %v3420, 0
    %v3506 = vsel %vm523, %v3421, 0
    %v3509 = vsel %vm523, %v3422, 0
    %v3512 = vsel %vm523, %v3423, 0
    %v3515 = vsel %vm523, %v3424, 0
    %v3518 = vsel %vm523, %v3425, 0
    %v3521 = vsel %vm523, %v3426, 0
    %v3524 = vsel %vm523, %v3427, 0
    %v3527 = vsel %vm523, %v3428, 0
    %v3530 = vsel %vm523, %v3429, 0
    %v3533 = vsel %vm523, %v3430, 0
    %v3536 = vsel %vm523, %v3431, 0
    %v3539 = vsel %vm523, %v3432, 0
    %3541 = vmatprep.subr.bf16.mxu0 0
    %3542 = vmatpush1.bf16.msra.mxu0 %v3441
    %3543 = vmatprep.subr.bf16.mxu0 0
    %3544 = vmatpush1.bf16.msra.mxu0 %v3442
    %3545 = vmatprep.subr.bf16.mxu0 0
    %3546 = vmatpush1.bf16.msra.mxu0 0
    %3547 = vmatprep.subr.bf16.mxu0 0
    %3548 = vmatpush1.bf16.msra.mxu0 0
    %3549 = vmatprep.subr.bf16.mxu0 0
    %3550 = vmatpush1.bf16.msra.mxu0 0
    %3551 = vmatprep.subr.bf16.mxu0 0
    %3552 = vmatpush1.bf16.msra.mxu0 0
    %3553 = vmatprep.subr.bf16.mxu0 0
    %3554 = vmatpush1.bf16.msra.mxu0 0
    %3555 = vmatprep.subr.bf16.mxu0 0
    %3556 = vmatpush1.bf16.msra.mxu0 0
    %3557 = vmatprep.subr.bf16.mxu0 0
    %3558 = vmatpush1.bf16.msra.mxu0 0
    %3559 = vmatprep.subr.bf16.mxu0 0
    %3560 = vmatpush1.bf16.msra.mxu0 0
    %3561 = vmatprep.subr.bf16.mxu0 0
    %3562 = vmatpush1.bf16.msra.mxu0 0
    %3563 = vmatprep.subr.bf16.mxu0 0
    %3564 = vmatpush1.bf16.msra.mxu0 0
    %3565 = vmatprep.subr.bf16.mxu0 0
    %3566 = vmatpush1.bf16.msra.mxu0 0
    %3567 = vmatprep.subr.bf16.mxu0 0
    %3568 = vmatpush1.bf16.msra.mxu0 0
    %3569 = vmatprep.subr.bf16.mxu0 0
    %3570 = vmatpush1.bf16.msra.mxu0 0
    %3571 = vmatprep.subr.bf16.mxu0 0
    %3572 = vmatpush1.bf16.msra.mxu0 0
    %3573 = vmatprep.mubr.bf16.mxu0 0
    %3574 = vmatmul.mubr.bf16.gmra.mrb[0].mxu0 %v3446
    %v3575 = vpop.f32.mrb[0].mxu0
    %v3576 = vadd.f32 0.0, %v3575
    %v3577 = vpop.f32.mrb[0].mxu0
    %v3578 = vpop.f32.mrb[0].mxu0
    %v3579 = vadd.f32 0.0, %v3578
    %v3580 = vpop.f32.mrb[0].mxu0
    %3581 = vmatprep.mubr.bf16.mxu0 0
    %3582 = vmatmul.mubr.bf16.gmra.mrb[0].mxu0 %v3449
    %v3583 = vpop.f32.mrb[0].mxu0
    %v3584 = vadd.f32 0.0, %v3583
    %v3585 = vpop.f32.mrb[0].mxu0
    %v3586 = vpop.f32.mrb[0].mxu0
    %v3587 = vadd.f32 0.0, %v3586
    %v3588 = vpop.f32.mrb[0].mxu0
    %3589 = vmatprep.mubr.bf16.mxu0 0
    %3590 = vmatmul.mubr.bf16.gmra.mrb[0].mxu0 %v3452
    %v3591 = vpop.f32.mrb[0].mxu0
    %v3592 = vadd.f32 0.0, %v3591
    %v3593 = vpop.f32.mrb[0].mxu0
    %v3594 = vpop.f32.mrb[0].mxu0
    %v3595 = vadd.f32 0.0, %v3594
    %v3596 = vpop.f32.mrb[0].mxu0
    %3597 = vmatprep.mubr.bf16.mxu0 0
    %3598 = vmatmul.mubr.bf16.gmra.mrb[0].mxu0 %v3455
    %v3599 = vpop.f32.mrb[0].mxu0
    %v3600 = vadd.f32 0.0, %v3599
    %v3601 = vpop.f32.mrb[0].mxu0
    %v3602 = vpop.f32.mrb[0].mxu0
    %v3603 = vadd.f32 0.0, %v3602
    %v3604 = vpop.f32.mrb[0].mxu0
    %3605 = vmatprep.mubr.bf16.mxu0 0
    %3606 = vmatmul.mubr.bf16.gmra.mrb[0].mxu0 %v3458
    %v3607 = vpop.f32.mrb[0].mxu0
    %v3608 = vadd.f32 0.0, %v3607
    %v3609 = vpop.f32.mrb[0].mxu0
    %v3610 = vpop.f32.mrb[0].mxu0
    %v3611 = vadd.f32 0.0, %v3610
    %v3612 = vpop.f32.mrb[0].mxu0
    %3613 = vmatprep.mubr.bf16.mxu0 0
    %3614 = vmatmul.mubr.bf16.gmra.mrb[0].mxu0 %v3461
    %v3615 = vpop.f32.mrb[0].mxu0
    %v3616 = vadd.f32 0.0, %v3615
    %v3617 = vpop.f32.mrb[0].mxu0
    %v3618 = vpop.f32.mrb[0].mxu0
    %v3619 = vadd.f32 0.0, %v3618
    %v3620 = vpop.f32.mrb[0].mxu0
    %3621 = vmatprep.mubr.bf16.mxu0 0
    %3622 = vmatmul.mubr.bf16.gmra.mrb[0].mxu0 %v3464
    %v3623 = vpop.f32.mrb[0].mxu0
    %v3624 = vadd.f32 0.0, %v3623
    %v3625 = vpop.f32.mrb[0].mxu0
    %v3626 = vpop.f32.mrb[0].mxu0
    %v3627 = vadd.f32 0.0, %v3626
    %v3628 = vpop.f32.mrb[0].mxu0
    %3629 = vmatprep.mubr.bf16.mxu0 0
    %3630 = vmatmul.mubr.bf16.gmra.mrb[0].mxu0 %v3467
    %v3631 = vpop.f32.mrb[0].mxu0
    %v3632 = vadd.f32 0.0, %v3631
    %v3633 = vpop.f32.mrb[0].mxu0
    %v3634 = vpop.f32.mrb[0].mxu0
    %v3635 = vadd.f32 0.0, %v3634
    %v3636 = vpop.f32.mrb[0].mxu0
    %3637 = vmatprep.mubr.bf16.mxu0 0
    %3638 = vmatmul.mubr.bf16.gmra.mrb[0].mxu0 %v3470
    %v3639 = vpop.f32.mrb[0].mxu0
    %v3640 = vadd.f32 0.0, %v3639
    %v3641 = vpop.f32.mrb[0].mxu0
    %v3642 = vpop.f32.mrb[0].mxu0
    %v3643 = vadd.f32 0.0, %v3642
    %v3644 = vpop.f32.mrb[0].mxu0
    %3645 = vmatprep.mubr.bf16.mxu0 0
    %3646 = vmatmul.mubr.bf16.gmra.mrb[0].mxu0 %v3473
    %v3647 = vpop.f32.mrb[0].mxu0
    %v3648 = vadd.f32 0.0, %v3647
    %v3649 = vpop.f32.mrb[0].mxu0
    %v3650 = vpop.f32.mrb[0].mxu0
    %v3651 = vadd.f32 0.0, %v3650
    %v3652 = vpop.f32.mrb[0].mxu0
    %3653 = vmatprep.mubr.bf16.mxu0 0
    %3654 = vmatmul.mubr.bf16.gmra.mrb[0].mxu0 %v3476
    %v3655 = vpop.f32.mrb[0].mxu0
    %v3656 = vadd.f32 0.0, %v3655
    %v3657 = vpop.f32.mrb[0].mxu0
    %v3658 = vpop.f32.mrb[0].mxu0
    %v3659 = vadd.f32 0.0, %v3658
    %v3660 = vpop.f32.mrb[0].mxu0
    %3661 = vmatprep.mubr.bf16.mxu0 0
    %3662 = vmatmul.mubr.bf16.gmra.mrb[0].mxu0 %v3479
    %v3663 = vpop.f32.mrb[0].mxu0
    %v3664 = vadd.f32 0.0, %v3663
    %v3665 = vpop.f32.mrb[0].mxu0
    %v3666 = vpop.f32.mrb[0].mxu0
    %v3667 = vadd.f32 0.0, %v3666
    %v3668 = vpop.f32.mrb[0].mxu0
    %3669 = vmatprep.mubr.bf16.mxu0 0
    %3670 = vmatmul.mubr.bf16.gmra.mrb[0].mxu0 %v3482
    %v3671 = vpop.f32.mrb[0].mxu0
    %v3672 = vadd.f32 0.0, %v3671
    %v3673 = vpop.f32.mrb[0].mxu0
    %v3674 = vpop.f32.mrb[0].mxu0
    %v3675 = vadd.f32 0.0, %v3674
    %v3676 = vpop.f32.mrb[0].mxu0
    %3677 = vmatprep.mubr.bf16.mxu0 0
    %3678 = vmatmul.mubr.bf16.gmra.mrb[0].mxu0 %v3485
    %v3679 = vpop.f32.mrb[0].mxu0
    %v3680 = vadd.f32 0.0, %v3679
    %v3681 = vpop.f32.mrb[0].mxu0
    %v3682 = vpop.f32.mrb[0].mxu0
    %v3683 = vadd.f32 0.0, %v3682
    %v3684 = vpop.f32.mrb[0].mxu0
    %3685 = vmatprep.mubr.bf16.mxu0 0
    %3686 = vmatmul.mubr.bf16.gmra.mrb[0].mxu0 %v3488
    %v3687 = vpop.f32.mrb[0].mxu0
    %v3688 = vadd.f32 0.0, %v3687
    %v3689 = vpop.f32.mrb[0].mxu0
    %v3690 = vpop.f32.mrb[0].mxu0
    %v3691 = vadd.f32 0.0, %v3690
    %v3692 = vpop.f32.mrb[0].mxu0
    %3693 = vmatprep.mubr.bf16.mxu0 0
    %3694 = vmatmul.mubr.bf16.gmra.mrb[0].mxu0 %v3491
    %v3695 = vpop.f32.mrb[0].mxu0
    %v3696 = vadd.f32 0.0, %v3695
    %v3697 = vpop.f32.mrb[0].mxu0
    %v3698 = vpop.f32.mrb[0].mxu0
    %v3699 = vadd.f32 0.0, %v3698
    %v3700 = vpop.f32.mrb[0].mxu0
    %3701 = vmatprep.mubr.bf16.mxu0 0
    %3702 = vmatmul.mubr.bf16.gmra.mrb[0].mxu0 %v3494
    %v3703 = vpop.f32.mrb[0].mxu0
    %v3704 = vadd.f32 0.0, %v3703
    %v3705 = vpop.f32.mrb[0].mxu0
    %v3706 = vpop.f32.mrb[0].mxu0
    %v3707 = vadd.f32 0.0, %v3706
    %v3708 = vpop.f32.mrb[0].mxu0
    %3709 = vmatprep.mubr.bf16.mxu0 0
    %3710 = vmatmul.mubr.bf16.gmra.mrb[0].mxu0 %v3497
    %v3711 = vpop.f32.mrb[0].mxu0
    %v3712 = vadd.f32 0.0, %v3711
    %v3713 = vpop.f32.mrb[0].mxu0
    %v3714 = vpop.f32.mrb[0].mxu0
    %v3715 = vadd.f32 0.0, %v3714
    %v3716 = vpop.f32.mrb[0].mxu0
    %3717 = vmatprep.mubr.bf16.mxu0 0
    %3718 = vmatmul.mubr.bf16.gmra.mrb[0].mxu0 %v3500
    %v3719 = vpop.f32.mrb[0].mxu0
    %v3720 = vadd.f32 0.0, %v3719
    %v3721 = vpop.f32.mrb[0].mxu0
    %v3722 = vpop.f32.mrb[0].mxu0
    %v3723 = vadd.f32 0.0, %v3722
    %v3724 = vpop.f32.mrb[0].mxu0
    %3725 = vmatprep.mubr.bf16.mxu0 0
    %3726 = vmatmul.mubr.bf16.gmra.mrb[0].mxu0 %v3503
    %v3727 = vpop.f32.mrb[0].mxu0
    %v3728 = vadd.f32 0.0, %v3727
    %v3729 = vpop.f32.mrb[0].mxu0
    %v3730 = vpop.f32.mrb[0].mxu0
    %v3731 = vadd.f32 0.0, %v3730
    %v3732 = vpop.f32.mrb[0].mxu0
    %3733 = vmatprep.mubr.bf16.mxu0 0
    %3734 = vmatmul.mubr.bf16.gmra.mrb[0].mxu0 %v3506
    %v3735 = vpop.f32.mrb[0].mxu0
    %v3736 = vadd.f32 0.0, %v3735
    %v3737 = vpop.f32.mrb[0].mxu0
    %v3738 = vpop.f32.mrb[0].mxu0
    %v3739 = vadd.f32 0.0, %v3738
    %v3740 = vpop.f32.mrb[0].mxu0
    %3741 = vmatprep.mubr.bf16.mxu0 0
    %3742 = vmatmul.mubr.bf16.gmra.mrb[0].mxu0 %v3509
    %v3743 = vpop.f32.mrb[0].mxu0
    %v3744 = vadd.f32 0.0, %v3743
    %v3745 = vpop.f32.mrb[0].mxu0
    %v3746 = vpop.f32.mrb[0].mxu0
    %v3747 = vadd.f32 0.0, %v3746
    %v3748 = vpop.f32.mrb[0].mxu0
    %3749 = vmatprep.mubr.bf16.mxu0 0
    %3750 = vmatmul.mubr.bf16.gmra.mrb[0].mxu0 %v3512
    %v3751 = vpop.f32.mrb[0].mxu0
    %v3752 = vadd.f32 0.0, %v3751
    %v3753 = vpop.f32.mrb[0].mxu0
    %v3754 = vpop.f32.mrb[0].mxu0
    %v3755 = vadd.f32 0.0, %v3754
    %v3756 = vpop.f32.mrb[0].mxu0
    %3757 = vmatprep.mubr.bf16.mxu0 0
    %3758 = vmatmul.mubr.bf16.gmra.mrb[0].mxu0 %v3515
    %v3759 = vpop.f32.mrb[0].mxu0
    %v3760 = vadd.f32 0.0, %v3759
    %v3761 = vpop.f32.mrb[0].mxu0
    %v3762 = vpop.f32.mrb[0].mxu0
    %v3763 = vadd.f32 0.0, %v3762
    %v3764 = vpop.f32.mrb[0].mxu0
    %3765 = vmatprep.mubr.bf16.mxu0 0
    %3766 = vmatmul.mubr.bf16.gmra.mrb[0].mxu0 %v3518
    %v3767 = vpop.f32.mrb[0].mxu0
    %v3768 = vadd.f32 0.0, %v3767
    %v3769 = vpop.f32.mrb[0].mxu0
    %v3770 = vpop.f32.mrb[0].mxu0
    %v3771 = vadd.f32 0.0, %v3770
    %v3772 = vpop.f32.mrb[0].mxu0
    %3773 = vmatprep.mubr.bf16.mxu0 0
    %3774 = vmatmul.mubr.bf16.gmra.mrb[0].mxu0 %v3521
    %v3775 = vpop.f32.mrb[0].mxu0
    %v3776 = vadd.f32 0.0, %v3775
    %v3777 = vpop.f32.mrb[0].mxu0
    %v3778 = vpop.f32.mrb[0].mxu0
    %v3779 = vadd.f32 0.0, %v3778
    %v3780 = vpop.f32.mrb[0].mxu0
    %3781 = vmatprep.mubr.bf16.mxu0 0
    %3782 = vmatmul.mubr.bf16.gmra.mrb[0].mxu0 %v3524
    %v3783 = vpop.f32.mrb[0].mxu0
    %v3784 = vadd.f32 0.0, %v3783
    %v3785 = vpop.f32.mrb[0].mxu0
    %v3786 = vpop.f32.mrb[0].mxu0
    %v3787 = vadd.f32 0.0, %v3786
    %v3788 = vpop.f32.mrb[0].mxu0
    %3789 = vmatprep.mubr.bf16.mxu0 0
    %3790 = vmatmul.mubr.bf16.gmra.mrb[0].mxu0 %v3527
    %v3791 = vpop.f32.mrb[0].mxu0
    %v3792 = vadd.f32 0.0, %v3791
    %v3793 = vpop.f32.mrb[0].mxu0
    %v3794 = vpop.f32.mrb[0].mxu0
    %v3795 = vadd.f32 0.0, %v3794
    %v3796 = vpop.f32.mrb[0].mxu0
    %3797 = vmatprep.mubr.bf16.mxu0 0
    %3798 = vmatmul.mubr.bf16.gmra.mrb[0].mxu0 %v3530
    %v3799 = vpop.f32.mrb[0].mxu0
    %v3800 = vadd.f32 0.0, %v3799
    %v3801 = vpop.f32.mrb[0].mxu0
    %v3802 = vpop.f32.mrb[0].mxu0
    %v3803 = vadd.f32 0.0, %v3802
    %v3804 = vpop.f32.mrb[0].mxu0
    %3805 = vmatprep.mubr.bf16.mxu0 0
    %3806 = vmatmul.mubr.bf16.gmra.mrb[0].mxu0 %v3533
    %v3807 = vpop.f32.mrb[0].mxu0
    %v3808 = vadd.f32 0.0, %v3807
    %v3809 = vpop.f32.mrb[0].mxu0
    %v3810 = vpop.f32.mrb[0].mxu0
    %v3811 = vadd.f32 0.0, %v3810
    %v3812 = vpop.f32.mrb[0].mxu0
    %3813 = vmatprep.mubr.bf16.mxu0 0
    %3814 = vmatmul.mubr.bf16.gmra.mrb[0].mxu0 %v3536
    %v3815 = vpop.f32.mrb[0].mxu0
    %v3816 = vadd.f32 0.0, %v3815
    %v3817 = vpop.f32.mrb[0].mxu0
    %v3818 = vpop.f32.mrb[0].mxu0
    %v3819 = vadd.f32 0.0, %v3818
    %v3820 = vpop.f32.mrb[0].mxu0
    %3821 = vmatprep.mubr.bf16.mxu0 0
    %3822 = vmatmul.mubr.bf16.gmra.mrb[0].mxu0 %v3539
    %v3823 = vpop.f32.mrb[0].mxu0
    %v3824 = vadd.f32 0.0, %v3823
    %v3825 = vpop.f32.mrb[0].mxu0
    %v3826 = vpop.f32.mrb[0].mxu0
    %v3827 = vadd.f32 0.0, %v3826
    %v3828 = vpop.f32.mrb[0].mxu0
    %3829 = vdwg.mxu0
    %v3894 = vunpack.c.l.b16 %v2461
    %v3895 = vunpack.c.l.b16 %v2462
    %v3896 = vunpack.c.l.b16 %v2463
    %v3897 = vunpack.c.l.b16 %v2464
    %v3898 = vunpack.c.l.b16 %v2465
    %v3899 = vunpack.c.l.b16 %v2466
    %v3900 = vunpack.c.l.b16 %v2467
    %v3901 = vunpack.c.l.b16 %v2468
    %v3902 = vunpack.c.l.b16 %v2469
    %v3903 = vunpack.c.l.b16 %v2470
    %v3904 = vunpack.c.l.b16 %v2471
    %v3905 = vunpack.c.l.b16 %v2472
    %v3906 = vunpack.c.l.b16 %v2473
    %v3907 = vunpack.c.l.b16 %v2474
    %v3908 = vunpack.c.l.b16 %v2475
    %v3909 = vunpack.c.l.b16 %v2476
    %v3910 = vunpack.c.l.b16 %v2477
    %v3911 = vunpack.c.l.b16 %v2478
    %v3912 = vunpack.c.l.b16 %v2479
    %v3913 = vunpack.c.l.b16 %v2480
    %v3914 = vunpack.c.l.b16 %v2481
    %v3915 = vunpack.c.l.b16 %v2482
    %v3916 = vunpack.c.l.b16 %v2483
    %v3917 = vunpack.c.l.b16 %v2484
    %v3918 = vunpack.c.l.b16 %v2485
    %v3919 = vunpack.c.l.b16 %v2486
    %v3920 = vunpack.c.l.b16 %v2487
    %v3921 = vunpack.c.l.b16 %v2488
    %v3922 = vunpack.c.l.b16 %v2489
    %v3923 = vunpack.c.l.b16 %v2490
    %v3924 = vunpack.c.l.b16 %v2491
    %v3925 = vunpack.c.l.b16 %v2492
    %v3926 = vunpack.c.l.b16 %v2493
    %v3927 = vunpack.c.l.b16 %v2494
    %v3928 = vunpack.c.l.b16 %v2495
    %v3929 = vunpack.c.l.b16 %v2496
    %v3930 = vunpack.c.l.b16 %v2497
    %v3931 = vunpack.c.l.b16 %v2498
    %v3932 = vunpack.c.l.b16 %v2499
    %v3933 = vunpack.c.l.b16 %v2500
    %v3934 = vunpack.c.l.b16 %v2501
    %v3935 = vunpack.c.l.b16 %v2502
    %v3936 = vunpack.c.l.b16 %v2503
    %v3937 = vunpack.c.l.b16 %v2504
    %v3938 = vunpack.c.l.b16 %v2505
    %v3939 = vunpack.c.l.b16 %v2506
    %v3940 = vunpack.c.l.b16 %v2507
    %v3941 = vunpack.c.l.b16 %v2508
    %v3942 = vunpack.c.l.b16 %v2509
    %v3943 = vunpack.c.l.b16 %v2510
    %v3944 = vunpack.c.l.b16 %v2511
    %v3945 = vunpack.c.l.b16 %v2512
    %v3946 = vunpack.c.l.b16 %v2513
    %v3947 = vunpack.c.l.b16 %v2514
    %v3948 = vunpack.c.l.b16 %v2515
    %v3949 = vunpack.c.l.b16 %v2516
    %v3950 = vunpack.c.l.b16 %v2517
    %v3951 = vunpack.c.l.b16 %v2518
    %v3952 = vunpack.c.l.b16 %v2519
    %v3953 = vunpack.c.l.b16 %v2520
    %v3954 = vunpack.c.l.b16 %v2521
    %v3955 = vunpack.c.l.b16 %v2522
    %v3956 = vunpack.c.l.b16 %v2523
    %v3957 = vunpack.c.l.b16 %v2524
    %v3958 = vpack.c.b16 %v3895, %v3894
    %v3959 = vpack.c.b16 %v3897, %v3896
    %v3960 = vpack.c.b16 %v3899, %v3898
    %v3961 = vpack.c.b16 %v3901, %v3900
    %v3962 = vpack.c.b16 %v3903, %v3902
    %v3963 = vpack.c.b16 %v3905, %v3904
    %v3964 = vpack.c.b16 %v3907, %v3906
    %v3965 = vpack.c.b16 %v3909, %v3908
    %v3966 = vpack.c.b16 %v3911, %v3910
    %v3967 = vpack.c.b16 %v3913, %v3912
    %v3968 = vpack.c.b16 %v3915, %v3914
    %v3969 = vpack.c.b16 %v3917, %v3916
    %v3970 = vpack.c.b16 %v3919, %v3918
    %v3971 = vpack.c.b16 %v3921, %v3920
    %v3972 = vpack.c.b16 %v3923, %v3922
    %v3973 = vpack.c.b16 %v3925, %v3924
    %v3974 = vpack.c.b16 %v3927, %v3926
    %v3975 = vpack.c.b16 %v3929, %v3928
    %v3976 = vpack.c.b16 %v3931, %v3930
    %v3977 = vpack.c.b16 %v3933, %v3932
    %v3978 = vpack.c.b16 %v3935, %v3934
    %v3979 = vpack.c.b16 %v3937, %v3936
    %v3980 = vpack.c.b16 %v3939, %v3938
    %v3981 = vpack.c.b16 %v3941, %v3940
    %v3982 = vpack.c.b16 %v3943, %v3942
    %v3983 = vpack.c.b16 %v3945, %v3944
    %v3984 = vpack.c.b16 %v3947, %v3946
    %v3985 = vpack.c.b16 %v3949, %v3948
    %v3986 = vpack.c.b16 %v3951, %v3950
    %v3987 = vpack.c.b16 %v3953, %v3952
    %v3988 = vpack.c.b16 %v3955, %v3954
    %v3989 = vpack.c.b16 %v3957, %v3956
    %v3994 = vunpack.c.l.b16 %v2525
    %v3995 = vunpack.c.l.b16 %v2526
    %v3996 = vunpack.c.l.b16 %v2527
    %v3997 = vunpack.c.l.b16 %v2528
    %v3998 = vpack.c.b16 %v3995, %v3994
    %v3999 = vpack.c.b16 %v3997, %v3996
    %v4003 = vsel %vm523, %v3958, 0
    %v4006 = vsel %vm523, %v3959, 0
    %v4009 = vsel %vm523, %v3960, 0
    %v4012 = vsel %vm523, %v3961, 0
    %v4015 = vsel %vm523, %v3962, 0
    %v4018 = vsel %vm523, %v3963, 0
    %v4021 = vsel %vm523, %v3964, 0
    %v4024 = vsel %vm523, %v3965, 0
    %v4027 = vsel %vm523, %v3966, 0
    %v4030 = vsel %vm523, %v3967, 0
    %v4033 = vsel %vm523, %v3968, 0
    %v4036 = vsel %vm523, %v3969, 0
    %v4039 = vsel %vm523, %v3970, 0
    %v4042 = vsel %vm523, %v3971, 0
    %v4045 = vsel %vm523, %v3972, 0
    %v4048 = vsel %vm523, %v3973, 0
    %v4051 = vsel %vm523, %v3974, 0
    %v4054 = vsel %vm523, %v3975, 0
    %v4057 = vsel %vm523, %v3976, 0
    %v4060 = vsel %vm523, %v3977, 0
    %v4063 = vsel %vm523, %v3978, 0
    %v4066 = vsel %vm523, %v3979, 0
    %v4069 = vsel %vm523, %v3980, 0
    %v4072 = vsel %vm523, %v3981, 0
    %v4075 = vsel %vm523, %v3982, 0
    %v4078 = vsel %vm523, %v3983, 0
    %v4081 = vsel %vm523, %v3984, 0
    %v4084 = vsel %vm523, %v3985, 0
    %v4087 = vsel %vm523, %v3986, 0
    %v4090 = vsel %vm523, %v3987, 0
    %v4093 = vsel %vm523, %v3988, 0
    %v4096 = vsel %vm523, %v3989, 0
    %4098 = vmatprep.subr.bf16.mxu0 0
    %4099 = vmatpush1.bf16.msra.mxu0 %v3998
    %4100 = vmatprep.subr.bf16.mxu0 0
    %4101 = vmatpush1.bf16.msra.mxu0 %v3999
    %4102 = vmatprep.subr.bf16.mxu0 0
    %4103 = vmatpush1.bf16.msra.mxu0 0
    %4104 = vmatprep.subr.bf16.mxu0 0
    %4105 = vmatpush1.bf16.msra.mxu0 0
    %4106 = vmatprep.subr.bf16.mxu0 0
    %4107 = vmatpush1.bf16.msra.mxu0 0
    %4108 = vmatprep.subr.bf16.mxu0 0
    %4109 = vmatpush1.bf16.msra.mxu0 0
    %4110 = vmatprep.subr.bf16.mxu0 0
    %4111 = vmatpush1.bf16.msra.mxu0 0
    %4112 = vmatprep.subr.bf16.mxu0 0
    %4113 = vmatpush1.bf16.msra.mxu0 0
    %4114 = vmatprep.subr.bf16.mxu0 0
    %4115 = vmatpush1.bf16.msra.mxu0 0
    %4116 = vmatprep.subr.bf16.mxu0 0
    %4117 = vmatpush1.bf16.msra.mxu0 0
    %4118 = vmatprep.subr.bf16.mxu0 0
    %4119 = vmatpush1.bf16.msra.mxu0 0
    %4120 = vmatprep.subr.bf16.mxu0 0
    %4121 = vmatpush1.bf16.msra.mxu0 0
    %4122 = vmatprep.subr.bf16.mxu0 0
    %4123 = vmatpush1.bf16.msra.mxu0 0
    %4124 = vmatprep.subr.bf16.mxu0 0
    %4125 = vmatpush1.bf16.msra.mxu0 0
    %4126 = vmatprep.subr.bf16.mxu0 0
    %4127 = vmatpush1.bf16.msra.mxu0 0
    %4128 = vmatprep.subr.bf16.mxu0 0
    %4129 = vmatpush1.bf16.msra.mxu0 0
    %4130 = vmatprep.mubr.bf16.mxu0 0
    %4131 = vmatmul.mubr.bf16.gmra.mrb[0].mxu0 %v4003
    %v4132 = vpop.f32.mrb[0].mxu0
    %v4133 = vadd.f32 %v3576, %v4132
    %v4134 = vpop.f32.mrb[0].mxu0
    %v4135 = vpop.f32.mrb[0].mxu0
    %v4136 = vadd.f32 %v3579, %v4135
    %v4137 = vpop.f32.mrb[0].mxu0
    %4138 = vmatprep.mubr.bf16.mxu0 0
    %4139 = vmatmul.mubr.bf16.gmra.mrb[0].mxu0 %v4006
    %v4140 = vpop.f32.mrb[0].mxu0
    %v4141 = vadd.f32 %v3584, %v4140
    %v4142 = vpop.f32.mrb[0].mxu0
    %v4143 = vpop.f32.mrb[0].mxu0
    %v4144 = vadd.f32 %v3587, %v4143
    %v4145 = vpop.f32.mrb[0].mxu0
    %4146 = vmatprep.mubr.bf16.mxu0 0
    %4147 = vmatmul.mubr.bf16.gmra.mrb[0].mxu0 %v4009
    %v4148 = vpop.f32.mrb[0].mxu0
    %v4149 = vadd.f32 %v3592, %v4148
    %v4150 = vpop.f32.mrb[0].mxu0
    %v4151 = vpop.f32.mrb[0].mxu0
    %v4152 = vadd.f32 %v3595, %v4151
    %v4153 = vpop.f32.mrb[0].mxu0
    %4154 = vmatprep.mubr.bf16.mxu0 0
    %4155 = vmatmul.mubr.bf16.gmra.mrb[0].mxu0 %v4012
    %v4156 = vpop.f32.mrb[0].mxu0
    %v4157 = vadd.f32 %v3600, %v4156
    %v4158 = vpop.f32.mrb[0].mxu0
    %v4159 = vpop.f32.mrb[0].mxu0
    %v4160 = vadd.f32 %v3603, %v4159
    %v4161 = vpop.f32.mrb[0].mxu0
    %4162 = vmatprep.mubr.bf16.mxu0 0
    %4163 = vmatmul.mubr.bf16.gmra.mrb[0].mxu0 %v4015
    %v4164 = vpop.f32.mrb[0].mxu0
    %v4165 = vadd.f32 %v3608, %v4164
    %v4166 = vpop.f32.mrb[0].mxu0
    %v4167 = vpop.f32.mrb[0].mxu0
    %v4168 = vadd.f32 %v3611, %v4167
    %v4169 = vpop.f32.mrb[0].mxu0
    %4170 = vmatprep.mubr.bf16.mxu0 0
    %4171 = vmatmul.mubr.bf16.gmra.mrb[0].mxu0 %v4018
    %v4172 = vpop.f32.mrb[0].mxu0
    %v4173 = vadd.f32 %v3616, %v4172
    %v4174 = vpop.f32.mrb[0].mxu0
    %v4175 = vpop.f32.mrb[0].mxu0
    %v4176 = vadd.f32 %v3619, %v4175
    %v4177 = vpop.f32.mrb[0].mxu0
    %4178 = vmatprep.mubr.bf16.mxu0 0
    %4179 = vmatmul.mubr.bf16.gmra.mrb[0].mxu0 %v4021
    %v4180 = vpop.f32.mrb[0].mxu0
    %v4181 = vadd.f32 %v3624, %v4180
    %v4182 = vpop.f32.mrb[0].mxu0
    %v4183 = vpop.f32.mrb[0].mxu0
    %v4184 = vadd.f32 %v3627, %v4183
    %v4185 = vpop.f32.mrb[0].mxu0
    %4186 = vmatprep.mubr.bf16.mxu0 0
    %4187 = vmatmul.mubr.bf16.gmra.mrb[0].mxu0 %v4024
    %v4188 = vpop.f32.mrb[0].mxu0
    %v4189 = vadd.f32 %v3632, %v4188
    %v4190 = vpop.f32.mrb[0].mxu0
    %v4191 = vpop.f32.mrb[0].mxu0
    %v4192 = vadd.f32 %v3635, %v4191
    %v4193 = vpop.f32.mrb[0].mxu0
    %4194 = vmatprep.mubr.bf16.mxu0 0
    %4195 = vmatmul.mubr.bf16.gmra.mrb[0].mxu0 %v4027
    %v4196 = vpop.f32.mrb[0].mxu0
    %v4197 = vadd.f32 %v3640, %v4196
    %v4198 = vpop.f32.mrb[0].mxu0
    %v4199 = vpop.f32.mrb[0].mxu0
    %v4200 = vadd.f32 %v3643, %v4199
    %v4201 = vpop.f32.mrb[0].mxu0
    %4202 = vmatprep.mubr.bf16.mxu0 0
    %4203 = vmatmul.mubr.bf16.gmra.mrb[0].mxu0 %v4030
    %v4204 = vpop.f32.mrb[0].mxu0
    %v4205 = vadd.f32 %v3648, %v4204
    %v4206 = vpop.f32.mrb[0].mxu0
    %v4207 = vpop.f32.mrb[0].mxu0
    %v4208 = vadd.f32 %v3651, %v4207
    %v4209 = vpop.f32.mrb[0].mxu0
    %4210 = vmatprep.mubr.bf16.mxu0 0
    %4211 = vmatmul.mubr.bf16.gmra.mrb[0].mxu0 %v4033
    %v4212 = vpop.f32.mrb[0].mxu0
    %v4213 = vadd.f32 %v3656, %v4212
    %v4214 = vpop.f32.mrb[0].mxu0
    %v4215 = vpop.f32.mrb[0].mxu0
    %v4216 = vadd.f32 %v3659, %v4215
    %v4217 = vpop.f32.mrb[0].mxu0
    %4218 = vmatprep.mubr.bf16.mxu0 0
    %4219 = vmatmul.mubr.bf16.gmra.mrb[0].mxu0 %v4036
    %v4220 = vpop.f32.mrb[0].mxu0
    %v4221 = vadd.f32 %v3664, %v4220
    %v4222 = vpop.f32.mrb[0].mxu0
    %v4223 = vpop.f32.mrb[0].mxu0
    %v4224 = vadd.f32 %v3667, %v4223
    %v4225 = vpop.f32.mrb[0].mxu0
    %4226 = vmatprep.mubr.bf16.mxu0 0
    %4227 = vmatmul.mubr.bf16.gmra.mrb[0].mxu0 %v4039
    %v4228 = vpop.f32.mrb[0].mxu0
    %v4229 = vadd.f32 %v3672, %v4228
    %v4230 = vpop.f32.mrb[0].mxu0
    %v4231 = vpop.f32.mrb[0].mxu0
    %v4232 = vadd.f32 %v3675, %v4231
    %v4233 = vpop.f32.mrb[0].mxu0
    %4234 = vmatprep.mubr.bf16.mxu0 0
    %4235 = vmatmul.mubr.bf16.gmra.mrb[0].mxu0 %v4042
    %v4236 = vpop.f32.mrb[0].mxu0
    %v4237 = vadd.f32 %v3680, %v4236
    %v4238 = vpop.f32.mrb[0].mxu0
    %v4239 = vpop.f32.mrb[0].mxu0
    %v4240 = vadd.f32 %v3683, %v4239
    %v4241 = vpop.f32.mrb[0].mxu0
    %4242 = vmatprep.mubr.bf16.mxu0 0
    %4243 = vmatmul.mubr.bf16.gmra.mrb[0].mxu0 %v4045
    %v4244 = vpop.f32.mrb[0].mxu0
    %v4245 = vadd.f32 %v3688, %v4244
    %v4246 = vpop.f32.mrb[0].mxu0
    %v4247 = vpop.f32.mrb[0].mxu0
    %v4248 = vadd.f32 %v3691, %v4247
    %v4249 = vpop.f32.mrb[0].mxu0
    %4250 = vmatprep.mubr.bf16.mxu0 0
    %4251 = vmatmul.mubr.bf16.gmra.mrb[0].mxu0 %v4048
    %v4252 = vpop.f32.mrb[0].mxu0
    %v4253 = vadd.f32 %v3696, %v4252
    %v4254 = vpop.f32.mrb[0].mxu0
    %v4255 = vpop.f32.mrb[0].mxu0
    %v4256 = vadd.f32 %v3699, %v4255
    %v4257 = vpop.f32.mrb[0].mxu0
    %4258 = vmatprep.mubr.bf16.mxu0 0
    %4259 = vmatmul.mubr.bf16.gmra.mrb[0].mxu0 %v4051
    %v4260 = vpop.f32.mrb[0].mxu0
    %v4261 = vadd.f32 %v3704, %v4260
    %v4262 = vpop.f32.mrb[0].mxu0
    %v4263 = vpop.f32.mrb[0].mxu0
    %v4264 = vadd.f32 %v3707, %v4263
    %v4265 = vpop.f32.mrb[0].mxu0
    %4266 = vmatprep.mubr.bf16.mxu0 0
    %4267 = vmatmul.mubr.bf16.gmra.mrb[0].mxu0 %v4054
    %v4268 = vpop.f32.mrb[0].mxu0
    %v4269 = vadd.f32 %v3712, %v4268
    %v4270 = vpop.f32.mrb[0].mxu0
    %v4271 = vpop.f32.mrb[0].mxu0
    %v4272 = vadd.f32 %v3715, %v4271
    %v4273 = vpop.f32.mrb[0].mxu0
    %4274 = vmatprep.mubr.bf16.mxu0 0
    %4275 = vmatmul.mubr.bf16.gmra.mrb[0].mxu0 %v4057
    %v4276 = vpop.f32.mrb[0].mxu0
    %v4277 = vadd.f32 %v3720, %v4276
    %v4278 = vpop.f32.mrb[0].mxu0
    %v4279 = vpop.f32.mrb[0].mxu0
    %v4280 = vadd.f32 %v3723, %v4279
    %v4281 = vpop.f32.mrb[0].mxu0
    %4282 = vmatprep.mubr.bf16.mxu0 0
    %4283 = vmatmul.mubr.bf16.gmra.mrb[0].mxu0 %v4060
    %v4284 = vpop.f32.mrb[0].mxu0
    %v4285 = vadd.f32 %v3728, %v4284
    %v4286 = vpop.f32.mrb[0].mxu0
    %v4287 = vpop.f32.mrb[0].mxu0
    %v4288 = vadd.f32 %v3731, %v4287
    %v4289 = vpop.f32.mrb[0].mxu0
    %4290 = vmatprep.mubr.bf16.mxu0 0
    %4291 = vmatmul.mubr.bf16.gmra.mrb[0].mxu0 %v4063
    %v4292 = vpop.f32.mrb[0].mxu0
    %v4293 = vadd.f32 %v3736, %v4292
    %v4294 = vpop.f32.mrb[0].mxu0
    %v4295 = vpop.f32.mrb[0].mxu0
    %v4296 = vadd.f32 %v3739, %v4295
    %v4297 = vpop.f32.mrb[0].mxu0
    %4298 = vmatprep.mubr.bf16.mxu0 0
    %4299 = vmatmul.mubr.bf16.gmra.mrb[0].mxu0 %v4066
    %v4300 = vpop.f32.mrb[0].mxu0
    %v4301 = vadd.f32 %v3744, %v4300
    %v4302 = vpop.f32.mrb[0].mxu0
    %v4303 = vpop.f32.mrb[0].mxu0
    %v4304 = vadd.f32 %v3747, %v4303
    %v4305 = vpop.f32.mrb[0].mxu0
    %4306 = vmatprep.mubr.bf16.mxu0 0
    %4307 = vmatmul.mubr.bf16.gmra.mrb[0].mxu0 %v4069
    %v4308 = vpop.f32.mrb[0].mxu0
    %v4309 = vadd.f32 %v3752, %v4308
    %v4310 = vpop.f32.mrb[0].mxu0
    %v4311 = vpop.f32.mrb[0].mxu0
    %v4312 = vadd.f32 %v3755, %v4311
    %v4313 = vpop.f32.mrb[0].mxu0
    %4314 = vmatprep.mubr.bf16.mxu0 0
    %4315 = vmatmul.mubr.bf16.gmra.mrb[0].mxu0 %v4072
    %v4316 = vpop.f32.mrb[0].mxu0
    %v4317 = vadd.f32 %v3760, %v4316
    %v4318 = vpop.f32.mrb[0].mxu0
    %v4319 = vpop.f32.mrb[0].mxu0
    %v4320 = vadd.f32 %v3763, %v4319
    %v4321 = vpop.f32.mrb[0].mxu0
    %4322 = vmatprep.mubr.bf16.mxu0 0
    %4323 = vmatmul.mubr.bf16.gmra.mrb[0].mxu0 %v4075
    %v4324 = vpop.f32.mrb[0].mxu0
    %v4325 = vadd.f32 %v3768, %v4324
    %v4326 = vpop.f32.mrb[0].mxu0
    %v4327 = vpop.f32.mrb[0].mxu0
    %v4328 = vadd.f32 %v3771, %v4327
    %v4329 = vpop.f32.mrb[0].mxu0
    %4330 = vmatprep.mubr.bf16.mxu0 0
    %4331 = vmatmul.mubr.bf16.gmra.mrb[0].mxu0 %v4078
    %v4332 = vpop.f32.mrb[0].mxu0
    %v4333 = vadd.f32 %v3776, %v4332
    %v4334 = vpop.f32.mrb[0].mxu0
    %v4335 = vpop.f32.mrb[0].mxu0
    %v4336 = vadd.f32 %v3779, %v4335
    %v4337 = vpop.f32.mrb[0].mxu0
    %4338 = vmatprep.mubr.bf16.mxu0 0
    %4339 = vmatmul.mubr.bf16.gmra.mrb[0].mxu0 %v4081
    %v4340 = vpop.f32.mrb[0].mxu0
    %v4341 = vadd.f32 %v3784, %v4340
    %v4342 = vpop.f32.mrb[0].mxu0
    %v4343 = vpop.f32.mrb[0].mxu0
    %v4344 = vadd.f32 %v3787, %v4343
    %v4345 = vpop.f32.mrb[0].mxu0
    %4346 = vmatprep.mubr.bf16.mxu0 0
    %4347 = vmatmul.mubr.bf16.gmra.mrb[0].mxu0 %v4084
    %v4348 = vpop.f32.mrb[0].mxu0
    %v4349 = vadd.f32 %v3792, %v4348
    %v4350 = vpop.f32.mrb[0].mxu0
    %v4351 = vpop.f32.mrb[0].mxu0
    %v4352 = vadd.f32 %v3795, %v4351
    %v4353 = vpop.f32.mrb[0].mxu0
    %4354 = vmatprep.mubr.bf16.mxu0 0
    %4355 = vmatmul.mubr.bf16.gmra.mrb[0].mxu0 %v4087
    %v4356 = vpop.f32.mrb[0].mxu0
    %v4357 = vadd.f32 %v3800, %v4356
    %v4358 = vpop.f32.mrb[0].mxu0
    %v4359 = vpop.f32.mrb[0].mxu0
    %v4360 = vadd.f32 %v3803, %v4359
    %v4361 = vpop.f32.mrb[0].mxu0
    %4362 = vmatprep.mubr.bf16.mxu0 0
    %4363 = vmatmul.mubr.bf16.gmra.mrb[0].mxu0 %v4090
    %v4364 = vpop.f32.mrb[0].mxu0
    %v4365 = vadd.f32 %v3808, %v4364
    %v4366 = vpop.f32.mrb[0].mxu0
    %v4367 = vpop.f32.mrb[0].mxu0
    %v4368 = vadd.f32 %v3811, %v4367
    %v4369 = vpop.f32.mrb[0].mxu0
    %4370 = vmatprep.mubr.bf16.mxu0 0
    %4371 = vmatmul.mubr.bf16.gmra.mrb[0].mxu0 %v4093
    %v4372 = vpop.f32.mrb[0].mxu0
    %v4373 = vadd.f32 %v3816, %v4372
    %v4374 = vpop.f32.mrb[0].mxu0
    %v4375 = vpop.f32.mrb[0].mxu0
    %v4376 = vadd.f32 %v3819, %v4375
    %v4377 = vpop.f32.mrb[0].mxu0
    %4378 = vmatprep.mubr.bf16.mxu0 0
    %4379 = vmatmul.mubr.bf16.gmra.mrb[0].mxu0 %v4096
    %v4380 = vpop.f32.mrb[0].mxu0
    %v4381 = vadd.f32 %v3824, %v4380
    %v4382 = vpop.f32.mrb[0].mxu0
    %v4383 = vpop.f32.mrb[0].mxu0
    %v4384 = vadd.f32 %v3827, %v4383
    %v4385 = vpop.f32.mrb[0].mxu0
    %4386 = vdwg.mxu0
    %v4387 = vld [vmem:[#allocation2] sm:$0xe]
    %v4388 = vld [vmem:[#allocation2 + $0xc] sm:$0xe]
    %v4389 = vld [vmem:[#allocation2 + $0x18] sm:$0xe]
    %v4390 = vld [vmem:[#allocation2 + $0x24] sm:$0xe]
    %v4391 = vld [vmem:[#allocation2 + $0x30] sm:$0xe]
    %v4392 = vld [vmem:[#allocation2 + $0x3c] sm:$0xe]
    %v4393 = vld [vmem:[#allocation2 + $0x48] sm:$0xe]
    %v4394 = vld [vmem:[#allocation2 + $0x54] sm:$0xe]
    %v4395 = vld [vmem:[#allocation2 + $0x60] sm:$0xe]
    %v4396 = vld [vmem:[#allocation2 + $0x6c] sm:$0xe]
    %v4397 = vld [vmem:[#allocation2 + $0x78] sm:$0xe]
    %v4398 = vld [vmem:[#allocation2 + $0x84] sm:$0xe]
    %v4399 = vld [vmem:[#allocation2 + $0x90] sm:$0xe]
    %v4400 = vld [vmem:[#allocation2 + $0x9c] sm:$0xe]
    %v4401 = vld [vmem:[#allocation2 + $0xa8] sm:$0xe]
    %v4402 = vld [vmem:[#allocation2 + $0xb4] sm:$0xe]
    %v4403 = vld [vmem:[#allocation2 + $0xd8] sm:$0xe]
    %v4404 = vld [vmem:[#allocation2 + $0xe4] sm:$0xe]
    %v4405 = vld [vmem:[#allocation2 + $0xf0] sm:$0xe]
    %v4406 = vld [vmem:[#allocation2 + $0xfc] sm:$0xe]
    %v4407 = vld [vmem:[#allocation2 + $0x108] sm:$0xe]
    %v4408 = vld [vmem:[#allocation2 + $0x114] sm:$0xe]
    %v4409 = vld [vmem:[#allocation2 + $0x120] sm:$0xe]
    %v4410 = vld [vmem:[#allocation2 + $0x12c] sm:$0xe]
    %v4411 = vld [vmem:[#allocation2 + $0x138] sm:$0xe]
    %v4412 = vld [vmem:[#allocation2 + $0x144] sm:$0xe]
    %v4413 = vld [vmem:[#allocation2 + $0x150] sm:$0xe]
    %v4414 = vld [vmem:[#allocation2 + $0x15c] sm:$0xe]
    %v4415 = vld [vmem:[#allocation2 + $0x168] sm:$0xe]
    %v4416 = vld [vmem:[#allocation2 + $0x174] sm:$0xe]
    %v4417 = vld [vmem:[#allocation2 + $0x180] sm:$0xe]
    %v4418 = vld [vmem:[#allocation2 + $0x18c] sm:$0xe]
    %vm4483 = vcmask 1042432
    %vm4484 = vcmask 1046532
    %vm4485 = vmor %vm4483, %vm4484
    %v4486 = vrot.slane %v4387, 5
    %v4487 = vrot.slane %v4486, 4
    %v4488 = vrot.slane %v2462, 5
    %v4489 = vsel %vm4485, %v4487, %v4488
    %v4490 = vrot.slane %v4488, 4
    %v4491 = vrot.slane %v2529, 5
    %v4492 = vsel %vm4485, %v4490, %v4491
    %v4493 = vrot.slane %v4388, 5
    %v4494 = vrot.slane %v4493, 4
    %v4495 = vrot.slane %v2464, 5
    %v4496 = vsel %vm4485, %v4494, %v4495
    %v4497 = vrot.slane %v4495, 4
    %v4498 = vrot.slane %v2530, 5
    %v4499 = vsel %vm4485, %v4497, %v4498
    %v4500 = vrot.slane %v4389, 5
    %v4501 = vrot.slane %v4500, 4
    %v4502 = vrot.slane %v2466, 5
    %v4503 = vsel %vm4485, %v4501, %v4502
    %v4504 = vrot.slane %v4502, 4
    %v4505 = vrot.slane %v2531, 5
    %v4506 = vsel %vm4485, %v4504, %v4505
    %v4507 = vrot.slane %v4390, 5
    %v4508 = vrot.slane %v4507, 4
    %v4509 = vrot.slane %v2468, 5
    %v4510 = vsel %vm4485, %v4508, %v4509
    %v4511 = vrot.slane %v4509, 4
    %v4512 = vrot.slane %v2532, 5
    %v4513 = vsel %vm4485, %v4511, %v4512
    %v4514 = vrot.slane %v4391, 5
    %v4515 = vrot.slane %v4514, 4
    %v4516 = vrot.slane %v2470, 5
    %v4517 = vsel %vm4485, %v4515, %v4516
    %v4518 = vrot.slane %v4516, 4
    %v4519 = vrot.slane %v2533, 5
    %v4520 = vsel %vm4485, %v4518, %v4519
    %v4521 = vrot.slane %v4392, 5
    %v4522 = vrot.slane %v4521, 4
    %v4523 = vrot.slane %v2472, 5
    %v4524 = vsel %vm4485, %v4522, %v4523
    %v4525 = vrot.slane %v4523, 4
    %v4526 = vrot.slane %v2534, 5
    %v4527 = vsel %vm4485, %v4525, %v4526
    %v4528 = vrot.slane %v4393, 5
    %v4529 = vrot.slane %v4528, 4
    %v4530 = vrot.slane %v2474, 5
    %v4531 = vsel %vm4485, %v4529, %v4530
    %v4532 = vrot.slane %v4530, 4
    %v4533 = vrot.slane %v2535, 5
    %v4534 = vsel %vm4485, %v4532, %v4533
    %v4535 = vrot.slane %v4394, 5
    %v4536 = vrot.slane %v4535, 4
    %v4537 = vrot.slane %v2476, 5
    %v4538 = vsel %vm4485, %v4536, %v4537
    %v4539 = vrot.slane %v4537, 4
    %v4540 = vrot.slane %v2536, 5
    %v4541 = vsel %vm4485, %v4539, %v4540
    %v4542 = vrot.slane %v4395, 5
    %v4543 = vrot.slane %v4542, 4
    %v4544 = vrot.slane %v2478, 5
    %v4545 = vsel %vm4485, %v4543, %v4544
    %v4546 = vrot.slane %v4544, 4
    %v4547 = vrot.slane %v2537, 5
    %v4548 = vsel %vm4485, %v4546, %v4547
    %v4549 = vrot.slane %v4396, 5
    %v4550 = vrot.slane %v4549, 4
    %v4551 = vrot.slane %v2480, 5
    %v4552 = vsel %vm4485, %v4550, %v4551
    %v4553 = vrot.slane %v4551, 4
    %v4554 = vrot.slane %v2538, 5
    %v4555 = vsel %vm4485, %v4553, %v4554
    %v4556 = vrot.slane %v4397, 5
    %v4557 = vrot.slane %v4556, 4
    %v4558 = vrot.slane %v2482, 5
    %v4559 = vsel %vm4485, %v4557, %v4558
    %v4560 = vrot.slane %v4558, 4
    %v4561 = vrot.slane %v2539, 5
    %v4562 = vsel %vm4485, %v4560, %v4561
    %v4563 = vrot.slane %v4398, 5
    %v4564 = vrot.slane %v4563, 4
    %v4565 = vrot.slane %v2484, 5
    %v4566 = vsel %vm4485, %v4564, %v4565
    %v4567 = vrot.slane %v4565, 4
    %v4568 = vrot.slane %v2540, 5
    %v4569 = vsel %vm4485, %v4567, %v4568
    %v4570 = vrot.slane %v4399, 5
    %v4571 = vrot.slane %v4570, 4
    %v4572 = vrot.slane %v2486, 5
    %v4573 = vsel %vm4485, %v4571, %v4572
    %v4574 = vrot.slane %v4572, 4
    %v4575 = vrot.slane %v2541, 5
    %v4576 = vsel %vm4485, %v4574, %v4575
    %v4577 = vrot.slane %v4400, 5
    %v4578 = vrot.slane %v4577, 4
    %v4579 = vrot.slane %v2488, 5
    %v4580 = vsel %vm4485, %v4578, %v4579
    %v4581 = vrot.slane %v4579, 4
    %v4582 = vrot.slane %v2542, 5
    %v4583 = vsel %vm4485, %v4581, %v4582
    %v4584 = vrot.slane %v4401, 5
    %v4585 = vrot.slane %v4584, 4
    %v4586 = vrot.slane %v2490, 5
    %v4587 = vsel %vm4485, %v4585, %v4586
    %v4588 = vrot.slane %v4586, 4
    %v4589 = vrot.slane %v2543, 5
    %v4590 = vsel %vm4485, %v4588, %v4589
    %v4591 = vrot.slane %v4402, 5
    %v4592 = vrot.slane %v4591, 4
    %v4593 = vrot.slane %v2492, 5
    %v4594 = vsel %vm4485, %v4592, %v4593
    %v4595 = vrot.slane %v4593, 4
    %v4596 = vrot.slane %v2544, 5
    %v4597 = vsel %vm4485, %v4595, %v4596
    %v4598 = vrot.slane %v4403, 5
    %v4599 = vrot.slane %v4598, 4
    %v4600 = vrot.slane %v2494, 5
    %v4601 = vsel %vm4485, %v4599, %v4600
    %v4602 = vrot.slane %v4600, 4
    %v4603 = vrot.slane %v2545, 5
    %v4604 = vsel %vm4485, %v4602, %v4603
    %v4605 = vrot.slane %v4404, 5
    %v4606 = vrot.slane %v4605, 4
    %v4607 = vrot.slane %v2496, 5
    %v4608 = vsel %vm4485, %v4606, %v4607
    %v4609 = vrot.slane %v4607, 4
    %v4610 = vrot.slane %v2546, 5
    %v4611 = vsel %vm4485, %v4609, %v4610
    %v4612 = vrot.slane %v4405, 5
    %v4613 = vrot.slane %v4612, 4
    %v4614 = vrot.slane %v2498, 5
    %v4615 = vsel %vm4485, %v4613, %v4614
    %v4616 = vrot.slane %v4614, 4
    %v4617 = vrot.slane %v2547, 5
    %v4618 = vsel %vm4485, %v4616, %v4617
    %v4619 = vrot.slane %v4406, 5
    %v4620 = vrot.slane %v4619, 4
    %v4621 = vrot.slane %v2500, 5
    %v4622 = vsel %vm4485, %v4620, %v4621
    %v4623 = vrot.slane %v4621, 4
    %v4624 = vrot.slane %v2548, 5
    %v4625 = vsel %vm4485, %v4623, %v4624
    %v4626 = vrot.slane %v4407, 5
    %v4627 = vrot.slane %v4626, 4
    %v4628 = vrot.slane %v2502, 5
    %v4629 = vsel %vm4485, %v4627, %v4628
    %v4630 = vrot.slane %v4628, 4
    %v4631 = vrot.slane %v2549, 5
    %v4632 = vsel %vm4485, %v4630, %v4631
    %v4633 = vrot.slane %v4408, 5
    %v4634 = vrot.slane %v4633, 4
    %v4635 = vrot.slane %v2504, 5
    %v4636 = vsel %vm4485, %v4634, %v4635
    %v4637 = vrot.slane %v4635, 4
    %v4638 = vrot.slane %v2550, 5
    %v4639 = vsel %vm4485, %v4637, %v4638
    %v4640 = vrot.slane %v4409, 5
    %v4641 = vrot.slane %v4640, 4
    %v4642 = vrot.slane %v2506, 5
    %v4643 = vsel %vm4485, %v4641, %v4642
    %v4644 = vrot.slane %v4642, 4
    %v4645 = vrot.slane %v2551, 5
    %v4646 = vsel %vm4485, %v4644, %v4645
    %v4647 = vrot.slane %v4410, 5
    %v4648 = vrot.slane %v4647, 4
    %v4649 = vrot.slane %v2508, 5
    %v4650 = vsel %vm4485, %v4648, %v4649
    %v4651 = vrot.slane %v4649, 4
    %v4652 = vrot.slane %v2552, 5
    %v4653 = vsel %vm4485, %v4651, %v4652
    %v4654 = vrot.slane %v4411, 5
    %v4655 = vrot.slane %v4654, 4
    %v4656 = vrot.slane %v2510, 5
    %v4657 = vsel %vm4485, %v4655, %v4656
    %v4658 = vrot.slane %v4656, 4
    %v4659 = vrot.slane %v2553, 5
    %v4660 = vsel %vm4485, %v4658, %v4659
    %v4661 = vrot.slane %v4412, 5
    %v4662 = vrot.slane %v4661, 4
    %v4663 = vrot.slane %v2512, 5
    %v4664 = vsel %vm4485, %v4662, %v4663
    %v4665 = vrot.slane %v4663, 4
    %v4666 = vrot.slane %v2554, 5
    %v4667 = vsel %vm4485, %v4665, %v4666
    %v4668 = vrot.slane %v4413, 5
    %v4669 = vrot.slane %v4668, 4
    %v4670 = vrot.slane %v2514, 5
    %v4671 = vsel %vm4485, %v4669, %v4670
    %v4672 = vrot.slane %v4670, 4
    %v4673 = vrot.slane %v2555, 5
    %v4674 = vsel %vm4485, %v4672, %v4673
    %v4675 = vrot.slane %v4414, 5
    %v4676 = vrot.slane %v4675, 4
    %v4677 = vrot.slane %v2516, 5
    %v4678 = vsel %vm4485, %v4676, %v4677
    %v4679 = vrot.slane %v4677, 4
    %v4680 = vrot.slane %v2556, 5
    %v4681 = vsel %vm4485, %v4679, %v4680
    %v4682 = vrot.slane %v4415, 5
    %v4683 = vrot.slane %v4682, 4
    %v4684 = vrot.slane %v2518, 5
    %v4685 = vsel %vm4485, %v4683, %v4684
    %v4686 = vrot.slane %v4684, 4
    %v4687 = vrot.slane %v2557, 5
    %v4688 = vsel %vm4485, %v4686, %v4687
    %v4689 = vrot.slane %v4416, 5
    %v4690 = vrot.slane %v4689, 4
    %v4691 = vrot.slane %v2520, 5
    %v4692 = vsel %vm4485, %v4690, %v4691
    %v4693 = vrot.slane %v4691, 4
    %v4694 = vrot.slane %v2558, 5
    %v4695 = vsel %vm4485, %v4693, %v4694
    %v4696 = vrot.slane %v4417, 5
    %v4697 = vrot.slane %v4696, 4
    %v4698 = vrot.slane %v2522, 5
    %v4699 = vsel %vm4485, %v4697, %v4698
    %v4700 = vrot.slane %v4698, 4
    %v4701 = vrot.slane %v2559, 5
    %v4702 = vsel %vm4485, %v4700, %v4701
    %v4703 = vrot.slane %v4418, 5
    %v4704 = vrot.slane %v4703, 4
    %v4705 = vrot.slane %v2524, 5
    %v4706 = vsel %vm4485, %v4704, %v4705
    %v4707 = vrot.slane %v4705, 4
    %v4708 = vrot.slane %v2560, 5
    %v4709 = vsel %vm4485, %v4707, %v4708
    %s4710 = scalar_lea.vmem [#allocation7], 32
    %v4711 = vld [vmem:[%s4710] sm:$0xf]
    %v4712 = vld [vmem:[%s4710 + $0x4] sm:$0xf]
    %v4713 = vld [vmem:[%s4710 + $0x8] sm:$0xf]
    %v4714 = vld [vmem:[%s4710 + $0xc] sm:$0xf]
    %v4715 = vunpack.c.l.b16 %v4489
    %v4716 = vunpack.c.l.b16 %v4492
    %v4717 = vunpack.c.l.b16 %v4496
    %v4718 = vunpack.c.l.b16 %v4499
    %v4719 = vunpack.c.l.b16 %v4503
    %v4720 = vunpack.c.l.b16 %v4506
    %v4721 = vunpack.c.l.b16 %v4510
    %v4722 = vunpack.c.l.b16 %v4513
    %v4723 = vunpack.c.l.b16 %v4517
    %v4724 = vunpack.c.l.b16 %v4520
    %v4725 = vunpack.c.l.b16 %v4524
    %v4726 = vunpack.c.l.b16 %v4527
    %v4727 = vunpack.c.l.b16 %v4531
    %v4728 = vunpack.c.l.b16 %v4534
    %v4729 = vunpack.c.l.b16 %v4538
    %v4730 = vunpack.c.l.b16 %v4541
    %v4731 = vunpack.c.l.b16 %v4545
    %v4732 = vunpack.c.l.b16 %v4548
    %v4733 = vunpack.c.l.b16 %v4552
    %v4734 = vunpack.c.l.b16 %v4555
    %v4735 = vunpack.c.l.b16 %v4559
    %v4736 = vunpack.c.l.b16 %v4562
    %v4737 = vunpack.c.l.b16 %v4566
    %v4738 = vunpack.c.l.b16 %v4569
    %v4739 = vunpack.c.l.b16 %v4573
    %v4740 = vunpack.c.l.b16 %v4576
    %v4741 = vunpack.c.l.b16 %v4580
    %v4742 = vunpack.c.l.b16 %v4583
    %v4743 = vunpack.c.l.b16 %v4587
    %v4744 = vunpack.c.l.b16 %v4590
    %v4745 = vunpack.c.l.b16 %v4594
    %v4746 = vunpack.c.l.b16 %v4597
    %v4747 = vunpack.c.l.b16 %v4601
    %v4748 = vunpack.c.l.b16 %v4604
    %v4749 = vunpack.c.l.b16 %v4608
    %v4750 = vunpack.c.l.b16 %v4611
    %v4751 = vunpack.c.l.b16 %v4615
    %v4752 = vunpack.c.l.b16 %v4618
    %v4753 = vunpack.c.l.b16 %v4622
    %v4754 = vunpack.c.l.b16 %v4625
    %v4755 = vunpack.c.l.b16 %v4629
    %v4756 = vunpack.c.l.b16 %v4632
    %v4757 = vunpack.c.l.b16 %v4636
    %v4758 = vunpack.c.l.b16 %v4639
    %v4759 = vunpack.c.l.b16 %v4643
    %v4760 = vunpack.c.l.b16 %v4646
    %v4761 = vunpack.c.l.b16 %v4650
    %v4762 = vunpack.c.l.b16 %v4653
    %v4763 = vunpack.c.l.b16 %v4657
    %v4764 = vunpack.c.l.b16 %v4660
    %v4765 = vunpack.c.l.b16 %v4664
    %v4766 = vunpack.c.l.b16 %v4667
    %v4767 = vunpack.c.l.b16 %v4671
    %v4768 = vunpack.c.l.b16 %v4674
    %v4769 = vunpack.c.l.b16 %v4678
    %v4770 = vunpack.c.l.b16 %v4681
    %v4771 = vunpack.c.l.b16 %v4685
    %v4772 = vunpack.c.l.b16 %v4688
    %v4773 = vunpack.c.l.b16 %v4692
    %v4774 = vunpack.c.l.b16 %v4695
    %v4775 = vunpack.c.l.b16 %v4699
    %v4776 = vunpack.c.l.b16 %v4702
    %v4777 = vunpack.c.l.b16 %v4706
    %v4778 = vunpack.c.l.b16 %v4709
    %v4779 = vpack.c.b16 %v4716, %v4715
    %v4780 = vpack.c.b16 %v4718, %v4717
    %v4781 = vpack.c.b16 %v4720, %v4719
    %v4782 = vpack.c.b16 %v4722, %v4721
    %v4783 = vpack.c.b16 %v4724, %v4723
    %v4784 = vpack.c.b16 %v4726, %v4725
    %v4785 = vpack.c.b16 %v4728, %v4727
    %v4786 = vpack.c.b16 %v4730, %v4729
    %v4787 = vpack.c.b16 %v4732, %v4731
    %v4788 = vpack.c.b16 %v4734, %v4733
    %v4789 = vpack.c.b16 %v4736, %v4735
    %v4790 = vpack.c.b16 %v4738, %v4737
    %v4791 = vpack.c.b16 %v4740, %v4739
    %v4792 = vpack.c.b16 %v4742, %v4741
    %v4793 = vpack.c.b16 %v4744, %v4743
    %v4794 = vpack.c.b16 %v4746, %v4745
    %v4795 = vpack.c.b16 %v4748, %v4747
    %v4796 = vpack.c.b16 %v4750, %v4749
    %v4797 = vpack.c.b16 %v4752, %v4751
    %v4798 = vpack.c.b16 %v4754, %v4753
    %v4799 = vpack.c.b16 %v4756, %v4755
    %v4800 = vpack.c.b16 %v4758, %v4757
    %v4801 = vpack.c.b16 %v4760, %v4759
    %v4802 = vpack.c.b16 %v4762, %v4761
    %v4803 = vpack.c.b16 %v4764, %v4763
    %v4804 = vpack.c.b16 %v4766, %v4765
    %v4805 = vpack.c.b16 %v4768, %v4767
    %v4806 = vpack.c.b16 %v4770, %v4769
    %v4807 = vpack.c.b16 %v4772, %v4771
    %v4808 = vpack.c.b16 %v4774, %v4773
    %v4809 = vpack.c.b16 %v4776, %v4775
    %v4810 = vpack.c.b16 %v4778, %v4777
    %v4815 = vunpack.c.l.b16 %v4711
    %v4816 = vunpack.c.l.b16 %v4712
    %v4817 = vunpack.c.l.b16 %v4713
    %v4818 = vunpack.c.l.b16 %v4714
    %v4819 = vpack.c.b16 %v4816, %v4815
    %v4820 = vpack.c.b16 %v4818, %v4817
    %v4824 = vsel %vm523, %v4779, 0
    %v4827 = vsel %vm523, %v4780, 0
    %v4830 = vsel %vm523, %v4781, 0
    %v4833 = vsel %vm523, %v4782, 0
    %v4836 = vsel %vm523, %v4783, 0
    %v4839 = vsel %vm523, %v4784, 0
    %v4842 = vsel %vm523, %v4785, 0
    %v4845 = vsel %vm523, %v4786, 0
    %v4848 = vsel %vm523, %v4787, 0
    %v4851 = vsel %vm523, %v4788, 0
    %v4854 = vsel %vm523, %v4789, 0
    %v4857 = vsel %vm523, %v4790, 0
    %v4860 = vsel %vm523, %v4791, 0
    %v4863 = vsel %vm523, %v4792, 0
    %v4866 = vsel %vm523, %v4793, 0
    %v4869 = vsel %vm523, %v4794, 0
    %v4872 = vsel %vm523, %v4795, 0
    %v4875 = vsel %vm523, %v4796, 0
    %v4878 = vsel %vm523, %v4797, 0
    %v4881 = vsel %vm523, %v4798, 0
    %v4884 = vsel %vm523, %v4799, 0
    %v4887 = vsel %vm523, %v4800, 0
    %v4890 = vsel %vm523, %v4801, 0
    %v4893 = vsel %vm523, %v4802, 0
    %v4896 = vsel %vm523, %v4803, 0
    %v4899 = vsel %vm523, %v4804, 0
    %v4902 = vsel %vm523, %v4805, 0
    %v4905 = vsel %vm523, %v4806, 0
    %v4908 = vsel %vm523, %v4807, 0
    %v4911 = vsel %vm523, %v4808, 0
    %v4914 = vsel %vm523, %v4809, 0
    %v4917 = vsel %vm523, %v4810, 0
    %4919 = vmatprep.subr.bf16.mxu0 0
    %4920 = vmatpush1.bf16.msra.mxu0 %v4819
    %4921 = vmatprep.subr.bf16.mxu0 0
    %4922 = vmatpush1.bf16.msra.mxu0 %v4820
    %4923 = vmatprep.subr.bf16.mxu0 0
    %4924 = vmatpush1.bf16.msra.mxu0 0
    %4925 = vmatprep.subr.bf16.mxu0 0
    %4926 = vmatpush1.bf16.msra.mxu0 0
    %4927 = vmatprep.subr.bf16.mxu0 0
    %4928 = vmatpush1.bf16.msra.mxu0 0
    %4929 = vmatprep.subr.bf16.mxu0 0
    %4930 = vmatpush1.bf16.msra.mxu0 0
    %4931 = vmatprep.subr.bf16.mxu0 0
    %4932 = vmatpush1.bf16.msra.mxu0 0
    %4933 = vmatprep.subr.bf16.mxu0 0
    %4934 = vmatpush1.bf16.msra.mxu0 0
    %4935 = vmatprep.subr.bf16.mxu0 0
    %4936 = vmatpush1.bf16.msra.mxu0 0
    %4937 = vmatprep.subr.bf16.mxu0 0
    %4938 = vmatpush1.bf16.msra.mxu0 0
    %4939 = vmatprep.subr.bf16.mxu0 0
    %4940 = vmatpush1.bf16.msra.mxu0 0
    %4941 = vmatprep.subr.bf16.mxu0 0
    %4942 = vmatpush1.bf16.msra.mxu0 0
    %4943 = vmatprep.subr.bf16.mxu0 0
    %4944 = vmatpush1.bf16.msra.mxu0 0
    %4945 = vmatprep.subr.bf16.mxu0 0
    %4946 = vmatpush1.bf16.msra.mxu0 0
    %4947 = vmatprep.subr.bf16.mxu0 0
    %4948 = vmatpush1.bf16.msra.mxu0 0
    %4949 = vmatprep.subr.bf16.mxu0 0
    %4950 = vmatpush1.bf16.msra.mxu0 0
    %4951 = vmatprep.mubr.bf16.mxu0 0
    %4952 = vmatmul.mubr.bf16.gmra.mrb[0].mxu0 %v4824
    %v4953 = vpop.f32.mrb[0].mxu0
    %v4954 = vadd.f32 0.0, %v4953
    %v4955 = vpop.f32.mrb[0].mxu0
    %v4956 = vpop.f32.mrb[0].mxu0
    %v4957 = vadd.f32 0.0, %v4956
    %v4958 = vpop.f32.mrb[0].mxu0
    %4959 = vmatprep.mubr.bf16.mxu0 0
    %4960 = vmatmul.mubr.bf16.gmra.mrb[0].mxu0 %v4827
    %v4961 = vpop.f32.mrb[0].mxu0
    %v4962 = vadd.f32 0.0, %v4961
    %v4963 = vpop.f32.mrb[0].mxu0
    %v4964 = vpop.f32.mrb[0].mxu0
    %v4965 = vadd.f32 0.0, %v4964
    %v4966 = vpop.f32.mrb[0].mxu0
    %4967 = vmatprep.mubr.bf16.mxu0 0
    %4968 = vmatmul.mubr.bf16.gmra.mrb[0].mxu0 %v4830
    %v4969 = vpop.f32.mrb[0].mxu0
    %v4970 = vadd.f32 0.0, %v4969
    %v4971 = vpop.f32.mrb[0].mxu0
    %v4972 = vpop.f32.mrb[0].mxu0
    %v4973 = vadd.f32 0.0, %v4972
    %v4974 = vpop.f32.mrb[0].mxu0
    %4975 = vmatprep.mubr.bf16.mxu0 0
    %4976 = vmatmul.mubr.bf16.gmra.mrb[0].mxu0 %v4833
    %v4977 = vpop.f32.mrb[0].mxu0
    %v4978 = vadd.f32 0.0, %v4977
    %v4979 = vpop.f32.mrb[0].mxu0
    %v4980 = vpop.f32.mrb[0].mxu0
    %v4981 = vadd.f32 0.0, %v4980
    %v4982 = vpop.f32.mrb[0].mxu0
    %4983 = vmatprep.mubr.bf16.mxu0 0
    %4984 = vmatmul.mubr.bf16.gmra.mrb[0].mxu0 %v4836
    %v4985 = vpop.f32.mrb[0].mxu0
    %v4986 = vadd.f32 0.0, %v4985
    %v4987 = vpop.f32.mrb[0].mxu0
    %v4988 = vpop.f32.mrb[0].mxu0
    %v4989 = vadd.f32 0.0, %v4988
    %v4990 = vpop.f32.mrb[0].mxu0
    %4991 = vmatprep.mubr.bf16.mxu0 0
    %4992 = vmatmul.mubr.bf16.gmra.mrb[0].mxu0 %v4839
    %v4993 = vpop.f32.mrb[0].mxu0
    %v4994 = vadd.f32 0.0, %v4993
    %v4995 = vpop.f32.mrb[0].mxu0
    %v4996 = vpop.f32.mrb[0].mxu0
    %v4997 = vadd.f32 0.0, %v4996
    %v4998 = vpop.f32.mrb[0].mxu0
    %4999 = vmatprep.mubr.bf16.mxu0 0
    %5000 = vmatmul.mubr.bf16.gmra.mrb[0].mxu0 %v4842
    %v5001 = vpop.f32.mrb[0].mxu0
    %v5002 = vadd.f32 0.0, %v5001
    %v5003 = vpop.f32.mrb[0].mxu0
    %v5004 = vpop.f32.mrb[0].mxu0
    %v5005 = vadd.f32 0.0, %v5004
    %v5006 = vpop.f32.mrb[0].mxu0
    %5007 = vmatprep.mubr.bf16.mxu0 0
    %5008 = vmatmul.mubr.bf16.gmra.mrb[0].mxu0 %v4845
    %v5009 = vpop.f32.mrb[0].mxu0
    %v5010 = vadd.f32 0.0, %v5009
    %v5011 = vpop.f32.mrb[0].mxu0
    %v5012 = vpop.f32.mrb[0].mxu0
    %v5013 = vadd.f32 0.0, %v5012
    %v5014 = vpop.f32.mrb[0].mxu0
    %5015 = vmatprep.mubr.bf16.mxu0 0
    %5016 = vmatmul.mubr.bf16.gmra.mrb[0].mxu0 %v4848
    %v5017 = vpop.f32.mrb[0].mxu0
    %v5018 = vadd.f32 0.0, %v5017
    %v5019 = vpop.f32.mrb[0].mxu0
    %v5020 = vpop.f32.mrb[0].mxu0
    %v5021 = vadd.f32 0.0, %v5020
    %v5022 = vpop.f32.mrb[0].mxu0
    %5023 = vmatprep.mubr.bf16.mxu0 0
    %5024 = vmatmul.mubr.bf16.gmra.mrb[0].mxu0 %v4851
    %v5025 = vpop.f32.mrb[0].mxu0
    %v5026 = vadd.f32 0.0, %v5025
    %v5027 = vpop.f32.mrb[0].mxu0
    %v5028 = vpop.f32.mrb[0].mxu0
    %v5029 = vadd.f32 0.0, %v5028
    %v5030 = vpop.f32.mrb[0].mxu0
    %5031 = vmatprep.mubr.bf16.mxu0 0
    %5032 = vmatmul.mubr.bf16.gmra.mrb[0].mxu0 %v4854
    %v5033 = vpop.f32.mrb[0].mxu0
    %v5034 = vadd.f32 0.0, %v5033
    %v5035 = vpop.f32.mrb[0].mxu0
    %v5036 = vpop.f32.mrb[0].mxu0
    %v5037 = vadd.f32 0.0, %v5036
    %v5038 = vpop.f32.mrb[0].mxu0
    %5039 = vmatprep.mubr.bf16.mxu0 0
    %5040 = vmatmul.mubr.bf16.gmra.mrb[0].mxu0 %v4857
    %v5041 = vpop.f32.mrb[0].mxu0
    %v5042 = vadd.f32 0.0, %v5041
    %v5043 = vpop.f32.mrb[0].mxu0
    %v5044 = vpop.f32.mrb[0].mxu0
    %v5045 = vadd.f32 0.0, %v5044
    %v5046 = vpop.f32.mrb[0].mxu0
    %5047 = vmatprep.mubr.bf16.mxu0 0
    %5048 = vmatmul.mubr.bf16.gmra.mrb[0].mxu0 %v4860
    %v5049 = vpop.f32.mrb[0].mxu0
    %v5050 = vadd.f32 0.0, %v5049
    %v5051 = vpop.f32.mrb[0].mxu0
    %v5052 = vpop.f32.mrb[0].mxu0
    %v5053 = vadd.f32 0.0, %v5052
    %v5054 = vpop.f32.mrb[0].mxu0
    %5055 = vmatprep.mubr.bf16.mxu0 0
    %5056 = vmatmul.mubr.bf16.gmra.mrb[0].mxu0 %v4863
    %v5057 = vpop.f32.mrb[0].mxu0
    %v5058 = vadd.f32 0.0, %v5057
    %v5059 = vpop.f32.mrb[0].mxu0
    %v5060 = vpop.f32.mrb[0].mxu0
    %v5061 = vadd.f32 0.0, %v5060
    %v5062 = vpop.f32.mrb[0].mxu0
    %5063 = vmatprep.mubr.bf16.mxu0 0
    %5064 = vmatmul.mubr.bf16.gmra.mrb[0].mxu0 %v4866
    %v5065 = vpop.f32.mrb[0].mxu0
    %v5066 = vadd.f32 0.0, %v5065
    %v5067 = vpop.f32.mrb[0].mxu0
    %v5068 = vpop.f32.mrb[0].mxu0
    %v5069 = vadd.f32 0.0, %v5068
    %v5070 = vpop.f32.mrb[0].mxu0
    %5071 = vmatprep.mubr.bf16.mxu0 0
    %5072 = vmatmul.mubr.bf16.gmra.mrb[0].mxu0 %v4869
    %v5073 = vpop.f32.mrb[0].mxu0
    %v5074 = vadd.f32 0.0, %v5073
    %v5075 = vpop.f32.mrb[0].mxu0
    %v5076 = vpop.f32.mrb[0].mxu0
    %v5077 = vadd.f32 0.0, %v5076
    %v5078 = vpop.f32.mrb[0].mxu0
    %5079 = vmatprep.mubr.bf16.mxu0 0
    %5080 = vmatmul.mubr.bf16.gmra.mrb[0].mxu0 %v4872
    %v5081 = vpop.f32.mrb[0].mxu0
    %v5082 = vadd.f32 0.0, %v5081
    %v5083 = vpop.f32.mrb[0].mxu0
    %v5084 = vpop.f32.mrb[0].mxu0
    %v5085 = vadd.f32 0.0, %v5084
    %v5086 = vpop.f32.mrb[0].mxu0
    %5087 = vmatprep.mubr.bf16.mxu0 0
    %5088 = vmatmul.mubr.bf16.gmra.mrb[0].mxu0 %v4875
    %v5089 = vpop.f32.mrb[0].mxu0
    %v5090 = vadd.f32 0.0, %v5089
    %v5091 = vpop.f32.mrb[0].mxu0
    %v5092 = vpop.f32.mrb[0].mxu0
    %v5093 = vadd.f32 0.0, %v5092
    %v5094 = vpop.f32.mrb[0].mxu0
    %5095 = vmatprep.mubr.bf16.mxu0 0
    %5096 = vmatmul.mubr.bf16.gmra.mrb[0].mxu0 %v4878
    %v5097 = vpop.f32.mrb[0].mxu0
    %v5098 = vadd.f32 0.0, %v5097
    %v5099 = vpop.f32.mrb[0].mxu0
    %v5100 = vpop.f32.mrb[0].mxu0
    %v5101 = vadd.f32 0.0, %v5100
    %v5102 = vpop.f32.mrb[0].mxu0
    %5103 = vmatprep.mubr.bf16.mxu0 0
    %5104 = vmatmul.mubr.bf16.gmra.mrb[0].mxu0 %v4881
    %v5105 = vpop.f32.mrb[0].mxu0
    %v5106 = vadd.f32 0.0, %v5105
    %v5107 = vpop.f32.mrb[0].mxu0
    %v5108 = vpop.f32.mrb[0].mxu0
    %v5109 = vadd.f32 0.0, %v5108
    %v5110 = vpop.f32.mrb[0].mxu0
    %5111 = vmatprep.mubr.bf16.mxu0 0
    %5112 = vmatmul.mubr.bf16.gmra.mrb[0].mxu0 %v4884
    %v5113 = vpop.f32.mrb[0].mxu0
    %v5114 = vadd.f32 0.0, %v5113
    %v5115 = vpop.f32.mrb[0].mxu0
    %v5116 = vpop.f32.mrb[0].mxu0
    %v5117 = vadd.f32 0.0, %v5116
    %v5118 = vpop.f32.mrb[0].mxu0
    %5119 = vmatprep.mubr.bf16.mxu0 0
    %5120 = vmatmul.mubr.bf16.gmra.mrb[0].mxu0 %v4887
    %v5121 = vpop.f32.mrb[0].mxu0
    %v5122 = vadd.f32 0.0, %v5121
    %v5123 = vpop.f32.mrb[0].mxu0
    %v5124 = vpop.f32.mrb[0].mxu0
    %v5125 = vadd.f32 0.0, %v5124
    %v5126 = vpop.f32.mrb[0].mxu0
    %5127 = vmatprep.mubr.bf16.mxu0 0
    %5128 = vmatmul.mubr.bf16.gmra.mrb[0].mxu0 %v4890
    %v5129 = vpop.f32.mrb[0].mxu0
    %v5130 = vadd.f32 0.0, %v5129
    %v5131 = vpop.f32.mrb[0].mxu0
    %v5132 = vpop.f32.mrb[0].mxu0
    %v5133 = vadd.f32 0.0, %v5132
    %v5134 = vpop.f32.mrb[0].mxu0
    %5135 = vmatprep.mubr.bf16.mxu0 0
    %5136 = vmatmul.mubr.bf16.gmra.mrb[0].mxu0 %v4893
    %v5137 = vpop.f32.mrb[0].mxu0
    %v5138 = vadd.f32 0.0, %v5137
    %v5139 = vpop.f32.mrb[0].mxu0
    %v5140 = vpop.f32.mrb[0].mxu0
    %v5141 = vadd.f32 0.0, %v5140
    %v5142 = vpop.f32.mrb[0].mxu0
    %5143 = vmatprep.mubr.bf16.mxu0 0
    %5144 = vmatmul.mubr.bf16.gmra.mrb[0].mxu0 %v4896
    %v5145 = vpop.f32.mrb[0].mxu0
    %v5146 = vadd.f32 0.0, %v5145
    %v5147 = vpop.f32.mrb[0].mxu0
    %v5148 = vpop.f32.mrb[0].mxu0
    %v5149 = vadd.f32 0.0, %v5148
    %v5150 = vpop.f32.mrb[0].mxu0
    %5151 = vmatprep.mubr.bf16.mxu0 0
    %5152 = vmatmul.mubr.bf16.gmra.mrb[0].mxu0 %v4899
    %v5153 = vpop.f32.mrb[0].mxu0
    %v5154 = vadd.f32 0.0, %v5153
    %v5155 = vpop.f32.mrb[0].mxu0
    %v5156 = vpop.f32.mrb[0].mxu0
    %v5157 = vadd.f32 0.0, %v5156
    %v5158 = vpop.f32.mrb[0].mxu0
    %5159 = vmatprep.mubr.bf16.mxu0 0
    %5160 = vmatmul.mubr.bf16.gmra.mrb[0].mxu0 %v4902
    %v5161 = vpop.f32.mrb[0].mxu0
    %v5162 = vadd.f32 0.0, %v5161
    %v5163 = vpop.f32.mrb[0].mxu0
    %v5164 = vpop.f32.mrb[0].mxu0
    %v5165 = vadd.f32 0.0, %v5164
    %v5166 = vpop.f32.mrb[0].mxu0
    %5167 = vmatprep.mubr.bf16.mxu0 0
    %5168 = vmatmul.mubr.bf16.gmra.mrb[0].mxu0 %v4905
    %v5169 = vpop.f32.mrb[0].mxu0
    %v5170 = vadd.f32 0.0, %v5169
    %v5171 = vpop.f32.mrb[0].mxu0
    %v5172 = vpop.f32.mrb[0].mxu0
    %v5173 = vadd.f32 0.0, %v5172
    %v5174 = vpop.f32.mrb[0].mxu0
    %5175 = vmatprep.mubr.bf16.mxu0 0
    %5176 = vmatmul.mubr.bf16.gmra.mrb[0].mxu0 %v4908
    %v5177 = vpop.f32.mrb[0].mxu0
    %v5178 = vadd.f32 0.0, %v5177
    %v5179 = vpop.f32.mrb[0].mxu0
    %v5180 = vpop.f32.mrb[0].mxu0
    %v5181 = vadd.f32 0.0, %v5180
    %v5182 = vpop.f32.mrb[0].mxu0
    %5183 = vmatprep.mubr.bf16.mxu0 0
    %5184 = vmatmul.mubr.bf16.gmra.mrb[0].mxu0 %v4911
    %v5185 = vpop.f32.mrb[0].mxu0
    %v5186 = vadd.f32 0.0, %v5185
    %v5187 = vpop.f32.mrb[0].mxu0
    %v5188 = vpop.f32.mrb[0].mxu0
    %v5189 = vadd.f32 0.0, %v5188
    %v5190 = vpop.f32.mrb[0].mxu0
    %5191 = vmatprep.mubr.bf16.mxu0 0
    %5192 = vmatmul.mubr.bf16.gmra.mrb[0].mxu0 %v4914
    %v5193 = vpop.f32.mrb[0].mxu0
    %v5194 = vadd.f32 0.0, %v5193
    %v5195 = vpop.f32.mrb[0].mxu0
    %v5196 = vpop.f32.mrb[0].mxu0
    %v5197 = vadd.f32 0.0, %v5196
    %v5198 = vpop.f32.mrb[0].mxu0
    %5199 = vmatprep.mubr.bf16.mxu0 0
    %5200 = vmatmul.mubr.bf16.gmra.mrb[0].mxu0 %v4917
    %v5201 = vpop.f32.mrb[0].mxu0
    %v5202 = vadd.f32 0.0, %v5201
    %v5203 = vpop.f32.mrb[0].mxu0
    %v5204 = vpop.f32.mrb[0].mxu0
    %v5205 = vadd.f32 0.0, %v5204
    %v5206 = vpop.f32.mrb[0].mxu0
    %5207 = vdwg.mxu0
    %v5208 = vadd.f32 %v4133, %v4954
    %v5209 = vadd.f32 %v4136, %v4957
    %v5210 = vadd.f32 %v4141, %v4962
    %v5211 = vadd.f32 %v4144, %v4965
    %v5212 = vadd.f32 %v4149, %v4970
    %v5213 = vadd.f32 %v4152, %v4973
    %v5214 = vadd.f32 %v4157, %v4978
    %v5215 = vadd.f32 %v4160, %v4981
    %v5216 = vadd.f32 %v4165, %v4986
    %v5217 = vadd.f32 %v4168, %v4989
    %v5218 = vadd.f32 %v4173, %v4994
    %v5219 = vadd.f32 %v4176, %v4997
    %v5220 = vadd.f32 %v4181, %v5002
    %v5221 = vadd.f32 %v4184, %v5005
    %v5222 = vadd.f32 %v4189, %v5010
    %v5223 = vadd.f32 %v4192, %v5013
    %v5224 = vadd.f32 %v4197, %v5018
    %v5225 = vadd.f32 %v4200, %v5021
    %v5226 = vadd.f32 %v4205, %v5026
    %v5227 = vadd.f32 %v4208, %v5029
    %v5228 = vadd.f32 %v4213, %v5034
    %v5229 = vadd.f32 %v4216, %v5037
    %v5230 = vadd.f32 %v4221, %v5042
    %v5231 = vadd.f32 %v4224, %v5045
    %v5232 = vadd.f32 %v4229, %v5050
    %v5233 = vadd.f32 %v4232, %v5053
    %v5234 = vadd.f32 %v4237, %v5058
    %v5235 = vadd.f32 %v4240, %v5061
    %v5236 = vadd.f32 %v4245, %v5066
    %v5237 = vadd.f32 %v4248, %v5069
    %v5238 = vadd.f32 %v4253, %v5074
    %v5239 = vadd.f32 %v4256, %v5077
    %v5240 = vadd.f32 %v4261, %v5082
    %v5241 = vadd.f32 %v4264, %v5085
    %v5242 = vadd.f32 %v4269, %v5090
    %v5243 = vadd.f32 %v4272, %v5093
    %v5244 = vadd.f32 %v4277, %v5098
    %v5245 = vadd.f32 %v4280, %v5101
    %v5246 = vadd.f32 %v4285, %v5106
    %v5247 = vadd.f32 %v4288, %v5109
    %v5248 = vadd.f32 %v4293, %v5114
    %v5249 = vadd.f32 %v4296, %v5117
    %v5250 = vadd.f32 %v4301, %v5122
    %v5251 = vadd.f32 %v4304, %v5125
    %v5252 = vadd.f32 %v4309, %v5130
    %v5253 = vadd.f32 %v4312, %v5133
    %v5254 = vadd.f32 %v4317, %v5138
    %v5255 = vadd.f32 %v4320, %v5141
    %v5256 = vadd.f32 %v4325, %v5146
    %v5257 = vadd.f32 %v4328, %v5149
    %v5258 = vadd.f32 %v4333, %v5154
    %v5259 = vadd.f32 %v4336, %v5157
    %v5260 = vadd.f32 %v4341, %v5162
    %v5261 = vadd.f32 %v4344, %v5165
    %v5262 = vadd.f32 %v4349, %v5170
    %v5263 = vadd.f32 %v4352, %v5173
    %v5264 = vadd.f32 %v4357, %v5178
    %v5265 = vadd.f32 %v4360, %v5181
    %v5266 = vadd.f32 %v4365, %v5186
    %v5267 = vadd.f32 %v4368, %v5189
    %v5268 = vadd.f32 %v4373, %v5194
    %v5269 = vadd.f32 %v4376, %v5197
    %v5270 = vadd.f32 %v4381, %v5202
    %v5271 = vadd.f32 %v4384, %v5205
    %v5272 = vld [vmem:[%s1203] sm:$0xf]
    %v5273 = vld [vmem:[%s1203 + $0x4] sm:$0xf]
    %v5274 = vld [vmem:[%s1203 + $0xc] sm:$0xf]
    %v5275 = vld [vmem:[%s1203 + $0x10] sm:$0xf]
    %v5276 = vld [vmem:[%s1203 + $0x18] sm:$0xf]
    %v5277 = vld [vmem:[%s1203 + $0x1c] sm:$0xf]
    %v5278 = vld [vmem:[%s1203 + $0x24] sm:$0xf]
    %v5279 = vld [vmem:[%s1203 + $0x28] sm:$0xf]
    %v5280 = vld [vmem:[%s1203 + $0x30] sm:$0xf]
    %v5281 = vld [vmem:[%s1203 + $0x34] sm:$0xf]
    %v5282 = vld [vmem:[%s1203 + $0x3c] sm:$0xf]
    %v5283 = vld [vmem:[%s1203 + $0x40] sm:$0xf]
    %v5284 = vld [vmem:[%s1203 + $0x48] sm:$0xf]
    %v5285 = vld [vmem:[%s1203 + $0x4c] sm:$0xf]
    %v5286 = vld [vmem:[%s1203 + $0x54] sm:$0xf]
    %v5287 = vld [vmem:[%s1203 + $0x58] sm:$0xf]
    %v5288 = vld [vmem:[%s1203 + $0x60] sm:$0xf]
    %v5289 = vld [vmem:[%s1203 + $0x64] sm:$0xf]
    %v5290 = vld [vmem:[%s1203 + $0x6c] sm:$0xf]
    %v5291 = vld [vmem:[%s1203 + $0x70] sm:$0xf]
    %v5292 = vld [vmem:[%s1203 + $0x78] sm:$0xf]
    %v5293 = vld [vmem:[%s1203 + $0x7c] sm:$0xf]
    %v5294 = vld [vmem:[%s1203 + $0x84] sm:$0xf]
    %v5295 = vld [vmem:[%s1203 + $0x88] sm:$0xf]
    %v5296 = vld [vmem:[%s1203 + $0x90] sm:$0xf]
    %v5297 = vld [vmem:[%s1203 + $0x94] sm:$0xf]
    %v5298 = vld [vmem:[%s1203 + $0x9c] sm:$0xf]
    %v5299 = vld [vmem:[%s1203 + $0xa0] sm:$0xf]
    %v5300 = vld [vmem:[%s1203 + $0xa8] sm:$0xf]
    %v5301 = vld [vmem:[%s1203 + $0xac] sm:$0xf]
    %v5302 = vld [vmem:[%s1203 + $0xb4] sm:$0xf]
    %v5303 = vld [vmem:[%s1203 + $0xb8] sm:$0xf]
    %v5304 = vld [vmem:[%s1203 + $0xd8] sm:$0xf]
    %v5305 = vld [vmem:[%s1203 + $0xdc] sm:$0xf]
    %v5306 = vld [vmem:[%s1203 + $0xe4] sm:$0xf]
    %v5307 = vld [vmem:[%s1203 + $0xe8] sm:$0xf]
    %v5308 = vld [vmem:[%s1203 + $0xf0] sm:$0xf]
    %v5309 = vld [vmem:[%s1203 + $0xf4] sm:$0xf]
    %v5310 = vld [vmem:[%s1203 + $0xfc] sm:$0xf]
    %v5311 = vld [vmem:[%s1203 + $0x100] sm:$0xf]
    %v5312 = vld [vmem:[%s1203 + $0x108] sm:$0xf]
    %v5313 = vld [vmem:[%s1203 + $0x10c] sm:$0xf]
    %v5314 = vld [vmem:[%s1203 + $0x114] sm:$0xf]
    %v5315 = vld [vmem:[%s1203 + $0x118] sm:$0xf]
    %v5316 = vld [vmem:[%s1203 + $0x120] sm:$0xf]
    %v5317 = vld [vmem:[%s1203 + $0x124] sm:$0xf]
    %v5318 = vld [vmem:[%s1203 + $0x12c] sm:$0xf]
    %v5319 = vld [vmem:[%s1203 + $0x130] sm:$0xf]
    %v5320 = vld [vmem:[%s1203 + $0x138] sm:$0xf]
    %v5321 = vld [vmem:[%s1203 + $0x13c] sm:$0xf]
    %v5322 = vld [vmem:[%s1203 + $0x144] sm:$0xf]
    %v5323 = vld [vmem:[%s1203 + $0x148] sm:$0xf]
    %v5324 = vld [vmem:[%s1203 + $0x150] sm:$0xf]
    %v5325 = vld [vmem:[%s1203 + $0x154] sm:$0xf]
    %v5326 = vld [vmem:[%s1203 + $0x15c] sm:$0xf]
    %v5327 = vld [vmem:[%s1203 + $0x160] sm:$0xf]
    %v5328 = vld [vmem:[%s1203 + $0x168] sm:$0xf]
    %v5329 = vld [vmem:[%s1203 + $0x16c] sm:$0xf]
    %v5330 = vld [vmem:[%s1203 + $0x174] sm:$0xf]
    %v5331 = vld [vmem:[%s1203 + $0x178] sm:$0xf]
    %v5332 = vld [vmem:[%s1203 + $0x180] sm:$0xf]
    %v5333 = vld [vmem:[%s1203 + $0x184] sm:$0xf]
    %v5334 = vld [vmem:[%s1203 + $0x18c] sm:$0xf]
    %v5335 = vld [vmem:[%s1203 + $0x190] sm:$0xf]
    %s5336 = scalar_lea.vmem [#allocation7], 48
    %v5337 = vld [vmem:[%s5336] sm:$0xf]
    %v5338 = vld [vmem:[%s5336 + $0x4] sm:$0xf]
    %v5339 = vld [vmem:[%s5336 + $0x8] sm:$0xf]
    %v5340 = vld [vmem:[%s5336 + $0xc] sm:$0xf]
    %v5405 = vunpack.c.l.b16 %v5272
    %v5406 = vunpack.c.l.b16 %v5273
    %v5407 = vunpack.c.l.b16 %v5274
    %v5408 = vunpack.c.l.b16 %v5275
    %v5409 = vunpack.c.l.b16 %v5276
    %v5410 = vunpack.c.l.b16 %v5277
    %v5411 = vunpack.c.l.b16 %v5278
    %v5412 = vunpack.c.l.b16 %v5279
    %v5413 = vunpack.c.l.b16 %v5280
    %v5414 = vunpack.c.l.b16 %v5281
    %v5415 = vunpack.c.l.b16 %v5282
    %v5416 = vunpack.c.l.b16 %v5283
    %v5417 = vunpack.c.l.b16 %v5284
    %v5418 = vunpack.c.l.b16 %v5285
    %v5419 = vunpack.c.l.b16 %v5286
    %v5420 = vunpack.c.l.b16 %v5287
    %v5421 = vunpack.c.l.b16 %v5288
    %v5422 = vunpack.c.l.b16 %v5289
    %v5423 = vunpack.c.l.b16 %v5290
    %v5424 = vunpack.c.l.b16 %v5291
    %v5425 = vunpack.c.l.b16 %v5292
    %v5426 = vunpack.c.l.b16 %v5293
    %v5427 = vunpack.c.l.b16 %v5294
    %v5428 = vunpack.c.l.b16 %v5295
    %v5429 = vunpack.c.l.b16 %v5296
    %v5430 = vunpack.c.l.b16 %v5297
    %v5431 = vunpack.c.l.b16 %v5298
    %v5432 = vunpack.c.l.b16 %v5299
    %v5433 = vunpack.c.l.b16 %v5300
    %v5434 = vunpack.c.l.b16 %v5301
    %v5435 = vunpack.c.l.b16 %v5302
    %v5436 = vunpack.c.l.b16 %v5303
    %v5437 = vunpack.c.l.b16 %v5304
    %v5438 = vunpack.c.l.b16 %v5305
    %v5439 = vunpack.c.l.b16 %v5306
    %v5440 = vunpack.c.l.b16 %v5307
    %v5441 = vunpack.c.l.b16 %v5308
    %v5442 = vunpack.c.l.b16 %v5309
    %v5443 = vunpack.c.l.b16 %v5310
    %v5444 = vunpack.c.l.b16 %v5311
    %v5445 = vunpack.c.l.b16 %v5312
    %v5446 = vunpack.c.l.b16 %v5313
    %v5447 = vunpack.c.l.b16 %v5314
    %v5448 = vunpack.c.l.b16 %v5315
    %v5449 = vunpack.c.l.b16 %v5316
    %v5450 = vunpack.c.l.b16 %v5317
    %v5451 = vunpack.c.l.b16 %v5318
    %v5452 = vunpack.c.l.b16 %v5319
    %v5453 = vunpack.c.l.b16 %v5320
    %v5454 = vunpack.c.l.b16 %v5321
    %v5455 = vunpack.c.l.b16 %v5322
    %v5456 = vunpack.c.l.b16 %v5323
    %v5457 = vunpack.c.l.b16 %v5324
    %v5458 = vunpack.c.l.b16 %v5325
    %v5459 = vunpack.c.l.b16 %v5326
    %v5460 = vunpack.c.l.b16 %v5327
    %v5461 = vunpack.c.l.b16 %v5328
    %v5462 = vunpack.c.l.b16 %v5329
    %v5463 = vunpack.c.l.b16 %v5330
    %v5464 = vunpack.c.l.b16 %v5331
    %v5465 = vunpack.c.l.b16 %v5332
    %v5466 = vunpack.c.l.b16 %v5333
    %v5467 = vunpack.c.l.b16 %v5334
    %v5468 = vunpack.c.l.b16 %v5335
    %v5469 = vpack.c.b16 %v5406, %v5405
    %v5470 = vpack.c.b16 %v5408, %v5407
    %v5471 = vpack.c.b16 %v5410, %v5409
    %v5472 = vpack.c.b16 %v5412, %v5411
    %v5473 = vpack.c.b16 %v5414, %v5413
    %v5474 = vpack.c.b16 %v5416, %v5415
    %v5475 = vpack.c.b16 %v5418, %v5417
    %v5476 = vpack.c.b16 %v5420, %v5419
    %v5477 = vpack.c.b16 %v5422, %v5421
    %v5478 = vpack.c.b16 %v5424, %v5423
    %v5479 = vpack.c.b16 %v5426, %v5425
    %v5480 = vpack.c.b16 %v5428, %v5427
    %v5481 = vpack.c.b16 %v5430, %v5429
    %v5482 = vpack.c.b16 %v5432, %v5431
    %v5483 = vpack.c.b16 %v5434, %v5433
    %v5484 = vpack.c.b16 %v5436, %v5435
    %v5485 = vpack.c.b16 %v5438, %v5437
    %v5486 = vpack.c.b16 %v5440, %v5439
    %v5487 = vpack.c.b16 %v5442, %v5441
    %v5488 = vpack.c.b16 %v5444, %v5443
    %v5489 = vpack.c.b16 %v5446, %v5445
    %v5490 = vpack.c.b16 %v5448, %v5447
    %v5491 = vpack.c.b16 %v5450, %v5449
    %v5492 = vpack.c.b16 %v5452, %v5451
    %v5493 = vpack.c.b16 %v5454, %v5453
    %v5494 = vpack.c.b16 %v5456, %v5455
    %v5495 = vpack.c.b16 %v5458, %v5457
    %v5496 = vpack.c.b16 %v5460, %v5459
    %v5497 = vpack.c.b16 %v5462, %v5461
    %v5498 = vpack.c.b16 %v5464, %v5463
    %v5499 = vpack.c.b16 %v5466, %v5465
    %v5500 = vpack.c.b16 %v5468, %v5467
    %v5505 = vunpack.c.l.b16 %v5337
    %v5506 = vunpack.c.l.b16 %v5338
    %v5507 = vunpack.c.l.b16 %v5339
    %v5508 = vunpack.c.l.b16 %v5340
    %v5509 = vpack.c.b16 %v5506, %v5505
    %v5510 = vpack.c.b16 %v5508, %v5507
    %v5514 = vsel %vm523, %v5469, 0
    %v5517 = vsel %vm523, %v5470, 0
    %v5520 = vsel %vm523, %v5471, 0
    %v5523 = vsel %vm523, %v5472, 0
    %v5526 = vsel %vm523, %v5473, 0
    %v5529 = vsel %vm523, %v5474, 0
    %v5532 = vsel %vm523, %v5475, 0
    %v5535 = vsel %vm523, %v5476, 0
    %v5538 = vsel %vm523, %v5477, 0
    %v5541 = vsel %vm523, %v5478, 0
    %v5544 = vsel %vm523, %v5479, 0
    %v5547 = vsel %vm523, %v5480, 0
    %v5550 = vsel %vm523, %v5481, 0
    %v5553 = vsel %vm523, %v5482, 0
    %v5556 = vsel %vm523, %v5483, 0
    %v5559 = vsel %vm523, %v5484, 0
    %v5562 = vsel %vm523, %v5485, 0
    %v5565 = vsel %vm523, %v5486, 0
    %v5568 = vsel %vm523, %v5487, 0
    %v5571 = vsel %vm523, %v5488, 0
    %v5574 = vsel %vm523, %v5489, 0
    %v5577 = vsel %vm523, %v5490, 0
    %v5580 = vsel %vm523, %v5491, 0
    %v5583 = vsel %vm523, %v5492, 0
    %v5586 = vsel %vm523, %v5493, 0
    %v5589 = vsel %vm523, %v5494, 0
    %v5592 = vsel %vm523, %v5495, 0
    %v5595 = vsel %vm523, %v5496, 0
    %v5598 = vsel %vm523, %v5497, 0
    %v5601 = vsel %vm523, %v5498, 0
    %v5604 = vsel %vm523, %v5499, 0
    %v5607 = vsel %vm523, %v5500, 0
    %5609 = vmatprep.subr.bf16.mxu0 0
    %5610 = vmatpush1.bf16.msra.mxu0 %v5509
    %5611 = vmatprep.subr.bf16.mxu0 0
    %5612 = vmatpush1.bf16.msra.mxu0 %v5510
    %5613 = vmatprep.subr.bf16.mxu0 0
    %5614 = vmatpush1.bf16.msra.mxu0 0
    %5615 = vmatprep.subr.bf16.mxu0 0
    %5616 = vmatpush1.bf16.msra.mxu0 0
    %5617 = vmatprep.subr.bf16.mxu0 0
    %5618 = vmatpush1.bf16.msra.mxu0 0
    %5619 = vmatprep.subr.bf16.mxu0 0
    %5620 = vmatpush1.bf16.msra.mxu0 0
    %5621 = vmatprep.subr.bf16.mxu0 0
    %5622 = vmatpush1.bf16.msra.mxu0 0
    %5623 = vmatprep.subr.bf16.mxu0 0
    %5624 = vmatpush1.bf16.msra.mxu0 0
    %5625 = vmatprep.subr.bf16.mxu0 0
    %5626 = vmatpush1.bf16.msra.mxu0 0
    %5627 = vmatprep.subr.bf16.mxu0 0
    %5628 = vmatpush1.bf16.msra.mxu0 0
    %5629 = vmatprep.subr.bf16.mxu0 0
    %5630 = vmatpush1.bf16.msra.mxu0 0
    %5631 = vmatprep.subr.bf16.mxu0 0
    %5632 = vmatpush1.bf16.msra.mxu0 0
    %5633 = vmatprep.subr.bf16.mxu0 0
    %5634 = vmatpush1.bf16.msra.mxu0 0
    %5635 = vmatprep.subr.bf16.mxu0 0
    %5636 = vmatpush1.bf16.msra.mxu0 0
    %5637 = vmatprep.subr.bf16.mxu0 0
    %5638 = vmatpush1.bf16.msra.mxu0 0
    %5639 = vmatprep.subr.bf16.mxu0 0
    %5640 = vmatpush1.bf16.msra.mxu0 0
    %5641 = vmatprep.mubr.bf16.mxu0 0
    %5642 = vmatmul.mubr.bf16.gmra.mrb[0].mxu0 %v5514
    %v5643 = vpop.f32.mrb[0].mxu0
    %v5644 = vadd.f32 0.0, %v5643
    %v5645 = vpop.f32.mrb[0].mxu0
    %v5646 = vpop.f32.mrb[0].mxu0
    %v5647 = vadd.f32 0.0, %v5646
    %v5648 = vpop.f32.mrb[0].mxu0
    %5649 = vmatprep.mubr.bf16.mxu0 0
    %5650 = vmatmul.mubr.bf16.gmra.mrb[0].mxu0 %v5517
    %v5651 = vpop.f32.mrb[0].mxu0
    %v5652 = vadd.f32 0.0, %v5651
    %v5653 = vpop.f32.mrb[0].mxu0
    %v5654 = vpop.f32.mrb[0].mxu0
    %v5655 = vadd.f32 0.0, %v5654
    %v5656 = vpop.f32.mrb[0].mxu0
    %5657 = vmatprep.mubr.bf16.mxu0 0
    %5658 = vmatmul.mubr.bf16.gmra.mrb[0].mxu0 %v5520
    %v5659 = vpop.f32.mrb[0].mxu0
    %v5660 = vadd.f32 0.0, %v5659
    %v5661 = vpop.f32.mrb[0].mxu0
    %v5662 = vpop.f32.mrb[0].mxu0
    %v5663 = vadd.f32 0.0, %v5662
    %v5664 = vpop.f32.mrb[0].mxu0
    %5665 = vmatprep.mubr.bf16.mxu0 0
    %5666 = vmatmul.mubr.bf16.gmra.mrb[0].mxu0 %v5523
    %v5667 = vpop.f32.mrb[0].mxu0
    %v5668 = vadd.f32 0.0, %v5667
    %v5669 = vpop.f32.mrb[0].mxu0
    %v5670 = vpop.f32.mrb[0].mxu0
    %v5671 = vadd.f32 0.0, %v5670
    %v5672 = vpop.f32.mrb[0].mxu0
    %5673 = vmatprep.mubr.bf16.mxu0 0
    %5674 = vmatmul.mubr.bf16.gmra.mrb[0].mxu0 %v5526
    %v5675 = vpop.f32.mrb[0].mxu0
    %v5676 = vadd.f32 0.0, %v5675
    %v5677 = vpop.f32.mrb[0].mxu0
    %v5678 = vpop.f32.mrb[0].mxu0
    %v5679 = vadd.f32 0.0, %v5678
    %v5680 = vpop.f32.mrb[0].mxu0
    %5681 = vmatprep.mubr.bf16.mxu0 0
    %5682 = vmatmul.mubr.bf16.gmra.mrb[0].mxu0 %v5529
    %v5683 = vpop.f32.mrb[0].mxu0
    %v5684 = vadd.f32 0.0, %v5683
    %v5685 = vpop.f32.mrb[0].mxu0
    %v5686 = vpop.f32.mrb[0].mxu0
    %v5687 = vadd.f32 0.0, %v5686
    %v5688 = vpop.f32.mrb[0].mxu0
    %5689 = vmatprep.mubr.bf16.mxu0 0
    %5690 = vmatmul.mubr.bf16.gmra.mrb[0].mxu0 %v5532
    %v5691 = vpop.f32.mrb[0].mxu0
    %v5692 = vadd.f32 0.0, %v5691
    %v5693 = vpop.f32.mrb[0].mxu0
    %v5694 = vpop.f32.mrb[0].mxu0
    %v5695 = vadd.f32 0.0, %v5694
    %v5696 = vpop.f32.mrb[0].mxu0
    %5697 = vmatprep.mubr.bf16.mxu0 0
    %5698 = vmatmul.mubr.bf16.gmra.mrb[0].mxu0 %v5535
    %v5699 = vpop.f32.mrb[0].mxu0
    %v5700 = vadd.f32 0.0, %v5699
    %v5701 = vpop.f32.mrb[0].mxu0
    %v5702 = vpop.f32.mrb[0].mxu0
    %v5703 = vadd.f32 0.0, %v5702
    %v5704 = vpop.f32.mrb[0].mxu0
    %5705 = vmatprep.mubr.bf16.mxu0 0
    %5706 = vmatmul.mubr.bf16.gmra.mrb[0].mxu0 %v5538
    %v5707 = vpop.f32.mrb[0].mxu0
    %v5708 = vadd.f32 0.0, %v5707
    %v5709 = vpop.f32.mrb[0].mxu0
    %v5710 = vpop.f32.mrb[0].mxu0
    %v5711 = vadd.f32 0.0, %v5710
    %v5712 = vpop.f32.mrb[0].mxu0
    %5713 = vmatprep.mubr.bf16.mxu0 0
    %5714 = vmatmul.mubr.bf16.gmra.mrb[0].mxu0 %v5541
    %v5715 = vpop.f32.mrb[0].mxu0
    %v5716 = vadd.f32 0.0, %v5715
    %v5717 = vpop.f32.mrb[0].mxu0
    %v5718 = vpop.f32.mrb[0].mxu0
    %v5719 = vadd.f32 0.0, %v5718
    %v5720 = vpop.f32.mrb[0].mxu0
    %5721 = vmatprep.mubr.bf16.mxu0 0
    %5722 = vmatmul.mubr.bf16.gmra.mrb[0].mxu0 %v5544
    %v5723 = vpop.f32.mrb[0].mxu0
    %v5724 = vadd.f32 0.0, %v5723
    %v5725 = vpop.f32.mrb[0].mxu0
    %v5726 = vpop.f32.mrb[0].mxu0
    %v5727 = vadd.f32 0.0, %v5726
    %v5728 = vpop.f32.mrb[0].mxu0
    %5729 = vmatprep.mubr.bf16.mxu0 0
    %5730 = vmatmul.mubr.bf16.gmra.mrb[0].mxu0 %v5547
    %v5731 = vpop.f32.mrb[0].mxu0
    %v5732 = vadd.f32 0.0, %v5731
    %v5733 = vpop.f32.mrb[0].mxu0
    %v5734 = vpop.f32.mrb[0].mxu0
    %v5735 = vadd.f32 0.0, %v5734
    %v5736 = vpop.f32.mrb[0].mxu0
    %5737 = vmatprep.mubr.bf16.mxu0 0
    %5738 = vmatmul.mubr.bf16.gmra.mrb[0].mxu0 %v5550
    %v5739 = vpop.f32.mrb[0].mxu0
    %v5740 = vadd.f32 0.0, %v5739
    %v5741 = vpop.f32.mrb[0].mxu0
    %v5742 = vpop.f32.mrb[0].mxu0
    %v5743 = vadd.f32 0.0, %v5742
    %v5744 = vpop.f32.mrb[0].mxu0
    %5745 = vmatprep.mubr.bf16.mxu0 0
    %5746 = vmatmul.mubr.bf16.gmra.mrb[0].mxu0 %v5553
    %v5747 = vpop.f32.mrb[0].mxu0
    %v5748 = vadd.f32 0.0, %v5747
    %v5749 = vpop.f32.mrb[0].mxu0
    %v5750 = vpop.f32.mrb[0].mxu0
    %v5751 = vadd.f32 0.0, %v5750
    %v5752 = vpop.f32.mrb[0].mxu0
    %5753 = vmatprep.mubr.bf16.mxu0 0
    %5754 = vmatmul.mubr.bf16.gmra.mrb[0].mxu0 %v5556
    %v5755 = vpop.f32.mrb[0].mxu0
    %v5756 = vadd.f32 0.0, %v5755
    %v5757 = vpop.f32.mrb[0].mxu0
    %v5758 = vpop.f32.mrb[0].mxu0
    %v5759 = vadd.f32 0.0, %v5758
    %v5760 = vpop.f32.mrb[0].mxu0
    %5761 = vmatprep.mubr.bf16.mxu0 0
    %5762 = vmatmul.mubr.bf16.gmra.mrb[0].mxu0 %v5559
    %v5763 = vpop.f32.mrb[0].mxu0
    %v5764 = vadd.f32 0.0, %v5763
    %v5765 = vpop.f32.mrb[0].mxu0
    %v5766 = vpop.f32.mrb[0].mxu0
    %v5767 = vadd.f32 0.0, %v5766
    %v5768 = vpop.f32.mrb[0].mxu0
    %5769 = vmatprep.mubr.bf16.mxu0 0
    %5770 = vmatmul.mubr.bf16.gmra.mrb[0].mxu0 %v5562
    %v5771 = vpop.f32.mrb[0].mxu0
    %v5772 = vadd.f32 0.0, %v5771
    %v5773 = vpop.f32.mrb[0].mxu0
    %v5774 = vpop.f32.mrb[0].mxu0
    %v5775 = vadd.f32 0.0, %v5774
    %v5776 = vpop.f32.mrb[0].mxu0
    %5777 = vmatprep.mubr.bf16.mxu0 0
    %5778 = vmatmul.mubr.bf16.gmra.mrb[0].mxu0 %v5565
    %v5779 = vpop.f32.mrb[0].mxu0
    %v5780 = vadd.f32 0.0, %v5779
    %v5781 = vpop.f32.mrb[0].mxu0
    %v5782 = vpop.f32.mrb[0].mxu0
    %v5783 = vadd.f32 0.0, %v5782
    %v5784 = vpop.f32.mrb[0].mxu0
    %5785 = vmatprep.mubr.bf16.mxu0 0
    %5786 = vmatmul.mubr.bf16.gmra.mrb[0].mxu0 %v5568
    %v5787 = vpop.f32.mrb[0].mxu0
    %v5788 = vadd.f32 0.0, %v5787
    %v5789 = vpop.f32.mrb[0].mxu0
    %v5790 = vpop.f32.mrb[0].mxu0
    %v5791 = vadd.f32 0.0, %v5790
    %v5792 = vpop.f32.mrb[0].mxu0
    %5793 = vmatprep.mubr.bf16.mxu0 0
    %5794 = vmatmul.mubr.bf16.gmra.mrb[0].mxu0 %v5571
    %v5795 = vpop.f32.mrb[0].mxu0
    %v5796 = vadd.f32 0.0, %v5795
    %v5797 = vpop.f32.mrb[0].mxu0
    %v5798 = vpop.f32.mrb[0].mxu0
    %v5799 = vadd.f32 0.0, %v5798
    %v5800 = vpop.f32.mrb[0].mxu0
    %5801 = vmatprep.mubr.bf16.mxu0 0
    %5802 = vmatmul.mubr.bf16.gmra.mrb[0].mxu0 %v5574
    %v5803 = vpop.f32.mrb[0].mxu0
    %v5804 = vadd.f32 0.0, %v5803
    %v5805 = vpop.f32.mrb[0].mxu0
    %v5806 = vpop.f32.mrb[0].mxu0
    %v5807 = vadd.f32 0.0, %v5806
    %v5808 = vpop.f32.mrb[0].mxu0
    %5809 = vmatprep.mubr.bf16.mxu0 0
    %5810 = vmatmul.mubr.bf16.gmra.mrb[0].mxu0 %v5577
    %v5811 = vpop.f32.mrb[0].mxu0
    %v5812 = vadd.f32 0.0, %v5811
    %v5813 = vpop.f32.mrb[0].mxu0
    %v5814 = vpop.f32.mrb[0].mxu0
    %v5815 = vadd.f32 0.0, %v5814
    %v5816 = vpop.f32.mrb[0].mxu0
    %5817 = vmatprep.mubr.bf16.mxu0 0
    %5818 = vmatmul.mubr.bf16.gmra.mrb[0].mxu0 %v5580
    %v5819 = vpop.f32.mrb[0].mxu0
    %v5820 = vadd.f32 0.0, %v5819
    %v5821 = vpop.f32.mrb[0].mxu0
    %v5822 = vpop.f32.mrb[0].mxu0
    %v5823 = vadd.f32 0.0, %v5822
    %v5824 = vpop.f32.mrb[0].mxu0
    %5825 = vmatprep.mubr.bf16.mxu0 0
    %5826 = vmatmul.mubr.bf16.gmra.mrb[0].mxu0 %v5583
    %v5827 = vpop.f32.mrb[0].mxu0
    %v5828 = vadd.f32 0.0, %v5827
    %v5829 = vpop.f32.mrb[0].mxu0
    %v5830 = vpop.f32.mrb[0].mxu0
    %v5831 = vadd.f32 0.0, %v5830
    %v5832 = vpop.f32.mrb[0].mxu0
    %5833 = vmatprep.mubr.bf16.mxu0 0
    %5834 = vmatmul.mubr.bf16.gmra.mrb[0].mxu0 %v5586
    %v5835 = vpop.f32.mrb[0].mxu0
    %v5836 = vadd.f32 0.0, %v5835
    %v5837 = vpop.f32.mrb[0].mxu0
    %v5838 = vpop.f32.mrb[0].mxu0
    %v5839 = vadd.f32 0.0, %v5838
    %v5840 = vpop.f32.mrb[0].mxu0
    %5841 = vmatprep.mubr.bf16.mxu0 0
    %5842 = vmatmul.mubr.bf16.gmra.mrb[0].mxu0 %v5589
    %v5843 = vpop.f32.mrb[0].mxu0
    %v5844 = vadd.f32 0.0, %v5843
    %v5845 = vpop.f32.mrb[0].mxu0
    %v5846 = vpop.f32.mrb[0].mxu0
    %v5847 = vadd.f32 0.0, %v5846
    %v5848 = vpop.f32.mrb[0].mxu0
    %5849 = vmatprep.mubr.bf16.mxu0 0
    %5850 = vmatmul.mubr.bf16.gmra.mrb[0].mxu0 %v5592
    %v5851 = vpop.f32.mrb[0].mxu0
    %v5852 = vadd.f32 0.0, %v5851
    %v5853 = vpop.f32.mrb[0].mxu0
    %v5854 = vpop.f32.mrb[0].mxu0
    %v5855 = vadd.f32 0.0, %v5854
    %v5856 = vpop.f32.mrb[0].mxu0
    %5857 = vmatprep.mubr.bf16.mxu0 0
    %5858 = vmatmul.mubr.bf16.gmra.mrb[0].mxu0 %v5595
    %v5859 = vpop.f32.mrb[0].mxu0
    %v5860 = vadd.f32 0.0, %v5859
    %v5861 = vpop.f32.mrb[0].mxu0
    %v5862 = vpop.f32.mrb[0].mxu0
    %v5863 = vadd.f32 0.0, %v5862
    %v5864 = vpop.f32.mrb[0].mxu0
    %5865 = vmatprep.mubr.bf16.mxu0 0
    %5866 = vmatmul.mubr.bf16.gmra.mrb[0].mxu0 %v5598
    %v5867 = vpop.f32.mrb[0].mxu0
    %v5868 = vadd.f32 0.0, %v5867
    %v5869 = vpop.f32.mrb[0].mxu0
    %v5870 = vpop.f32.mrb[0].mxu0
    %v5871 = vadd.f32 0.0, %v5870
    %v5872 = vpop.f32.mrb[0].mxu0
    %5873 = vmatprep.mubr.bf16.mxu0 0
    %5874 = vmatmul.mubr.bf16.gmra.mrb[0].mxu0 %v5601
    %v5875 = vpop.f32.mrb[0].mxu0
    %v5876 = vadd.f32 0.0, %v5875
    %v5877 = vpop.f32.mrb[0].mxu0
    %v5878 = vpop.f32.mrb[0].mxu0
    %v5879 = vadd.f32 0.0, %v5878
    %v5880 = vpop.f32.mrb[0].mxu0
    %5881 = vmatprep.mubr.bf16.mxu0 0
    %5882 = vmatmul.mubr.bf16.gmra.mrb[0].mxu0 %v5604
    %v5883 = vpop.f32.mrb[0].mxu0
    %v5884 = vadd.f32 0.0, %v5883
    %v5885 = vpop.f32.mrb[0].mxu0
    %v5886 = vpop.f32.mrb[0].mxu0
    %v5887 = vadd.f32 0.0, %v5886
    %v5888 = vpop.f32.mrb[0].mxu0
    %5889 = vmatprep.mubr.bf16.mxu0 0
    %5890 = vmatmul.mubr.bf16.gmra.mrb[0].mxu0 %v5607
    %v5891 = vpop.f32.mrb[0].mxu0
    %v5892 = vadd.f32 0.0, %v5891
    %v5893 = vpop.f32.mrb[0].mxu0
    %v5894 = vpop.f32.mrb[0].mxu0
    %v5895 = vadd.f32 0.0, %v5894
    %v5896 = vpop.f32.mrb[0].mxu0
    %5897 = vdwg.mxu0
    %v5898 = vadd.f32 %v5208, %v5644
    %v5899 = vadd.f32 %v5209, %v5647
    %v5900 = vadd.f32 %v5210, %v5652
    %v5901 = vadd.f32 %v5211, %v5655
    %v5902 = vadd.f32 %v5212, %v5660
    %v5903 = vadd.f32 %v5213, %v5663
    %v5904 = vadd.f32 %v5214, %v5668
    %v5905 = vadd.f32 %v5215, %v5671
    %v5906 = vadd.f32 %v5216, %v5676
    %v5907 = vadd.f32 %v5217, %v5679
    %v5908 = vadd.f32 %v5218, %v5684
    %v5909 = vadd.f32 %v5219, %v5687
    %v5910 = vadd.f32 %v5220, %v5692
    %v5911 = vadd.f32 %v5221, %v5695
    %v5912 = vadd.f32 %v5222, %v5700
    %v5913 = vadd.f32 %v5223, %v5703
    %v5914 = vadd.f32 %v5224, %v5708
    %v5915 = vadd.f32 %v5225, %v5711
    %v5916 = vadd.f32 %v5226, %v5716
    %v5917 = vadd.f32 %v5227, %v5719
    %v5918 = vadd.f32 %v5228, %v5724
    %v5919 = vadd.f32 %v5229, %v5727
    %v5920 = vadd.f32 %v5230, %v5732
    %v5921 = vadd.f32 %v5231, %v5735
    %v5922 = vadd.f32 %v5232, %v5740
    %v5923 = vadd.f32 %v5233, %v5743
    %v5924 = vadd.f32 %v5234, %v5748
    %v5925 = vadd.f32 %v5235, %v5751
    %v5926 = vadd.f32 %v5236, %v5756
    %v5927 = vadd.f32 %v5237, %v5759
    %v5928 = vadd.f32 %v5238, %v5764
    %v5929 = vadd.f32 %v5239, %v5767
    %v5930 = vadd.f32 %v5240, %v5772
    %v5931 = vadd.f32 %v5241, %v5775
    %v5932 = vadd.f32 %v5242, %v5780
    %v5933 = vadd.f32 %v5243, %v5783
    %v5934 = vadd.f32 %v5244, %v5788
    %v5935 = vadd.f32 %v5245, %v5791
    %v5936 = vadd.f32 %v5246, %v5796
    %v5937 = vadd.f32 %v5247, %v5799
    %v5938 = vadd.f32 %v5248, %v5804
    %v5939 = vadd.f32 %v5249, %v5807
    %v5940 = vadd.f32 %v5250, %v5812
    %v5941 = vadd.f32 %v5251, %v5815
    %v5942 = vadd.f32 %v5252, %v5820
    %v5943 = vadd.f32 %v5253, %v5823
    %v5944 = vadd.f32 %v5254, %v5828
    %v5945 = vadd.f32 %v5255, %v5831
    %v5946 = vadd.f32 %v5256, %v5836
    %v5947 = vadd.f32 %v5257, %v5839
    %v5948 = vadd.f32 %v5258, %v5844
    %v5949 = vadd.f32 %v5259, %v5847
    %v5950 = vadd.f32 %v5260, %v5852
    %v5951 = vadd.f32 %v5261, %v5855
    %v5952 = vadd.f32 %v5262, %v5860
    %v5953 = vadd.f32 %v5263, %v5863
    %v5954 = vadd.f32 %v5264, %v5868
    %v5955 = vadd.f32 %v5265, %v5871
    %v5956 = vadd.f32 %v5266, %v5876
    %v5957 = vadd.f32 %v5267, %v5879
    %v5958 = vadd.f32 %v5268, %v5884
    %v5959 = vadd.f32 %v5269, %v5887
    %v5960 = vadd.f32 %v5270, %v5892
    %v5961 = vadd.f32 %v5271, %v5895
    %v5962 = vld [vmem:[%s1203] sm:$0xf]
    %v5963 = vld [vmem:[%s1203 + $0x4] sm:$0xf]
    %v5964 = vld [vmem:[%s1203 + $0x8] sm:$0x1]
    %v5965 = vld [vmem:[%s1203 + $0xc] sm:$0xf]
    %v5966 = vld [vmem:[%s1203 + $0x10] sm:$0xf]
    %v5967 = vld [vmem:[%s1203 + $0x14] sm:$0x1]
    %v5968 = vld [vmem:[%s1203 + $0x18] sm:$0xf]
    %v5969 = vld [vmem:[%s1203 + $0x1c] sm:$0xf]
    %v5970 = vld [vmem:[%s1203 + $0x20] sm:$0x1]
    %v5971 = vld [vmem:[%s1203 + $0x24] sm:$0xf]
    %v5972 = vld [vmem:[%s1203 + $0x28] sm:$0xf]
    %v5973 = vld [vmem:[%s1203 + $0x2c] sm:$0x1]
    %v5974 = vld [vmem:[%s1203 + $0x30] sm:$0xf]
    %v5975 = vld [vmem:[%s1203 + $0x34] sm:$0xf]
    %v5976 = vld [vmem:[%s1203 + $0x38] sm:$0x1]
    %v5977 = vld [vmem:[%s1203 + $0x3c] sm:$0xf]
    %v5978 = vld [vmem:[%s1203 + $0x40] sm:$0xf]
    %v5979 = vld [vmem:[%s1203 + $0x44] sm:$0x1]
    %v5980 = vld [vmem:[%s1203 + $0x48] sm:$0xf]
    %v5981 = vld [vmem:[%s1203 + $0x4c] sm:$0xf]
    %v5982 = vld [vmem:[%s1203 + $0x50] sm:$0x1]
    %v5983 = vld [vmem:[%s1203 + $0x54] sm:$0xf]
    %v5984 = vld [vmem:[%s1203 + $0x58] sm:$0xf]
    %v5985 = vld [vmem:[%s1203 + $0x5c] sm:$0x1]
    %v5986 = vld [vmem:[%s1203 + $0x60] sm:$0xf]
    %v5987 = vld [vmem:[%s1203 + $0x64] sm:$0xf]
    %v5988 = vld [vmem:[%s1203 + $0x68] sm:$0x1]
    %v5989 = vld [vmem:[%s1203 + $0x6c] sm:$0xf]
    %v5990 = vld [vmem:[%s1203 + $0x70] sm:$0xf]
    %v5991 = vld [vmem:[%s1203 + $0x74] sm:$0x1]
    %v5992 = vld [vmem:[%s1203 + $0x78] sm:$0xf]
    %v5993 = vld [vmem:[%s1203 + $0x7c] sm:$0xf]
    %v5994 = vld [vmem:[%s1203 + $0x80] sm:$0x1]
    %v5995 = vld [vmem:[%s1203 + $0x84] sm:$0xf]
    %v5996 = vld [vmem:[%s1203 + $0x88] sm:$0xf]
    %v5997 = vld [vmem:[%s1203 + $0x8c] sm:$0x1]
    %v5998 = vld [vmem:[%s1203 + $0x90] sm:$0xf]
    %v5999 = vld [vmem:[%s1203 + $0x94] sm:$0xf]
    %v6000 = vld [vmem:[%s1203 + $0x98] sm:$0x1]
    %v6001 = vld [vmem:[%s1203 + $0x9c] sm:$0xf]
    %v6002 = vld [vmem:[%s1203 + $0xa0] sm:$0xf]
    %v6003 = vld [vmem:[%s1203 + $0xa4] sm:$0x1]
    %v6004 = vld [vmem:[%s1203 + $0xa8] sm:$0xf]
    %v6005 = vld [vmem:[%s1203 + $0xac] sm:$0xf]
    %v6006 = vld [vmem:[%s1203 + $0xb0] sm:$0x1]
    %v6007 = vld [vmem:[%s1203 + $0xb4] sm:$0xf]
    %v6008 = vld [vmem:[%s1203 + $0xb8] sm:$0xf]
    %v6009 = vld [vmem:[%s1203 + $0xbc] sm:$0x1]
    %v6010 = vld [vmem:[%s1203 + $0xd8] sm:$0xf]
    %v6011 = vld [vmem:[%s1203 + $0xdc] sm:$0xf]
    %v6012 = vld [vmem:[%s1203 + $0xe0] sm:$0x1]
    %v6013 = vld [vmem:[%s1203 + $0xe4] sm:$0xf]
    %v6014 = vld [vmem:[%s1203 + $0xe8] sm:$0xf]
    %v6015 = vld [vmem:[%s1203 + $0xec] sm:$0x1]
    %v6016 = vld [vmem:[%s1203 + $0xf0] sm:$0xf]
    %v6017 = vld [vmem:[%s1203 + $0xf4] sm:$0xf]
    %v6018 = vld [vmem:[%s1203 + $0xf8] sm:$0x1]
    %v6019 = vld [vmem:[%s1203 + $0xfc] sm:$0xf]
    %v6020 = vld [vmem:[%s1203 + $0x100] sm:$0xf]
    %v6021 = vld [vmem:[%s1203 + $0x104] sm:$0x1]
    %v6022 = vld [vmem:[%s1203 + $0x108] sm:$0xf]
    %v6023 = vld [vmem:[%s1203 + $0x10c] sm:$0xf]
    %v6024 = vld [vmem:[%s1203 + $0x110] sm:$0x1]
    %v6025 = vld [vmem:[%s1203 + $0x114] sm:$0xf]
    %v6026 = vld [vmem:[%s1203 + $0x118] sm:$0xf]
    %v6027 = vld [vmem:[%s1203 + $0x11c] sm:$0x1]
    %v6028 = vld [vmem:[%s1203 + $0x120] sm:$0xf]
    %v6029 = vld [vmem:[%s1203 + $0x124] sm:$0xf]
    %v6030 = vld [vmem:[%s1203 + $0x128] sm:$0x1]
    %v6031 = vld [vmem:[%s1203 + $0x12c] sm:$0xf]
    %v6032 = vld [vmem:[%s1203 + $0x130] sm:$0xf]
    %v6033 = vld [vmem:[%s1203 + $0x134] sm:$0x1]
    %v6034 = vld [vmem:[%s1203 + $0x138] sm:$0xf]
    %v6035 = vld [vmem:[%s1203 + $0x13c] sm:$0xf]
    %v6036 = vld [vmem:[%s1203 + $0x140] sm:$0x1]
    %v6037 = vld [vmem:[%s1203 + $0x144] sm:$0xf]
    %v6038 = vld [vmem:[%s1203 + $0x148] sm:$0xf]
    %v6039 = vld [vmem:[%s1203 + $0x14c] sm:$0x1]
    %v6040 = vld [vmem:[%s1203 + $0x150] sm:$0xf]
    %v6041 = vld [vmem:[%s1203 + $0x154] sm:$0xf]
    %v6042 = vld [vmem:[%s1203 + $0x158] sm:$0x1]
    %v6043 = vld [vmem:[%s1203 + $0x15c] sm:$0xf]
    %v6044 = vld [vmem:[%s1203 + $0x160] sm:$0xf]
    %v6045 = vld [vmem:[%s1203 + $0x164] sm:$0x1]
    %v6046 = vld [vmem:[%s1203 + $0x168] sm:$0xf]
    %v6047 = vld [vmem:[%s1203 + $0x16c] sm:$0xf]
    %v6048 = vld [vmem:[%s1203 + $0x170] sm:$0x1]
    %v6049 = vld [vmem:[%s1203 + $0x174] sm:$0xf]
    %v6050 = vld [vmem:[%s1203 + $0x178] sm:$0xf]
    %v6051 = vld [vmem:[%s1203 + $0x17c] sm:$0x1]
    %v6052 = vld [vmem:[%s1203 + $0x180] sm:$0xf]
    %v6053 = vld [vmem:[%s1203 + $0x184] sm:$0xf]
    %v6054 = vld [vmem:[%s1203 + $0x188] sm:$0x1]
    %v6055 = vld [vmem:[%s1203 + $0x18c] sm:$0xf]
    %v6056 = vld [vmem:[%s1203 + $0x190] sm:$0xf]
    %v6057 = vld [vmem:[%s1203 + $0x194] sm:$0x1]
    %v6059 = vshrl.u32 %v5962, 16
    %v6061 = vrot.slane %v6059, 4
    %v6062 = vshll.u32 %v5962, 16
    %v6064 = vrot.slane %v6062, 5
    %v6065 = vor.u32 %v6061, %v6064
    %v6066 = vrot.slane %v6065, 4
    %v6068 = vshll.u32 %v5963, 16
    %v6070 = vrot.slane %v6068, 5
    %v6071 = vsel %vm2563, %v6066, %v6070
    %v6072 = vshrl.u32 %v5963, 16
    %v6074 = vrot.slane %v6072, 4
    %v6075 = vor.u32 %v6074, %v6070
    %v6076 = vrot.slane %v6075, 4
    %v6078 = vshll.u32 %v5964, 16
    %v6080 = vrot.slane %v6078, 5
    %v6081 = vsel %vm2563, %v6076, %v6080
    %v6083 = vshrl.u32 %v5965, 16
    %v6085 = vrot.slane %v6083, 4
    %v6086 = vshll.u32 %v5965, 16
    %v6088 = vrot.slane %v6086, 5
    %v6089 = vor.u32 %v6085, %v6088
    %v6090 = vrot.slane %v6089, 4
    %v6092 = vshll.u32 %v5966, 16
    %v6094 = vrot.slane %v6092, 5
    %v6095 = vsel %vm2563, %v6090, %v6094
    %v6096 = vshrl.u32 %v5966, 16
    %v6098 = vrot.slane %v6096, 4
    %v6099 = vor.u32 %v6098, %v6094
    %v6100 = vrot.slane %v6099, 4
    %v6102 = vshll.u32 %v5967, 16
    %v6104 = vrot.slane %v6102, 5
    %v6105 = vsel %vm2563, %v6100, %v6104
    %v6107 = vshrl.u32 %v5968, 16
    %v6109 = vrot.slane %v6107, 4
    %v6110 = vshll.u32 %v5968, 16
    %v6112 = vrot.slane %v6110, 5
    %v6113 = vor.u32 %v6109, %v6112
    %v6114 = vrot.slane %v6113, 4
    %v6116 = vshll.u32 %v5969, 16
    %v6118 = vrot.slane %v6116, 5
    %v6119 = vsel %vm2563, %v6114, %v6118
    %v6120 = vshrl.u32 %v5969, 16
    %v6122 = vrot.slane %v6120, 4
    %v6123 = vor.u32 %v6122, %v6118
    %v6124 = vrot.slane %v6123, 4
    %v6126 = vshll.u32 %v5970, 16
    %v6128 = vrot.slane %v6126, 5
    %v6129 = vsel %vm2563, %v6124, %v6128
    %v6131 = vshrl.u32 %v5971, 16
    %v6133 = vrot.slane %v6131, 4
    %v6134 = vshll.u32 %v5971, 16
    %v6136 = vrot.slane %v6134, 5
    %v6137 = vor.u32 %v6133, %v6136
    %v6138 = vrot.slane %v6137, 4
    %v6140 = vshll.u32 %v5972, 16
    %v6142 = vrot.slane %v6140, 5
    %v6143 = vsel %vm2563, %v6138, %v6142
    %v6144 = vshrl.u32 %v5972, 16
    %v6146 = vrot.slane %v6144, 4
    %v6147 = vor.u32 %v6146, %v6142
    %v6148 = vrot.slane %v6147, 4
    %v6150 = vshll.u32 %v5973, 16
    %v6152 = vrot.slane %v6150, 5
    %v6153 = vsel %vm2563, %v6148, %v6152
    %v6155 = vshrl.u32 %v5974, 16
    %v6157 = vrot.slane %v6155, 4
    %v6158 = vshll.u32 %v5974, 16
    %v6160 = vrot.slane %v6158, 5
    %v6161 = vor.u32 %v6157, %v6160
    %v6162 = vrot.slane %v6161, 4
    %v6164 = vshll.u32 %v5975, 16
    %v6166 = vrot.slane %v6164, 5
    %v6167 = vsel %vm2563, %v6162, %v6166
    %v6168 = vshrl.u32 %v5975, 16
    %v6170 = vrot.slane %v6168, 4
    %v6171 = vor.u32 %v6170, %v6166
    %v6172 = vrot.slane %v6171, 4
    %v6174 = vshll.u32 %v5976, 16
    %v6176 = vrot.slane %v6174, 5
    %v6177 = vsel %vm2563, %v6172, %v6176
    %v6179 = vshrl.u32 %v5977, 16
    %v6181 = vrot.slane %v6179, 4
    %v6182 = vshll.u32 %v5977, 16
    %v6184 = vrot.slane %v6182, 5
    %v6185 = vor.u32 %v6181, %v6184
    %v6186 = vrot.slane %v6185, 4
    %v6188 = vshll.u32 %v5978, 16
    %v6190 = vrot.slane %v6188, 5
    %v6191 = vsel %vm2563, %v6186, %v6190
    %v6192 = vshrl.u32 %v5978, 16
    %v6194 = vrot.slane %v6192, 4
    %v6195 = vor.u32 %v6194, %v6190
    %v6196 = vrot.slane %v6195, 4
    %v6198 = vshll.u32 %v5979, 16
    %v6200 = vrot.slane %v6198, 5
    %v6201 = vsel %vm2563, %v6196, %v6200
    %v6203 = vshrl.u32 %v5980, 16
    %v6205 = vrot.slane %v6203, 4
    %v6206 = vshll.u32 %v5980, 16
    %v6208 = vrot.slane %v6206, 5
    %v6209 = vor.u32 %v6205, %v6208
    %v6210 = vrot.slane %v6209, 4
    %v6212 = vshll.u32 %v5981, 16
    %v6214 = vrot.slane %v6212, 5
    %v6215 = vsel %vm2563, %v6210, %v6214
    %v6216 = vshrl.u32 %v5981, 16
    %v6218 = vrot.slane %v6216, 4
    %v6219 = vor.u32 %v6218, %v6214
    %v6220 = vrot.slane %v6219, 4
    %v6222 = vshll.u32 %v5982, 16
    %v6224 = vrot.slane %v6222, 5
    %v6225 = vsel %vm2563, %v6220, %v6224
    %v6227 = vshrl.u32 %v5983, 16
    %v6229 = vrot.slane %v6227, 4
    %v6230 = vshll.u32 %v5983, 16
    %v6232 = vrot.slane %v6230, 5
    %v6233 = vor.u32 %v6229, %v6232
    %v6234 = vrot.slane %v6233, 4
    %v6236 = vshll.u32 %v5984, 16
    %v6238 = vrot.slane %v6236, 5
    %v6239 = vsel %vm2563, %v6234, %v6238
    %v6240 = vshrl.u32 %v5984, 16
    %v6242 = vrot.slane %v6240, 4
    %v6243 = vor.u32 %v6242, %v6238
    %v6244 = vrot.slane %v6243, 4
    %v6246 = vshll.u32 %v5985, 16
    %v6248 = vrot.slane %v6246, 5
    %v6249 = vsel %vm2563, %v6244, %v6248
    %v6251 = vshrl.u32 %v5986, 16
    %v6253 = vrot.slane %v6251, 4
    %v6254 = vshll.u32 %v5986, 16
    %v6256 = vrot.slane %v6254, 5
    %v6257 = vor.u32 %v6253, %v6256
    %v6258 = vrot.slane %v6257, 4
    %v6260 = vshll.u32 %v5987, 16
    %v6262 = vrot.slane %v6260, 5
    %v6263 = vsel %vm2563, %v6258, %v6262
    %v6264 = vshrl.u32 %v5987, 16
    %v6266 = vrot.slane %v6264, 4
    %v6267 = vor.u32 %v6266, %v6262
    %v6268 = vrot.slane %v6267, 4
    %v6270 = vshll.u32 %v5988, 16
    %v6272 = vrot.slane %v6270, 5
    %v6273 = vsel %vm2563, %v6268, %v6272
    %v6275 = vshrl.u32 %v5989, 16
    %v6277 = vrot.slane %v6275, 4
    %v6278 = vshll.u32 %v5989, 16
    %v6280 = vrot.slane %v6278, 5
    %v6281 = vor.u32 %v6277, %v6280
    %v6282 = vrot.slane %v6281, 4
    %v6284 = vshll.u32 %v5990, 16
    %v6286 = vrot.slane %v6284, 5
    %v6287 = vsel %vm2563, %v6282, %v6286
    %v6288 = vshrl.u32 %v5990, 16
    %v6290 = vrot.slane %v6288, 4
    %v6291 = vor.u32 %v6290, %v6286
    %v6292 = vrot.slane %v6291, 4
    %v6294 = vshll.u32 %v5991, 16
    %v6296 = vrot.slane %v6294, 5
    %v6297 = vsel %vm2563, %v6292, %v6296
    %v6299 = vshrl.u32 %v5992, 16
    %v6301 = vrot.slane %v6299, 4
    %v6302 = vshll.u32 %v5992, 16
    %v6304 = vrot.slane %v6302, 5
    %v6305 = vor.u32 %v6301, %v6304
    %v6306 = vrot.slane %v6305, 4
    %v6308 = vshll.u32 %v5993, 16
    %v6310 = vrot.slane %v6308, 5
    %v6311 = vsel %vm2563, %v6306, %v6310
    %v6312 = vshrl.u32 %v5993, 16
    %v6314 = vrot.slane %v6312, 4
    %v6315 = vor.u32 %v6314, %v6310
    %v6316 = vrot.slane %v6315, 4
    %v6318 = vshll.u32 %v5994, 16
    %v6320 = vrot.slane %v6318, 5
    %v6321 = vsel %vm2563, %v6316, %v6320
    %v6323 = vshrl.u32 %v5995, 16
    %v6325 = vrot.slane %v6323, 4
    %v6326 = vshll.u32 %v5995, 16
    %v6328 = vrot.slane %v6326, 5
    %v6329 = vor.u32 %v6325, %v6328
    %v6330 = vrot.slane %v6329, 4
    %v6332 = vshll.u32 %v5996, 16
    %v6334 = vrot.slane %v6332, 5
    %v6335 = vsel %vm2563, %v6330, %v6334
    %v6336 = vshrl.u32 %v5996, 16
    %v6338 = vrot.slane %v6336, 4
    %v6339 = vor.u32 %v6338, %v6334
    %v6340 = vrot.slane %v6339, 4
    %v6342 = vshll.u32 %v5997, 16
    %v6344 = vrot.slane %v6342, 5
    %v6345 = vsel %vm2563, %v6340, %v6344
    %v6347 = vshrl.u32 %v5998, 16
    %v6349 = vrot.slane %v6347, 4
    %v6350 = vshll.u32 %v5998, 16
    %v6352 = vrot.slane %v6350, 5
    %v6353 = vor.u32 %v6349, %v6352
    %v6354 = vrot.slane %v6353, 4
    %v6356 = vshll.u32 %v5999, 16
    %v6358 = vrot.slane %v6356, 5
    %v6359 = vsel %vm2563, %v6354, %v6358
    %v6360 = vshrl.u32 %v5999, 16
    %v6362 = vrot.slane %v6360, 4
    %v6363 = vor.u32 %v6362, %v6358
    %v6364 = vrot.slane %v6363, 4
    %v6366 = vshll.u32 %v6000, 16
    %v6368 = vrot.slane %v6366, 5
    %v6369 = vsel %vm2563, %v6364, %v6368
    %v6371 = vshrl.u32 %v6001, 16
    %v6373 = vrot.slane %v6371, 4
    %v6374 = vshll.u32 %v6001, 16
    %v6376 = vrot.slane %v6374, 5
    %v6377 = vor.u32 %v6373, %v6376
    %v6378 = vrot.slane %v6377, 4
    %v6380 = vshll.u32 %v6002, 16
    %v6382 = vrot.slane %v6380, 5
    %v6383 = vsel %vm2563, %v6378, %v6382
    %v6384 = vshrl.u32 %v6002, 16
    %v6386 = vrot.slane %v6384, 4
    %v6387 = vor.u32 %v6386, %v6382
    %v6388 = vrot.slane %v6387, 4
    %v6390 = vshll.u32 %v6003, 16
    %v6392 = vrot.slane %v6390, 5
    %v6393 = vsel %vm2563, %v6388, %v6392
    %v6395 = vshrl.u32 %v6004, 16
    %v6397 = vrot.slane %v6395, 4
    %v6398 = vshll.u32 %v6004, 16
    %v6400 = vrot.slane %v6398, 5
    %v6401 = vor.u32 %v6397, %v6400
    %v6402 = vrot.slane %v6401, 4
    %v6404 = vshll.u32 %v6005, 16
    %v6406 = vrot.slane %v6404, 5
    %v6407 = vsel %vm2563, %v6402, %v6406
    %v6408 = vshrl.u32 %v6005, 16
    %v6410 = vrot.slane %v6408, 4
    %v6411 = vor.u32 %v6410, %v6406
    %v6412 = vrot.slane %v6411, 4
    %v6414 = vshll.u32 %v6006, 16
    %v6416 = vrot.slane %v6414, 5
    %v6417 = vsel %vm2563, %v6412, %v6416
    %v6419 = vshrl.u32 %v6007, 16
    %v6421 = vrot.slane %v6419, 4
    %v6422 = vshll.u32 %v6007, 16
    %v6424 = vrot.slane %v6422, 5
    %v6425 = vor.u32 %v6421, %v6424
    %v6426 = vrot.slane %v6425, 4
    %v6428 = vshll.u32 %v6008, 16
    %v6430 = vrot.slane %v6428, 5
    %v6431 = vsel %vm2563, %v6426, %v6430
    %v6432 = vshrl.u32 %v6008, 16
    %v6434 = vrot.slane %v6432, 4
    %v6435 = vor.u32 %v6434, %v6430
    %v6436 = vrot.slane %v6435, 4
    %v6438 = vshll.u32 %v6009, 16
    %v6440 = vrot.slane %v6438, 5
    %v6441 = vsel %vm2563, %v6436, %v6440
    %v6443 = vshrl.u32 %v6010, 16
    %v6445 = vrot.slane %v6443, 4
    %v6446 = vshll.u32 %v6010, 16
    %v6448 = vrot.slane %v6446, 5
    %v6449 = vor.u32 %v6445, %v6448
    %v6450 = vrot.slane %v6449, 4
    %v6452 = vshll.u32 %v6011, 16
    %v6454 = vrot.slane %v6452, 5
    %v6455 = vsel %vm2563, %v6450, %v6454
    %v6456 = vshrl.u32 %v6011, 16
    %v6458 = vrot.slane %v6456, 4
    %v6459 = vor.u32 %v6458, %v6454
    %v6460 = vrot.slane %v6459, 4
    %v6462 = vshll.u32 %v6012, 16
    %v6464 = vrot.slane %v6462, 5
    %v6465 = vsel %vm2563, %v6460, %v6464
    %v6467 = vshrl.u32 %v6013, 16
    %v6469 = vrot.slane %v6467, 4
    %v6470 = vshll.u32 %v6013, 16
    %v6472 = vrot.slane %v6470, 5
    %v6473 = vor.u32 %v6469, %v6472
    %v6474 = vrot.slane %v6473, 4
    %v6476 = vshll.u32 %v6014, 16
    %v6478 = vrot.slane %v6476, 5
    %v6479 = vsel %vm2563, %v6474, %v6478
    %v6480 = vshrl.u32 %v6014, 16
    %v6482 = vrot.slane %v6480, 4
    %v6483 = vor.u32 %v6482, %v6478
    %v6484 = vrot.slane %v6483, 4
    %v6486 = vshll.u32 %v6015, 16
    %v6488 = vrot.slane %v6486, 5
    %v6489 = vsel %vm2563, %v6484, %v6488
    %v6491 = vshrl.u32 %v6016, 16
    %v6493 = vrot.slane %v6491, 4
    %v6494 = vshll.u32 %v6016, 16
    %v6496 = vrot.slane %v6494, 5
    %v6497 = vor.u32 %v6493, %v6496
    %v6498 = vrot.slane %v6497, 4
    %v6500 = vshll.u32 %v6017, 16
    %v6502 = vrot.slane %v6500, 5
    %v6503 = vsel %vm2563, %v6498, %v6502
    %v6504 = vshrl.u32 %v6017, 16
    %v6506 = vrot.slane %v6504, 4
    %v6507 = vor.u32 %v6506, %v6502
    %v6508 = vrot.slane %v6507, 4
    %v6510 = vshll.u32 %v6018, 16
    %v6512 = vrot.slane %v6510, 5
    %v6513 = vsel %vm2563, %v6508, %v6512
    %v6515 = vshrl.u32 %v6019, 16
    %v6517 = vrot.slane %v6515, 4
    %v6518 = vshll.u32 %v6019, 16
    %v6520 = vrot.slane %v6518, 5
    %v6521 = vor.u32 %v6517, %v6520
    %v6522 = vrot.slane %v6521, 4
    %v6524 = vshll.u32 %v6020, 16
    %v6526 = vrot.slane %v6524, 5
    %v6527 = vsel %vm2563, %v6522, %v6526
    %v6528 = vshrl.u32 %v6020, 16
    %v6530 = vrot.slane %v6528, 4
    %v6531 = vor.u32 %v6530, %v6526
    %v6532 = vrot.slane %v6531, 4
    %v6534 = vshll.u32 %v6021, 16
    %v6536 = vrot.slane %v6534, 5
    %v6537 = vsel %vm2563, %v6532, %v6536
    %v6539 = vshrl.u32 %v6022, 16
    %v6541 = vrot.slane %v6539, 4
    %v6542 = vshll.u32 %v6022, 16
    %v6544 = vrot.slane %v6542, 5
    %v6545 = vor.u32 %v6541, %v6544
    %v6546 = vrot.slane %v6545, 4
    %v6548 = vshll.u32 %v6023, 16
    %v6550 = vrot.slane %v6548, 5
    %v6551 = vsel %vm2563, %v6546, %v6550
    %v6552 = vshrl.u32 %v6023, 16
    %v6554 = vrot.slane %v6552, 4
    %v6555 = vor.u32 %v6554, %v6550
    %v6556 = vrot.slane %v6555, 4
    %v6558 = vshll.u32 %v6024, 16
    %v6560 = vrot.slane %v6558, 5
    %v6561 = vsel %vm2563, %v6556, %v6560
    %v6563 = vshrl.u32 %v6025, 16
    %v6565 = vrot.slane %v6563, 4
    %v6566 = vshll.u32 %v6025, 16
    %v6568 = vrot.slane %v6566, 5
    %v6569 = vor.u32 %v6565, %v6568
    %v6570 = vrot.slane %v6569, 4
    %v6572 = vshll.u32 %v6026, 16
    %v6574 = vrot.slane %v6572, 5
    %v6575 = vsel %vm2563, %v6570, %v6574
    %v6576 = vshrl.u32 %v6026, 16
    %v6578 = vrot.slane %v6576, 4
    %v6579 = vor.u32 %v6578, %v6574
    %v6580 = vrot.slane %v6579, 4
    %v6582 = vshll.u32 %v6027, 16
    %v6584 = vrot.slane %v6582, 5
    %v6585 = vsel %vm2563, %v6580, %v6584
    %v6587 = vshrl.u32 %v6028, 16
    %v6589 = vrot.slane %v6587, 4
    %v6590 = vshll.u32 %v6028, 16
    %v6592 = vrot.slane %v6590, 5
    %v6593 = vor.u32 %v6589, %v6592
    %v6594 = vrot.slane %v6593, 4
    %v6596 = vshll.u32 %v6029, 16
    %v6598 = vrot.slane %v6596, 5
    %v6599 = vsel %vm2563, %v6594, %v6598
    %v6600 = vshrl.u32 %v6029, 16
    %v6602 = vrot.slane %v6600, 4
    %v6603 = vor.u32 %v6602, %v6598
    %v6604 = vrot.slane %v6603, 4
    %v6606 = vshll.u32 %v6030, 16
    %v6608 = vrot.slane %v6606, 5
    %v6609 = vsel %vm2563, %v6604, %v6608
    %v6611 = vshrl.u32 %v6031, 16
    %v6613 = vrot.slane %v6611, 4
    %v6614 = vshll.u32 %v6031, 16
    %v6616 = vrot.slane %v6614, 5
    %v6617 = vor.u32 %v6613, %v6616
    %v6618 = vrot.slane %v6617, 4
    %v6620 = vshll.u32 %v6032, 16
    %v6622 = vrot.slane %v6620, 5
    %v6623 = vsel %vm2563, %v6618, %v6622
    %v6624 = vshrl.u32 %v6032, 16
    %v6626 = vrot.slane %v6624, 4
    %v6627 = vor.u32 %v6626, %v6622
    %v6628 = vrot.slane %v6627, 4
    %v6630 = vshll.u32 %v6033, 16
    %v6632 = vrot.slane %v6630, 5
    %v6633 = vsel %vm2563, %v6628, %v6632
    %v6635 = vshrl.u32 %v6034, 16
    %v6637 = vrot.slane %v6635, 4
    %v6638 = vshll.u32 %v6034, 16
    %v6640 = vrot.slane %v6638, 5
    %v6641 = vor.u32 %v6637, %v6640
    %v6642 = vrot.slane %v6641, 4
    %v6644 = vshll.u32 %v6035, 16
    %v6646 = vrot.slane %v6644, 5
    %v6647 = vsel %vm2563, %v6642, %v6646
    %v6648 = vshrl.u32 %v6035, 16
    %v6650 = vrot.slane %v6648, 4
    %v6651 = vor.u32 %v6650, %v6646
    %v6652 = vrot.slane %v6651, 4
    %v6654 = vshll.u32 %v6036, 16
    %v6656 = vrot.slane %v6654, 5
    %v6657 = vsel %vm2563, %v6652, %v6656
    %v6659 = vshrl.u32 %v6037, 16
    %v6661 = vrot.slane %v6659, 4
    %v6662 = vshll.u32 %v6037, 16
    %v6664 = vrot.slane %v6662, 5
    %v6665 = vor.u32 %v6661, %v6664
    %v6666 = vrot.slane %v6665, 4
    %v6668 = vshll.u32 %v6038, 16
    %v6670 = vrot.slane %v6668, 5
    %v6671 = vsel %vm2563, %v6666, %v6670
    %v6672 = vshrl.u32 %v6038, 16
    %v6674 = vrot.slane %v6672, 4
    %v6675 = vor.u32 %v6674, %v6670
    %v6676 = vrot.slane %v6675, 4
    %v6678 = vshll.u32 %v6039, 16
    %v6680 = vrot.slane %v6678, 5
    %v6681 = vsel %vm2563, %v6676, %v6680
    %v6683 = vshrl.u32 %v6040, 16
    %v6685 = vrot.slane %v6683, 4
    %v6686 = vshll.u32 %v6040, 16
    %v6688 = vrot.slane %v6686, 5
    %v6689 = vor.u32 %v6685, %v6688
    %v6690 = vrot.slane %v6689, 4
    %v6692 = vshll.u32 %v6041, 16
    %v6694 = vrot.slane %v6692, 5
    %v6695 = vsel %vm2563, %v6690, %v6694
    %v6696 = vshrl.u32 %v6041, 16
    %v6698 = vrot.slane %v6696, 4
    %v6699 = vor.u32 %v6698, %v6694
    %v6700 = vrot.slane %v6699, 4
    %v6702 = vshll.u32 %v6042, 16
    %v6704 = vrot.slane %v6702, 5
    %v6705 = vsel %vm2563, %v6700, %v6704
    %v6707 = vshrl.u32 %v6043, 16
    %v6709 = vrot.slane %v6707, 4
    %v6710 = vshll.u32 %v6043, 16
    %v6712 = vrot.slane %v6710, 5
    %v6713 = vor.u32 %v6709, %v6712
    %v6714 = vrot.slane %v6713, 4
    %v6716 = vshll.u32 %v6044, 16
    %v6718 = vrot.slane %v6716, 5
    %v6719 = vsel %vm2563, %v6714, %v6718
    %v6720 = vshrl.u32 %v6044, 16
    %v6722 = vrot.slane %v6720, 4
    %v6723 = vor.u32 %v6722, %v6718
    %v6724 = vrot.slane %v6723, 4
    %v6726 = vshll.u32 %v6045, 16
    %v6728 = vrot.slane %v6726, 5
    %v6729 = vsel %vm2563, %v6724, %v6728
    %v6731 = vshrl.u32 %v6046, 16
    %v6733 = vrot.slane %v6731, 4
    %v6734 = vshll.u32 %v6046, 16
    %v6736 = vrot.slane %v6734, 5
    %v6737 = vor.u32 %v6733, %v6736
    %v6738 = vrot.slane %v6737, 4
    %v6740 = vshll.u32 %v6047, 16
    %v6742 = vrot.slane %v6740, 5
    %v6743 = vsel %vm2563, %v6738, %v6742
    %v6744 = vshrl.u32 %v6047, 16
    %v6746 = vrot.slane %v6744, 4
    %v6747 = vor.u32 %v6746, %v6742
    %v6748 = vrot.slane %v6747, 4
    %v6750 = vshll.u32 %v6048, 16
    %v6752 = vrot.slane %v6750, 5
    %v6753 = vsel %vm2563, %v6748, %v6752
    %v6755 = vshrl.u32 %v6049, 16
    %v6757 = vrot.slane %v6755, 4
    %v6758 = vshll.u32 %v6049, 16
    %v6760 = vrot.slane %v6758, 5
    %v6761 = vor.u32 %v6757, %v6760
    %v6762 = vrot.slane %v6761, 4
    %v6764 = vshll.u32 %v6050, 16
    %v6766 = vrot.slane %v6764, 5
    %v6767 = vsel %vm2563, %v6762, %v6766
    %v6768 = vshrl.u32 %v6050, 16
    %v6770 = vrot.slane %v6768, 4
    %v6771 = vor.u32 %v6770, %v6766
    %v6772 = vrot.slane %v6771, 4
    %v6774 = vshll.u32 %v6051, 16
    %v6776 = vrot.slane %v6774, 5
    %v6777 = vsel %vm2563, %v6772, %v6776
    %v6779 = vshrl.u32 %v6052, 16
    %v6781 = vrot.slane %v6779, 4
    %v6782 = vshll.u32 %v6052, 16
    %v6784 = vrot.slane %v6782, 5
    %v6785 = vor.u32 %v6781, %v6784
    %v6786 = vrot.slane %v6785, 4
    %v6788 = vshll.u32 %v6053, 16
    %v6790 = vrot.slane %v6788, 5
    %v6791 = vsel %vm2563, %v6786, %v6790
    %v6792 = vshrl.u32 %v6053, 16
    %v6794 = vrot.slane %v6792, 4
    %v6795 = vor.u32 %v6794, %v6790
    %v6796 = vrot.slane %v6795, 4
    %v6798 = vshll.u32 %v6054, 16
    %v6800 = vrot.slane %v6798, 5
    %v6801 = vsel %vm2563, %v6796, %v6800
    %v6803 = vshrl.u32 %v6055, 16
    %v6805 = vrot.slane %v6803, 4
    %v6806 = vshll.u32 %v6055, 16
    %v6808 = vrot.slane %v6806, 5
    %v6809 = vor.u32 %v6805, %v6808
    %v6810 = vrot.slane %v6809, 4
    %v6812 = vshll.u32 %v6056, 16
    %v6814 = vrot.slane %v6812, 5
    %v6815 = vsel %vm2563, %v6810, %v6814
    %v6816 = vshrl.u32 %v6056, 16
    %v6818 = vrot.slane %v6816, 4
    %v6819 = vor.u32 %v6818, %v6814
    %v6820 = vrot.slane %v6819, 4
    %v6822 = vshll.u32 %v6057, 16
    %v6824 = vrot.slane %v6822, 5
    %v6825 = vsel %vm2563, %v6820, %v6824
    %s6826 = scalar_lea.vmem [#allocation7], 64
    %v6827 = vld [vmem:[%s6826] sm:$0xf]
    %v6828 = vld [vmem:[%s6826 + $0x4] sm:$0xf]
    %v6829 = vld [vmem:[%s6826 + $0x8] sm:$0xf]
    %v6830 = vld [vmem:[%s6826 + $0xc] sm:$0xf]
    %v6831 = vunpack.c.l.b16 %v6071
    %v6832 = vunpack.c.l.b16 %v6081
    %v6833 = vunpack.c.l.b16 %v6095
    %v6834 = vunpack.c.l.b16 %v6105
    %v6835 = vunpack.c.l.b16 %v6119
    %v6836 = vunpack.c.l.b16 %v6129
    %v6837 = vunpack.c.l.b16 %v6143
    %v6838 = vunpack.c.l.b16 %v6153
    %v6839 = vunpack.c.l.b16 %v6167
    %v6840 = vunpack.c.l.b16 %v6177
    %v6841 = vunpack.c.l.b16 %v6191
    %v6842 = vunpack.c.l.b16 %v6201
    %v6843 = vunpack.c.l.b16 %v6215
    %v6844 = vunpack.c.l.b16 %v6225
    %v6845 = vunpack.c.l.b16 %v6239
    %v6846 = vunpack.c.l.b16 %v6249
    %v6847 = vunpack.c.l.b16 %v6263
    %v6848 = vunpack.c.l.b16 %v6273
    %v6849 = vunpack.c.l.b16 %v6287
    %v6850 = vunpack.c.l.b16 %v6297
    %v6851 = vunpack.c.l.b16 %v6311
    %v6852 = vunpack.c.l.b16 %v6321
    %v6853 = vunpack.c.l.b16 %v6335
    %v6854 = vunpack.c.l.b16 %v6345
    %v6855 = vunpack.c.l.b16 %v6359
    %v6856 = vunpack.c.l.b16 %v6369
    %v6857 = vunpack.c.l.b16 %v6383
    %v6858 = vunpack.c.l.b16 %v6393
    %v6859 = vunpack.c.l.b16 %v6407
    %v6860 = vunpack.c.l.b16 %v6417
    %v6861 = vunpack.c.l.b16 %v6431
    %v6862 = vunpack.c.l.b16 %v6441
    %v6863 = vunpack.c.l.b16 %v6455
    %v6864 = vunpack.c.l.b16 %v6465
    %v6865 = vunpack.c.l.b16 %v6479
    %v6866 = vunpack.c.l.b16 %v6489
    %v6867 = vunpack.c.l.b16 %v6503
    %v6868 = vunpack.c.l.b16 %v6513
    %v6869 = vunpack.c.l.b16 %v6527
    %v6870 = vunpack.c.l.b16 %v6537
    %v6871 = vunpack.c.l.b16 %v6551
    %v6872 = vunpack.c.l.b16 %v6561
    %v6873 = vunpack.c.l.b16 %v6575
    %v6874 = vunpack.c.l.b16 %v6585
    %v6875 = vunpack.c.l.b16 %v6599
    %v6876 = vunpack.c.l.b16 %v6609
    %v6877 = vunpack.c.l.b16 %v6623
    %v6878 = vunpack.c.l.b16 %v6633
    %v6879 = vunpack.c.l.b16 %v6647
    %v6880 = vunpack.c.l.b16 %v6657
    %v6881 = vunpack.c.l.b16 %v6671
    %v6882 = vunpack.c.l.b16 %v6681
    %v6883 = vunpack.c.l.b16 %v6695
    %v6884 = vunpack.c.l.b16 %v6705
    %v6885 = vunpack.c.l.b16 %v6719
    %v6886 = vunpack.c.l.b16 %v6729
    %v6887 = vunpack.c.l.b16 %v6743
    %v6888 = vunpack.c.l.b16 %v6753
    %v6889 = vunpack.c.l.b16 %v6767
    %v6890 = vunpack.c.l.b16 %v6777
    %v6891 = vunpack.c.l.b16 %v6791
    %v6892 = vunpack.c.l.b16 %v6801
    %v6893 = vunpack.c.l.b16 %v6815
    %v6894 = vunpack.c.l.b16 %v6825
    %v6895 = vpack.c.b16 %v6832, %v6831
    %v6896 = vpack.c.b16 %v6834, %v6833
    %v6897 = vpack.c.b16 %v6836, %v6835
    %v6898 = vpack.c.b16 %v6838, %v6837
    %v6899 = vpack.c.b16 %v6840, %v6839
    %v6900 = vpack.c.b16 %v6842, %v6841
    %v6901 = vpack.c.b16 %v6844, %v6843
    %v6902 = vpack.c.b16 %v6846, %v6845
    %v6903 = vpack.c.b16 %v6848, %v6847
    %v6904 = vpack.c.b16 %v6850, %v6849
    %v6905 = vpack.c.b16 %v6852, %v6851
    %v6906 = vpack.c.b16 %v6854, %v6853
    %v6907 = vpack.c.b16 %v6856, %v6855
    %v6908 = vpack.c.b16 %v6858, %v6857
    %v6909 = vpack.c.b16 %v6860, %v6859
    %v6910 = vpack.c.b16 %v6862, %v6861
    %v6911 = vpack.c.b16 %v6864, %v6863
    %v6912 = vpack.c.b16 %v6866, %v6865
    %v6913 = vpack.c.b16 %v6868, %v6867
    %v6914 = vpack.c.b16 %v6870, %v6869
    %v6915 = vpack.c.b16 %v6872, %v6871
    %v6916 = vpack.c.b16 %v6874, %v6873
    %v6917 = vpack.c.b16 %v6876, %v6875
    %v6918 = vpack.c.b16 %v6878, %v6877
    %v6919 = vpack.c.b16 %v6880, %v6879
    %v6920 = vpack.c.b16 %v6882, %v6881
    %v6921 = vpack.c.b16 %v6884, %v6883
    %v6922 = vpack.c.b16 %v6886, %v6885
    %v6923 = vpack.c.b16 %v6888, %v6887
    %v6924 = vpack.c.b16 %v6890, %v6889
    %v6925 = vpack.c.b16 %v6892, %v6891
    %v6926 = vpack.c.b16 %v6894, %v6893
    %v6931 = vunpack.c.l.b16 %v6827
    %v6932 = vunpack.c.l.b16 %v6828
    %v6933 = vunpack.c.l.b16 %v6829
    %v6934 = vunpack.c.l.b16 %v6830
    %v6935 = vpack.c.b16 %v6932, %v6931
    %v6936 = vpack.c.b16 %v6934, %v6933
    %v6940 = vsel %vm523, %v6895, 0
    %v6943 = vsel %vm523, %v6896, 0
    %v6946 = vsel %vm523, %v6897, 0
    %v6949 = vsel %vm523, %v6898, 0
    %v6952 = vsel %vm523, %v6899, 0
    %v6955 = vsel %vm523, %v6900, 0
    %v6958 = vsel %vm523, %v6901, 0
    %v6961 = vsel %vm523, %v6902, 0
    %v6964 = vsel %vm523, %v6903, 0
    %v6967 = vsel %vm523, %v6904, 0
    %v6970 = vsel %vm523, %v6905, 0
    %v6973 = vsel %vm523, %v6906, 0
    %v6976 = vsel %vm523, %v6907, 0
    %v6979 = vsel %vm523, %v6908, 0
    %v6982 = vsel %vm523, %v6909, 0
    %v6985 = vsel %vm523, %v6910, 0
    %v6988 = vsel %vm523, %v6911, 0
    %v6991 = vsel %vm523, %v6912, 0
    %v6994 = vsel %vm523, %v6913, 0
    %v6997 = vsel %vm523, %v6914, 0
    %v7000 = vsel %vm523, %v6915, 0
    %v7003 = vsel %vm523, %v6916, 0
    %v7006 = vsel %vm523, %v6917, 0
    %v7009 = vsel %vm523, %v6918, 0
    %v7012 = vsel %vm523, %v6919, 0
    %v7015 = vsel %vm523, %v6920, 0
    %v7018 = vsel %vm523, %v6921, 0
    %v7021 = vsel %vm523, %v6922, 0
    %v7024 = vsel %vm523, %v6923, 0
    %v7027 = vsel %vm523, %v6924, 0
    %v7030 = vsel %vm523, %v6925, 0
    %v7033 = vsel %vm523, %v6926, 0
    %7035 = vmatprep.subr.bf16.mxu0 0
    %7036 = vmatpush1.bf16.msra.mxu0 %v6935
    %7037 = vmatprep.subr.bf16.mxu0 0
    %7038 = vmatpush1.bf16.msra.mxu0 %v6936
    %7039 = vmatprep.subr.bf16.mxu0 0
    %7040 = vmatpush1.bf16.msra.mxu0 0
    %7041 = vmatprep.subr.bf16.mxu0 0
    %7042 = vmatpush1.bf16.msra.mxu0 0
    %7043 = vmatprep.subr.bf16.mxu0 0
    %7044 = vmatpush1.bf16.msra.mxu0 0
    %7045 = vmatprep.subr.bf16.mxu0 0
    %7046 = vmatpush1.bf16.msra.mxu0 0
    %7047 = vmatprep.subr.bf16.mxu0 0
    %7048 = vmatpush1.bf16.msra.mxu0 0
    %7049 = vmatprep.subr.bf16.mxu0 0
    %7050 = vmatpush1.bf16.msra.mxu0 0
    %7051 = vmatprep.subr.bf16.mxu0 0
    %7052 = vmatpush1.bf16.msra.mxu0 0
    %7053 = vmatprep.subr.bf16.mxu0 0
    %7054 = vmatpush1.bf16.msra.mxu0 0
    %7055 = vmatprep.subr.bf16.mxu0 0
    %7056 = vmatpush1.bf16.msra.mxu0 0
    %7057 = vmatprep.subr.bf16.mxu0 0
    %7058 = vmatpush1.bf16.msra.mxu0 0
    %7059 = vmatprep.subr.bf16.mxu0 0
    %7060 = vmatpush1.bf16.msra.mxu0 0
    %7061 = vmatprep.subr.bf16.mxu0 0
    %7062 = vmatpush1.bf16.msra.mxu0 0
    %7063 = vmatprep.subr.bf16.mxu0 0
    %7064 = vmatpush1.bf16.msra.mxu0 0
    %7065 = vmatprep.subr.bf16.mxu0 0
    %7066 = vmatpush1.bf16.msra.mxu0 0
    %7067 = vmatprep.mubr.bf16.mxu0 0
    %7068 = vmatmul.mubr.bf16.gmra.mrb[0].mxu0 %v6940
    %v7069 = vpop.f32.mrb[0].mxu0
    %v7070 = vadd.f32 0.0, %v7069
    %v7071 = vpop.f32.mrb[0].mxu0
    %v7072 = vpop.f32.mrb[0].mxu0
    %v7073 = vadd.f32 0.0, %v7072
    %v7074 = vpop.f32.mrb[0].mxu0
    %7075 = vmatprep.mubr.bf16.mxu0 0
    %7076 = vmatmul.mubr.bf16.gmra.mrb[0].mxu0 %v6943
    %v7077 = vpop.f32.mrb[0].mxu0
    %v7078 = vadd.f32 0.0, %v7077
    %v7079 = vpop.f32.mrb[0].mxu0
    %v7080 = vpop.f32.mrb[0].mxu0
    %v7081 = vadd.f32 0.0, %v7080
    %v7082 = vpop.f32.mrb[0].mxu0
    %7083 = vmatprep.mubr.bf16.mxu0 0
    %7084 = vmatmul.mubr.bf16.gmra.mrb[0].mxu0 %v6946
    %v7085 = vpop.f32.mrb[0].mxu0
    %v7086 = vadd.f32 0.0, %v7085
    %v7087 = vpop.f32.mrb[0].mxu0
    %v7088 = vpop.f32.mrb[0].mxu0
    %v7089 = vadd.f32 0.0, %v7088
    %v7090 = vpop.f32.mrb[0].mxu0
    %7091 = vmatprep.mubr.bf16.mxu0 0
    %7092 = vmatmul.mubr.bf16.gmra.mrb[0].mxu0 %v6949
    %v7093 = vpop.f32.mrb[0].mxu0
    %v7094 = vadd.f32 0.0, %v7093
    %v7095 = vpop.f32.mrb[0].mxu0
    %v7096 = vpop.f32.mrb[0].mxu0
    %v7097 = vadd.f32 0.0, %v7096
    %v7098 = vpop.f32.mrb[0].mxu0
    %7099 = vmatprep.mubr.bf16.mxu0 0
    %7100 = vmatmul.mubr.bf16.gmra.mrb[0].mxu0 %v6952
    %v7101 = vpop.f32.mrb[0].mxu0
    %v7102 = vadd.f32 0.0, %v7101
    %v7103 = vpop.f32.mrb[0].mxu0
    %v7104 = vpop.f32.mrb[0].mxu0
    %v7105 = vadd.f32 0.0, %v7104
    %v7106 = vpop.f32.mrb[0].mxu0
    %7107 = vmatprep.mubr.bf16.mxu0 0
    %7108 = vmatmul.mubr.bf16.gmra.mrb[0].mxu0 %v6955
    %v7109 = vpop.f32.mrb[0].mxu0
    %v7110 = vadd.f32 0.0, %v7109
    %v7111 = vpop.f32.mrb[0].mxu0
    %v7112 = vpop.f32.mrb[0].mxu0
    %v7113 = vadd.f32 0.0, %v7112
    %v7114 = vpop.f32.mrb[0].mxu0
    %7115 = vmatprep.mubr.bf16.mxu0 0
    %7116 = vmatmul.mubr.bf16.gmra.mrb[0].mxu0 %v6958
    %v7117 = vpop.f32.mrb[0].mxu0
    %v7118 = vadd.f32 0.0, %v7117
    %v7119 = vpop.f32.mrb[0].mxu0
    %v7120 = vpop.f32.mrb[0].mxu0
    %v7121 = vadd.f32 0.0, %v7120
    %v7122 = vpop.f32.mrb[0].mxu0
    %7123 = vmatprep.mubr.bf16.mxu0 0
    %7124 = vmatmul.mubr.bf16.gmra.mrb[0].mxu0 %v6961
    %v7125 = vpop.f32.mrb[0].mxu0
    %v7126 = vadd.f32 0.0, %v7125
    %v7127 = vpop.f32.mrb[0].mxu0
    %v7128 = vpop.f32.mrb[0].mxu0
    %v7129 = vadd.f32 0.0, %v7128
    %v7130 = vpop.f32.mrb[0].mxu0
    %7131 = vmatprep.mubr.bf16.mxu0 0
    %7132 = vmatmul.mubr.bf16.gmra.mrb[0].mxu0 %v6964
    %v7133 = vpop.f32.mrb[0].mxu0
    %v7134 = vadd.f32 0.0, %v7133
    %v7135 = vpop.f32.mrb[0].mxu0
    %v7136 = vpop.f32.mrb[0].mxu0
    %v7137 = vadd.f32 0.0, %v7136
    %v7138 = vpop.f32.mrb[0].mxu0
    %7139 = vmatprep.mubr.bf16.mxu0 0
    %7140 = vmatmul.mubr.bf16.gmra.mrb[0].mxu0 %v6967
    %v7141 = vpop.f32.mrb[0].mxu0
    %v7142 = vadd.f32 0.0, %v7141
    %v7143 = vpop.f32.mrb[0].mxu0
    %v7144 = vpop.f32.mrb[0].mxu0
    %v7145 = vadd.f32 0.0, %v7144
    %v7146 = vpop.f32.mrb[0].mxu0
    %7147 = vmatprep.mubr.bf16.mxu0 0
    %7148 = vmatmul.mubr.bf16.gmra.mrb[0].mxu0 %v6970
    %v7149 = vpop.f32.mrb[0].mxu0
    %v7150 = vadd.f32 0.0, %v7149
    %v7151 = vpop.f32.mrb[0].mxu0
    %v7152 = vpop.f32.mrb[0].mxu0
    %v7153 = vadd.f32 0.0, %v7152
    %v7154 = vpop.f32.mrb[0].mxu0
    %7155 = vmatprep.mubr.bf16.mxu0 0
    %7156 = vmatmul.mubr.bf16.gmra.mrb[0].mxu0 %v6973
    %v7157 = vpop.f32.mrb[0].mxu0
    %v7158 = vadd.f32 0.0, %v7157
    %v7159 = vpop.f32.mrb[0].mxu0
    %v7160 = vpop.f32.mrb[0].mxu0
    %v7161 = vadd.f32 0.0, %v7160
    %v7162 = vpop.f32.mrb[0].mxu0
    %7163 = vmatprep.mubr.bf16.mxu0 0
    %7164 = vmatmul.mubr.bf16.gmra.mrb[0].mxu0 %v6976
    %v7165 = vpop.f32.mrb[0].mxu0
    %v7166 = vadd.f32 0.0, %v7165
    %v7167 = vpop.f32.mrb[0].mxu0
    %v7168 = vpop.f32.mrb[0].mxu0
    %v7169 = vadd.f32 0.0, %v7168
    %v7170 = vpop.f32.mrb[0].mxu0
    %7171 = vmatprep.mubr.bf16.mxu0 0
    %7172 = vmatmul.mubr.bf16.gmra.mrb[0].mxu0 %v6979
    %v7173 = vpop.f32.mrb[0].mxu0
    %v7174 = vadd.f32 0.0, %v7173
    %v7175 = vpop.f32.mrb[0].mxu0
    %v7176 = vpop.f32.mrb[0].mxu0
    %v7177 = vadd.f32 0.0, %v7176
    %v7178 = vpop.f32.mrb[0].mxu0
    %7179 = vmatprep.mubr.bf16.mxu0 0
    %7180 = vmatmul.mubr.bf16.gmra.mrb[0].mxu0 %v6982
    %v7181 = vpop.f32.mrb[0].mxu0
    %v7182 = vadd.f32 0.0, %v7181
    %v7183 = vpop.f32.mrb[0].mxu0
    %v7184 = vpop.f32.mrb[0].mxu0
    %v7185 = vadd.f32 0.0, %v7184
    %v7186 = vpop.f32.mrb[0].mxu0
    %7187 = vmatprep.mubr.bf16.mxu0 0
    %7188 = vmatmul.mubr.bf16.gmra.mrb[0].mxu0 %v6985
    %v7189 = vpop.f32.mrb[0].mxu0
    %v7190 = vadd.f32 0.0, %v7189
    %v7191 = vpop.f32.mrb[0].mxu0
    %v7192 = vpop.f32.mrb[0].mxu0
    %v7193 = vadd.f32 0.0, %v7192
    %v7194 = vpop.f32.mrb[0].mxu0
    %7195 = vmatprep.mubr.bf16.mxu0 0
    %7196 = vmatmul.mubr.bf16.gmra.mrb[0].mxu0 %v6988
    %v7197 = vpop.f32.mrb[0].mxu0
    %v7198 = vadd.f32 0.0, %v7197
    %v7199 = vpop.f32.mrb[0].mxu0
    %v7200 = vpop.f32.mrb[0].mxu0
    %v7201 = vadd.f32 0.0, %v7200
    %v7202 = vpop.f32.mrb[0].mxu0
    %7203 = vmatprep.mubr.bf16.mxu0 0
    %7204 = vmatmul.mubr.bf16.gmra.mrb[0].mxu0 %v6991
    %v7205 = vpop.f32.mrb[0].mxu0
    %v7206 = vadd.f32 0.0, %v7205
    %v7207 = vpop.f32.mrb[0].mxu0
    %v7208 = vpop.f32.mrb[0].mxu0
    %v7209 = vadd.f32 0.0, %v7208
    %v7210 = vpop.f32.mrb[0].mxu0
    %7211 = vmatprep.mubr.bf16.mxu0 0
    %7212 = vmatmul.mubr.bf16.gmra.mrb[0].mxu0 %v6994
    %v7213 = vpop.f32.mrb[0].mxu0
    %v7214 = vadd.f32 0.0, %v7213
    %v7215 = vpop.f32.mrb[0].mxu0
    %v7216 = vpop.f32.mrb[0].mxu0
    %v7217 = vadd.f32 0.0, %v7216
    %v7218 = vpop.f32.mrb[0].mxu0
    %7219 = vmatprep.mubr.bf16.mxu0 0
    %7220 = vmatmul.mubr.bf16.gmra.mrb[0].mxu0 %v6997
    %v7221 = vpop.f32.mrb[0].mxu0
    %v7222 = vadd.f32 0.0, %v7221
    %v7223 = vpop.f32.mrb[0].mxu0
    %v7224 = vpop.f32.mrb[0].mxu0
    %v7225 = vadd.f32 0.0, %v7224
    %v7226 = vpop.f32.mrb[0].mxu0
    %7227 = vmatprep.mubr.bf16.mxu0 0
    %7228 = vmatmul.mubr.bf16.gmra.mrb[0].mxu0 %v7000
    %v7229 = vpop.f32.mrb[0].mxu0
    %v7230 = vadd.f32 0.0, %v7229
    %v7231 = vpop.f32.mrb[0].mxu0
    %v7232 = vpop.f32.mrb[0].mxu0
    %v7233 = vadd.f32 0.0, %v7232
    %v7234 = vpop.f32.mrb[0].mxu0
    %7235 = vmatprep.mubr.bf16.mxu0 0
    %7236 = vmatmul.mubr.bf16.gmra.mrb[0].mxu0 %v7003
    %v7237 = vpop.f32.mrb[0].mxu0
    %v7238 = vadd.f32 0.0, %v7237
    %v7239 = vpop.f32.mrb[0].mxu0
    %v7240 = vpop.f32.mrb[0].mxu0
    %v7241 = vadd.f32 0.0, %v7240
    %v7242 = vpop.f32.mrb[0].mxu0
    %7243 = vmatprep.mubr.bf16.mxu0 0
    %7244 = vmatmul.mubr.bf16.gmra.mrb[0].mxu0 %v7006
    %v7245 = vpop.f32.mrb[0].mxu0
    %v7246 = vadd.f32 0.0, %v7245
    %v7247 = vpop.f32.mrb[0].mxu0
    %v7248 = vpop.f32.mrb[0].mxu0
    %v7249 = vadd.f32 0.0, %v7248
    %v7250 = vpop.f32.mrb[0].mxu0
    %7251 = vmatprep.mubr.bf16.mxu0 0
    %7252 = vmatmul.mubr.bf16.gmra.mrb[0].mxu0 %v7009
    %v7253 = vpop.f32.mrb[0].mxu0
    %v7254 = vadd.f32 0.0, %v7253
    %v7255 = vpop.f32.mrb[0].mxu0
    %v7256 = vpop.f32.mrb[0].mxu0
    %v7257 = vadd.f32 0.0, %v7256
    %v7258 = vpop.f32.mrb[0].mxu0
    %7259 = vmatprep.mubr.bf16.mxu0 0
    %7260 = vmatmul.mubr.bf16.gmra.mrb[0].mxu0 %v7012
    %v7261 = vpop.f32.mrb[0].mxu0
    %v7262 = vadd.f32 0.0, %v7261
    %v7263 = vpop.f32.mrb[0].mxu0
    %v7264 = vpop.f32.mrb[0].mxu0
    %v7265 = vadd.f32 0.0, %v7264
    %v7266 = vpop.f32.mrb[0].mxu0
    %7267 = vmatprep.mubr.bf16.mxu0 0
    %7268 = vmatmul.mubr.bf16.gmra.mrb[0].mxu0 %v7015
    %v7269 = vpop.f32.mrb[0].mxu0
    %v7270 = vadd.f32 0.0, %v7269
    %v7271 = vpop.f32.mrb[0].mxu0
    %v7272 = vpop.f32.mrb[0].mxu0
    %v7273 = vadd.f32 0.0, %v7272
    %v7274 = vpop.f32.mrb[0].mxu0
    %7275 = vmatprep.mubr.bf16.mxu0 0
    %7276 = vmatmul.mubr.bf16.gmra.mrb[0].mxu0 %v7018
    %v7277 = vpop.f32.mrb[0].mxu0
    %v7278 = vadd.f32 0.0, %v7277
    %v7279 = vpop.f32.mrb[0].mxu0
    %v7280 = vpop.f32.mrb[0].mxu0
    %v7281 = vadd.f32 0.0, %v7280
    %v7282 = vpop.f32.mrb[0].mxu0
    %7283 = vmatprep.mubr.bf16.mxu0 0
    %7284 = vmatmul.mubr.bf16.gmra.mrb[0].mxu0 %v7021
    %v7285 = vpop.f32.mrb[0].mxu0
    %v7286 = vadd.f32 0.0, %v7285
    %v7287 = vpop.f32.mrb[0].mxu0
    %v7288 = vpop.f32.mrb[0].mxu0
    %v7289 = vadd.f32 0.0, %v7288
    %v7290 = vpop.f32.mrb[0].mxu0
    %7291 = vmatprep.mubr.bf16.mxu0 0
    %7292 = vmatmul.mubr.bf16.gmra.mrb[0].mxu0 %v7024
    %v7293 = vpop.f32.mrb[0].mxu0
    %v7294 = vadd.f32 0.0, %v7293
    %v7295 = vpop.f32.mrb[0].mxu0
    %v7296 = vpop.f32.mrb[0].mxu0
    %v7297 = vadd.f32 0.0, %v7296
    %v7298 = vpop.f32.mrb[0].mxu0
    %7299 = vmatprep.mubr.bf16.mxu0 0
    %7300 = vmatmul.mubr.bf16.gmra.mrb[0].mxu0 %v7027
    %v7301 = vpop.f32.mrb[0].mxu0
    %v7302 = vadd.f32 0.0, %v7301
    %v7303 = vpop.f32.mrb[0].mxu0
    %v7304 = vpop.f32.mrb[0].mxu0
    %v7305 = vadd.f32 0.0, %v7304
    %v7306 = vpop.f32.mrb[0].mxu0
    %7307 = vmatprep.mubr.bf16.mxu0 0
    %7308 = vmatmul.mubr.bf16.gmra.mrb[0].mxu0 %v7030
    %v7309 = vpop.f32.mrb[0].mxu0
    %v7310 = vadd.f32 0.0, %v7309
    %v7311 = vpop.f32.mrb[0].mxu0
    %v7312 = vpop.f32.mrb[0].mxu0
    %v7313 = vadd.f32 0.0, %v7312
    %v7314 = vpop.f32.mrb[0].mxu0
    %7315 = vmatprep.mubr.bf16.mxu0 0
    %7316 = vmatmul.mubr.bf16.gmra.mrb[0].mxu0 %v7033
    %v7317 = vpop.f32.mrb[0].mxu0
    %v7318 = vadd.f32 0.0, %v7317
    %v7319 = vpop.f32.mrb[0].mxu0
    %v7320 = vpop.f32.mrb[0].mxu0
    %v7321 = vadd.f32 0.0, %v7320
    %v7322 = vpop.f32.mrb[0].mxu0
    %7323 = vdwg.mxu0
    %v7324 = vadd.f32 %v5898, %v7070
    %v7325 = vadd.f32 %v5899, %v7073
    %v7326 = vadd.f32 %v5900, %v7078
    %v7327 = vadd.f32 %v5901, %v7081
    %v7328 = vadd.f32 %v5902, %v7086
    %v7329 = vadd.f32 %v5903, %v7089
    %v7330 = vadd.f32 %v5904, %v7094
    %v7331 = vadd.f32 %v5905, %v7097
    %v7332 = vadd.f32 %v5906, %v7102
    %v7333 = vadd.f32 %v5907, %v7105
    %v7334 = vadd.f32 %v5908, %v7110
    %v7335 = vadd.f32 %v5909, %v7113
    %v7336 = vadd.f32 %v5910, %v7118
    %v7337 = vadd.f32 %v5911, %v7121
    %v7338 = vadd.f32 %v5912, %v7126
    %v7339 = vadd.f32 %v5913, %v7129
    %v7340 = vadd.f32 %v5914, %v7134
    %v7341 = vadd.f32 %v5915, %v7137
    %v7342 = vadd.f32 %v5916, %v7142
    %v7343 = vadd.f32 %v5917, %v7145
    %v7344 = vadd.f32 %v5918, %v7150
    %v7345 = vadd.f32 %v5919, %v7153
    %v7346 = vadd.f32 %v5920, %v7158
    %v7347 = vadd.f32 %v5921, %v7161
    %v7348 = vadd.f32 %v5922, %v7166
    %v7349 = vadd.f32 %v5923, %v7169
    %v7350 = vadd.f32 %v5924, %v7174
    %v7351 = vadd.f32 %v5925, %v7177
    %v7352 = vadd.f32 %v5926, %v7182
    %v7353 = vadd.f32 %v5927, %v7185
    %v7354 = vadd.f32 %v5928, %v7190
    %v7355 = vadd.f32 %v5929, %v7193
    %v7356 = vadd.f32 %v5930, %v7198
    %v7357 = vadd.f32 %v5931, %v7201
    %v7358 = vadd.f32 %v5932, %v7206
    %v7359 = vadd.f32 %v5933, %v7209
    %v7360 = vadd.f32 %v5934, %v7214
    %v7361 = vadd.f32 %v5935, %v7217
    %v7362 = vadd.f32 %v5936, %v7222
    %v7363 = vadd.f32 %v5937, %v7225
    %v7364 = vadd.f32 %v5938, %v7230
    %v7365 = vadd.f32 %v5939, %v7233
    %v7366 = vadd.f32 %v5940, %v7238
    %v7367 = vadd.f32 %v5941, %v7241
    %v7368 = vadd.f32 %v5942, %v7246
    %v7369 = vadd.f32 %v5943, %v7249
    %v7370 = vadd.f32 %v5944, %v7254
    %v7371 = vadd.f32 %v5945, %v7257
    %v7372 = vadd.f32 %v5946, %v7262
    %v7373 = vadd.f32 %v5947, %v7265
    %v7374 = vadd.f32 %v5948, %v7270
    %v7375 = vadd.f32 %v5949, %v7273
    %v7376 = vadd.f32 %v5950, %v7278
    %v7377 = vadd.f32 %v5951, %v7281
    %v7378 = vadd.f32 %v5952, %v7286
    %v7379 = vadd.f32 %v5953, %v7289
    %v7380 = vadd.f32 %v5954, %v7294
    %v7381 = vadd.f32 %v5955, %v7297
    %v7382 = vadd.f32 %v5956, %v7302
    %v7383 = vadd.f32 %v5957, %v7305
    %v7384 = vadd.f32 %v5958, %v7310
    %v7385 = vadd.f32 %v5959, %v7313
    %v7386 = vadd.f32 %v5960, %v7318
    %v7387 = vadd.f32 %v5961, %v7321
    %v7388 = vld [vmem:[%s1203] sm:$0xe]
    %v7389 = vld [vmem:[%s1203 + $0xc] sm:$0xe]
    %v7390 = vld [vmem:[%s1203 + $0x18] sm:$0xe]
    %v7391 = vld [vmem:[%s1203 + $0x24] sm:$0xe]
    %v7392 = vld [vmem:[%s1203 + $0x30] sm:$0xe]
    %v7393 = vld [vmem:[%s1203 + $0x3c] sm:$0xe]
    %v7394 = vld [vmem:[%s1203 + $0x48] sm:$0xe]
    %v7395 = vld [vmem:[%s1203 + $0x54] sm:$0xe]
    %v7396 = vld [vmem:[%s1203 + $0x60] sm:$0xe]
    %v7397 = vld [vmem:[%s1203 + $0x6c] sm:$0xe]
    %v7398 = vld [vmem:[%s1203 + $0x78] sm:$0xe]
    %v7399 = vld [vmem:[%s1203 + $0x84] sm:$0xe]
    %v7400 = vld [vmem:[%s1203 + $0x90] sm:$0xe]
    %v7401 = vld [vmem:[%s1203 + $0x9c] sm:$0xe]
    %v7402 = vld [vmem:[%s1203 + $0xa8] sm:$0xe]
    %v7403 = vld [vmem:[%s1203 + $0xb4] sm:$0xe]
    %v7404 = vld [vmem:[%s1203 + $0xd8] sm:$0xe]
    %v7405 = vld [vmem:[%s1203 + $0xe4] sm:$0xe]
    %v7406 = vld [vmem:[%s1203 + $0xf0] sm:$0xe]
    %v7407 = vld [vmem:[%s1203 + $0xfc] sm:$0xe]
    %v7408 = vld [vmem:[%s1203 + $0x108] sm:$0xe]
    %v7409 = vld [vmem:[%s1203 + $0x114] sm:$0xe]
    %v7410 = vld [vmem:[%s1203 + $0x120] sm:$0xe]
    %v7411 = vld [vmem:[%s1203 + $0x12c] sm:$0xe]
    %v7412 = vld [vmem:[%s1203 + $0x138] sm:$0xe]
    %v7413 = vld [vmem:[%s1203 + $0x144] sm:$0xe]
    %v7414 = vld [vmem:[%s1203 + $0x150] sm:$0xe]
    %v7415 = vld [vmem:[%s1203 + $0x15c] sm:$0xe]
    %v7416 = vld [vmem:[%s1203 + $0x168] sm:$0xe]
    %v7417 = vld [vmem:[%s1203 + $0x174] sm:$0xe]
    %v7418 = vld [vmem:[%s1203 + $0x180] sm:$0xe]
    %v7419 = vld [vmem:[%s1203 + $0x18c] sm:$0xe]
    %v7516 = vrot.slane %v7388, 5
    %v7517 = vrot.slane %v7516, 4
    %v7518 = vrot.slane %v5963, 5
    %v7519 = vsel %vm4485, %v7517, %v7518
    %v7520 = vrot.slane %v7518, 4
    %v7521 = vrot.slane %v5964, 5
    %v7522 = vsel %vm4485, %v7520, %v7521
    %v7523 = vrot.slane %v7389, 5
    %v7524 = vrot.slane %v7523, 4
    %v7525 = vrot.slane %v5966, 5
    %v7526 = vsel %vm4485, %v7524, %v7525
    %v7527 = vrot.slane %v7525, 4
    %v7528 = vrot.slane %v5967, 5
    %v7529 = vsel %vm4485, %v7527, %v7528
    %v7530 = vrot.slane %v7390, 5
    %v7531 = vrot.slane %v7530, 4
    %v7532 = vrot.slane %v5969, 5
    %v7533 = vsel %vm4485, %v7531, %v7532
    %v7534 = vrot.slane %v7532, 4
    %v7535 = vrot.slane %v5970, 5
    %v7536 = vsel %vm4485, %v7534, %v7535
    %v7537 = vrot.slane %v7391, 5
    %v7538 = vrot.slane %v7537, 4
    %v7539 = vrot.slane %v5972, 5
    %v7540 = vsel %vm4485, %v7538, %v7539
    %v7541 = vrot.slane %v7539, 4
    %v7542 = vrot.slane %v5973, 5
    %v7543 = vsel %vm4485, %v7541, %v7542
    %v7544 = vrot.slane %v7392, 5
    %v7545 = vrot.slane %v7544, 4
    %v7546 = vrot.slane %v5975, 5
    %v7547 = vsel %vm4485, %v7545, %v7546
    %v7548 = vrot.slane %v7546, 4
    %v7549 = vrot.slane %v5976, 5
    %v7550 = vsel %vm4485, %v7548, %v7549
    %v7551 = vrot.slane %v7393, 5
    %v7552 = vrot.slane %v7551, 4
    %v7553 = vrot.slane %v5978, 5
    %v7554 = vsel %vm4485, %v7552, %v7553
    %v7555 = vrot.slane %v7553, 4
    %v7556 = vrot.slane %v5979, 5
    %v7557 = vsel %vm4485, %v7555, %v7556
    %v7558 = vrot.slane %v7394, 5
    %v7559 = vrot.slane %v7558, 4
    %v7560 = vrot.slane %v5981, 5
    %v7561 = vsel %vm4485, %v7559, %v7560
    %v7562 = vrot.slane %v7560, 4
    %v7563 = vrot.slane %v5982, 5
    %v7564 = vsel %vm4485, %v7562, %v7563
    %v7565 = vrot.slane %v7395, 5
    %v7566 = vrot.slane %v7565, 4
    %v7567 = vrot.slane %v5984, 5
    %v7568 = vsel %vm4485, %v7566, %v7567
    %v7569 = vrot.slane %v7567, 4
    %v7570 = vrot.slane %v5985, 5
    %v7571 = vsel %vm4485, %v7569, %v7570
    %v7572 = vrot.slane %v7396, 5
    %v7573 = vrot.slane %v7572, 4
    %v7574 = vrot.slane %v5987, 5
    %v7575 = vsel %vm4485, %v7573, %v7574
    %v7576 = vrot.slane %v7574, 4
    %v7577 = vrot.slane %v5988, 5
    %v7578 = vsel %vm4485, %v7576, %v7577
    %v7579 = vrot.slane %v7397, 5
    %v7580 = vrot.slane %v7579, 4
    %v7581 = vrot.slane %v5990, 5
    %v7582 = vsel %vm4485, %v7580, %v7581
    %v7583 = vrot.slane %v7581, 4
    %v7584 = vrot.slane %v5991, 5
    %v7585 = vsel %vm4485, %v7583, %v7584
    %v7586 = vrot.slane %v7398, 5
    %v7587 = vrot.slane %v7586, 4
    %v7588 = vrot.slane %v5993, 5
    %v7589 = vsel %vm4485, %v7587, %v7588
    %v7590 = vrot.slane %v7588, 4
    %v7591 = vrot.slane %v5994, 5
    %v7592 = vsel %vm4485, %v7590, %v7591
    %v7593 = vrot.slane %v7399, 5
    %v7594 = vrot.slane %v7593, 4
    %v7595 = vrot.slane %v5996, 5
    %v7596 = vsel %vm4485, %v7594, %v7595
    %v7597 = vrot.slane %v7595, 4
    %v7598 = vrot.slane %v5997, 5
    %v7599 = vsel %vm4485, %v7597, %v7598
    %v7600 = vrot.slane %v7400, 5
    %v7601 = vrot.slane %v7600, 4
    %v7602 = vrot.slane %v5999, 5
    %v7603 = vsel %vm4485, %v7601, %v7602
    %v7604 = vrot.slane %v7602, 4
    %v7605 = vrot.slane %v6000, 5
    %v7606 = vsel %vm4485, %v7604, %v7605
    %v7607 = vrot.slane %v7401, 5
    %v7608 = vrot.slane %v7607, 4
    %v7609 = vrot.slane %v6002, 5
    %v7610 = vsel %vm4485, %v7608, %v7609
    %v7611 = vrot.slane %v7609, 4
    %v7612 = vrot.slane %v6003, 5
    %v7613 = vsel %vm4485, %v7611, %v7612
    %v7614 = vrot.slane %v7402, 5
    %v7615 = vrot.slane %v7614, 4
    %v7616 = vrot.slane %v6005, 5
    %v7617 = vsel %vm4485, %v7615, %v7616
    %v7618 = vrot.slane %v7616, 4
    %v7619 = vrot.slane %v6006, 5
    %v7620 = vsel %vm4485, %v7618, %v7619
    %v7621 = vrot.slane %v7403, 5
    %v7622 = vrot.slane %v7621, 4
    %v7623 = vrot.slane %v6008, 5
    %v7624 = vsel %vm4485, %v7622, %v7623
    %v7625 = vrot.slane %v7623, 4
    %v7626 = vrot.slane %v6009, 5
    %v7627 = vsel %vm4485, %v7625, %v7626
    %v7628 = vrot.slane %v7404, 5
    %v7629 = vrot.slane %v7628, 4
    %v7630 = vrot.slane %v6011, 5
    %v7631 = vsel %vm4485, %v7629, %v7630
    %v7632 = vrot.slane %v7630, 4
    %v7633 = vrot.slane %v6012, 5
    %v7634 = vsel %vm4485, %v7632, %v7633
    %v7635 = vrot.slane %v7405, 5
    %v7636 = vrot.slane %v7635, 4
    %v7637 = vrot.slane %v6014, 5
    %v7638 = vsel %vm4485, %v7636, %v7637
    %v7639 = vrot.slane %v7637, 4
    %v7640 = vrot.slane %v6015, 5
    %v7641 = vsel %vm4485, %v7639, %v7640
    %v7642 = vrot.slane %v7406, 5
    %v7643 = vrot.slane %v7642, 4
    %v7644 = vrot.slane %v6017, 5
    %v7645 = vsel %vm4485, %v7643, %v7644
    %v7646 = vrot.slane %v7644, 4
    %v7647 = vrot.slane %v6018, 5
    %v7648 = vsel %vm4485, %v7646, %v7647
    %v7649 = vrot.slane %v7407, 5
    %v7650 = vrot.slane %v7649, 4
    %v7651 = vrot.slane %v6020, 5
    %v7652 = vsel %vm4485, %v7650, %v7651
    %v7653 = vrot.slane %v7651, 4
    %v7654 = vrot.slane %v6021, 5
    %v7655 = vsel %vm4485, %v7653, %v7654
    %v7656 = vrot.slane %v7408, 5
    %v7657 = vrot.slane %v7656, 4
    %v7658 = vrot.slane %v6023, 5
    %v7659 = vsel %vm4485, %v7657, %v7658
    %v7660 = vrot.slane %v7658, 4
    %v7661 = vrot.slane %v6024, 5
    %v7662 = vsel %vm4485, %v7660, %v7661
    %v7663 = vrot.slane %v7409, 5
    %v7664 = vrot.slane %v7663, 4
    %v7665 = vrot.slane %v6026, 5
    %v7666 = vsel %vm4485, %v7664, %v7665
    %v7667 = vrot.slane %v7665, 4
    %v7668 = vrot.slane %v6027, 5
    %v7669 = vsel %vm4485, %v7667, %v7668
    %v7670 = vrot.slane %v7410, 5
    %v7671 = vrot.slane %v7670, 4
    %v7672 = vrot.slane %v6029, 5
    %v7673 = vsel %vm4485, %v7671, %v7672
    %v7674 = vrot.slane %v7672, 4
    %v7675 = vrot.slane %v6030, 5
    %v7676 = vsel %vm4485, %v7674, %v7675
    %v7677 = vrot.slane %v7411, 5
    %v7678 = vrot.slane %v7677, 4
    %v7679 = vrot.slane %v6032, 5
    %v7680 = vsel %vm4485, %v7678, %v7679
    %v7681 = vrot.slane %v7679, 4
    %v7682 = vrot.slane %v6033, 5
    %v7683 = vsel %vm4485, %v7681, %v7682
    %v7684 = vrot.slane %v7412, 5
    %v7685 = vrot.slane %v7684, 4
    %v7686 = vrot.slane %v6035, 5
    %v7687 = vsel %vm4485, %v7685, %v7686
    %v7688 = vrot.slane %v7686, 4
    %v7689 = vrot.slane %v6036, 5
    %v7690 = vsel %vm4485, %v7688, %v7689
    %v7691 = vrot.slane %v7413, 5
    %v7692 = vrot.slane %v7691, 4
    %v7693 = vrot.slane %v6038, 5
    %v7694 = vsel %vm4485, %v7692, %v7693
    %v7695 = vrot.slane %v7693, 4
    %v7696 = vrot.slane %v6039, 5
    %v7697 = vsel %vm4485, %v7695, %v7696
    %v7698 = vrot.slane %v7414, 5
    %v7699 = vrot.slane %v7698, 4
    %v7700 = vrot.slane %v6041, 5
    %v7701 = vsel %vm4485, %v7699, %v7700
    %v7702 = vrot.slane %v7700, 4
    %v7703 = vrot.slane %v6042, 5
    %v7704 = vsel %vm4485, %v7702, %v7703
    %v7705 = vrot.slane %v7415, 5
    %v7706 = vrot.slane %v7705, 4
    %v7707 = vrot.slane %v6044, 5
    %v7708 = vsel %vm4485, %v7706, %v7707
    %v7709 = vrot.slane %v7707, 4
    %v7710 = vrot.slane %v6045, 5
    %v7711 = vsel %vm4485, %v7709, %v7710
    %v7712 = vrot.slane %v7416, 5
    %v7713 = vrot.slane %v7712, 4
    %v7714 = vrot.slane %v6047, 5
    %v7715 = vsel %vm4485, %v7713, %v7714
    %v7716 = vrot.slane %v7714, 4
    %v7717 = vrot.slane %v6048, 5
    %v7718 = vsel %vm4485, %v7716, %v7717
    %v7719 = vrot.slane %v7417, 5
    %v7720 = vrot.slane %v7719, 4
    %v7721 = vrot.slane %v6050, 5
    %v7722 = vsel %vm4485, %v7720, %v7721
    %v7723 = vrot.slane %v7721, 4
    %v7724 = vrot.slane %v6051, 5
    %v7725 = vsel %vm4485, %v7723, %v7724
    %v7726 = vrot.slane %v7418, 5
    %v7727 = vrot.slane %v7726, 4
    %v7728 = vrot.slane %v6053, 5
    %v7729 = vsel %vm4485, %v7727, %v7728
    %v7730 = vrot.slane %v7728, 4
    %v7731 = vrot.slane %v6054, 5
    %v7732 = vsel %vm4485, %v7730, %v7731
    %v7733 = vrot.slane %v7419, 5
    %v7734 = vrot.slane %v7733, 4
    %v7735 = vrot.slane %v6056, 5
    %v7736 = vsel %vm4485, %v7734, %v7735
    %v7737 = vrot.slane %v7735, 4
    %v7738 = vrot.slane %v6057, 5
    %v7739 = vsel %vm4485, %v7737, %v7738
    %s7740 = scalar_lea.vmem [#allocation7], 80
    %v7741 = vld [vmem:[%s7740] sm:$0xf]
    %v7742 = vld [vmem:[%s7740 + $0x4] sm:$0xf]
    %v7743 = vld [vmem:[%s7740 + $0x8] sm:$0xf]
    %v7744 = vld [vmem:[%s7740 + $0xc] sm:$0xf]
    %v7745 = vunpack.c.l.b16 %v7519
    %v7746 = vunpack.c.l.b16 %v7522
    %v7747 = vunpack.c.l.b16 %v7526
    %v7748 = vunpack.c.l.b16 %v7529
    %v7749 = vunpack.c.l.b16 %v7533
    %v7750 = vunpack.c.l.b16 %v7536
    %v7751 = vunpack.c.l.b16 %v7540
    %v7752 = vunpack.c.l.b16 %v7543
    %v7753 = vunpack.c.l.b16 %v7547
    %v7754 = vunpack.c.l.b16 %v7550
    %v7755 = vunpack.c.l.b16 %v7554
    %v7756 = vunpack.c.l.b16 %v7557
    %v7757 = vunpack.c.l.b16 %v7561
    %v7758 = vunpack.c.l.b16 %v7564
    %v7759 = vunpack.c.l.b16 %v7568
    %v7760 = vunpack.c.l.b16 %v7571
    %v7761 = vunpack.c.l.b16 %v7575
    %v7762 = vunpack.c.l.b16 %v7578
    %v7763 = vunpack.c.l.b16 %v7582
    %v7764 = vunpack.c.l.b16 %v7585
    %v7765 = vunpack.c.l.b16 %v7589
    %v7766 = vunpack.c.l.b16 %v7592
    %v7767 = vunpack.c.l.b16 %v7596
    %v7768 = vunpack.c.l.b16 %v7599
    %v7769 = vunpack.c.l.b16 %v7603
    %v7770 = vunpack.c.l.b16 %v7606
    %v7771 = vunpack.c.l.b16 %v7610
    %v7772 = vunpack.c.l.b16 %v7613
    %v7773 = vunpack.c.l.b16 %v7617
    %v7774 = vunpack.c.l.b16 %v7620
    %v7775 = vunpack.c.l.b16 %v7624
    %v7776 = vunpack.c.l.b16 %v7627
    %v7777 = vunpack.c.l.b16 %v7631
    %v7778 = vunpack.c.l.b16 %v7634
    %v7779 = vunpack.c.l.b16 %v7638
    %v7780 = vunpack.c.l.b16 %v7641
    %v7781 = vunpack.c.l.b16 %v7645
    %v7782 = vunpack.c.l.b16 %v7648
    %v7783 = vunpack.c.l.b16 %v7652
    %v7784 = vunpack.c.l.b16 %v7655
    %v7785 = vunpack.c.l.b16 %v7659
    %v7786 = vunpack.c.l.b16 %v7662
    %v7787 = vunpack.c.l.b16 %v7666
    %v7788 = vunpack.c.l.b16 %v7669
    %v7789 = vunpack.c.l.b16 %v7673
    %v7790 = vunpack.c.l.b16 %v7676
    %v7791 = vunpack.c.l.b16 %v7680
    %v7792 = vunpack.c.l.b16 %v7683
    %v7793 = vunpack.c.l.b16 %v7687
    %v7794 = vunpack.c.l.b16 %v7690
    %v7795 = vunpack.c.l.b16 %v7694
    %v7796 = vunpack.c.l.b16 %v7697
    %v7797 = vunpack.c.l.b16 %v7701
    %v7798 = vunpack.c.l.b16 %v7704
    %v7799 = vunpack.c.l.b16 %v7708
    %v7800 = vunpack.c.l.b16 %v7711
    %v7801 = vunpack.c.l.b16 %v7715
    %v7802 = vunpack.c.l.b16 %v7718
    %v7803 = vunpack.c.l.b16 %v7722
    %v7804 = vunpack.c.l.b16 %v7725
    %v7805 = vunpack.c.l.b16 %v7729
    %v7806 = vunpack.c.l.b16 %v7732
    %v7807 = vunpack.c.l.b16 %v7736
    %v7808 = vunpack.c.l.b16 %v7739
    %v7809 = vpack.c.b16 %v7746, %v7745
    %v7810 = vpack.c.b16 %v7748, %v7747
    %v7811 = vpack.c.b16 %v7750, %v7749
    %v7812 = vpack.c.b16 %v7752, %v7751
    %v7813 = vpack.c.b16 %v7754, %v7753
    %v7814 = vpack.c.b16 %v7756, %v7755
    %v7815 = vpack.c.b16 %v7758, %v7757
    %v7816 = vpack.c.b16 %v7760, %v7759
    %v7817 = vpack.c.b16 %v7762, %v7761
    %v7818 = vpack.c.b16 %v7764, %v7763
    %v7819 = vpack.c.b16 %v7766, %v7765
    %v7820 = vpack.c.b16 %v7768, %v7767
    %v7821 = vpack.c.b16 %v7770, %v7769
    %v7822 = vpack.c.b16 %v7772, %v7771
    %v7823 = vpack.c.b16 %v7774, %v7773
    %v7824 = vpack.c.b16 %v7776, %v7775
    %v7825 = vpack.c.b16 %v7778, %v7777
    %v7826 = vpack.c.b16 %v7780, %v7779
    %v7827 = vpack.c.b16 %v7782, %v7781
    %v7828 = vpack.c.b16 %v7784, %v7783
    %v7829 = vpack.c.b16 %v7786, %v7785
    %v7830 = vpack.c.b16 %v7788, %v7787
    %v7831 = vpack.c.b16 %v7790, %v7789
    %v7832 = vpack.c.b16 %v7792, %v7791
    %v7833 = vpack.c.b16 %v7794, %v7793
    %v7834 = vpack.c.b16 %v7796, %v7795
    %v7835 = vpack.c.b16 %v7798, %v7797
    %v7836 = vpack.c.b16 %v7800, %v7799
    %v7837 = vpack.c.b16 %v7802, %v7801
    %v7838 = vpack.c.b16 %v7804, %v7803
    %v7839 = vpack.c.b16 %v7806, %v7805
    %v7840 = vpack.c.b16 %v7808, %v7807
    %v7845 = vunpack.c.l.b16 %v7741
    %v7846 = vunpack.c.l.b16 %v7742
    %v7847 = vunpack.c.l.b16 %v7743
    %v7848 = vunpack.c.l.b16 %v7744
    %v7849 = vpack.c.b16 %v7846, %v7845
    %v7850 = vpack.c.b16 %v7848, %v7847
    %v7854 = vsel %vm523, %v7809, 0
    %v7857 = vsel %vm523, %v7810, 0
    %v7860 = vsel %vm523, %v7811, 0
    %v7863 = vsel %vm523, %v7812, 0
    %v7866 = vsel %vm523, %v7813, 0
    %v7869 = vsel %vm523, %v7814, 0
    %v7872 = vsel %vm523, %v7815, 0
    %v7875 = vsel %vm523, %v7816, 0
    %v7878 = vsel %vm523, %v7817, 0
    %v7881 = vsel %vm523, %v7818, 0
    %v7884 = vsel %vm523, %v7819, 0
    %v7887 = vsel %vm523, %v7820, 0
    %v7890 = vsel %vm523, %v7821, 0
    %v7893 = vsel %vm523, %v7822, 0
    %v7896 = vsel %vm523, %v7823, 0
    %v7899 = vsel %vm523, %v7824, 0
    %v7902 = vsel %vm523, %v7825, 0
    %v7905 = vsel %vm523, %v7826, 0
    %v7908 = vsel %vm523, %v7827, 0
    %v7911 = vsel %vm523, %v7828, 0
    %v7914 = vsel %vm523, %v7829, 0
    %v7917 = vsel %vm523, %v7830, 0
    %v7920 = vsel %vm523, %v7831, 0
    %v7923 = vsel %vm523, %v7832, 0
    %v7926 = vsel %vm523, %v7833, 0
    %v7929 = vsel %vm523, %v7834, 0
    %v7932 = vsel %vm523, %v7835, 0
    %v7935 = vsel %vm523, %v7836, 0
    %v7938 = vsel %vm523, %v7837, 0
    %v7941 = vsel %vm523, %v7838, 0
    %v7944 = vsel %vm523, %v7839, 0
    %v7947 = vsel %vm523, %v7840, 0
    %7949 = vmatprep.subr.bf16.mxu0 0
    %7950 = vmatpush1.bf16.msra.mxu0 %v7849
    %7951 = vmatprep.subr.bf16.mxu0 0
    %7952 = vmatpush1.bf16.msra.mxu0 %v7850
    %7953 = vmatprep.subr.bf16.mxu0 0
    %7954 = vmatpush1.bf16.msra.mxu0 0
    %7955 = vmatprep.subr.bf16.mxu0 0
    %7956 = vmatpush1.bf16.msra.mxu0 0
    %7957 = vmatprep.subr.bf16.mxu0 0
    %7958 = vmatpush1.bf16.msra.mxu0 0
    %7959 = vmatprep.subr.bf16.mxu0 0
    %7960 = vmatpush1.bf16.msra.mxu0 0
    %7961 = vmatprep.subr.bf16.mxu0 0
    %7962 = vmatpush1.bf16.msra.mxu0 0
    %7963 = vmatprep.subr.bf16.mxu0 0
    %7964 = vmatpush1.bf16.msra.mxu0 0
    %7965 = vmatprep.subr.bf16.mxu0 0
    %7966 = vmatpush1.bf16.msra.mxu0 0
    %7967 = vmatprep.subr.bf16.mxu0 0
    %7968 = vmatpush1.bf16.msra.mxu0 0
    %7969 = vmatprep.subr.bf16.mxu0 0
    %7970 = vmatpush1.bf16.msra.mxu0 0
    %7971 = vmatprep.subr.bf16.mxu0 0
    %7972 = vmatpush1.bf16.msra.mxu0 0
    %7973 = vmatprep.subr.bf16.mxu0 0
    %7974 = vmatpush1.bf16.msra.mxu0 0
    %7975 = vmatprep.subr.bf16.mxu0 0
    %7976 = vmatpush1.bf16.msra.mxu0 0
    %7977 = vmatprep.subr.bf16.mxu0 0
    %7978 = vmatpush1.bf16.msra.mxu0 0
    %7979 = vmatprep.subr.bf16.mxu0 0
    %7980 = vmatpush1.bf16.msra.mxu0 0
    %7981 = vmatprep.mubr.bf16.mxu0 0
    %7982 = vmatmul.mubr.bf16.gmra.mrb[0].mxu0 %v7854
    %v7983 = vpop.f32.mrb[0].mxu0
    %v7984 = vadd.f32 0.0, %v7983
    %v7985 = vpop.f32.mrb[0].mxu0
    %v7986 = vpop.f32.mrb[0].mxu0
    %v7987 = vadd.f32 0.0, %v7986
    %v7988 = vpop.f32.mrb[0].mxu0
    %7989 = vmatprep.mubr.bf16.mxu0 0
    %7990 = vmatmul.mubr.bf16.gmra.mrb[0].mxu0 %v7857
    %v7991 = vpop.f32.mrb[0].mxu0
    %v7992 = vadd.f32 0.0, %v7991
    %v7993 = vpop.f32.mrb[0].mxu0
    %v7994 = vpop.f32.mrb[0].mxu0
    %v7995 = vadd.f32 0.0, %v7994
    %v7996 = vpop.f32.mrb[0].mxu0
    %7997 = vmatprep.mubr.bf16.mxu0 0
    %7998 = vmatmul.mubr.bf16.gmra.mrb[0].mxu0 %v7860
    %v7999 = vpop.f32.mrb[0].mxu0
    %v8000 = vadd.f32 0.0, %v7999
    %v8001 = vpop.f32.mrb[0].mxu0
    %v8002 = vpop.f32.mrb[0].mxu0
    %v8003 = vadd.f32 0.0, %v8002
    %v8004 = vpop.f32.mrb[0].mxu0
    %8005 = vmatprep.mubr.bf16.mxu0 0
    %8006 = vmatmul.mubr.bf16.gmra.mrb[0].mxu0 %v7863
    %v8007 = vpop.f32.mrb[0].mxu0
    %v8008 = vadd.f32 0.0, %v8007
    %v8009 = vpop.f32.mrb[0].mxu0
    %v8010 = vpop.f32.mrb[0].mxu0
    %v8011 = vadd.f32 0.0, %v8010
    %v8012 = vpop.f32.mrb[0].mxu0
    %8013 = vmatprep.mubr.bf16.mxu0 0
    %8014 = vmatmul.mubr.bf16.gmra.mrb[0].mxu0 %v7866
    %v8015 = vpop.f32.mrb[0].mxu0
    %v8016 = vadd.f32 0.0, %v8015
    %v8017 = vpop.f32.mrb[0].mxu0
    %v8018 = vpop.f32.mrb[0].mxu0
    %v8019 = vadd.f32 0.0, %v8018
    %v8020 = vpop.f32.mrb[0].mxu0
    %8021 = vmatprep.mubr.bf16.mxu0 0
    %8022 = vmatmul.mubr.bf16.gmra.mrb[0].mxu0 %v7869
    %v8023 = vpop.f32.mrb[0].mxu0
    %v8024 = vadd.f32 0.0, %v8023
    %v8025 = vpop.f32.mrb[0].mxu0
    %v8026 = vpop.f32.mrb[0].mxu0
    %v8027 = vadd.f32 0.0, %v8026
    %v8028 = vpop.f32.mrb[0].mxu0
    %8029 = vmatprep.mubr.bf16.mxu0 0
    %8030 = vmatmul.mubr.bf16.gmra.mrb[0].mxu0 %v7872
    %v8031 = vpop.f32.mrb[0].mxu0
    %v8032 = vadd.f32 0.0, %v8031
    %v8033 = vpop.f32.mrb[0].mxu0
    %v8034 = vpop.f32.mrb[0].mxu0
    %v8035 = vadd.f32 0.0, %v8034
    %v8036 = vpop.f32.mrb[0].mxu0
    %8037 = vmatprep.mubr.bf16.mxu0 0
    %8038 = vmatmul.mubr.bf16.gmra.mrb[0].mxu0 %v7875
    %v8039 = vpop.f32.mrb[0].mxu0
    %v8040 = vadd.f32 0.0, %v8039
    %v8041 = vpop.f32.mrb[0].mxu0
    %v8042 = vpop.f32.mrb[0].mxu0
    %v8043 = vadd.f32 0.0, %v8042
    %v8044 = vpop.f32.mrb[0].mxu0
    %8045 = vmatprep.mubr.bf16.mxu0 0
    %8046 = vmatmul.mubr.bf16.gmra.mrb[0].mxu0 %v7878
    %v8047 = vpop.f32.mrb[0].mxu0
    %v8048 = vadd.f32 0.0, %v8047
    %v8049 = vpop.f32.mrb[0].mxu0
    %v8050 = vpop.f32.mrb[0].mxu0
    %v8051 = vadd.f32 0.0, %v8050
    %v8052 = vpop.f32.mrb[0].mxu0
    %8053 = vmatprep.mubr.bf16.mxu0 0
    %8054 = vmatmul.mubr.bf16.gmra.mrb[0].mxu0 %v7881
    %v8055 = vpop.f32.mrb[0].mxu0
    %v8056 = vadd.f32 0.0, %v8055
    %v8057 = vpop.f32.mrb[0].mxu0
    %v8058 = vpop.f32.mrb[0].mxu0
    %v8059 = vadd.f32 0.0, %v8058
    %v8060 = vpop.f32.mrb[0].mxu0
    %8061 = vmatprep.mubr.bf16.mxu0 0
    %8062 = vmatmul.mubr.bf16.gmra.mrb[0].mxu0 %v7884
    %v8063 = vpop.f32.mrb[0].mxu0
    %v8064 = vadd.f32 0.0, %v8063
    %v8065 = vpop.f32.mrb[0].mxu0
    %v8066 = vpop.f32.mrb[0].mxu0
    %v8067 = vadd.f32 0.0, %v8066
    %v8068 = vpop.f32.mrb[0].mxu0
    %8069 = vmatprep.mubr.bf16.mxu0 0
    %8070 = vmatmul.mubr.bf16.gmra.mrb[0].mxu0 %v7887
    %v8071 = vpop.f32.mrb[0].mxu0
    %v8072 = vadd.f32 0.0, %v8071
    %v8073 = vpop.f32.mrb[0].mxu0
    %v8074 = vpop.f32.mrb[0].mxu0
    %v8075 = vadd.f32 0.0, %v8074
    %v8076 = vpop.f32.mrb[0].mxu0
    %8077 = vmatprep.mubr.bf16.mxu0 0
    %8078 = vmatmul.mubr.bf16.gmra.mrb[0].mxu0 %v7890
    %v8079 = vpop.f32.mrb[0].mxu0
    %v8080 = vadd.f32 0.0, %v8079
    %v8081 = vpop.f32.mrb[0].mxu0
    %v8082 = vpop.f32.mrb[0].mxu0
    %v8083 = vadd.f32 0.0, %v8082
    %v8084 = vpop.f32.mrb[0].mxu0
    %8085 = vmatprep.mubr.bf16.mxu0 0
    %8086 = vmatmul.mubr.bf16.gmra.mrb[0].mxu0 %v7893
    %v8087 = vpop.f32.mrb[0].mxu0
    %v8088 = vadd.f32 0.0, %v8087
    %v8089 = vpop.f32.mrb[0].mxu0
    %v8090 = vpop.f32.mrb[0].mxu0
    %v8091 = vadd.f32 0.0, %v8090
    %v8092 = vpop.f32.mrb[0].mxu0
    %8093 = vmatprep.mubr.bf16.mxu0 0
    %8094 = vmatmul.mubr.bf16.gmra.mrb[0].mxu0 %v7896
    %v8095 = vpop.f32.mrb[0].mxu0
    %v8096 = vadd.f32 0.0, %v8095
    %v8097 = vpop.f32.mrb[0].mxu0
    %v8098 = vpop.f32.mrb[0].mxu0
    %v8099 = vadd.f32 0.0, %v8098
    %v8100 = vpop.f32.mrb[0].mxu0
    %8101 = vmatprep.mubr.bf16.mxu0 0
    %8102 = vmatmul.mubr.bf16.gmra.mrb[0].mxu0 %v7899
    %v8103 = vpop.f32.mrb[0].mxu0
    %v8104 = vadd.f32 0.0, %v8103
    %v8105 = vpop.f32.mrb[0].mxu0
    %v8106 = vpop.f32.mrb[0].mxu0
    %v8107 = vadd.f32 0.0, %v8106
    %v8108 = vpop.f32.mrb[0].mxu0
    %8109 = vmatprep.mubr.bf16.mxu0 0
    %8110 = vmatmul.mubr.bf16.gmra.mrb[0].mxu0 %v7902
    %v8111 = vpop.f32.mrb[0].mxu0
    %v8112 = vadd.f32 0.0, %v8111
    %v8113 = vpop.f32.mrb[0].mxu0
    %v8114 = vpop.f32.mrb[0].mxu0
    %v8115 = vadd.f32 0.0, %v8114
    %v8116 = vpop.f32.mrb[0].mxu0
    %8117 = vmatprep.mubr.bf16.mxu0 0
    %8118 = vmatmul.mubr.bf16.gmra.mrb[0].mxu0 %v7905
    %v8119 = vpop.f32.mrb[0].mxu0
    %v8120 = vadd.f32 0.0, %v8119
    %v8121 = vpop.f32.mrb[0].mxu0
    %v8122 = vpop.f32.mrb[0].mxu0
    %v8123 = vadd.f32 0.0, %v8122
    %v8124 = vpop.f32.mrb[0].mxu0
    %8125 = vmatprep.mubr.bf16.mxu0 0
    %8126 = vmatmul.mubr.bf16.gmra.mrb[0].mxu0 %v7908
    %v8127 = vpop.f32.mrb[0].mxu0
    %v8128 = vadd.f32 0.0, %v8127
    %v8129 = vpop.f32.mrb[0].mxu0
    %v8130 = vpop.f32.mrb[0].mxu0
    %v8131 = vadd.f32 0.0, %v8130
    %v8132 = vpop.f32.mrb[0].mxu0
    %8133 = vmatprep.mubr.bf16.mxu0 0
    %8134 = vmatmul.mubr.bf16.gmra.mrb[0].mxu0 %v7911
    %v8135 = vpop.f32.mrb[0].mxu0
    %v8136 = vadd.f32 0.0, %v8135
    %v8137 = vpop.f32.mrb[0].mxu0
    %v8138 = vpop.f32.mrb[0].mxu0
    %v8139 = vadd.f32 0.0, %v8138
    %v8140 = vpop.f32.mrb[0].mxu0
    %8141 = vmatprep.mubr.bf16.mxu0 0
    %8142 = vmatmul.mubr.bf16.gmra.mrb[0].mxu0 %v7914
    %v8143 = vpop.f32.mrb[0].mxu0
    %v8144 = vadd.f32 0.0, %v8143
    %v8145 = vpop.f32.mrb[0].mxu0
    %v8146 = vpop.f32.mrb[0].mxu0
    %v8147 = vadd.f32 0.0, %v8146
    %v8148 = vpop.f32.mrb[0].mxu0
    %8149 = vmatprep.mubr.bf16.mxu0 0
    %8150 = vmatmul.mubr.bf16.gmra.mrb[0].mxu0 %v7917
    %v8151 = vpop.f32.mrb[0].mxu0
    %v8152 = vadd.f32 0.0, %v8151
    %v8153 = vpop.f32.mrb[0].mxu0
    %v8154 = vpop.f32.mrb[0].mxu0
    %v8155 = vadd.f32 0.0, %v8154
    %v8156 = vpop.f32.mrb[0].mxu0
    %8157 = vmatprep.mubr.bf16.mxu0 0
    %8158 = vmatmul.mubr.bf16.gmra.mrb[0].mxu0 %v7920
    %v8159 = vpop.f32.mrb[0].mxu0
    %v8160 = vadd.f32 0.0, %v8159
    %v8161 = vpop.f32.mrb[0].mxu0
    %v8162 = vpop.f32.mrb[0].mxu0
    %v8163 = vadd.f32 0.0, %v8162
    %v8164 = vpop.f32.mrb[0].mxu0
    %8165 = vmatprep.mubr.bf16.mxu0 0
    %8166 = vmatmul.mubr.bf16.gmra.mrb[0].mxu0 %v7923
    %v8167 = vpop.f32.mrb[0].mxu0
    %v8168 = vadd.f32 0.0, %v8167
    %v8169 = vpop.f32.mrb[0].mxu0
    %v8170 = vpop.f32.mrb[0].mxu0
    %v8171 = vadd.f32 0.0, %v8170
    %v8172 = vpop.f32.mrb[0].mxu0
    %8173 = vmatprep.mubr.bf16.mxu0 0
    %8174 = vmatmul.mubr.bf16.gmra.mrb[0].mxu0 %v7926
    %v8175 = vpop.f32.mrb[0].mxu0
    %v8176 = vadd.f32 0.0, %v8175
    %v8177 = vpop.f32.mrb[0].mxu0
    %v8178 = vpop.f32.mrb[0].mxu0
    %v8179 = vadd.f32 0.0, %v8178
    %v8180 = vpop.f32.mrb[0].mxu0
    %8181 = vmatprep.mubr.bf16.mxu0 0
    %8182 = vmatmul.mubr.bf16.gmra.mrb[0].mxu0 %v7929
    %v8183 = vpop.f32.mrb[0].mxu0
    %v8184 = vadd.f32 0.0, %v8183
    %v8185 = vpop.f32.mrb[0].mxu0
    %v8186 = vpop.f32.mrb[0].mxu0
    %v8187 = vadd.f32 0.0, %v8186
    %v8188 = vpop.f32.mrb[0].mxu0
    %8189 = vmatprep.mubr.bf16.mxu0 0
    %8190 = vmatmul.mubr.bf16.gmra.mrb[0].mxu0 %v7932
    %v8191 = vpop.f32.mrb[0].mxu0
    %v8192 = vadd.f32 0.0, %v8191
    %v8193 = vpop.f32.mrb[0].mxu0
    %v8194 = vpop.f32.mrb[0].mxu0
    %v8195 = vadd.f32 0.0, %v8194
    %v8196 = vpop.f32.mrb[0].mxu0
    %8197 = vmatprep.mubr.bf16.mxu0 0
    %8198 = vmatmul.mubr.bf16.gmra.mrb[0].mxu0 %v7935
    %v8199 = vpop.f32.mrb[0].mxu0
    %v8200 = vadd.f32 0.0, %v8199
    %v8201 = vpop.f32.mrb[0].mxu0
    %v8202 = vpop.f32.mrb[0].mxu0
    %v8203 = vadd.f32 0.0, %v8202
    %v8204 = vpop.f32.mrb[0].mxu0
    %8205 = vmatprep.mubr.bf16.mxu0 0
    %8206 = vmatmul.mubr.bf16.gmra.mrb[0].mxu0 %v7938
    %v8207 = vpop.f32.mrb[0].mxu0
    %v8208 = vadd.f32 0.0, %v8207
    %v8209 = vpop.f32.mrb[0].mxu0
    %v8210 = vpop.f32.mrb[0].mxu0
    %v8211 = vadd.f32 0.0, %v8210
    %v8212 = vpop.f32.mrb[0].mxu0
    %8213 = vmatprep.mubr.bf16.mxu0 0
    %8214 = vmatmul.mubr.bf16.gmra.mrb[0].mxu0 %v7941
    %v8215 = vpop.f32.mrb[0].mxu0
    %v8216 = vadd.f32 0.0, %v8215
    %v8217 = vpop.f32.mrb[0].mxu0
    %v8218 = vpop.f32.mrb[0].mxu0
    %v8219 = vadd.f32 0.0, %v8218
    %v8220 = vpop.f32.mrb[0].mxu0
    %8221 = vmatprep.mubr.bf16.mxu0 0
    %8222 = vmatmul.mubr.bf16.gmra.mrb[0].mxu0 %v7944
    %v8223 = vpop.f32.mrb[0].mxu0
    %v8224 = vadd.f32 0.0, %v8223
    %v8225 = vpop.f32.mrb[0].mxu0
    %v8226 = vpop.f32.mrb[0].mxu0
    %v8227 = vadd.f32 0.0, %v8226
    %v8228 = vpop.f32.mrb[0].mxu0
    %8229 = vmatprep.mubr.bf16.mxu0 0
    %8230 = vmatmul.mubr.bf16.gmra.mrb[0].mxu0 %v7947
    %v8231 = vpop.f32.mrb[0].mxu0
    %v8232 = vadd.f32 0.0, %v8231
    %v8233 = vpop.f32.mrb[0].mxu0
    %v8234 = vpop.f32.mrb[0].mxu0
    %v8235 = vadd.f32 0.0, %v8234
    %v8236 = vpop.f32.mrb[0].mxu0
    %8237 = vdwg.mxu0
    %v8238 = vadd.f32 %v7324, %v7984
    %v8239 = vadd.f32 %v7325, %v7987
    %v8240 = vadd.f32 %v7326, %v7992
    %v8241 = vadd.f32 %v7327, %v7995
    %v8242 = vadd.f32 %v7328, %v8000
    %v8243 = vadd.f32 %v7329, %v8003
    %v8244 = vadd.f32 %v7330, %v8008
    %v8245 = vadd.f32 %v7331, %v8011
    %v8246 = vadd.f32 %v7332, %v8016
    %v8247 = vadd.f32 %v7333, %v8019
    %v8248 = vadd.f32 %v7334, %v8024
    %v8249 = vadd.f32 %v7335, %v8027
    %v8250 = vadd.f32 %v7336, %v8032
    %v8251 = vadd.f32 %v7337, %v8035
    %v8252 = vadd.f32 %v7338, %v8040
    %v8253 = vadd.f32 %v7339, %v8043
    %v8254 = vadd.f32 %v7340, %v8048
    %v8255 = vadd.f32 %v7341, %v8051
    %v8256 = vadd.f32 %v7342, %v8056
    %v8257 = vadd.f32 %v7343, %v8059
    %v8258 = vadd.f32 %v7344, %v8064
    %v8259 = vadd.f32 %v7345, %v8067
    %v8260 = vadd.f32 %v7346, %v8072
    %v8261 = vadd.f32 %v7347, %v8075
    %v8262 = vadd.f32 %v7348, %v8080
    %v8263 = vadd.f32 %v7349, %v8083
    %v8264 = vadd.f32 %v7350, %v8088
    %v8265 = vadd.f32 %v7351, %v8091
    %v8266 = vadd.f32 %v7352, %v8096
    %v8267 = vadd.f32 %v7353, %v8099
    %v8268 = vadd.f32 %v7354, %v8104
    %v8269 = vadd.f32 %v7355, %v8107
    %v8270 = vadd.f32 %v7356, %v8112
    %v8271 = vadd.f32 %v7357, %v8115
    %v8272 = vadd.f32 %v7358, %v8120
    %v8273 = vadd.f32 %v7359, %v8123
    %v8274 = vadd.f32 %v7360, %v8128
    %v8275 = vadd.f32 %v7361, %v8131
    %v8276 = vadd.f32 %v7362, %v8136
    %v8277 = vadd.f32 %v7363, %v8139
    %v8278 = vadd.f32 %v7364, %v8144
    %v8279 = vadd.f32 %v7365, %v8147
    %v8280 = vadd.f32 %v7366, %v8152
    %v8281 = vadd.f32 %v7367, %v8155
    %v8282 = vadd.f32 %v7368, %v8160
    %v8283 = vadd.f32 %v7369, %v8163
    %v8284 = vadd.f32 %v7370, %v8168
    %v8285 = vadd.f32 %v7371, %v8171
    %v8286 = vadd.f32 %v7372, %v8176
    %v8287 = vadd.f32 %v7373, %v8179
    %v8288 = vadd.f32 %v7374, %v8184
    %v8289 = vadd.f32 %v7375, %v8187
    %v8290 = vadd.f32 %v7376, %v8192
    %v8291 = vadd.f32 %v7377, %v8195
    %v8292 = vadd.f32 %v7378, %v8200
    %v8293 = vadd.f32 %v7379, %v8203
    %v8294 = vadd.f32 %v7380, %v8208
    %v8295 = vadd.f32 %v7381, %v8211
    %v8296 = vadd.f32 %v7382, %v8216
    %v8297 = vadd.f32 %v7383, %v8219
    %v8298 = vadd.f32 %v7384, %v8224
    %v8299 = vadd.f32 %v7385, %v8227
    %v8300 = vadd.f32 %v7386, %v8232
    %v8301 = vadd.f32 %v7387, %v8235
    %s8302 = scalar_lea.vmem [#allocation2], 24
    %v8303 = vld [vmem:[%s8302] sm:$0xf]
    %v8304 = vld [vmem:[%s8302 + $0x4] sm:$0xf]
    %v8305 = vld [vmem:[%s8302 + $0xc] sm:$0xf]
    %v8306 = vld [vmem:[%s8302 + $0x10] sm:$0xf]
    %v8307 = vld [vmem:[%s8302 + $0x18] sm:$0xf]
    %v8308 = vld [vmem:[%s8302 + $0x1c] sm:$0xf]
    %v8309 = vld [vmem:[%s8302 + $0x24] sm:$0xf]
    %v8310 = vld [vmem:[%s8302 + $0x28] sm:$0xf]
    %v8311 = vld [vmem:[%s8302 + $0x30] sm:$0xf]
    %v8312 = vld [vmem:[%s8302 + $0x34] sm:$0xf]
    %v8313 = vld [vmem:[%s8302 + $0x3c] sm:$0xf]
    %v8314 = vld [vmem:[%s8302 + $0x40] sm:$0xf]
    %v8315 = vld [vmem:[%s8302 + $0x48] sm:$0xf]
    %v8316 = vld [vmem:[%s8302 + $0x4c] sm:$0xf]
    %v8317 = vld [vmem:[%s8302 + $0x54] sm:$0xf]
    %v8318 = vld [vmem:[%s8302 + $0x58] sm:$0xf]
    %v8319 = vld [vmem:[%s8302 + $0x60] sm:$0xf]
    %v8320 = vld [vmem:[%s8302 + $0x64] sm:$0xf]
    %v8321 = vld [vmem:[%s8302 + $0x6c] sm:$0xf]
    %v8322 = vld [vmem:[%s8302 + $0x70] sm:$0xf]
    %v8323 = vld [vmem:[%s8302 + $0x78] sm:$0xf]
    %v8324 = vld [vmem:[%s8302 + $0x7c] sm:$0xf]
    %v8325 = vld [vmem:[%s8302 + $0x84] sm:$0xf]
    %v8326 = vld [vmem:[%s8302 + $0x88] sm:$0xf]
    %v8327 = vld [vmem:[%s8302 + $0x90] sm:$0xf]
    %v8328 = vld [vmem:[%s8302 + $0x94] sm:$0xf]
    %v8329 = vld [vmem:[%s8302 + $0x9c] sm:$0xf]
    %v8330 = vld [vmem:[%s8302 + $0xa0] sm:$0xf]
    %v8331 = vld [vmem:[%s8302 + $0xa8] sm:$0xf]
    %v8332 = vld [vmem:[%s8302 + $0xac] sm:$0xf]
    %v8333 = vld [vmem:[%s8302 + $0xb4] sm:$0xf]
    %v8334 = vld [vmem:[%s8302 + $0xb8] sm:$0xf]
    %v8335 = vld [vmem:[%s8302 + $0xd8] sm:$0xf]
    %v8336 = vld [vmem:[%s8302 + $0xdc] sm:$0xf]
    %v8337 = vld [vmem:[%s8302 + $0xe4] sm:$0xf]
    %v8338 = vld [vmem:[%s8302 + $0xe8] sm:$0xf]
    %v8339 = vld [vmem:[%s8302 + $0xf0] sm:$0xf]
    %v8340 = vld [vmem:[%s8302 + $0xf4] sm:$0xf]
    %v8341 = vld [vmem:[%s8302 + $0xfc] sm:$0xf]
    %v8342 = vld [vmem:[%s8302 + $0x100] sm:$0xf]
    %v8343 = vld [vmem:[%s8302 + $0x108] sm:$0xf]
    %v8344 = vld [vmem:[%s8302 + $0x10c] sm:$0xf]
    %v8345 = vld [vmem:[%s8302 + $0x114] sm:$0xf]
    %v8346 = vld [vmem:[%s8302 + $0x118] sm:$0xf]
    %v8347 = vld [vmem:[%s8302 + $0x120] sm:$0xf]
    %v8348 = vld [vmem:[%s8302 + $0x124] sm:$0xf]
    %v8349 = vld [vmem:[%s8302 + $0x12c] sm:$0xf]
    %v8350 = vld [vmem:[%s8302 + $0x130] sm:$0xf]
    %v8351 = vld [vmem:[%s8302 + $0x138] sm:$0xf]
    %v8352 = vld [vmem:[%s8302 + $0x13c] sm:$0xf]
    %v8353 = vld [vmem:[%s8302 + $0x144] sm:$0xf]
    %v8354 = vld [vmem:[%s8302 + $0x148] sm:$0xf]
    %v8355 = vld [vmem:[%s8302 + $0x150] sm:$0xf]
    %v8356 = vld [vmem:[%s8302 + $0x154] sm:$0xf]
    %v8357 = vld [vmem:[%s8302 + $0x15c] sm:$0xf]
    %v8358 = vld [vmem:[%s8302 + $0x160] sm:$0xf]
    %v8359 = vld [vmem:[%s8302 + $0x168] sm:$0xf]
    %v8360 = vld [vmem:[%s8302 + $0x16c] sm:$0xf]
    %v8361 = vld [vmem:[%s8302 + $0x174] sm:$0xf]
    %v8362 = vld [vmem:[%s8302 + $0x178] sm:$0xf]
    %v8363 = vld [vmem:[%s8302 + $0x180] sm:$0xf]
    %v8364 = vld [vmem:[%s8302 + $0x184] sm:$0xf]
    %v8365 = vld [vmem:[%s8302 + $0x18c] sm:$0xf]
    %v8366 = vld [vmem:[%s8302 + $0x190] sm:$0xf]
    %s8367 = scalar_lea.vmem [#allocation7], 96
    %v8368 = vld [vmem:[%s8367] sm:$0xf]
    %v8369 = vld [vmem:[%s8367 + $0x4] sm:$0xf]
    %v8370 = vld [vmem:[%s8367 + $0x8] sm:$0xf]
    %v8371 = vld [vmem:[%s8367 + $0xc] sm:$0xf]
    %v8436 = vunpack.c.l.b16 %v8303
    %v8437 = vunpack.c.l.b16 %v8304
    %v8438 = vunpack.c.l.b16 %v8305
    %v8439 = vunpack.c.l.b16 %v8306
    %v8440 = vunpack.c.l.b16 %v8307
    %v8441 = vunpack.c.l.b16 %v8308
    %v8442 = vunpack.c.l.b16 %v8309
    %v8443 = vunpack.c.l.b16 %v8310
    %v8444 = vunpack.c.l.b16 %v8311
    %v8445 = vunpack.c.l.b16 %v8312
    %v8446 = vunpack.c.l.b16 %v8313
    %v8447 = vunpack.c.l.b16 %v8314
    %v8448 = vunpack.c.l.b16 %v8315
    %v8449 = vunpack.c.l.b16 %v8316
    %v8450 = vunpack.c.l.b16 %v8317
    %v8451 = vunpack.c.l.b16 %v8318
    %v8452 = vunpack.c.l.b16 %v8319
    %v8453 = vunpack.c.l.b16 %v8320
    %v8454 = vunpack.c.l.b16 %v8321
    %v8455 = vunpack.c.l.b16 %v8322
    %v8456 = vunpack.c.l.b16 %v8323
    %v8457 = vunpack.c.l.b16 %v8324
    %v8458 = vunpack.c.l.b16 %v8325
    %v8459 = vunpack.c.l.b16 %v8326
    %v8460 = vunpack.c.l.b16 %v8327
    %v8461 = vunpack.c.l.b16 %v8328
    %v8462 = vunpack.c.l.b16 %v8329
    %v8463 = vunpack.c.l.b16 %v8330
    %v8464 = vunpack.c.l.b16 %v8331
    %v8465 = vunpack.c.l.b16 %v8332
    %v8466 = vunpack.c.l.b16 %v8333
    %v8467 = vunpack.c.l.b16 %v8334
    %v8468 = vunpack.c.l.b16 %v8335
    %v8469 = vunpack.c.l.b16 %v8336
    %v8470 = vunpack.c.l.b16 %v8337
    %v8471 = vunpack.c.l.b16 %v8338
    %v8472 = vunpack.c.l.b16 %v8339
    %v8473 = vunpack.c.l.b16 %v8340
    %v8474 = vunpack.c.l.b16 %v8341
    %v8475 = vunpack.c.l.b16 %v8342
    %v8476 = vunpack.c.l.b16 %v8343
    %v8477 = vunpack.c.l.b16 %v8344
    %v8478 = vunpack.c.l.b16 %v8345
    %v8479 = vunpack.c.l.b16 %v8346
    %v8480 = vunpack.c.l.b16 %v8347
    %v8481 = vunpack.c.l.b16 %v8348
    %v8482 = vunpack.c.l.b16 %v8349
    %v8483 = vunpack.c.l.b16 %v8350
    %v8484 = vunpack.c.l.b16 %v8351
    %v8485 = vunpack.c.l.b16 %v8352
    %v8486 = vunpack.c.l.b16 %v8353
    %v8487 = vunpack.c.l.b16 %v8354
    %v8488 = vunpack.c.l.b16 %v8355
    %v8489 = vunpack.c.l.b16 %v8356
    %v8490 = vunpack.c.l.b16 %v8357
    %v8491 = vunpack.c.l.b16 %v8358
    %v8492 = vunpack.c.l.b16 %v8359
    %v8493 = vunpack.c.l.b16 %v8360
    %v8494 = vunpack.c.l.b16 %v8361
    %v8495 = vunpack.c.l.b16 %v8362
    %v8496 = vunpack.c.l.b16 %v8363
    %v8497 = vunpack.c.l.b16 %v8364
    %v8498 = vunpack.c.l.b16 %v8365
    %v8499 = vunpack.c.l.b16 %v8366
    %v8500 = vpack.c.b16 %v8437, %v8436
    %v8501 = vpack.c.b16 %v8439, %v8438
    %v8502 = vpack.c.b16 %v8441, %v8440
    %v8503 = vpack.c.b16 %v8443, %v8442
    %v8504 = vpack.c.b16 %v8445, %v8444
    %v8505 = vpack.c.b16 %v8447, %v8446
    %v8506 = vpack.c.b16 %v8449, %v8448
    %v8507 = vpack.c.b16 %v8451, %v8450
    %v8508 = vpack.c.b16 %v8453, %v8452
    %v8509 = vpack.c.b16 %v8455, %v8454
    %v8510 = vpack.c.b16 %v8457, %v8456
    %v8511 = vpack.c.b16 %v8459, %v8458
    %v8512 = vpack.c.b16 %v8461, %v8460
    %v8513 = vpack.c.b16 %v8463, %v8462
    %v8514 = vpack.c.b16 %v8465, %v8464
    %v8515 = vpack.c.b16 %v8467, %v8466
    %v8516 = vpack.c.b16 %v8469, %v8468
    %v8517 = vpack.c.b16 %v8471, %v8470
    %v8518 = vpack.c.b16 %v8473, %v8472
    %v8519 = vpack.c.b16 %v8475, %v8474
    %v8520 = vpack.c.b16 %v8477, %v8476
    %v8521 = vpack.c.b16 %v8479, %v8478
    %v8522 = vpack.c.b16 %v8481, %v8480
    %v8523 = vpack.c.b16 %v8483, %v8482
    %v8524 = vpack.c.b16 %v8485, %v8484
    %v8525 = vpack.c.b16 %v8487, %v8486
    %v8526 = vpack.c.b16 %v8489, %v8488
    %v8527 = vpack.c.b16 %v8491, %v8490
    %v8528 = vpack.c.b16 %v8493, %v8492
    %v8529 = vpack.c.b16 %v8495, %v8494
    %v8530 = vpack.c.b16 %v8497, %v8496
    %v8531 = vpack.c.b16 %v8499, %v8498
    %v8536 = vunpack.c.l.b16 %v8368
    %v8537 = vunpack.c.l.b16 %v8369
    %v8538 = vunpack.c.l.b16 %v8370
    %v8539 = vunpack.c.l.b16 %v8371
    %v8540 = vpack.c.b16 %v8537, %v8536
    %v8541 = vpack.c.b16 %v8539, %v8538
    %v8545 = vsel %vm523, %v8500, 0
    %v8548 = vsel %vm523, %v8501, 0
    %v8551 = vsel %vm523, %v8502, 0
    %v8554 = vsel %vm523, %v8503, 0
    %v8557 = vsel %vm523, %v8504, 0
    %v8560 = vsel %vm523, %v8505, 0
    %v8563 = vsel %vm523, %v8506, 0
    %v8566 = vsel %vm523, %v8507, 0
    %v8569 = vsel %vm523, %v8508, 0
    %v8572 = vsel %vm523, %v8509, 0
    %v8575 = vsel %vm523, %v8510, 0
    %v8578 = vsel %vm523, %v8511, 0
    %v8581 = vsel %vm523, %v8512, 0
    %v8584 = vsel %vm523, %v8513, 0
    %v8587 = vsel %vm523, %v8514, 0
    %v8590 = vsel %vm523, %v8515, 0
    %v8593 = vsel %vm523, %v8516, 0
    %v8596 = vsel %vm523, %v8517, 0
    %v8599 = vsel %vm523, %v8518, 0
    %v8602 = vsel %vm523, %v8519, 0
    %v8605 = vsel %vm523, %v8520, 0
    %v8608 = vsel %vm523, %v8521, 0
    %v8611 = vsel %vm523, %v8522, 0
    %v8614 = vsel %vm523, %v8523, 0
    %v8617 = vsel %vm523, %v8524, 0
    %v8620 = vsel %vm523, %v8525, 0
    %v8623 = vsel %vm523, %v8526, 0
    %v8626 = vsel %vm523, %v8527, 0
    %v8629 = vsel %vm523, %v8528, 0
    %v8632 = vsel %vm523, %v8529, 0
    %v8635 = vsel %vm523, %v8530, 0
    %v8638 = vsel %vm523, %v8531, 0
    %8640 = vmatprep.subr.bf16.mxu0 0
    %8641 = vmatpush1.bf16.msra.mxu0 %v8540
    %8642 = vmatprep.subr.bf16.mxu0 0
    %8643 = vmatpush1.bf16.msra.mxu0 %v8541
    %8644 = vmatprep.subr.bf16.mxu0 0
    %8645 = vmatpush1.bf16.msra.mxu0 0
    %8646 = vmatprep.subr.bf16.mxu0 0
    %8647 = vmatpush1.bf16.msra.mxu0 0
    %8648 = vmatprep.subr.bf16.mxu0 0
    %8649 = vmatpush1.bf16.msra.mxu0 0
    %8650 = vmatprep.subr.bf16.mxu0 0
    %8651 = vmatpush1.bf16.msra.mxu0 0
    %8652 = vmatprep.subr.bf16.mxu0 0
    %8653 = vmatpush1.bf16.msra.mxu0 0
    %8654 = vmatprep.subr.bf16.mxu0 0
    %8655 = vmatpush1.bf16.msra.mxu0 0
    %8656 = vmatprep.subr.bf16.mxu0 0
    %8657 = vmatpush1.bf16.msra.mxu0 0
    %8658 = vmatprep.subr.bf16.mxu0 0
    %8659 = vmatpush1.bf16.msra.mxu0 0
    %8660 = vmatprep.subr.bf16.mxu0 0
    %8661 = vmatpush1.bf16.msra.mxu0 0
    %8662 = vmatprep.subr.bf16.mxu0 0
    %8663 = vmatpush1.bf16.msra.mxu0 0
    %8664 = vmatprep.subr.bf16.mxu0 0
    %8665 = vmatpush1.bf16.msra.mxu0 0
    %8666 = vmatprep.subr.bf16.mxu0 0
    %8667 = vmatpush1.bf16.msra.mxu0 0
    %8668 = vmatprep.subr.bf16.mxu0 0
    %8669 = vmatpush1.bf16.msra.mxu0 0
    %8670 = vmatprep.subr.bf16.mxu0 0
    %8671 = vmatpush1.bf16.msra.mxu0 0
    %8672 = vmatprep.mubr.bf16.mxu0 0
    %8673 = vmatmul.mubr.bf16.gmra.mrb[0].mxu0 %v8545
    %v8674 = vpop.f32.mrb[0].mxu0
    %v8675 = vadd.f32 0.0, %v8674
    %v8676 = vpop.f32.mrb[0].mxu0
    %v8677 = vpop.f32.mrb[0].mxu0
    %v8678 = vadd.f32 0.0, %v8677
    %v8679 = vpop.f32.mrb[0].mxu0
    %8680 = vmatprep.mubr.bf16.mxu0 0
    %8681 = vmatmul.mubr.bf16.gmra.mrb[0].mxu0 %v8548
    %v8682 = vpop.f32.mrb[0].mxu0
    %v8683 = vadd.f32 0.0, %v8682
    %v8684 = vpop.f32.mrb[0].mxu0
    %v8685 = vpop.f32.mrb[0].mxu0
    %v8686 = vadd.f32 0.0, %v8685
    %v8687 = vpop.f32.mrb[0].mxu0
    %8688 = vmatprep.mubr.bf16.mxu0 0
    %8689 = vmatmul.mubr.bf16.gmra.mrb[0].mxu0 %v8551
    %v8690 = vpop.f32.mrb[0].mxu0
    %v8691 = vadd.f32 0.0, %v8690
    %v8692 = vpop.f32.mrb[0].mxu0
    %v8693 = vpop.f32.mrb[0].mxu0
    %v8694 = vadd.f32 0.0, %v8693
    %v8695 = vpop.f32.mrb[0].mxu0
    %8696 = vmatprep.mubr.bf16.mxu0 0
    %8697 = vmatmul.mubr.bf16.gmra.mrb[0].mxu0 %v8554
    %v8698 = vpop.f32.mrb[0].mxu0
    %v8699 = vadd.f32 0.0, %v8698
    %v8700 = vpop.f32.mrb[0].mxu0
    %v8701 = vpop.f32.mrb[0].mxu0
    %v8702 = vadd.f32 0.0, %v8701
    %v8703 = vpop.f32.mrb[0].mxu0
    %8704 = vmatprep.mubr.bf16.mxu0 0
    %8705 = vmatmul.mubr.bf16.gmra.mrb[0].mxu0 %v8557
    %v8706 = vpop.f32.mrb[0].mxu0
    %v8707 = vadd.f32 0.0, %v8706
    %v8708 = vpop.f32.mrb[0].mxu0
    %v8709 = vpop.f32.mrb[0].mxu0
    %v8710 = vadd.f32 0.0, %v8709
    %v8711 = vpop.f32.mrb[0].mxu0
    %8712 = vmatprep.mubr.bf16.mxu0 0
    %8713 = vmatmul.mubr.bf16.gmra.mrb[0].mxu0 %v8560
    %v8714 = vpop.f32.mrb[0].mxu0
    %v8715 = vadd.f32 0.0, %v8714
    %v8716 = vpop.f32.mrb[0].mxu0
    %v8717 = vpop.f32.mrb[0].mxu0
    %v8718 = vadd.f32 0.0, %v8717
    %v8719 = vpop.f32.mrb[0].mxu0
    %8720 = vmatprep.mubr.bf16.mxu0 0
    %8721 = vmatmul.mubr.bf16.gmra.mrb[0].mxu0 %v8563
    %v8722 = vpop.f32.mrb[0].mxu0
    %v8723 = vadd.f32 0.0, %v8722
    %v8724 = vpop.f32.mrb[0].mxu0
    %v8725 = vpop.f32.mrb[0].mxu0
    %v8726 = vadd.f32 0.0, %v8725
    %v8727 = vpop.f32.mrb[0].mxu0
    %8728 = vmatprep.mubr.bf16.mxu0 0
    %8729 = vmatmul.mubr.bf16.gmra.mrb[0].mxu0 %v8566
    %v8730 = vpop.f32.mrb[0].mxu0
    %v8731 = vadd.f32 0.0, %v8730
    %v8732 = vpop.f32.mrb[0].mxu0
    %v8733 = vpop.f32.mrb[0].mxu0
    %v8734 = vadd.f32 0.0, %v8733
    %v8735 = vpop.f32.mrb[0].mxu0
    %8736 = vmatprep.mubr.bf16.mxu0 0
    %8737 = vmatmul.mubr.bf16.gmra.mrb[0].mxu0 %v8569
    %v8738 = vpop.f32.mrb[0].mxu0
    %v8739 = vadd.f32 0.0, %v8738
    %v8740 = vpop.f32.mrb[0].mxu0
    %v8741 = vpop.f32.mrb[0].mxu0
    %v8742 = vadd.f32 0.0, %v8741
    %v8743 = vpop.f32.mrb[0].mxu0
    %8744 = vmatprep.mubr.bf16.mxu0 0
    %8745 = vmatmul.mubr.bf16.gmra.mrb[0].mxu0 %v8572
    %v8746 = vpop.f32.mrb[0].mxu0
    %v8747 = vadd.f32 0.0, %v8746
    %v8748 = vpop.f32.mrb[0].mxu0
    %v8749 = vpop.f32.mrb[0].mxu0
    %v8750 = vadd.f32 0.0, %v8749
    %v8751 = vpop.f32.mrb[0].mxu0
    %8752 = vmatprep.mubr.bf16.mxu0 0
    %8753 = vmatmul.mubr.bf16.gmra.mrb[0].mxu0 %v8575
    %v8754 = vpop.f32.mrb[0].mxu0
    %v8755 = vadd.f32 0.0, %v8754
    %v8756 = vpop.f32.mrb[0].mxu0
    %v8757 = vpop.f32.mrb[0].mxu0
    %v8758 = vadd.f32 0.0, %v8757
    %v8759 = vpop.f32.mrb[0].mxu0
    %8760 = vmatprep.mubr.bf16.mxu0 0
    %8761 = vmatmul.mubr.bf16.gmra.mrb[0].mxu0 %v8578
    %v8762 = vpop.f32.mrb[0].mxu0
    %v8763 = vadd.f32 0.0, %v8762
    %v8764 = vpop.f32.mrb[0].mxu0
    %v8765 = vpop.f32.mrb[0].mxu0
    %v8766 = vadd.f32 0.0, %v8765
    %v8767 = vpop.f32.mrb[0].mxu0
    %8768 = vmatprep.mubr.bf16.mxu0 0
    %8769 = vmatmul.mubr.bf16.gmra.mrb[0].mxu0 %v8581
    %v8770 = vpop.f32.mrb[0].mxu0
    %v8771 = vadd.f32 0.0, %v8770
    %v8772 = vpop.f32.mrb[0].mxu0
    %v8773 = vpop.f32.mrb[0].mxu0
    %v8774 = vadd.f32 0.0, %v8773
    %v8775 = vpop.f32.mrb[0].mxu0
    %8776 = vmatprep.mubr.bf16.mxu0 0
    %8777 = vmatmul.mubr.bf16.gmra.mrb[0].mxu0 %v8584
    %v8778 = vpop.f32.mrb[0].mxu0
    %v8779 = vadd.f32 0.0, %v8778
    %v8780 = vpop.f32.mrb[0].mxu0
    %v8781 = vpop.f32.mrb[0].mxu0
    %v8782 = vadd.f32 0.0, %v8781
    %v8783 = vpop.f32.mrb[0].mxu0
    %8784 = vmatprep.mubr.bf16.mxu0 0
    %8785 = vmatmul.mubr.bf16.gmra.mrb[0].mxu0 %v8587
    %v8786 = vpop.f32.mrb[0].mxu0
    %v8787 = vadd.f32 0.0, %v8786
    %v8788 = vpop.f32.mrb[0].mxu0
    %v8789 = vpop.f32.mrb[0].mxu0
    %v8790 = vadd.f32 0.0, %v8789
    %v8791 = vpop.f32.mrb[0].mxu0
    %8792 = vmatprep.mubr.bf16.mxu0 0
    %8793 = vmatmul.mubr.bf16.gmra.mrb[0].mxu0 %v8590
    %v8794 = vpop.f32.mrb[0].mxu0
    %v8795 = vadd.f32 0.0, %v8794
    %v8796 = vpop.f32.mrb[0].mxu0
    %v8797 = vpop.f32.mrb[0].mxu0
    %v8798 = vadd.f32 0.0, %v8797
    %v8799 = vpop.f32.mrb[0].mxu0
    %8800 = vmatprep.mubr.bf16.mxu0 0
    %8801 = vmatmul.mubr.bf16.gmra.mrb[0].mxu0 %v8593
    %v8802 = vpop.f32.mrb[0].mxu0
    %v8803 = vadd.f32 0.0, %v8802
    %v8804 = vpop.f32.mrb[0].mxu0
    %v8805 = vpop.f32.mrb[0].mxu0
    %v8806 = vadd.f32 0.0, %v8805
    %v8807 = vpop.f32.mrb[0].mxu0
    %8808 = vmatprep.mubr.bf16.mxu0 0
    %8809 = vmatmul.mubr.bf16.gmra.mrb[0].mxu0 %v8596
    %v8810 = vpop.f32.mrb[0].mxu0
    %v8811 = vadd.f32 0.0, %v8810
    %v8812 = vpop.f32.mrb[0].mxu0
    %v8813 = vpop.f32.mrb[0].mxu0
    %v8814 = vadd.f32 0.0, %v8813
    %v8815 = vpop.f32.mrb[0].mxu0
    %8816 = vmatprep.mubr.bf16.mxu0 0
    %8817 = vmatmul.mubr.bf16.gmra.mrb[0].mxu0 %v8599
    %v8818 = vpop.f32.mrb[0].mxu0
    %v8819 = vadd.f32 0.0, %v8818
    %v8820 = vpop.f32.mrb[0].mxu0
    %v8821 = vpop.f32.mrb[0].mxu0
    %v8822 = vadd.f32 0.0, %v8821
    %v8823 = vpop.f32.mrb[0].mxu0
    %8824 = vmatprep.mubr.bf16.mxu0 0
    %8825 = vmatmul.mubr.bf16.gmra.mrb[0].mxu0 %v8602
    %v8826 = vpop.f32.mrb[0].mxu0
    %v8827 = vadd.f32 0.0, %v8826
    %v8828 = vpop.f32.mrb[0].mxu0
    %v8829 = vpop.f32.mrb[0].mxu0
    %v8830 = vadd.f32 0.0, %v8829
    %v8831 = vpop.f32.mrb[0].mxu0
    %8832 = vmatprep.mubr.bf16.mxu0 0
    %8833 = vmatmul.mubr.bf16.gmra.mrb[0].mxu0 %v8605
    %v8834 = vpop.f32.mrb[0].mxu0
    %v8835 = vadd.f32 0.0, %v8834
    %v8836 = vpop.f32.mrb[0].mxu0
    %v8837 = vpop.f32.mrb[0].mxu0
    %v8838 = vadd.f32 0.0, %v8837
    %v8839 = vpop.f32.mrb[0].mxu0
    %8840 = vmatprep.mubr.bf16.mxu0 0
    %8841 = vmatmul.mubr.bf16.gmra.mrb[0].mxu0 %v8608
    %v8842 = vpop.f32.mrb[0].mxu0
    %v8843 = vadd.f32 0.0, %v8842
    %v8844 = vpop.f32.mrb[0].mxu0
    %v8845 = vpop.f32.mrb[0].mxu0
    %v8846 = vadd.f32 0.0, %v8845
    %v8847 = vpop.f32.mrb[0].mxu0
    %8848 = vmatprep.mubr.bf16.mxu0 0
    %8849 = vmatmul.mubr.bf16.gmra.mrb[0].mxu0 %v8611
    %v8850 = vpop.f32.mrb[0].mxu0
    %v8851 = vadd.f32 0.0, %v8850
    %v8852 = vpop.f32.mrb[0].mxu0
    %v8853 = vpop.f32.mrb[0].mxu0
    %v8854 = vadd.f32 0.0, %v8853
    %v8855 = vpop.f32.mrb[0].mxu0
    %8856 = vmatprep.mubr.bf16.mxu0 0
    %8857 = vmatmul.mubr.bf16.gmra.mrb[0].mxu0 %v8614
    %v8858 = vpop.f32.mrb[0].mxu0
    %v8859 = vadd.f32 0.0, %v8858
    %v8860 = vpop.f32.mrb[0].mxu0
    %v8861 = vpop.f32.mrb[0].mxu0
    %v8862 = vadd.f32 0.0, %v8861
    %v8863 = vpop.f32.mrb[0].mxu0
    %8864 = vmatprep.mubr.bf16.mxu0 0
    %8865 = vmatmul.mubr.bf16.gmra.mrb[0].mxu0 %v8617
    %v8866 = vpop.f32.mrb[0].mxu0
    %v8867 = vadd.f32 0.0, %v8866
    %v8868 = vpop.f32.mrb[0].mxu0
    %v8869 = vpop.f32.mrb[0].mxu0
    %v8870 = vadd.f32 0.0, %v8869
    %v8871 = vpop.f32.mrb[0].mxu0
    %8872 = vmatprep.mubr.bf16.mxu0 0
    %8873 = vmatmul.mubr.bf16.gmra.mrb[0].mxu0 %v8620
    %v8874 = vpop.f32.mrb[0].mxu0
    %v8875 = vadd.f32 0.0, %v8874
    %v8876 = vpop.f32.mrb[0].mxu0
    %v8877 = vpop.f32.mrb[0].mxu0
    %v8878 = vadd.f32 0.0, %v8877
    %v8879 = vpop.f32.mrb[0].mxu0
    %8880 = vmatprep.mubr.bf16.mxu0 0
    %8881 = vmatmul.mubr.bf16.gmra.mrb[0].mxu0 %v8623
    %v8882 = vpop.f32.mrb[0].mxu0
    %v8883 = vadd.f32 0.0, %v8882
    %v8884 = vpop.f32.mrb[0].mxu0
    %v8885 = vpop.f32.mrb[0].mxu0
    %v8886 = vadd.f32 0.0, %v8885
    %v8887 = vpop.f32.mrb[0].mxu0
    %8888 = vmatprep.mubr.bf16.mxu0 0
    %8889 = vmatmul.mubr.bf16.gmra.mrb[0].mxu0 %v8626
    %v8890 = vpop.f32.mrb[0].mxu0
    %v8891 = vadd.f32 0.0, %v8890
    %v8892 = vpop.f32.mrb[0].mxu0
    %v8893 = vpop.f32.mrb[0].mxu0
    %v8894 = vadd.f32 0.0, %v8893
    %v8895 = vpop.f32.mrb[0].mxu0
    %8896 = vmatprep.mubr.bf16.mxu0 0
    %8897 = vmatmul.mubr.bf16.gmra.mrb[0].mxu0 %v8629
    %v8898 = vpop.f32.mrb[0].mxu0
    %v8899 = vadd.f32 0.0, %v8898
    %v8900 = vpop.f32.mrb[0].mxu0
    %v8901 = vpop.f32.mrb[0].mxu0
    %v8902 = vadd.f32 0.0, %v8901
    %v8903 = vpop.f32.mrb[0].mxu0
    %8904 = vmatprep.mubr.bf16.mxu0 0
    %8905 = vmatmul.mubr.bf16.gmra.mrb[0].mxu0 %v8632
    %v8906 = vpop.f32.mrb[0].mxu0
    %v8907 = vadd.f32 0.0, %v8906
    %v8908 = vpop.f32.mrb[0].mxu0
    %v8909 = vpop.f32.mrb[0].mxu0
    %v8910 = vadd.f32 0.0, %v8909
    %v8911 = vpop.f32.mrb[0].mxu0
    %8912 = vmatprep.mubr.bf16.mxu0 0
    %8913 = vmatmul.mubr.bf16.gmra.mrb[0].mxu0 %v8635
    %v8914 = vpop.f32.mrb[0].mxu0
    %v8915 = vadd.f32 0.0, %v8914
    %v8916 = vpop.f32.mrb[0].mxu0
    %v8917 = vpop.f32.mrb[0].mxu0
    %v8918 = vadd.f32 0.0, %v8917
    %v8919 = vpop.f32.mrb[0].mxu0
    %8920 = vmatprep.mubr.bf16.mxu0 0
    %8921 = vmatmul.mubr.bf16.gmra.mrb[0].mxu0 %v8638
    %v8922 = vpop.f32.mrb[0].mxu0
    %v8923 = vadd.f32 0.0, %v8922
    %v8924 = vpop.f32.mrb[0].mxu0
    %v8925 = vpop.f32.mrb[0].mxu0
    %v8926 = vadd.f32 0.0, %v8925
    %v8927 = vpop.f32.mrb[0].mxu0
    %8928 = vdwg.mxu0
    %v8929 = vadd.f32 %v8238, %v8675
    %v8930 = vadd.f32 %v8239, %v8678
    %v8931 = vadd.f32 %v8240, %v8683
    %v8932 = vadd.f32 %v8241, %v8686
    %v8933 = vadd.f32 %v8242, %v8691
    %v8934 = vadd.f32 %v8243, %v8694
    %v8935 = vadd.f32 %v8244, %v8699
    %v8936 = vadd.f32 %v8245, %v8702
    %v8937 = vadd.f32 %v8246, %v8707
    %v8938 = vadd.f32 %v8247, %v8710
    %v8939 = vadd.f32 %v8248, %v8715
    %v8940 = vadd.f32 %v8249, %v8718
    %v8941 = vadd.f32 %v8250, %v8723
    %v8942 = vadd.f32 %v8251, %v8726
    %v8943 = vadd.f32 %v8252, %v8731
    %v8944 = vadd.f32 %v8253, %v8734
    %v8945 = vadd.f32 %v8254, %v8739
    %v8946 = vadd.f32 %v8255, %v8742
    %v8947 = vadd.f32 %v8256, %v8747
    %v8948 = vadd.f32 %v8257, %v8750
    %v8949 = vadd.f32 %v8258, %v8755
    %v8950 = vadd.f32 %v8259, %v8758
    %v8951 = vadd.f32 %v8260, %v8763
    %v8952 = vadd.f32 %v8261, %v8766
    %v8953 = vadd.f32 %v8262, %v8771
    %v8954 = vadd.f32 %v8263, %v8774
    %v8955 = vadd.f32 %v8264, %v8779
    %v8956 = vadd.f32 %v8265, %v8782
    %v8957 = vadd.f32 %v8266, %v8787
    %v8958 = vadd.f32 %v8267, %v8790
    %v8959 = vadd.f32 %v8268, %v8795
    %v8960 = vadd.f32 %v8269, %v8798
    %v8961 = vadd.f32 %v8270, %v8803
    %v8962 = vadd.f32 %v8271, %v8806
    %v8963 = vadd.f32 %v8272, %v8811
    %v8964 = vadd.f32 %v8273, %v8814
    %v8965 = vadd.f32 %v8274, %v8819
    %v8966 = vadd.f32 %v8275, %v8822
    %v8967 = vadd.f32 %v8276, %v8827
    %v8968 = vadd.f32 %v8277, %v8830
    %v8969 = vadd.f32 %v8278, %v8835
    %v8970 = vadd.f32 %v8279, %v8838
    %v8971 = vadd.f32 %v8280, %v8843
    %v8972 = vadd.f32 %v8281, %v8846
    %v8973 = vadd.f32 %v8282, %v8851
    %v8974 = vadd.f32 %v8283, %v8854
    %v8975 = vadd.f32 %v8284, %v8859
    %v8976 = vadd.f32 %v8285, %v8862
    %v8977 = vadd.f32 %v8286, %v8867
    %v8978 = vadd.f32 %v8287, %v8870
    %v8979 = vadd.f32 %v8288, %v8875
    %v8980 = vadd.f32 %v8289, %v8878
    %v8981 = vadd.f32 %v8290, %v8883
    %v8982 = vadd.f32 %v8291, %v8886
    %v8983 = vadd.f32 %v8292, %v8891
    %v8984 = vadd.f32 %v8293, %v8894
    %v8985 = vadd.f32 %v8294, %v8899
    %v8986 = vadd.f32 %v8295, %v8902
    %v8987 = vadd.f32 %v8296, %v8907
    %v8988 = vadd.f32 %v8297, %v8910
    %v8989 = vadd.f32 %v8298, %v8915
    %v8990 = vadd.f32 %v8299, %v8918
    %v8991 = vadd.f32 %v8300, %v8923
    %v8992 = vadd.f32 %v8301, %v8926
    %v8993 = vld [vmem:[%s8302] sm:$0xf]
    %v8994 = vld [vmem:[%s8302 + $0x4] sm:$0xf]
    %v8995 = vld [vmem:[%s8302 + $0x8] sm:$0x1]
    %v8996 = vld [vmem:[%s8302 + $0xc] sm:$0xf]
    %v8997 = vld [vmem:[%s8302 + $0x10] sm:$0xf]
    %v8998 = vld [vmem:[%s8302 + $0x14] sm:$0x1]
    %v8999 = vld [vmem:[%s8302 + $0x18] sm:$0xf]
    %v9000 = vld [vmem:[%s8302 + $0x1c] sm:$0xf]
    %v9001 = vld [vmem:[%s8302 + $0x20] sm:$0x1]
    %v9002 = vld [vmem:[%s8302 + $0x24] sm:$0xf]
    %v9003 = vld [vmem:[%s8302 + $0x28] sm:$0xf]
    %v9004 = vld [vmem:[%s8302 + $0x2c] sm:$0x1]
    %v9005 = vld [vmem:[%s8302 + $0x30] sm:$0xf]
    %v9006 = vld [vmem:[%s8302 + $0x34] sm:$0xf]
    %v9007 = vld [vmem:[%s8302 + $0x38] sm:$0x1]
    %v9008 = vld [vmem:[%s8302 + $0x3c] sm:$0xf]
    %v9009 = vld [vmem:[%s8302 + $0x40] sm:$0xf]
    %v9010 = vld [vmem:[%s8302 + $0x44] sm:$0x1]
    %v9011 = vld [vmem:[%s8302 + $0x48] sm:$0xf]
    %v9012 = vld [vmem:[%s8302 + $0x4c] sm:$0xf]
    %v9013 = vld [vmem:[%s8302 + $0x50] sm:$0x1]
    %v9014 = vld [vmem:[%s8302 + $0x54] sm:$0xf]
    %v9015 = vld [vmem:[%s8302 + $0x58] sm:$0xf]
    %v9016 = vld [vmem:[%s8302 + $0x5c] sm:$0x1]
    %v9017 = vld [vmem:[%s8302 + $0x60] sm:$0xf]
    %v9018 = vld [vmem:[%s8302 + $0x64] sm:$0xf]
    %v9019 = vld [vmem:[%s8302 + $0x68] sm:$0x1]
    %v9020 = vld [vmem:[%s8302 + $0x6c] sm:$0xf]
    %v9021 = vld [vmem:[%s8302 + $0x70] sm:$0xf]
    %v9022 = vld [vmem:[%s8302 + $0x74] sm:$0x1]
    %v9023 = vld [vmem:[%s8302 + $0x78] sm:$0xf]
    %v9024 = vld [vmem:[%s8302 + $0x7c] sm:$0xf]
    %v9025 = vld [vmem:[%s8302 + $0x80] sm:$0x1]
    %v9026 = vld [vmem:[%s8302 + $0x84] sm:$0xf]
    %v9027 = vld [vmem:[%s8302 + $0x88] sm:$0xf]
    %v9028 = vld [vmem:[%s8302 + $0x8c] sm:$0x1]
    %v9029 = vld [vmem:[%s8302 + $0x90] sm:$0xf]
    %v9030 = vld [vmem:[%s8302 + $0x94] sm:$0xf]
    %v9031 = vld [vmem:[%s8302 + $0x98] sm:$0x1]
    %v9032 = vld [vmem:[%s8302 + $0x9c] sm:$0xf]
    %v9033 = vld [vmem:[%s8302 + $0xa0] sm:$0xf]
    %v9034 = vld [vmem:[%s8302 + $0xa4] sm:$0x1]
    %v9035 = vld [vmem:[%s8302 + $0xa8] sm:$0xf]
    %v9036 = vld [vmem:[%s8302 + $0xac] sm:$0xf]
    %v9037 = vld [vmem:[%s8302 + $0xb0] sm:$0x1]
    %v9038 = vld [vmem:[%s8302 + $0xb4] sm:$0xf]
    %v9039 = vld [vmem:[%s8302 + $0xb8] sm:$0xf]
    %v9040 = vld [vmem:[%s8302 + $0xbc] sm:$0x1]
    %v9041 = vld [vmem:[%s8302 + $0xd8] sm:$0xf]
    %v9042 = vld [vmem:[%s8302 + $0xdc] sm:$0xf]
    %v9043 = vld [vmem:[%s8302 + $0xe0] sm:$0x1]
    %v9044 = vld [vmem:[%s8302 + $0xe4] sm:$0xf]
    %v9045 = vld [vmem:[%s8302 + $0xe8] sm:$0xf]
    %v9046 = vld [vmem:[%s8302 + $0xec] sm:$0x1]
    %v9047 = vld [vmem:[%s8302 + $0xf0] sm:$0xf]
    %v9048 = vld [vmem:[%s8302 + $0xf4] sm:$0xf]
    %v9049 = vld [vmem:[%s8302 + $0xf8] sm:$0x1]
    %v9050 = vld [vmem:[%s8302 + $0xfc] sm:$0xf]
    %v9051 = vld [vmem:[%s8302 + $0x100] sm:$0xf]
    %v9052 = vld [vmem:[%s8302 + $0x104] sm:$0x1]
    %v9053 = vld [vmem:[%s8302 + $0x108] sm:$0xf]
    %v9054 = vld [vmem:[%s8302 + $0x10c] sm:$0xf]
    %v9055 = vld [vmem:[%s8302 + $0x110] sm:$0x1]
    %v9056 = vld [vmem:[%s8302 + $0x114] sm:$0xf]
    %v9057 = vld [vmem:[%s8302 + $0x118] sm:$0xf]
    %v9058 = vld [vmem:[%s8302 + $0x11c] sm:$0x1]
    %v9059 = vld [vmem:[%s8302 + $0x120] sm:$0xf]
    %v9060 = vld [vmem:[%s8302 + $0x124] sm:$0xf]
    %v9061 = vld [vmem:[%s8302 + $0x128] sm:$0x1]
    %v9062 = vld [vmem:[%s8302 + $0x12c] sm:$0xf]
    %v9063 = vld [vmem:[%s8302 + $0x130] sm:$0xf]
    %v9064 = vld [vmem:[%s8302 + $0x134] sm:$0x1]
    %v9065 = vld [vmem:[%s8302 + $0x138] sm:$0xf]
    %v9066 = vld [vmem:[%s8302 + $0x13c] sm:$0xf]
    %v9067 = vld [vmem:[%s8302 + $0x140] sm:$0x1]
    %v9068 = vld [vmem:[%s8302 + $0x144] sm:$0xf]
    %v9069 = vld [vmem:[%s8302 + $0x148] sm:$0xf]
    %v9070 = vld [vmem:[%s8302 + $0x14c] sm:$0x1]
    %v9071 = vld [vmem:[%s8302 + $0x150] sm:$0xf]
    %v9072 = vld [vmem:[%s8302 + $0x154] sm:$0xf]
    %v9073 = vld [vmem:[%s8302 + $0x158] sm:$0x1]
    %v9074 = vld [vmem:[%s8302 + $0x15c] sm:$0xf]
    %v9075 = vld [vmem:[%s8302 + $0x160] sm:$0xf]
    %v9076 = vld [vmem:[%s8302 + $0x164] sm:$0x1]
    %v9077 = vld [vmem:[%s8302 + $0x168] sm:$0xf]
    %v9078 = vld [vmem:[%s8302 + $0x16c] sm:$0xf]
    %v9079 = vld [vmem:[%s8302 + $0x170] sm:$0x1]
    %v9080 = vld [vmem:[%s8302 + $0x174] sm:$0xf]
    %v9081 = vld [vmem:[%s8302 + $0x178] sm:$0xf]
    %v9082 = vld [vmem:[%s8302 + $0x17c] sm:$0x1]
    %v9083 = vld [vmem:[%s8302 + $0x180] sm:$0xf]
    %v9084 = vld [vmem:[%s8302 + $0x184] sm:$0xf]
    %v9085 = vld [vmem:[%s8302 + $0x188] sm:$0x1]
    %v9086 = vld [vmem:[%s8302 + $0x18c] sm:$0xf]
    %v9087 = vld [vmem:[%s8302 + $0x190] sm:$0xf]
    %v9088 = vld [vmem:[%s8302 + $0x194] sm:$0x1]
    %v9090 = vshrl.u32 %v8993, 16
    %v9092 = vrot.slane %v9090, 4
    %v9093 = vshll.u32 %v8993, 16
    %v9095 = vrot.slane %v9093, 5
    %v9096 = vor.u32 %v9092, %v9095
    %v9097 = vrot.slane %v9096, 4
    %v9099 = vshll.u32 %v8994, 16
    %v9101 = vrot.slane %v9099, 5
    %v9102 = vsel %vm2563, %v9097, %v9101
    %v9103 = vshrl.u32 %v8994, 16
    %v9105 = vrot.slane %v9103, 4
    %v9106 = vor.u32 %v9105, %v9101
    %v9107 = vrot.slane %v9106, 4
    %v9109 = vshll.u32 %v8995, 16
    %v9111 = vrot.slane %v9109, 5
    %v9112 = vsel %vm2563, %v9107, %v9111
    %v9114 = vshrl.u32 %v8996, 16
    %v9116 = vrot.slane %v9114, 4
    %v9117 = vshll.u32 %v8996, 16
    %v9119 = vrot.slane %v9117, 5
    %v9120 = vor.u32 %v9116, %v9119
    %v9121 = vrot.slane %v9120, 4
    %v9123 = vshll.u32 %v8997, 16
    %v9125 = vrot.slane %v9123, 5
    %v9126 = vsel %vm2563, %v9121, %v9125
    %v9127 = vshrl.u32 %v8997, 16
    %v9129 = vrot.slane %v9127, 4
    %v9130 = vor.u32 %v9129, %v9125
    %v9131 = vrot.slane %v9130, 4
    %v9133 = vshll.u32 %v8998, 16
    %v9135 = vrot.slane %v9133, 5
    %v9136 = vsel %vm2563, %v9131, %v9135
    %v9138 = vshrl.u32 %v8999, 16
    %v9140 = vrot.slane %v9138, 4
    %v9141 = vshll.u32 %v8999, 16
    %v9143 = vrot.slane %v9141, 5
    %v9144 = vor.u32 %v9140, %v9143
    %v9145 = vrot.slane %v9144, 4
    %v9147 = vshll.u32 %v9000, 16
    %v9149 = vrot.slane %v9147, 5
    %v9150 = vsel %vm2563, %v9145, %v9149
    %v9151 = vshrl.u32 %v9000, 16
    %v9153 = vrot.slane %v9151, 4
    %v9154 = vor.u32 %v9153, %v9149
    %v9155 = vrot.slane %v9154, 4
    %v9157 = vshll.u32 %v9001, 16
    %v9159 = vrot.slane %v9157, 5
    %v9160 = vsel %vm2563, %v9155, %v9159
    %v9162 = vshrl.u32 %v9002, 16
    %v9164 = vrot.slane %v9162, 4
    %v9165 = vshll.u32 %v9002, 16
    %v9167 = vrot.slane %v9165, 5
    %v9168 = vor.u32 %v9164, %v9167
    %v9169 = vrot.slane %v9168, 4
    %v9171 = vshll.u32 %v9003, 16
    %v9173 = vrot.slane %v9171, 5
    %v9174 = vsel %vm2563, %v9169, %v9173
    %v9175 = vshrl.u32 %v9003, 16
    %v9177 = vrot.slane %v9175, 4
    %v9178 = vor.u32 %v9177, %v9173
    %v9179 = vrot.slane %v9178, 4
    %v9181 = vshll.u32 %v9004, 16
    %v9183 = vrot.slane %v9181, 5
    %v9184 = vsel %vm2563, %v9179, %v9183
    %v9186 = vshrl.u32 %v9005, 16
    %v9188 = vrot.slane %v9186, 4
    %v9189 = vshll.u32 %v9005, 16
    %v9191 = vrot.slane %v9189, 5
    %v9192 = vor.u32 %v9188, %v9191
    %v9193 = vrot.slane %v9192, 4
    %v9195 = vshll.u32 %v9006, 16
    %v9197 = vrot.slane %v9195, 5
    %v9198 = vsel %vm2563, %v9193, %v9197
    %v9199 = vshrl.u32 %v9006, 16
    %v9201 = vrot.slane %v9199, 4
    %v9202 = vor.u32 %v9201, %v9197
    %v9203 = vrot.slane %v9202, 4
    %v9205 = vshll.u32 %v9007, 16
    %v9207 = vrot.slane %v9205, 5
    %v9208 = vsel %vm2563, %v9203, %v9207
    %v9210 = vshrl.u32 %v9008, 16
    %v9212 = vrot.slane %v9210, 4
    %v9213 = vshll.u32 %v9008, 16
    %v9215 = vrot.slane %v9213, 5
    %v9216 = vor.u32 %v9212, %v9215
    %v9217 = vrot.slane %v9216, 4
    %v9219 = vshll.u32 %v9009, 16
    %v9221 = vrot.slane %v9219, 5
    %v9222 = vsel %vm2563, %v9217, %v9221
    %v9223 = vshrl.u32 %v9009, 16
    %v9225 = vrot.slane %v9223, 4
    %v9226 = vor.u32 %v9225, %v9221
    %v9227 = vrot.slane %v9226, 4
    %v9229 = vshll.u32 %v9010, 16
    %v9231 = vrot.slane %v9229, 5
    %v9232 = vsel %vm2563, %v9227, %v9231
    %v9234 = vshrl.u32 %v9011, 16
    %v9236 = vrot.slane %v9234, 4
    %v9237 = vshll.u32 %v9011, 16
    %v9239 = vrot.slane %v9237, 5
    %v9240 = vor.u32 %v9236, %v9239
    %v9241 = vrot.slane %v9240, 4
    %v9243 = vshll.u32 %v9012, 16
    %v9245 = vrot.slane %v9243, 5
    %v9246 = vsel %vm2563, %v9241, %v9245
    %v9247 = vshrl.u32 %v9012, 16
    %v9249 = vrot.slane %v9247, 4
    %v9250 = vor.u32 %v9249, %v9245
    %v9251 = vrot.slane %v9250, 4
    %v9253 = vshll.u32 %v9013, 16
    %v9255 = vrot.slane %v9253, 5
    %v9256 = vsel %vm2563, %v9251, %v9255
    %v9258 = vshrl.u32 %v9014, 16
    %v9260 = vrot.slane %v9258, 4
    %v9261 = vshll.u32 %v9014, 16
    %v9263 = vrot.slane %v9261, 5
    %v9264 = vor.u32 %v9260, %v9263
    %v9265 = vrot.slane %v9264, 4
    %v9267 = vshll.u32 %v9015, 16
    %v9269 = vrot.slane %v9267, 5
    %v9270 = vsel %vm2563, %v9265, %v9269
    %v9271 = vshrl.u32 %v9015, 16
    %v9273 = vrot.slane %v9271, 4
    %v9274 = vor.u32 %v9273, %v9269
    %v9275 = vrot.slane %v9274, 4
    %v9277 = vshll.u32 %v9016, 16
    %v9279 = vrot.slane %v9277, 5
    %v9280 = vsel %vm2563, %v9275, %v9279
    %v9282 = vshrl.u32 %v9017, 16
    %v9284 = vrot.slane %v9282, 4
    %v9285 = vshll.u32 %v9017, 16
    %v9287 = vrot.slane %v9285, 5
    %v9288 = vor.u32 %v9284, %v9287
    %v9289 = vrot.slane %v9288, 4
    %v9291 = vshll.u32 %v9018, 16
    %v9293 = vrot.slane %v9291, 5
    %v9294 = vsel %vm2563, %v9289, %v9293
    %v9295 = vshrl.u32 %v9018, 16
    %v9297 = vrot.slane %v9295, 4
    %v9298 = vor.u32 %v9297, %v9293
    %v9299 = vrot.slane %v9298, 4
    %v9301 = vshll.u32 %v9019, 16
    %v9303 = vrot.slane %v9301, 5
    %v9304 = vsel %vm2563, %v9299, %v9303
    %v9306 = vshrl.u32 %v9020, 16
    %v9308 = vrot.slane %v9306, 4
    %v9309 = vshll.u32 %v9020, 16
    %v9311 = vrot.slane %v9309, 5
    %v9312 = vor.u32 %v9308, %v9311
    %v9313 = vrot.slane %v9312, 4
    %v9315 = vshll.u32 %v9021, 16
    %v9317 = vrot.slane %v9315, 5
    %v9318 = vsel %vm2563, %v9313, %v9317
    %v9319 = vshrl.u32 %v9021, 16
    %v9321 = vrot.slane %v9319, 4
    %v9322 = vor.u32 %v9321, %v9317
    %v9323 = vrot.slane %v9322, 4
    %v9325 = vshll.u32 %v9022, 16
    %v9327 = vrot.slane %v9325, 5
    %v9328 = vsel %vm2563, %v9323, %v9327
    %v9330 = vshrl.u32 %v9023, 16
    %v9332 = vrot.slane %v9330, 4
    %v9333 = vshll.u32 %v9023, 16
    %v9335 = vrot.slane %v9333, 5
    %v9336 = vor.u32 %v9332, %v9335
    %v9337 = vrot.slane %v9336, 4
    %v9339 = vshll.u32 %v9024, 16
    %v9341 = vrot.slane %v9339, 5
    %v9342 = vsel %vm2563, %v9337, %v9341
    %v9343 = vshrl.u32 %v9024, 16
    %v9345 = vrot.slane %v9343, 4
    %v9346 = vor.u32 %v9345, %v9341
    %v9347 = vrot.slane %v9346, 4
    %v9349 = vshll.u32 %v9025, 16
    %v9351 = vrot.slane %v9349, 5
    %v9352 = vsel %vm2563, %v9347, %v9351
    %v9354 = vshrl.u32 %v9026, 16
    %v9356 = vrot.slane %v9354, 4
    %v9357 = vshll.u32 %v9026, 16
    %v9359 = vrot.slane %v9357, 5
    %v9360 = vor.u32 %v9356, %v9359
    %v9361 = vrot.slane %v9360, 4
    %v9363 = vshll.u32 %v9027, 16
    %v9365 = vrot.slane %v9363, 5
    %v9366 = vsel %vm2563, %v9361, %v9365
    %v9367 = vshrl.u32 %v9027, 16
    %v9369 = vrot.slane %v9367, 4
    %v9370 = vor.u32 %v9369, %v9365
    %v9371 = vrot.slane %v9370, 4
    %v9373 = vshll.u32 %v9028, 16
    %v9375 = vrot.slane %v9373, 5
    %v9376 = vsel %vm2563, %v9371, %v9375
    %v9378 = vshrl.u32 %v9029, 16
    %v9380 = vrot.slane %v9378, 4
    %v9381 = vshll.u32 %v9029, 16
    %v9383 = vrot.slane %v9381, 5
    %v9384 = vor.u32 %v9380, %v9383
    %v9385 = vrot.slane %v9384, 4
    %v9387 = vshll.u32 %v9030, 16
    %v9389 = vrot.slane %v9387, 5
    %v9390 = vsel %vm2563, %v9385, %v9389
    %v9391 = vshrl.u32 %v9030, 16
    %v9393 = vrot.slane %v9391, 4
    %v9394 = vor.u32 %v9393, %v9389
    %v9395 = vrot.slane %v9394, 4
    %v9397 = vshll.u32 %v9031, 16
    %v9399 = vrot.slane %v9397, 5
    %v9400 = vsel %vm2563, %v9395, %v9399
    %v9402 = vshrl.u32 %v9032, 16
    %v9404 = vrot.slane %v9402, 4
    %v9405 = vshll.u32 %v9032, 16
    %v9407 = vrot.slane %v9405, 5
    %v9408 = vor.u32 %v9404, %v9407
    %v9409 = vrot.slane %v9408, 4
    %v9411 = vshll.u32 %v9033, 16
    %v9413 = vrot.slane %v9411, 5
    %v9414 = vsel %vm2563, %v9409, %v9413
    %v9415 = vshrl.u32 %v9033, 16
    %v9417 = vrot.slane %v9415, 4
    %v9418 = vor.u32 %v9417, %v9413
    %v9419 = vrot.slane %v9418, 4
    %v9421 = vshll.u32 %v9034, 16
    %v9423 = vrot.slane %v9421, 5
    %v9424 = vsel %vm2563, %v9419, %v9423
    %v9426 = vshrl.u32 %v9035, 16
    %v9428 = vrot.slane %v9426, 4
    %v9429 = vshll.u32 %v9035, 16
    %v9431 = vrot.slane %v9429, 5
    %v9432 = vor.u32 %v9428, %v9431
    %v9433 = vrot.slane %v9432, 4
    %v9435 = vshll.u32 %v9036, 16
    %v9437 = vrot.slane %v9435, 5
    %v9438 = vsel %vm2563, %v9433, %v9437
    %v9439 = vshrl.u32 %v9036, 16
    %v9441 = vrot.slane %v9439, 4
    %v9442 = vor.u32 %v9441, %v9437
    %v9443 = vrot.slane %v9442, 4
    %v9445 = vshll.u32 %v9037, 16
    %v9447 = vrot.slane %v9445, 5
    %v9448 = vsel %vm2563, %v9443, %v9447
    %v9450 = vshrl.u32 %v9038, 16
    %v9452 = vrot.slane %v9450, 4
    %v9453 = vshll.u32 %v9038, 16
    %v9455 = vrot.slane %v9453, 5
    %v9456 = vor.u32 %v9452, %v9455
    %v9457 = vrot.slane %v9456, 4
    %v9459 = vshll.u32 %v9039, 16
    %v9461 = vrot.slane %v9459, 5
    %v9462 = vsel %vm2563, %v9457, %v9461
    %v9463 = vshrl.u32 %v9039, 16
    %v9465 = vrot.slane %v9463, 4
    %v9466 = vor.u32 %v9465, %v9461
    %v9467 = vrot.slane %v9466, 4
    %v9469 = vshll.u32 %v9040, 16
    %v9471 = vrot.slane %v9469, 5
    %v9472 = vsel %vm2563, %v9467, %v9471
    %v9474 = vshrl.u32 %v9041, 16
    %v9476 = vrot.slane %v9474, 4
    %v9477 = vshll.u32 %v9041, 16
    %v9479 = vrot.slane %v9477, 5
    %v9480 = vor.u32 %v9476, %v9479
    %v9481 = vrot.slane %v9480, 4
    %v9483 = vshll.u32 %v9042, 16
    %v9485 = vrot.slane %v9483, 5
    %v9486 = vsel %vm2563, %v9481, %v9485
    %v9487 = vshrl.u32 %v9042, 16
    %v9489 = vrot.slane %v9487, 4
    %v9490 = vor.u32 %v9489, %v9485
    %v9491 = vrot.slane %v9490, 4
    %v9493 = vshll.u32 %v9043, 16
    %v9495 = vrot.slane %v9493, 5
    %v9496 = vsel %vm2563, %v9491, %v9495
    %v9498 = vshrl.u32 %v9044, 16
    %v9500 = vrot.slane %v9498, 4
    %v9501 = vshll.u32 %v9044, 16
    %v9503 = vrot.slane %v9501, 5
    %v9504 = vor.u32 %v9500, %v9503
    %v9505 = vrot.slane %v9504, 4
    %v9507 = vshll.u32 %v9045, 16
    %v9509 = vrot.slane %v9507, 5
    %v9510 = vsel %vm2563, %v9505, %v9509
    %v9511 = vshrl.u32 %v9045, 16
    %v9513 = vrot.slane %v9511, 4
    %v9514 = vor.u32 %v9513, %v9509
    %v9515 = vrot.slane %v9514, 4
    %v9517 = vshll.u32 %v9046, 16
    %v9519 = vrot.slane %v9517, 5
    %v9520 = vsel %vm2563, %v9515, %v9519
    %v9522 = vshrl.u32 %v9047, 16
    %v9524 = vrot.slane %v9522, 4
    %v9525 = vshll.u32 %v9047, 16
    %v9527 = vrot.slane %v9525, 5
    %v9528 = vor.u32 %v9524, %v9527
    %v9529 = vrot.slane %v9528, 4
    %v9531 = vshll.u32 %v9048, 16
    %v9533 = vrot.slane %v9531, 5
    %v9534 = vsel %vm2563, %v9529, %v9533
    %v9535 = vshrl.u32 %v9048, 16
    %v9537 = vrot.slane %v9535, 4
    %v9538 = vor.u32 %v9537, %v9533
    %v9539 = vrot.slane %v9538, 4
    %v9541 = vshll.u32 %v9049, 16
    %v9543 = vrot.slane %v9541, 5
    %v9544 = vsel %vm2563, %v9539, %v9543
    %v9546 = vshrl.u32 %v9050, 16
    %v9548 = vrot.slane %v9546, 4
    %v9549 = vshll.u32 %v9050, 16
    %v9551 = vrot.slane %v9549, 5
    %v9552 = vor.u32 %v9548, %v9551
    %v9553 = vrot.slane %v9552, 4
    %v9555 = vshll.u32 %v9051, 16
    %v9557 = vrot.slane %v9555, 5
    %v9558 = vsel %vm2563, %v9553, %v9557
    %v9559 = vshrl.u32 %v9051, 16
    %v9561 = vrot.slane %v9559, 4
    %v9562 = vor.u32 %v9561, %v9557
    %v9563 = vrot.slane %v9562, 4
    %v9565 = vshll.u32 %v9052, 16
    %v9567 = vrot.slane %v9565, 5
    %v9568 = vsel %vm2563, %v9563, %v9567
    %v9570 = vshrl.u32 %v9053, 16
    %v9572 = vrot.slane %v9570, 4
    %v9573 = vshll.u32 %v9053, 16
    %v9575 = vrot.slane %v9573, 5
    %v9576 = vor.u32 %v9572, %v9575
    %v9577 = vrot.slane %v9576, 4
    %v9579 = vshll.u32 %v9054, 16
    %v9581 = vrot.slane %v9579, 5
    %v9582 = vsel %vm2563, %v9577, %v9581
    %v9583 = vshrl.u32 %v9054, 16
    %v9585 = vrot.slane %v9583, 4
    %v9586 = vor.u32 %v9585, %v9581
    %v9587 = vrot.slane %v9586, 4
    %v9589 = vshll.u32 %v9055, 16
    %v9591 = vrot.slane %v9589, 5
    %v9592 = vsel %vm2563, %v9587, %v9591
    %v9594 = vshrl.u32 %v9056, 16
    %v9596 = vrot.slane %v9594, 4
    %v9597 = vshll.u32 %v9056, 16
    %v9599 = vrot.slane %v9597, 5
    %v9600 = vor.u32 %v9596, %v9599
    %v9601 = vrot.slane %v9600, 4
    %v9603 = vshll.u32 %v9057, 16
    %v9605 = vrot.slane %v9603, 5
    %v9606 = vsel %vm2563, %v9601, %v9605
    %v9607 = vshrl.u32 %v9057, 16
    %v9609 = vrot.slane %v9607, 4
    %v9610 = vor.u32 %v9609, %v9605
    %v9611 = vrot.slane %v9610, 4
    %v9613 = vshll.u32 %v9058, 16
    %v9615 = vrot.slane %v9613, 5
    %v9616 = vsel %vm2563, %v9611, %v9615
    %v9618 = vshrl.u32 %v9059, 16
    %v9620 = vrot.slane %v9618, 4
    %v9621 = vshll.u32 %v9059, 16
    %v9623 = vrot.slane %v9621, 5
    %v9624 = vor.u32 %v9620, %v9623
    %v9625 = vrot.slane %v9624, 4
    %v9627 = vshll.u32 %v9060, 16
    %v9629 = vrot.slane %v9627, 5
    %v9630 = vsel %vm2563, %v9625, %v9629
    %v9631 = vshrl.u32 %v9060, 16
    %v9633 = vrot.slane %v9631, 4
    %v9634 = vor.u32 %v9633, %v9629
    %v9635 = vrot.slane %v9634, 4
    %v9637 = vshll.u32 %v9061, 16
    %v9639 = vrot.slane %v9637, 5
    %v9640 = vsel %vm2563, %v9635, %v9639
    %v9642 = vshrl.u32 %v9062, 16
    %v9644 = vrot.slane %v9642, 4
    %v9645 = vshll.u32 %v9062, 16
    %v9647 = vrot.slane %v9645, 5
    %v9648 = vor.u32 %v9644, %v9647
    %v9649 = vrot.slane %v9648, 4
    %v9651 = vshll.u32 %v9063, 16
    %v9653 = vrot.slane %v9651, 5
    %v9654 = vsel %vm2563, %v9649, %v9653
    %v9655 = vshrl.u32 %v9063, 16
    %v9657 = vrot.slane %v9655, 4
    %v9658 = vor.u32 %v9657, %v9653
    %v9659 = vrot.slane %v9658, 4
    %v9661 = vshll.u32 %v9064, 16
    %v9663 = vrot.slane %v9661, 5
    %v9664 = vsel %vm2563, %v9659, %v9663
    %v9666 = vshrl.u32 %v9065, 16
    %v9668 = vrot.slane %v9666, 4
    %v9669 = vshll.u32 %v9065, 16
    %v9671 = vrot.slane %v9669, 5
    %v9672 = vor.u32 %v9668, %v9671
    %v9673 = vrot.slane %v9672, 4
    %v9675 = vshll.u32 %v9066, 16
    %v9677 = vrot.slane %v9675, 5
    %v9678 = vsel %vm2563, %v9673, %v9677
    %v9679 = vshrl.u32 %v9066, 16
    %v9681 = vrot.slane %v9679, 4
    %v9682 = vor.u32 %v9681, %v9677
    %v9683 = vrot.slane %v9682, 4
    %v9685 = vshll.u32 %v9067, 16
    %v9687 = vrot.slane %v9685, 5
    %v9688 = vsel %vm2563, %v9683, %v9687
    %v9690 = vshrl.u32 %v9068, 16
    %v9692 = vrot.slane %v9690, 4
    %v9693 = vshll.u32 %v9068, 16
    %v9695 = vrot.slane %v9693, 5
    %v9696 = vor.u32 %v9692, %v9695
    %v9697 = vrot.slane %v9696, 4
    %v9699 = vshll.u32 %v9069, 16
    %v9701 = vrot.slane %v9699, 5
    %v9702 = vsel %vm2563, %v9697, %v9701
    %v9703 = vshrl.u32 %v9069, 16
    %v9705 = vrot.slane %v9703, 4
    %v9706 = vor.u32 %v9705, %v9701
    %v9707 = vrot.slane %v9706, 4
    %v9709 = vshll.u32 %v9070, 16
    %v9711 = vrot.slane %v9709, 5
    %v9712 = vsel %vm2563, %v9707, %v9711
    %v9714 = vshrl.u32 %v9071, 16
    %v9716 = vrot.slane %v9714, 4
    %v9717 = vshll.u32 %v9071, 16
    %v9719 = vrot.slane %v9717, 5
    %v9720 = vor.u32 %v9716, %v9719
    %v9721 = vrot.slane %v9720, 4
    %v9723 = vshll.u32 %v9072, 16
    %v9725 = vrot.slane %v9723, 5
    %v9726 = vsel %vm2563, %v9721, %v9725
    %v9727 = vshrl.u32 %v9072, 16
    %v9729 = vrot.slane %v9727, 4
    %v9730 = vor.u32 %v9729, %v9725
    %v9731 = vrot.slane %v9730, 4
    %v9733 = vshll.u32 %v9073, 16
    %v9735 = vrot.slane %v9733, 5
    %v9736 = vsel %vm2563, %v9731, %v9735
    %v9738 = vshrl.u32 %v9074, 16
    %v9740 = vrot.slane %v9738, 4
    %v9741 = vshll.u32 %v9074, 16
    %v9743 = vrot.slane %v9741, 5
    %v9744 = vor.u32 %v9740, %v9743
    %v9745 = vrot.slane %v9744, 4
    %v9747 = vshll.u32 %v9075, 16
    %v9749 = vrot.slane %v9747, 5
    %v9750 = vsel %vm2563, %v9745, %v9749
    %v9751 = vshrl.u32 %v9075, 16
    %v9753 = vrot.slane %v9751, 4
    %v9754 = vor.u32 %v9753, %v9749
    %v9755 = vrot.slane %v9754, 4
    %v9757 = vshll.u32 %v9076, 16
    %v9759 = vrot.slane %v9757, 5
    %v9760 = vsel %vm2563, %v9755, %v9759
    %v9762 = vshrl.u32 %v9077, 16
    %v9764 = vrot.slane %v9762, 4
    %v9765 = vshll.u32 %v9077, 16
    %v9767 = vrot.slane %v9765, 5
    %v9768 = vor.u32 %v9764, %v9767
    %v9769 = vrot.slane %v9768, 4
    %v9771 = vshll.u32 %v9078, 16
    %v9773 = vrot.slane %v9771, 5
    %v9774 = vsel %vm2563, %v9769, %v9773
    %v9775 = vshrl.u32 %v9078, 16
    %v9777 = vrot.slane %v9775, 4
    %v9778 = vor.u32 %v9777, %v9773
    %v9779 = vrot.slane %v9778, 4
    %v9781 = vshll.u32 %v9079, 16
    %v9783 = vrot.slane %v9781, 5
    %v9784 = vsel %vm2563, %v9779, %v9783
    %v9786 = vshrl.u32 %v9080, 16
    %v9788 = vrot.slane %v9786, 4
    %v9789 = vshll.u32 %v9080, 16
    %v9791 = vrot.slane %v9789, 5
    %v9792 = vor.u32 %v9788, %v9791
    %v9793 = vrot.slane %v9792, 4
    %v9795 = vshll.u32 %v9081, 16
    %v9797 = vrot.slane %v9795, 5
    %v9798 = vsel %vm2563, %v9793, %v9797
    %v9799 = vshrl.u32 %v9081, 16
    %v9801 = vrot.slane %v9799, 4
    %v9802 = vor.u32 %v9801, %v9797
    %v9803 = vrot.slane %v9802, 4
    %v9805 = vshll.u32 %v9082, 16
    %v9807 = vrot.slane %v9805, 5
    %v9808 = vsel %vm2563, %v9803, %v9807
    %v9810 = vshrl.u32 %v9083, 16
    %v9812 = vrot.slane %v9810, 4
    %v9813 = vshll.u32 %v9083, 16
    %v9815 = vrot.slane %v9813, 5
    %v9816 = vor.u32 %v9812, %v9815
    %v9817 = vrot.slane %v9816, 4
    %v9819 = vshll.u32 %v9084, 16
    %v9821 = vrot.slane %v9819, 5
    %v9822 = vsel %vm2563, %v9817, %v9821
    %v9823 = vshrl.u32 %v9084, 16
    %v9825 = vrot.slane %v9823, 4
    %v9826 = vor.u32 %v9825, %v9821
    %v9827 = vrot.slane %v9826, 4
    %v9829 = vshll.u32 %v9085, 16
    %v9831 = vrot.slane %v9829, 5
    %v9832 = vsel %vm2563, %v9827, %v9831
    %v9834 = vshrl.u32 %v9086, 16
    %v9836 = vrot.slane %v9834, 4
    %v9837 = vshll.u32 %v9086, 16
    %v9839 = vrot.slane %v9837, 5
    %v9840 = vor.u32 %v9836, %v9839
    %v9841 = vrot.slane %v9840, 4
    %v9843 = vshll.u32 %v9087, 16
    %v9845 = vrot.slane %v9843, 5
    %v9846 = vsel %vm2563, %v9841, %v9845
    %v9847 = vshrl.u32 %v9087, 16
    %v9849 = vrot.slane %v9847, 4
    %v9850 = vor.u32 %v9849, %v9845
    %v9851 = vrot.slane %v9850, 4
    %v9853 = vshll.u32 %v9088, 16
    %v9855 = vrot.slane %v9853, 5
    %v9856 = vsel %vm2563, %v9851, %v9855
    %s9857 = scalar_lea.vmem [#allocation7], 112
    %v9858 = vld [vmem:[%s9857] sm:$0xf]
    %v9859 = vld [vmem:[%s9857 + $0x4] sm:$0xf]
    %v9860 = vld [vmem:[%s9857 + $0x8] sm:$0xf]
    %v9861 = vld [vmem:[%s9857 + $0xc] sm:$0xf]
    %v9862 = vunpack.c.l.b16 %v9102
    %v9863 = vunpack.c.l.b16 %v9112
    %v9864 = vunpack.c.l.b16 %v9126
    %v9865 = vunpack.c.l.b16 %v9136
    %v9866 = vunpack.c.l.b16 %v9150
    %v9867 = vunpack.c.l.b16 %v9160
    %v9868 = vunpack.c.l.b16 %v9174
    %v9869 = vunpack.c.l.b16 %v9184
    %v9870 = vunpack.c.l.b16 %v9198
    %v9871 = vunpack.c.l.b16 %v9208
    %v9872 = vunpack.c.l.b16 %v9222
    %v9873 = vunpack.c.l.b16 %v9232
    %v9874 = vunpack.c.l.b16 %v9246
    %v9875 = vunpack.c.l.b16 %v9256
    %v9876 = vunpack.c.l.b16 %v9270
    %v9877 = vunpack.c.l.b16 %v9280
    %v9878 = vunpack.c.l.b16 %v9294
    %v9879 = vunpack.c.l.b16 %v9304
    %v9880 = vunpack.c.l.b16 %v9318
    %v9881 = vunpack.c.l.b16 %v9328
    %v9882 = vunpack.c.l.b16 %v9342
    %v9883 = vunpack.c.l.b16 %v9352
    %v9884 = vunpack.c.l.b16 %v9366
    %v9885 = vunpack.c.l.b16 %v9376
    %v9886 = vunpack.c.l.b16 %v9390
    %v9887 = vunpack.c.l.b16 %v9400
    %v9888 = vunpack.c.l.b16 %v9414
    %v9889 = vunpack.c.l.b16 %v9424
    %v9890 = vunpack.c.l.b16 %v9438
    %v9891 = vunpack.c.l.b16 %v9448
    %v9892 = vunpack.c.l.b16 %v9462
    %v9893 = vunpack.c.l.b16 %v9472
    %v9894 = vunpack.c.l.b16 %v9486
    %v9895 = vunpack.c.l.b16 %v9496
    %v9896 = vunpack.c.l.b16 %v9510
    %v9897 = vunpack.c.l.b16 %v9520
    %v9898 = vunpack.c.l.b16 %v9534
    %v9899 = vunpack.c.l.b16 %v9544
    %v9900 = vunpack.c.l.b16 %v9558
    %v9901 = vunpack.c.l.b16 %v9568
    %v9902 = vunpack.c.l.b16 %v9582
    %v9903 = vunpack.c.l.b16 %v9592
    %v9904 = vunpack.c.l.b16 %v9606
    %v9905 = vunpack.c.l.b16 %v9616
    %v9906 = vunpack.c.l.b16 %v9630
    %v9907 = vunpack.c.l.b16 %v9640
    %v9908 = vunpack.c.l.b16 %v9654
    %v9909 = vunpack.c.l.b16 %v9664
    %v9910 = vunpack.c.l.b16 %v9678
    %v9911 = vunpack.c.l.b16 %v9688
    %v9912 = vunpack.c.l.b16 %v9702
    %v9913 = vunpack.c.l.b16 %v9712
    %v9914 = vunpack.c.l.b16 %v9726
    %v9915 = vunpack.c.l.b16 %v9736
    %v9916 = vunpack.c.l.b16 %v9750
    %v9917 = vunpack.c.l.b16 %v9760
    %v9918 = vunpack.c.l.b16 %v9774
    %v9919 = vunpack.c.l.b16 %v9784
    %v9920 = vunpack.c.l.b16 %v9798
    %v9921 = vunpack.c.l.b16 %v9808
    %v9922 = vunpack.c.l.b16 %v9822
    %v9923 = vunpack.c.l.b16 %v9832
    %v9924 = vunpack.c.l.b16 %v9846
    %v9925 = vunpack.c.l.b16 %v9856
    %v9926 = vpack.c.b16 %v9863, %v9862
    %v9927 = vpack.c.b16 %v9865, %v9864
    %v9928 = vpack.c.b16 %v9867, %v9866
    %v9929 = vpack.c.b16 %v9869, %v9868
    %v9930 = vpack.c.b16 %v9871, %v9870
    %v9931 = vpack.c.b16 %v9873, %v9872
    %v9932 = vpack.c.b16 %v9875, %v9874
    %v9933 = vpack.c.b16 %v9877, %v9876
    %v9934 = vpack.c.b16 %v9879, %v9878
    %v9935 = vpack.c.b16 %v9881, %v9880
    %v9936 = vpack.c.b16 %v9883, %v9882
    %v9937 = vpack.c.b16 %v9885, %v9884
    %v9938 = vpack.c.b16 %v9887, %v9886
    %v9939 = vpack.c.b16 %v9889, %v9888
    %v9940 = vpack.c.b16 %v9891, %v9890
    %v9941 = vpack.c.b16 %v9893, %v9892
    %v9942 = vpack.c.b16 %v9895, %v9894
    %v9943 = vpack.c.b16 %v9897, %v9896
    %v9944 = vpack.c.b16 %v9899, %v9898
    %v9945 = vpack.c.b16 %v9901, %v9900
    %v9946 = vpack.c.b16 %v9903, %v9902
    %v9947 = vpack.c.b16 %v9905, %v9904
    %v9948 = vpack.c.b16 %v9907, %v9906
    %v9949 = vpack.c.b16 %v9909, %v9908
    %v9950 = vpack.c.b16 %v9911, %v9910
    %v9951 = vpack.c.b16 %v9913, %v9912
    %v9952 = vpack.c.b16 %v9915, %v9914
    %v9953 = vpack.c.b16 %v9917, %v9916
    %v9954 = vpack.c.b16 %v9919, %v9918
    %v9955 = vpack.c.b16 %v9921, %v9920
    %v9956 = vpack.c.b16 %v9923, %v9922
    %v9957 = vpack.c.b16 %v9925, %v9924
    %v9962 = vunpack.c.l.b16 %v9858
    %v9963 = vunpack.c.l.b16 %v9859
    %v9964 = vunpack.c.l.b16 %v9860
    %v9965 = vunpack.c.l.b16 %v9861
    %v9966 = vpack.c.b16 %v9963, %v9962
    %v9967 = vpack.c.b16 %v9965, %v9964
    %v9971 = vsel %vm523, %v9926, 0
    %v9974 = vsel %vm523, %v9927, 0
    %v9977 = vsel %vm523, %v9928, 0
    %v9980 = vsel %vm523, %v9929, 0
    %v9983 = vsel %vm523, %v9930, 0
    %v9986 = vsel %vm523, %v9931, 0
    %v9989 = vsel %vm523, %v9932, 0
    %v9992 = vsel %vm523, %v9933, 0
    %v9995 = vsel %vm523, %v9934, 0
    %v9998 = vsel %vm523, %v9935, 0
    %v10001 = vsel %vm523, %v9936, 0
    %v10004 = vsel %vm523, %v9937, 0
    %v10007 = vsel %vm523, %v9938, 0
    %v10010 = vsel %vm523, %v9939, 0
    %v10013 = vsel %vm523, %v9940, 0
    %v10016 = vsel %vm523, %v9941, 0
    %v10019 = vsel %vm523, %v9942, 0
    %v10022 = vsel %vm523, %v9943, 0
    %v10025 = vsel %vm523, %v9944, 0
    %v10028 = vsel %vm523, %v9945, 0
    %v10031 = vsel %vm523, %v9946, 0
    %v10034 = vsel %vm523, %v9947, 0
    %v10037 = vsel %vm523, %v9948, 0
    %v10040 = vsel %vm523, %v9949, 0
    %v10043 = vsel %vm523, %v9950, 0
    %v10046 = vsel %vm523, %v9951, 0
    %v10049 = vsel %vm523, %v9952, 0
    %v10052 = vsel %vm523, %v9953, 0
    %v10055 = vsel %vm523, %v9954, 0
    %v10058 = vsel %vm523, %v9955, 0
    %v10061 = vsel %vm523, %v9956, 0
    %v10064 = vsel %vm523, %v9957, 0
    %10066 = vmatprep.subr.bf16.mxu0 0
    %10067 = vmatpush1.bf16.msra.mxu0 %v9966
    %10068 = vmatprep.subr.bf16.mxu0 0
    %10069 = vmatpush1.bf16.msra.mxu0 %v9967
    %10070 = vmatprep.subr.bf16.mxu0 0
    %10071 = vmatpush1.bf16.msra.mxu0 0
    %10072 = vmatprep.subr.bf16.mxu0 0
    %10073 = vmatpush1.bf16.msra.mxu0 0
    %10074 = vmatprep.subr.bf16.mxu0 0
    %10075 = vmatpush1.bf16.msra.mxu0 0
    %10076 = vmatprep.subr.bf16.mxu0 0
    %10077 = vmatpush1.bf16.msra.mxu0 0
    %10078 = vmatprep.subr.bf16.mxu0 0
    %10079 = vmatpush1.bf16.msra.mxu0 0
    %10080 = vmatprep.subr.bf16.mxu0 0
    %10081 = vmatpush1.bf16.msra.mxu0 0
    %10082 = vmatprep.subr.bf16.mxu0 0
    %10083 = vmatpush1.bf16.msra.mxu0 0
    %10084 = vmatprep.subr.bf16.mxu0 0
    %10085 = vmatpush1.bf16.msra.mxu0 0
    %10086 = vmatprep.subr.bf16.mxu0 0
    %10087 = vmatpush1.bf16.msra.mxu0 0
    %10088 = vmatprep.subr.bf16.mxu0 0
    %10089 = vmatpush1.bf16.msra.mxu0 0
    %10090 = vmatprep.subr.bf16.mxu0 0
    %10091 = vmatpush1.bf16.msra.mxu0 0
    %10092 = vmatprep.subr.bf16.mxu0 0
    %10093 = vmatpush1.bf16.msra.mxu0 0
    %10094 = vmatprep.subr.bf16.mxu0 0
    %10095 = vmatpush1.bf16.msra.mxu0 0
    %10096 = vmatprep.subr.bf16.mxu0 0
    %10097 = vmatpush1.bf16.msra.mxu0 0
    %10098 = vmatprep.mubr.bf16.mxu0 0
    %10099 = vmatmul.mubr.bf16.gmra.mrb[0].mxu0 %v9971
    %v10100 = vpop.f32.mrb[0].mxu0
    %v10101 = vadd.f32 0.0, %v10100
    %v10102 = vpop.f32.mrb[0].mxu0
    %v10103 = vpop.f32.mrb[0].mxu0
    %v10104 = vadd.f32 0.0, %v10103
    %v10105 = vpop.f32.mrb[0].mxu0
    %10106 = vmatprep.mubr.bf16.mxu0 0
    %10107 = vmatmul.mubr.bf16.gmra.mrb[0].mxu0 %v9974
    %v10108 = vpop.f32.mrb[0].mxu0
    %v10109 = vadd.f32 0.0, %v10108
    %v10110 = vpop.f32.mrb[0].mxu0
    %v10111 = vpop.f32.mrb[0].mxu0
    %v10112 = vadd.f32 0.0, %v10111
    %v10113 = vpop.f32.mrb[0].mxu0
    %10114 = vmatprep.mubr.bf16.mxu0 0
    %10115 = vmatmul.mubr.bf16.gmra.mrb[0].mxu0 %v9977
    %v10116 = vpop.f32.mrb[0].mxu0
    %v10117 = vadd.f32 0.0, %v10116
    %v10118 = vpop.f32.mrb[0].mxu0
    %v10119 = vpop.f32.mrb[0].mxu0
    %v10120 = vadd.f32 0.0, %v10119
    %v10121 = vpop.f32.mrb[0].mxu0
    %10122 = vmatprep.mubr.bf16.mxu0 0
    %10123 = vmatmul.mubr.bf16.gmra.mrb[0].mxu0 %v9980
    %v10124 = vpop.f32.mrb[0].mxu0
    %v10125 = vadd.f32 0.0, %v10124
    %v10126 = vpop.f32.mrb[0].mxu0
    %v10127 = vpop.f32.mrb[0].mxu0
    %v10128 = vadd.f32 0.0, %v10127
    %v10129 = vpop.f32.mrb[0].mxu0
    %10130 = vmatprep.mubr.bf16.mxu0 0
    %10131 = vmatmul.mubr.bf16.gmra.mrb[0].mxu0 %v9983
    %v10132 = vpop.f32.mrb[0].mxu0
    %v10133 = vadd.f32 0.0, %v10132
    %v10134 = vpop.f32.mrb[0].mxu0
    %v10135 = vpop.f32.mrb[0].mxu0
    %v10136 = vadd.f32 0.0, %v10135
    %v10137 = vpop.f32.mrb[0].mxu0
    %10138 = vmatprep.mubr.bf16.mxu0 0
    %10139 = vmatmul.mubr.bf16.gmra.mrb[0].mxu0 %v9986
    %v10140 = vpop.f32.mrb[0].mxu0
    %v10141 = vadd.f32 0.0, %v10140
    %v10142 = vpop.f32.mrb[0].mxu0
    %v10143 = vpop.f32.mrb[0].mxu0
    %v10144 = vadd.f32 0.0, %v10143
    %v10145 = vpop.f32.mrb[0].mxu0
    %10146 = vmatprep.mubr.bf16.mxu0 0
    %10147 = vmatmul.mubr.bf16.gmra.mrb[0].mxu0 %v9989
    %v10148 = vpop.f32.mrb[0].mxu0
    %v10149 = vadd.f32 0.0, %v10148
    %v10150 = vpop.f32.mrb[0].mxu0
    %v10151 = vpop.f32.mrb[0].mxu0
    %v10152 = vadd.f32 0.0, %v10151
    %v10153 = vpop.f32.mrb[0].mxu0
    %10154 = vmatprep.mubr.bf16.mxu0 0
    %10155 = vmatmul.mubr.bf16.gmra.mrb[0].mxu0 %v9992
    %v10156 = vpop.f32.mrb[0].mxu0
    %v10157 = vadd.f32 0.0, %v10156
    %v10158 = vpop.f32.mrb[0].mxu0
    %v10159 = vpop.f32.mrb[0].mxu0
    %v10160 = vadd.f32 0.0, %v10159
    %v10161 = vpop.f32.mrb[0].mxu0
    %10162 = vmatprep.mubr.bf16.mxu0 0
    %10163 = vmatmul.mubr.bf16.gmra.mrb[0].mxu0 %v9995
    %v10164 = vpop.f32.mrb[0].mxu0
    %v10165 = vadd.f32 0.0, %v10164
    %v10166 = vpop.f32.mrb[0].mxu0
    %v10167 = vpop.f32.mrb[0].mxu0
    %v10168 = vadd.f32 0.0, %v10167
    %v10169 = vpop.f32.mrb[0].mxu0
    %10170 = vmatprep.mubr.bf16.mxu0 0
    %10171 = vmatmul.mubr.bf16.gmra.mrb[0].mxu0 %v9998
    %v10172 = vpop.f32.mrb[0].mxu0
    %v10173 = vadd.f32 0.0, %v10172
    %v10174 = vpop.f32.mrb[0].mxu0
    %v10175 = vpop.f32.mrb[0].mxu0
    %v10176 = vadd.f32 0.0, %v10175
    %v10177 = vpop.f32.mrb[0].mxu0
    %10178 = vmatprep.mubr.bf16.mxu0 0
    %10179 = vmatmul.mubr.bf16.gmra.mrb[0].mxu0 %v10001
    %v10180 = vpop.f32.mrb[0].mxu0
    %v10181 = vadd.f32 0.0, %v10180
    %v10182 = vpop.f32.mrb[0].mxu0
    %v10183 = vpop.f32.mrb[0].mxu0
    %v10184 = vadd.f32 0.0, %v10183
    %v10185 = vpop.f32.mrb[0].mxu0
    %10186 = vmatprep.mubr.bf16.mxu0 0
    %10187 = vmatmul.mubr.bf16.gmra.mrb[0].mxu0 %v10004
    %v10188 = vpop.f32.mrb[0].mxu0
    %v10189 = vadd.f32 0.0, %v10188
    %v10190 = vpop.f32.mrb[0].mxu0
    %v10191 = vpop.f32.mrb[0].mxu0
    %v10192 = vadd.f32 0.0, %v10191
    %v10193 = vpop.f32.mrb[0].mxu0
    %10194 = vmatprep.mubr.bf16.mxu0 0
    %10195 = vmatmul.mubr.bf16.gmra.mrb[0].mxu0 %v10007
    %v10196 = vpop.f32.mrb[0].mxu0
    %v10197 = vadd.f32 0.0, %v10196
    %v10198 = vpop.f32.mrb[0].mxu0
    %v10199 = vpop.f32.mrb[0].mxu0
    %v10200 = vadd.f32 0.0, %v10199
    %v10201 = vpop.f32.mrb[0].mxu0
    %10202 = vmatprep.mubr.bf16.mxu0 0
    %10203 = vmatmul.mubr.bf16.gmra.mrb[0].mxu0 %v10010
    %v10204 = vpop.f32.mrb[0].mxu0
    %v10205 = vadd.f32 0.0, %v10204
    %v10206 = vpop.f32.mrb[0].mxu0
    %v10207 = vpop.f32.mrb[0].mxu0
    %v10208 = vadd.f32 0.0, %v10207
    %v10209 = vpop.f32.mrb[0].mxu0
    %10210 = vmatprep.mubr.bf16.mxu0 0
    %10211 = vmatmul.mubr.bf16.gmra.mrb[0].mxu0 %v10013
    %v10212 = vpop.f32.mrb[0].mxu0
    %v10213 = vadd.f32 0.0, %v10212
    %v10214 = vpop.f32.mrb[0].mxu0
    %v10215 = vpop.f32.mrb[0].mxu0
    %v10216 = vadd.f32 0.0, %v10215
    %v10217 = vpop.f32.mrb[0].mxu0
    %10218 = vmatprep.mubr.bf16.mxu0 0
    %10219 = vmatmul.mubr.bf16.gmra.mrb[0].mxu0 %v10016
    %v10220 = vpop.f32.mrb[0].mxu0
    %v10221 = vadd.f32 0.0, %v10220
    %v10222 = vpop.f32.mrb[0].mxu0
    %v10223 = vpop.f32.mrb[0].mxu0
    %v10224 = vadd.f32 0.0, %v10223
    %v10225 = vpop.f32.mrb[0].mxu0
    %10226 = vmatprep.mubr.bf16.mxu0 0
    %10227 = vmatmul.mubr.bf16.gmra.mrb[0].mxu0 %v10019
    %v10228 = vpop.f32.mrb[0].mxu0
    %v10229 = vadd.f32 0.0, %v10228
    %v10230 = vpop.f32.mrb[0].mxu0
    %v10231 = vpop.f32.mrb[0].mxu0
    %v10232 = vadd.f32 0.0, %v10231
    %v10233 = vpop.f32.mrb[0].mxu0
    %10234 = vmatprep.mubr.bf16.mxu0 0
    %10235 = vmatmul.mubr.bf16.gmra.mrb[0].mxu0 %v10022
    %v10236 = vpop.f32.mrb[0].mxu0
    %v10237 = vadd.f32 0.0, %v10236
    %v10238 = vpop.f32.mrb[0].mxu0
    %v10239 = vpop.f32.mrb[0].mxu0
    %v10240 = vadd.f32 0.0, %v10239
    %v10241 = vpop.f32.mrb[0].mxu0
    %10242 = vmatprep.mubr.bf16.mxu0 0
    %10243 = vmatmul.mubr.bf16.gmra.mrb[0].mxu0 %v10025
    %v10244 = vpop.f32.mrb[0].mxu0
    %v10245 = vadd.f32 0.0, %v10244
    %v10246 = vpop.f32.mrb[0].mxu0
    %v10247 = vpop.f32.mrb[0].mxu0
    %v10248 = vadd.f32 0.0, %v10247
    %v10249 = vpop.f32.mrb[0].mxu0
    %10250 = vmatprep.mubr.bf16.mxu0 0
    %10251 = vmatmul.mubr.bf16.gmra.mrb[0].mxu0 %v10028
    %v10252 = vpop.f32.mrb[0].mxu0
    %v10253 = vadd.f32 0.0, %v10252
    %v10254 = vpop.f32.mrb[0].mxu0
    %v10255 = vpop.f32.mrb[0].mxu0
    %v10256 = vadd.f32 0.0, %v10255
    %v10257 = vpop.f32.mrb[0].mxu0
    %10258 = vmatprep.mubr.bf16.mxu0 0
    %10259 = vmatmul.mubr.bf16.gmra.mrb[0].mxu0 %v10031
    %v10260 = vpop.f32.mrb[0].mxu0
    %v10261 = vadd.f32 0.0, %v10260
    %v10262 = vpop.f32.mrb[0].mxu0
    %v10263 = vpop.f32.mrb[0].mxu0
    %v10264 = vadd.f32 0.0, %v10263
    %v10265 = vpop.f32.mrb[0].mxu0
    %10266 = vmatprep.mubr.bf16.mxu0 0
    %10267 = vmatmul.mubr.bf16.gmra.mrb[0].mxu0 %v10034
    %v10268 = vpop.f32.mrb[0].mxu0
    %v10269 = vadd.f32 0.0, %v10268
    %v10270 = vpop.f32.mrb[0].mxu0
    %v10271 = vpop.f32.mrb[0].mxu0
    %v10272 = vadd.f32 0.0, %v10271
    %v10273 = vpop.f32.mrb[0].mxu0
    %10274 = vmatprep.mubr.bf16.mxu0 0
    %10275 = vmatmul.mubr.bf16.gmra.mrb[0].mxu0 %v10037
    %v10276 = vpop.f32.mrb[0].mxu0
    %v10277 = vadd.f32 0.0, %v10276
    %v10278 = vpop.f32.mrb[0].mxu0
    %v10279 = vpop.f32.mrb[0].mxu0
    %v10280 = vadd.f32 0.0, %v10279
    %v10281 = vpop.f32.mrb[0].mxu0
    %10282 = vmatprep.mubr.bf16.mxu0 0
    %10283 = vmatmul.mubr.bf16.gmra.mrb[0].mxu0 %v10040
    %v10284 = vpop.f32.mrb[0].mxu0
    %v10285 = vadd.f32 0.0, %v10284
    %v10286 = vpop.f32.mrb[0].mxu0
    %v10287 = vpop.f32.mrb[0].mxu0
    %v10288 = vadd.f32 0.0, %v10287
    %v10289 = vpop.f32.mrb[0].mxu0
    %10290 = vmatprep.mubr.bf16.mxu0 0
    %10291 = vmatmul.mubr.bf16.gmra.mrb[0].mxu0 %v10043
    %v10292 = vpop.f32.mrb[0].mxu0
    %v10293 = vadd.f32 0.0, %v10292
    %v10294 = vpop.f32.mrb[0].mxu0
    %v10295 = vpop.f32.mrb[0].mxu0
    %v10296 = vadd.f32 0.0, %v10295
    %v10297 = vpop.f32.mrb[0].mxu0
    %10298 = vmatprep.mubr.bf16.mxu0 0
    %10299 = vmatmul.mubr.bf16.gmra.mrb[0].mxu0 %v10046
    %v10300 = vpop.f32.mrb[0].mxu0
    %v10301 = vadd.f32 0.0, %v10300
    %v10302 = vpop.f32.mrb[0].mxu0
    %v10303 = vpop.f32.mrb[0].mxu0
    %v10304 = vadd.f32 0.0, %v10303
    %v10305 = vpop.f32.mrb[0].mxu0
    %10306 = vmatprep.mubr.bf16.mxu0 0
    %10307 = vmatmul.mubr.bf16.gmra.mrb[0].mxu0 %v10049
    %v10308 = vpop.f32.mrb[0].mxu0
    %v10309 = vadd.f32 0.0, %v10308
    %v10310 = vpop.f32.mrb[0].mxu0
    %v10311 = vpop.f32.mrb[0].mxu0
    %v10312 = vadd.f32 0.0, %v10311
    %v10313 = vpop.f32.mrb[0].mxu0
    %10314 = vmatprep.mubr.bf16.mxu0 0
    %10315 = vmatmul.mubr.bf16.gmra.mrb[0].mxu0 %v10052
    %v10316 = vpop.f32.mrb[0].mxu0
    %v10317 = vadd.f32 0.0, %v10316
    %v10318 = vpop.f32.mrb[0].mxu0
    %v10319 = vpop.f32.mrb[0].mxu0
    %v10320 = vadd.f32 0.0, %v10319
    %v10321 = vpop.f32.mrb[0].mxu0
    %10322 = vmatprep.mubr.bf16.mxu0 0
    %10323 = vmatmul.mubr.bf16.gmra.mrb[0].mxu0 %v10055
    %v10324 = vpop.f32.mrb[0].mxu0
    %v10325 = vadd.f32 0.0, %v10324
    %v10326 = vpop.f32.mrb[0].mxu0
    %v10327 = vpop.f32.mrb[0].mxu0
    %v10328 = vadd.f32 0.0, %v10327
    %v10329 = vpop.f32.mrb[0].mxu0
    %10330 = vmatprep.mubr.bf16.mxu0 0
    %10331 = vmatmul.mubr.bf16.gmra.mrb[0].mxu0 %v10058
    %v10332 = vpop.f32.mrb[0].mxu0
    %v10333 = vadd.f32 0.0, %v10332
    %v10334 = vpop.f32.mrb[0].mxu0
    %v10335 = vpop.f32.mrb[0].mxu0
    %v10336 = vadd.f32 0.0, %v10335
    %v10337 = vpop.f32.mrb[0].mxu0
    %10338 = vmatprep.mubr.bf16.mxu0 0
    %10339 = vmatmul.mubr.bf16.gmra.mrb[0].mxu0 %v10061
    %v10340 = vpop.f32.mrb[0].mxu0
    %v10341 = vadd.f32 0.0, %v10340
    %v10342 = vpop.f32.mrb[0].mxu0
    %v10343 = vpop.f32.mrb[0].mxu0
    %v10344 = vadd.f32 0.0, %v10343
    %v10345 = vpop.f32.mrb[0].mxu0
    %10346 = vmatprep.mubr.bf16.mxu0 0
    %10347 = vmatmul.mubr.bf16.gmra.mrb[0].mxu0 %v10064
    %v10348 = vpop.f32.mrb[0].mxu0
    %v10349 = vadd.f32 0.0, %v10348
    %v10350 = vpop.f32.mrb[0].mxu0
    %v10351 = vpop.f32.mrb[0].mxu0
    %v10352 = vadd.f32 0.0, %v10351
    %v10353 = vpop.f32.mrb[0].mxu0
    %10354 = vdwg.mxu0
    %v10355 = vadd.f32 %v8929, %v10101
    %v10356 = vadd.f32 %v8930, %v10104
    %v10357 = vadd.f32 %v8931, %v10109
    %v10358 = vadd.f32 %v8932, %v10112
    %v10359 = vadd.f32 %v8933, %v10117
    %v10360 = vadd.f32 %v8934, %v10120
    %v10361 = vadd.f32 %v8935, %v10125
    %v10362 = vadd.f32 %v8936, %v10128
    %v10363 = vadd.f32 %v8937, %v10133
    %v10364 = vadd.f32 %v8938, %v10136
    %v10365 = vadd.f32 %v8939, %v10141
    %v10366 = vadd.f32 %v8940, %v10144
    %v10367 = vadd.f32 %v8941, %v10149
    %v10368 = vadd.f32 %v8942, %v10152
    %v10369 = vadd.f32 %v8943, %v10157
    %v10370 = vadd.f32 %v8944, %v10160
    %v10371 = vadd.f32 %v8945, %v10165
    %v10372 = vadd.f32 %v8946, %v10168
    %v10373 = vadd.f32 %v8947, %v10173
    %v10374 = vadd.f32 %v8948, %v10176
    %v10375 = vadd.f32 %v8949, %v10181
    %v10376 = vadd.f32 %v8950, %v10184
    %v10377 = vadd.f32 %v8951, %v10189
    %v10378 = vadd.f32 %v8952, %v10192
    %v10379 = vadd.f32 %v8953, %v10197
    %v10380 = vadd.f32 %v8954, %v10200
    %v10381 = vadd.f32 %v8955, %v10205
    %v10382 = vadd.f32 %v8956, %v10208
    %v10383 = vadd.f32 %v8957, %v10213
    %v10384 = vadd.f32 %v8958, %v10216
    %v10385 = vadd.f32 %v8959, %v10221
    %v10386 = vadd.f32 %v8960, %v10224
    %v10387 = vadd.f32 %v8961, %v10229
    %v10388 = vadd.f32 %v8962, %v10232
    %v10389 = vadd.f32 %v8963, %v10237
    %v10390 = vadd.f32 %v8964, %v10240
    %v10391 = vadd.f32 %v8965, %v10245
    %v10392 = vadd.f32 %v8966, %v10248
    %v10393 = vadd.f32 %v8967, %v10253
    %v10394 = vadd.f32 %v8968, %v10256
    %v10395 = vadd.f32 %v8969, %v10261
    %v10396 = vadd.f32 %v8970, %v10264
    %v10397 = vadd.f32 %v8971, %v10269
    %v10398 = vadd.f32 %v8972, %v10272
    %v10399 = vadd.f32 %v8973, %v10277
    %v10400 = vadd.f32 %v8974, %v10280
    %v10401 = vadd.f32 %v8975, %v10285
    %v10402 = vadd.f32 %v8976, %v10288
    %v10403 = vadd.f32 %v8977, %v10293
    %v10404 = vadd.f32 %v8978, %v10296
    %v10405 = vadd.f32 %v8979, %v10301
    %v10406 = vadd.f32 %v8980, %v10304
    %v10407 = vadd.f32 %v8981, %v10309
    %v10408 = vadd.f32 %v8982, %v10312
    %v10409 = vadd.f32 %v8983, %v10317
    %v10410 = vadd.f32 %v8984, %v10320
    %v10411 = vadd.f32 %v8985, %v10325
    %v10412 = vadd.f32 %v8986, %v10328
    %v10413 = vadd.f32 %v8987, %v10333
    %v10414 = vadd.f32 %v8988, %v10336
    %v10415 = vadd.f32 %v8989, %v10341
    %v10416 = vadd.f32 %v8990, %v10344
    %v10417 = vadd.f32 %v8991, %v10349
    %v10418 = vadd.f32 %v8992, %v10352
    %v10419 = vld [vmem:[%s8302] sm:$0xe]
    %v10420 = vld [vmem:[%s8302 + $0xc] sm:$0xe]
    %v10421 = vld [vmem:[%s8302 + $0x18] sm:$0xe]
    %v10422 = vld [vmem:[%s8302 + $0x24] sm:$0xe]
    %v10423 = vld [vmem:[%s8302 + $0x30] sm:$0xe]
    %v10424 = vld [vmem:[%s8302 + $0x3c] sm:$0xe]
    %v10425 = vld [vmem:[%s8302 + $0x48] sm:$0xe]
    %v10426 = vld [vmem:[%s8302 + $0x54] sm:$0xe]
    %v10427 = vld [vmem:[%s8302 + $0x60] sm:$0xe]
    %v10428 = vld [vmem:[%s8302 + $0x6c] sm:$0xe]
    %v10429 = vld [vmem:[%s8302 + $0x78] sm:$0xe]
    %v10430 = vld [vmem:[%s8302 + $0x84] sm:$0xe]
    %v10431 = vld [vmem:[%s8302 + $0x90] sm:$0xe]
    %v10432 = vld [vmem:[%s8302 + $0x9c] sm:$0xe]
    %v10433 = vld [vmem:[%s8302 + $0xa8] sm:$0xe]
    %v10434 = vld [vmem:[%s8302 + $0xb4] sm:$0xe]
    %v10435 = vld [vmem:[%s8302 + $0xd8] sm:$0xe]
    %v10436 = vld [vmem:[%s8302 + $0xe4] sm:$0xe]
    %v10437 = vld [vmem:[%s8302 + $0xf0] sm:$0xe]
    %v10438 = vld [vmem:[%s8302 + $0xfc] sm:$0xe]
    %v10439 = vld [vmem:[%s8302 + $0x108] sm:$0xe]
    %v10440 = vld [vmem:[%s8302 + $0x114] sm:$0xe]
    %v10441 = vld [vmem:[%s8302 + $0x120] sm:$0xe]
    %v10442 = vld [vmem:[%s8302 + $0x12c] sm:$0xe]
    %v10443 = vld [vmem:[%s8302 + $0x138] sm:$0xe]
    %v10444 = vld [vmem:[%s8302 + $0x144] sm:$0xe]
    %v10445 = vld [vmem:[%s8302 + $0x150] sm:$0xe]
    %v10446 = vld [vmem:[%s8302 + $0x15c] sm:$0xe]
    %v10447 = vld [vmem:[%s8302 + $0x168] sm:$0xe]
    %v10448 = vld [vmem:[%s8302 + $0x174] sm:$0xe]
    %v10449 = vld [vmem:[%s8302 + $0x180] sm:$0xe]
    %v10450 = vld [vmem:[%s8302 + $0x18c] sm:$0xe]
    %v10547 = vrot.slane %v10419, 5
    %v10548 = vrot.slane %v10547, 4
    %v10549 = vrot.slane %v8994, 5
    %v10550 = vsel %vm4485, %v10548, %v10549
    %v10551 = vrot.slane %v10549, 4
    %v10552 = vrot.slane %v8995, 5
    %v10553 = vsel %vm4485, %v10551, %v10552
    %v10554 = vrot.slane %v10420, 5
    %v10555 = vrot.slane %v10554, 4
    %v10556 = vrot.slane %v8997, 5
    %v10557 = vsel %vm4485, %v10555, %v10556
    %v10558 = vrot.slane %v10556, 4
    %v10559 = vrot.slane %v8998, 5
    %v10560 = vsel %vm4485, %v10558, %v10559
    %v10561 = vrot.slane %v10421, 5
    %v10562 = vrot.slane %v10561, 4
    %v10563 = vrot.slane %v9000, 5
    %v10564 = vsel %vm4485, %v10562, %v10563
    %v10565 = vrot.slane %v10563, 4
    %v10566 = vrot.slane %v9001, 5
    %v10567 = vsel %vm4485, %v10565, %v10566
    %v10568 = vrot.slane %v10422, 5
    %v10569 = vrot.slane %v10568, 4
    %v10570 = vrot.slane %v9003, 5
    %v10571 = vsel %vm4485, %v10569, %v10570
    %v10572 = vrot.slane %v10570, 4
    %v10573 = vrot.slane %v9004, 5
    %v10574 = vsel %vm4485, %v10572, %v10573
    %v10575 = vrot.slane %v10423, 5
    %v10576 = vrot.slane %v10575, 4
    %v10577 = vrot.slane %v9006, 5
    %v10578 = vsel %vm4485, %v10576, %v10577
    %v10579 = vrot.slane %v10577, 4
    %v10580 = vrot.slane %v9007, 5
    %v10581 = vsel %vm4485, %v10579, %v10580
    %v10582 = vrot.slane %v10424, 5
    %v10583 = vrot.slane %v10582, 4
    %v10584 = vrot.slane %v9009, 5
    %v10585 = vsel %vm4485, %v10583, %v10584
    %v10586 = vrot.slane %v10584, 4
    %v10587 = vrot.slane %v9010, 5
    %v10588 = vsel %vm4485, %v10586, %v10587
    %v10589 = vrot.slane %v10425, 5
    %v10590 = vrot.slane %v10589, 4
    %v10591 = vrot.slane %v9012, 5
    %v10592 = vsel %vm4485, %v10590, %v10591
    %v10593 = vrot.slane %v10591, 4
    %v10594 = vrot.slane %v9013, 5
    %v10595 = vsel %vm4485, %v10593, %v10594
    %v10596 = vrot.slane %v10426, 5
    %v10597 = vrot.slane %v10596, 4
    %v10598 = vrot.slane %v9015, 5
    %v10599 = vsel %vm4485, %v10597, %v10598
    %v10600 = vrot.slane %v10598, 4
    %v10601 = vrot.slane %v9016, 5
    %v10602 = vsel %vm4485, %v10600, %v10601
    %v10603 = vrot.slane %v10427, 5
    %v10604 = vrot.slane %v10603, 4
    %v10605 = vrot.slane %v9018, 5
    %v10606 = vsel %vm4485, %v10604, %v10605
    %v10607 = vrot.slane %v10605, 4
    %v10608 = vrot.slane %v9019, 5
    %v10609 = vsel %vm4485, %v10607, %v10608
    %v10610 = vrot.slane %v10428, 5
    %v10611 = vrot.slane %v10610, 4
    %v10612 = vrot.slane %v9021, 5
    %v10613 = vsel %vm4485, %v10611, %v10612
    %v10614 = vrot.slane %v10612, 4
    %v10615 = vrot.slane %v9022, 5
    %v10616 = vsel %vm4485, %v10614, %v10615
    %v10617 = vrot.slane %v10429, 5
    %v10618 = vrot.slane %v10617, 4
    %v10619 = vrot.slane %v9024, 5
    %v10620 = vsel %vm4485, %v10618, %v10619
    %v10621 = vrot.slane %v10619, 4
    %v10622 = vrot.slane %v9025, 5
    %v10623 = vsel %vm4485, %v10621, %v10622
    %v10624 = vrot.slane %v10430, 5
    %v10625 = vrot.slane %v10624, 4
    %v10626 = vrot.slane %v9027, 5
    %v10627 = vsel %vm4485, %v10625, %v10626
    %v10628 = vrot.slane %v10626, 4
    %v10629 = vrot.slane %v9028, 5
    %v10630 = vsel %vm4485, %v10628, %v10629
    %v10631 = vrot.slane %v10431, 5
    %v10632 = vrot.slane %v10631, 4
    %v10633 = vrot.slane %v9030, 5
    %v10634 = vsel %vm4485, %v10632, %v10633
    %v10635 = vrot.slane %v10633, 4
    %v10636 = vrot.slane %v9031, 5
    %v10637 = vsel %vm4485, %v10635, %v10636
    %v10638 = vrot.slane %v10432, 5
    %v10639 = vrot.slane %v10638, 4
    %v10640 = vrot.slane %v9033, 5
    %v10641 = vsel %vm4485, %v10639, %v10640
    %v10642 = vrot.slane %v10640, 4
    %v10643 = vrot.slane %v9034, 5
    %v10644 = vsel %vm4485, %v10642, %v10643
    %v10645 = vrot.slane %v10433, 5
    %v10646 = vrot.slane %v10645, 4
    %v10647 = vrot.slane %v9036, 5
    %v10648 = vsel %vm4485, %v10646, %v10647
    %v10649 = vrot.slane %v10647, 4
    %v10650 = vrot.slane %v9037, 5
    %v10651 = vsel %vm4485, %v10649, %v10650
    %v10652 = vrot.slane %v10434, 5
    %v10653 = vrot.slane %v10652, 4
    %v10654 = vrot.slane %v9039, 5
    %v10655 = vsel %vm4485, %v10653, %v10654
    %v10656 = vrot.slane %v10654, 4
    %v10657 = vrot.slane %v9040, 5
    %v10658 = vsel %vm4485, %v10656, %v10657
    %v10659 = vrot.slane %v10435, 5
    %v10660 = vrot.slane %v10659, 4
    %v10661 = vrot.slane %v9042, 5
    %v10662 = vsel %vm4485, %v10660, %v10661
    %v10663 = vrot.slane %v10661, 4
    %v10664 = vrot.slane %v9043, 5
    %v10665 = vsel %vm4485, %v10663, %v10664
    %v10666 = vrot.slane %v10436, 5
    %v10667 = vrot.slane %v10666, 4
    %v10668 = vrot.slane %v9045, 5
    %v10669 = vsel %vm4485, %v10667, %v10668
    %v10670 = vrot.slane %v10668, 4
    %v10671 = vrot.slane %v9046, 5
    %v10672 = vsel %vm4485, %v10670, %v10671
    %v10673 = vrot.slane %v10437, 5
    %v10674 = vrot.slane %v10673, 4
    %v10675 = vrot.slane %v9048, 5
    %v10676 = vsel %vm4485, %v10674, %v10675
    %v10677 = vrot.slane %v10675, 4
    %v10678 = vrot.slane %v9049, 5
    %v10679 = vsel %vm4485, %v10677, %v10678
    %v10680 = vrot.slane %v10438, 5
    %v10681 = vrot.slane %v10680, 4
    %v10682 = vrot.slane %v9051, 5
    %v10683 = vsel %vm4485, %v10681, %v10682
    %v10684 = vrot.slane %v10682, 4
    %v10685 = vrot.slane %v9052, 5
    %v10686 = vsel %vm4485, %v10684, %v10685
    %v10687 = vrot.slane %v10439, 5
    %v10688 = vrot.slane %v10687, 4
    %v10689 = vrot.slane %v9054, 5
    %v10690 = vsel %vm4485, %v10688, %v10689
    %v10691 = vrot.slane %v10689, 4
    %v10692 = vrot.slane %v9055, 5
    %v10693 = vsel %vm4485, %v10691, %v10692
    %v10694 = vrot.slane %v10440, 5
    %v10695 = vrot.slane %v10694, 4
    %v10696 = vrot.slane %v9057, 5
    %v10697 = vsel %vm4485, %v10695, %v10696
    %v10698 = vrot.slane %v10696, 4
    %v10699 = vrot.slane %v9058, 5
    %v10700 = vsel %vm4485, %v10698, %v10699
    %v10701 = vrot.slane %v10441, 5
    %v10702 = vrot.slane %v10701, 4
    %v10703 = vrot.slane %v9060, 5
    %v10704 = vsel %vm4485, %v10702, %v10703
    %v10705 = vrot.slane %v10703, 4
    %v10706 = vrot.slane %v9061, 5
    %v10707 = vsel %vm4485, %v10705, %v10706
    %v10708 = vrot.slane %v10442, 5
    %v10709 = vrot.slane %v10708, 4
    %v10710 = vrot.slane %v9063, 5
    %v10711 = vsel %vm4485, %v10709, %v10710
    %v10712 = vrot.slane %v10710, 4
    %v10713 = vrot.slane %v9064, 5
    %v10714 = vsel %vm4485, %v10712, %v10713
    %v10715 = vrot.slane %v10443, 5
    %v10716 = vrot.slane %v10715, 4
    %v10717 = vrot.slane %v9066, 5
    %v10718 = vsel %vm4485, %v10716, %v10717
    %v10719 = vrot.slane %v10717, 4
    %v10720 = vrot.slane %v9067, 5
    %v10721 = vsel %vm4485, %v10719, %v10720
    %v10722 = vrot.slane %v10444, 5
    %v10723 = vrot.slane %v10722, 4
    %v10724 = vrot.slane %v9069, 5
    %v10725 = vsel %vm4485, %v10723, %v10724
    %v10726 = vrot.slane %v10724, 4
    %v10727 = vrot.slane %v9070, 5
    %v10728 = vsel %vm4485, %v10726, %v10727
    %v10729 = vrot.slane %v10445, 5
    %v10730 = vrot.slane %v10729, 4
    %v10731 = vrot.slane %v9072, 5
    %v10732 = vsel %vm4485, %v10730, %v10731
    %v10733 = vrot.slane %v10731, 4
    %v10734 = vrot.slane %v9073, 5
    %v10735 = vsel %vm4485, %v10733, %v10734
    %v10736 = vrot.slane %v10446, 5
    %v10737 = vrot.slane %v10736, 4
    %v10738 = vrot.slane %v9075, 5
    %v10739 = vsel %vm4485, %v10737, %v10738
    %v10740 = vrot.slane %v10738, 4
    %v10741 = vrot.slane %v9076, 5
    %v10742 = vsel %vm4485, %v10740, %v10741
    %v10743 = vrot.slane %v10447, 5
    %v10744 = vrot.slane %v10743, 4
    %v10745 = vrot.slane %v9078, 5
    %v10746 = vsel %vm4485, %v10744, %v10745
    %v10747 = vrot.slane %v10745, 4
    %v10748 = vrot.slane %v9079, 5
    %v10749 = vsel %vm4485, %v10747, %v10748
    %v10750 = vrot.slane %v10448, 5
    %v10751 = vrot.slane %v10750, 4
    %v10752 = vrot.slane %v9081, 5
    %v10753 = vsel %vm4485, %v10751, %v10752
    %v10754 = vrot.slane %v10752, 4
    %v10755 = vrot.slane %v9082, 5
    %v10756 = vsel %vm4485, %v10754, %v10755
    %v10757 = vrot.slane %v10449, 5
    %v10758 = vrot.slane %v10757, 4
    %v10759 = vrot.slane %v9084, 5
    %v10760 = vsel %vm4485, %v10758, %v10759
    %v10761 = vrot.slane %v10759, 4
    %v10762 = vrot.slane %v9085, 5
    %v10763 = vsel %vm4485, %v10761, %v10762
    %v10764 = vrot.slane %v10450, 5
    %v10765 = vrot.slane %v10764, 4
    %v10766 = vrot.slane %v9087, 5
    %v10767 = vsel %vm4485, %v10765, %v10766
    %v10768 = vrot.slane %v10766, 4
    %v10769 = vrot.slane %v9088, 5
    %v10770 = vsel %vm4485, %v10768, %v10769
    %s10771 = scalar_lea.vmem [#allocation7], 128
    %v10772 = vld [vmem:[%s10771] sm:$0xf]
    %v10773 = vld [vmem:[%s10771 + $0x4] sm:$0xf]
    %v10774 = vld [vmem:[%s10771 + $0x8] sm:$0xf]
    %v10775 = vld [vmem:[%s10771 + $0xc] sm:$0xf]
    %v10776 = vunpack.c.l.b16 %v10550
    %v10777 = vunpack.c.l.b16 %v10553
    %v10778 = vunpack.c.l.b16 %v10557
    %v10779 = vunpack.c.l.b16 %v10560
    %v10780 = vunpack.c.l.b16 %v10564
    %v10781 = vunpack.c.l.b16 %v10567
    %v10782 = vunpack.c.l.b16 %v10571
    %v10783 = vunpack.c.l.b16 %v10574
    %v10784 = vunpack.c.l.b16 %v10578
    %v10785 = vunpack.c.l.b16 %v10581
    %v10786 = vunpack.c.l.b16 %v10585
    %v10787 = vunpack.c.l.b16 %v10588
    %v10788 = vunpack.c.l.b16 %v10592
    %v10789 = vunpack.c.l.b16 %v10595
    %v10790 = vunpack.c.l.b16 %v10599
    %v10791 = vunpack.c.l.b16 %v10602
    %v10792 = vunpack.c.l.b16 %v10606
    %v10793 = vunpack.c.l.b16 %v10609
    %v10794 = vunpack.c.l.b16 %v10613
    %v10795 = vunpack.c.l.b16 %v10616
    %v10796 = vunpack.c.l.b16 %v10620
    %v10797 = vunpack.c.l.b16 %v10623
    %v10798 = vunpack.c.l.b16 %v10627
    %v10799 = vunpack.c.l.b16 %v10630
    %v10800 = vunpack.c.l.b16 %v10634
    %v10801 = vunpack.c.l.b16 %v10637
    %v10802 = vunpack.c.l.b16 %v10641
    %v10803 = vunpack.c.l.b16 %v10644
    %v10804 = vunpack.c.l.b16 %v10648
    %v10805 = vunpack.c.l.b16 %v10651
    %v10806 = vunpack.c.l.b16 %v10655
    %v10807 = vunpack.c.l.b16 %v10658
    %v10808 = vunpack.c.l.b16 %v10662
    %v10809 = vunpack.c.l.b16 %v10665
    %v10810 = vunpack.c.l.b16 %v10669
    %v10811 = vunpack.c.l.b16 %v10672
    %v10812 = vunpack.c.l.b16 %v10676
    %v10813 = vunpack.c.l.b16 %v10679
    %v10814 = vunpack.c.l.b16 %v10683
    %v10815 = vunpack.c.l.b16 %v10686
    %v10816 = vunpack.c.l.b16 %v10690
    %v10817 = vunpack.c.l.b16 %v10693
    %v10818 = vunpack.c.l.b16 %v10697
    %v10819 = vunpack.c.l.b16 %v10700
    %v10820 = vunpack.c.l.b16 %v10704
    %v10821 = vunpack.c.l.b16 %v10707
    %v10822 = vunpack.c.l.b16 %v10711
    %v10823 = vunpack.c.l.b16 %v10714
    %v10824 = vunpack.c.l.b16 %v10718
    %v10825 = vunpack.c.l.b16 %v10721
    %v10826 = vunpack.c.l.b16 %v10725
    %v10827 = vunpack.c.l.b16 %v10728
    %v10828 = vunpack.c.l.b16 %v10732
    %v10829 = vunpack.c.l.b16 %v10735
    %v10830 = vunpack.c.l.b16 %v10739
    %v10831 = vunpack.c.l.b16 %v10742
    %v10832 = vunpack.c.l.b16 %v10746
    %v10833 = vunpack.c.l.b16 %v10749
    %v10834 = vunpack.c.l.b16 %v10753
    %v10835 = vunpack.c.l.b16 %v10756
    %v10836 = vunpack.c.l.b16 %v10760
    %v10837 = vunpack.c.l.b16 %v10763
    %v10838 = vunpack.c.l.b16 %v10767
    %v10839 = vunpack.c.l.b16 %v10770
    %v10840 = vpack.c.b16 %v10777, %v10776
    %v10841 = vpack.c.b16 %v10779, %v10778
    %v10842 = vpack.c.b16 %v10781, %v10780
    %v10843 = vpack.c.b16 %v10783, %v10782
    %v10844 = vpack.c.b16 %v10785, %v10784
    %v10845 = vpack.c.b16 %v10787, %v10786
    %v10846 = vpack.c.b16 %v10789, %v10788
    %v10847 = vpack.c.b16 %v10791, %v10790
    %v10848 = vpack.c.b16 %v10793, %v10792
    %v10849 = vpack.c.b16 %v10795, %v10794
    %v10850 = vpack.c.b16 %v10797, %v10796
    %v10851 = vpack.c.b16 %v10799, %v10798
    %v10852 = vpack.c.b16 %v10801, %v10800
    %v10853 = vpack.c.b16 %v10803, %v10802
    %v10854 = vpack.c.b16 %v10805, %v10804
    %v10855 = vpack.c.b16 %v10807, %v10806
    %v10856 = vpack.c.b16 %v10809, %v10808
    %v10857 = vpack.c.b16 %v10811, %v10810
    %v10858 = vpack.c.b16 %v10813, %v10812
    %v10859 = vpack.c.b16 %v10815, %v10814
    %v10860 = vpack.c.b16 %v10817, %v10816
    %v10861 = vpack.c.b16 %v10819, %v10818
    %v10862 = vpack.c.b16 %v10821, %v10820
    %v10863 = vpack.c.b16 %v10823, %v10822
    %v10864 = vpack.c.b16 %v10825, %v10824
    %v10865 = vpack.c.b16 %v10827, %v10826
    %v10866 = vpack.c.b16 %v10829, %v10828
    %v10867 = vpack.c.b16 %v10831, %v10830
    %v10868 = vpack.c.b16 %v10833, %v10832
    %v10869 = vpack.c.b16 %v10835, %v10834
    %v10870 = vpack.c.b16 %v10837, %v10836
    %v10871 = vpack.c.b16 %v10839, %v10838
    %v10876 = vunpack.c.l.b16 %v10772
    %v10877 = vunpack.c.l.b16 %v10773
    %v10878 = vunpack.c.l.b16 %v10774
    %v10879 = vunpack.c.l.b16 %v10775
    %v10880 = vpack.c.b16 %v10877, %v10876
    %v10881 = vpack.c.b16 %v10879, %v10878
    %v10885 = vsel %vm523, %v10840, 0
    %v10888 = vsel %vm523, %v10841, 0
    %v10891 = vsel %vm523, %v10842, 0
    %v10894 = vsel %vm523, %v10843, 0
    %v10897 = vsel %vm523, %v10844, 0
    %v10900 = vsel %vm523, %v10845, 0
    %v10903 = vsel %vm523, %v10846, 0
    %v10906 = vsel %vm523, %v10847, 0
    %v10909 = vsel %vm523, %v10848, 0
    %v10912 = vsel %vm523, %v10849, 0
    %v10915 = vsel %vm523, %v10850, 0
    %v10918 = vsel %vm523, %v10851, 0
    %v10921 = vsel %vm523, %v10852, 0
    %v10924 = vsel %vm523, %v10853, 0
    %v10927 = vsel %vm523, %v10854, 0
    %v10930 = vsel %vm523, %v10855, 0
    %v10933 = vsel %vm523, %v10856, 0
    %v10936 = vsel %vm523, %v10857, 0
    %v10939 = vsel %vm523, %v10858, 0
    %v10942 = vsel %vm523, %v10859, 0
    %v10945 = vsel %vm523, %v10860, 0
    %v10948 = vsel %vm523, %v10861, 0
    %v10951 = vsel %vm523, %v10862, 0
    %v10954 = vsel %vm523, %v10863, 0
    %v10957 = vsel %vm523, %v10864, 0
    %v10960 = vsel %vm523, %v10865, 0
    %v10963 = vsel %vm523, %v10866, 0
    %v10966 = vsel %vm523, %v10867, 0
    %v10969 = vsel %vm523, %v10868, 0
    %v10972 = vsel %vm523, %v10869, 0
    %v10975 = vsel %vm523, %v10870, 0
    %v10978 = vsel %vm523, %v10871, 0
    %10980 = vmatprep.subr.bf16.mxu0 0
    %10981 = vmatpush1.bf16.msra.mxu0 %v10880
    %10982 = vmatprep.subr.bf16.mxu0 0
    %10983 = vmatpush1.bf16.msra.mxu0 %v10881
    %10984 = vmatprep.subr.bf16.mxu0 0
    %10985 = vmatpush1.bf16.msra.mxu0 0
    %10986 = vmatprep.subr.bf16.mxu0 0
    %10987 = vmatpush1.bf16.msra.mxu0 0
    %10988 = vmatprep.subr.bf16.mxu0 0
    %10989 = vmatpush1.bf16.msra.mxu0 0
    %10990 = vmatprep.subr.bf16.mxu0 0
    %10991 = vmatpush1.bf16.msra.mxu0 0
    %10992 = vmatprep.subr.bf16.mxu0 0
    %10993 = vmatpush1.bf16.msra.mxu0 0
    %10994 = vmatprep.subr.bf16.mxu0 0
    %10995 = vmatpush1.bf16.msra.mxu0 0
    %10996 = vmatprep.subr.bf16.mxu0 0
    %10997 = vmatpush1.bf16.msra.mxu0 0
    %10998 = vmatprep.subr.bf16.mxu0 0
    %10999 = vmatpush1.bf16.msra.mxu0 0
    %11000 = vmatprep.subr.bf16.mxu0 0
    %11001 = vmatpush1.bf16.msra.mxu0 0
    %11002 = vmatprep.subr.bf16.mxu0 0
    %11003 = vmatpush1.bf16.msra.mxu0 0
    %11004 = vmatprep.subr.bf16.mxu0 0
    %11005 = vmatpush1.bf16.msra.mxu0 0
    %11006 = vmatprep.subr.bf16.mxu0 0
    %11007 = vmatpush1.bf16.msra.mxu0 0
    %11008 = vmatprep.subr.bf16.mxu0 0
    %11009 = vmatpush1.bf16.msra.mxu0 0
    %11010 = vmatprep.subr.bf16.mxu0 0
    %11011 = vmatpush1.bf16.msra.mxu0 0
    %11012 = vmatprep.mubr.bf16.mxu0 0
    %11013 = vmatmul.mubr.bf16.gmra.mrb[0].mxu0 %v10885
    %v11014 = vpop.f32.mrb[0].mxu0
    %v11015 = vadd.f32 0.0, %v11014
    %v11016 = vpop.f32.mrb[0].mxu0
    %v11017 = vpop.f32.mrb[0].mxu0
    %v11018 = vadd.f32 0.0, %v11017
    %v11019 = vpop.f32.mrb[0].mxu0
    %11020 = vmatprep.mubr.bf16.mxu0 0
    %11021 = vmatmul.mubr.bf16.gmra.mrb[0].mxu0 %v10888
    %v11022 = vpop.f32.mrb[0].mxu0
    %v11023 = vadd.f32 0.0, %v11022
    %v11024 = vpop.f32.mrb[0].mxu0
    %v11025 = vpop.f32.mrb[0].mxu0
    %v11026 = vadd.f32 0.0, %v11025
    %v11027 = vpop.f32.mrb[0].mxu0
    %11028 = vmatprep.mubr.bf16.mxu0 0
    %11029 = vmatmul.mubr.bf16.gmra.mrb[0].mxu0 %v10891
    %v11030 = vpop.f32.mrb[0].mxu0
    %v11031 = vadd.f32 0.0, %v11030
    %v11032 = vpop.f32.mrb[0].mxu0
    %v11033 = vpop.f32.mrb[0].mxu0
    %v11034 = vadd.f32 0.0, %v11033
    %v11035 = vpop.f32.mrb[0].mxu0
    %11036 = vmatprep.mubr.bf16.mxu0 0
    %11037 = vmatmul.mubr.bf16.gmra.mrb[0].mxu0 %v10894
    %v11038 = vpop.f32.mrb[0].mxu0
    %v11039 = vadd.f32 0.0, %v11038
    %v11040 = vpop.f32.mrb[0].mxu0
    %v11041 = vpop.f32.mrb[0].mxu0
    %v11042 = vadd.f32 0.0, %v11041
    %v11043 = vpop.f32.mrb[0].mxu0
    %11044 = vmatprep.mubr.bf16.mxu0 0
    %11045 = vmatmul.mubr.bf16.gmra.mrb[0].mxu0 %v10897
    %v11046 = vpop.f32.mrb[0].mxu0
    %v11047 = vadd.f32 0.0, %v11046
    %v11048 = vpop.f32.mrb[0].mxu0
    %v11049 = vpop.f32.mrb[0].mxu0
    %v11050 = vadd.f32 0.0, %v11049
    %v11051 = vpop.f32.mrb[0].mxu0
    %11052 = vmatprep.mubr.bf16.mxu0 0
    %11053 = vmatmul.mubr.bf16.gmra.mrb[0].mxu0 %v10900
    %v11054 = vpop.f32.mrb[0].mxu0
    %v11055 = vadd.f32 0.0, %v11054
    %v11056 = vpop.f32.mrb[0].mxu0
    %v11057 = vpop.f32.mrb[0].mxu0
    %v11058 = vadd.f32 0.0, %v11057
    %v11059 = vpop.f32.mrb[0].mxu0
    %11060 = vmatprep.mubr.bf16.mxu0 0
    %11061 = vmatmul.mubr.bf16.gmra.mrb[0].mxu0 %v10903
    %v11062 = vpop.f32.mrb[0].mxu0
    %v11063 = vadd.f32 0.0, %v11062
    %v11064 = vpop.f32.mrb[0].mxu0
    %v11065 = vpop.f32.mrb[0].mxu0
    %v11066 = vadd.f32 0.0, %v11065
    %v11067 = vpop.f32.mrb[0].mxu0
    %11068 = vmatprep.mubr.bf16.mxu0 0
    %11069 = vmatmul.mubr.bf16.gmra.mrb[0].mxu0 %v10906
    %v11070 = vpop.f32.mrb[0].mxu0
    %v11071 = vadd.f32 0.0, %v11070
    %v11072 = vpop.f32.mrb[0].mxu0
    %v11073 = vpop.f32.mrb[0].mxu0
    %v11074 = vadd.f32 0.0, %v11073
    %v11075 = vpop.f32.mrb[0].mxu0
    %11076 = vmatprep.mubr.bf16.mxu0 0
    %11077 = vmatmul.mubr.bf16.gmra.mrb[0].mxu0 %v10909
    %v11078 = vpop.f32.mrb[0].mxu0
    %v11079 = vadd.f32 0.0, %v11078
    %v11080 = vpop.f32.mrb[0].mxu0
    %v11081 = vpop.f32.mrb[0].mxu0
    %v11082 = vadd.f32 0.0, %v11081
    %v11083 = vpop.f32.mrb[0].mxu0
    %11084 = vmatprep.mubr.bf16.mxu0 0
    %11085 = vmatmul.mubr.bf16.gmra.mrb[0].mxu0 %v10912
    %v11086 = vpop.f32.mrb[0].mxu0
    %v11087 = vadd.f32 0.0, %v11086
    %v11088 = vpop.f32.mrb[0].mxu0
    %v11089 = vpop.f32.mrb[0].mxu0
    %v11090 = vadd.f32 0.0, %v11089
    %v11091 = vpop.f32.mrb[0].mxu0
    %11092 = vmatprep.mubr.bf16.mxu0 0
    %11093 = vmatmul.mubr.bf16.gmra.mrb[0].mxu0 %v10915
    %v11094 = vpop.f32.mrb[0].mxu0
    %v11095 = vadd.f32 0.0, %v11094
    %v11096 = vpop.f32.mrb[0].mxu0
    %v11097 = vpop.f32.mrb[0].mxu0
    %v11098 = vadd.f32 0.0, %v11097
    %v11099 = vpop.f32.mrb[0].mxu0
    %11100 = vmatprep.mubr.bf16.mxu0 0
    %11101 = vmatmul.mubr.bf16.gmra.mrb[0].mxu0 %v10918
    %v11102 = vpop.f32.mrb[0].mxu0
    %v11103 = vadd.f32 0.0, %v11102
    %v11104 = vpop.f32.mrb[0].mxu0
    %v11105 = vpop.f32.mrb[0].mxu0
    %v11106 = vadd.f32 0.0, %v11105
    %v11107 = vpop.f32.mrb[0].mxu0
    %11108 = vmatprep.mubr.bf16.mxu0 0
    %11109 = vmatmul.mubr.bf16.gmra.mrb[0].mxu0 %v10921
    %v11110 = vpop.f32.mrb[0].mxu0
    %v11111 = vadd.f32 0.0, %v11110
    %v11112 = vpop.f32.mrb[0].mxu0
    %v11113 = vpop.f32.mrb[0].mxu0
    %v11114 = vadd.f32 0.0, %v11113
    %v11115 = vpop.f32.mrb[0].mxu0
    %11116 = vmatprep.mubr.bf16.mxu0 0
    %11117 = vmatmul.mubr.bf16.gmra.mrb[0].mxu0 %v10924
    %v11118 = vpop.f32.mrb[0].mxu0
    %v11119 = vadd.f32 0.0, %v11118
    %v11120 = vpop.f32.mrb[0].mxu0
    %v11121 = vpop.f32.mrb[0].mxu0
    %v11122 = vadd.f32 0.0, %v11121
    %v11123 = vpop.f32.mrb[0].mxu0
    %11124 = vmatprep.mubr.bf16.mxu0 0
    %11125 = vmatmul.mubr.bf16.gmra.mrb[0].mxu0 %v10927
    %v11126 = vpop.f32.mrb[0].mxu0
    %v11127 = vadd.f32 0.0, %v11126
    %v11128 = vpop.f32.mrb[0].mxu0
    %v11129 = vpop.f32.mrb[0].mxu0
    %v11130 = vadd.f32 0.0, %v11129
    %v11131 = vpop.f32.mrb[0].mxu0
    %11132 = vmatprep.mubr.bf16.mxu0 0
    %11133 = vmatmul.mubr.bf16.gmra.mrb[0].mxu0 %v10930
    %v11134 = vpop.f32.mrb[0].mxu0
    %v11135 = vadd.f32 0.0, %v11134
    %v11136 = vpop.f32.mrb[0].mxu0
    %v11137 = vpop.f32.mrb[0].mxu0
    %v11138 = vadd.f32 0.0, %v11137
    %v11139 = vpop.f32.mrb[0].mxu0
    %11140 = vmatprep.mubr.bf16.mxu0 0
    %11141 = vmatmul.mubr.bf16.gmra.mrb[0].mxu0 %v10933
    %v11142 = vpop.f32.mrb[0].mxu0
    %v11143 = vadd.f32 0.0, %v11142
    %v11144 = vpop.f32.mrb[0].mxu0
    %v11145 = vpop.f32.mrb[0].mxu0
    %v11146 = vadd.f32 0.0, %v11145
    %v11147 = vpop.f32.mrb[0].mxu0
    %11148 = vmatprep.mubr.bf16.mxu0 0
    %11149 = vmatmul.mubr.bf16.gmra.mrb[0].mxu0 %v10936
    %v11150 = vpop.f32.mrb[0].mxu0
    %v11151 = vadd.f32 0.0, %v11150
    %v11152 = vpop.f32.mrb[0].mxu0
    %v11153 = vpop.f32.mrb[0].mxu0
    %v11154 = vadd.f32 0.0, %v11153
    %v11155 = vpop.f32.mrb[0].mxu0
    %11156 = vmatprep.mubr.bf16.mxu0 0
    %11157 = vmatmul.mubr.bf16.gmra.mrb[0].mxu0 %v10939
    %v11158 = vpop.f32.mrb[0].mxu0
    %v11159 = vadd.f32 0.0, %v11158
    %v11160 = vpop.f32.mrb[0].mxu0
    %v11161 = vpop.f32.mrb[0].mxu0
    %v11162 = vadd.f32 0.0, %v11161
    %v11163 = vpop.f32.mrb[0].mxu0
    %11164 = vmatprep.mubr.bf16.mxu0 0
    %11165 = vmatmul.mubr.bf16.gmra.mrb[0].mxu0 %v10942
    %v11166 = vpop.f32.mrb[0].mxu0
    %v11167 = vadd.f32 0.0, %v11166
    %v11168 = vpop.f32.mrb[0].mxu0
    %v11169 = vpop.f32.mrb[0].mxu0
    %v11170 = vadd.f32 0.0, %v11169
    %v11171 = vpop.f32.mrb[0].mxu0
    %11172 = vmatprep.mubr.bf16.mxu0 0
    %11173 = vmatmul.mubr.bf16.gmra.mrb[0].mxu0 %v10945
    %v11174 = vpop.f32.mrb[0].mxu0
    %v11175 = vadd.f32 0.0, %v11174
    %v11176 = vpop.f32.mrb[0].mxu0
    %v11177 = vpop.f32.mrb[0].mxu0
    %v11178 = vadd.f32 0.0, %v11177
    %v11179 = vpop.f32.mrb[0].mxu0
    %11180 = vmatprep.mubr.bf16.mxu0 0
    %11181 = vmatmul.mubr.bf16.gmra.mrb[0].mxu0 %v10948
    %v11182 = vpop.f32.mrb[0].mxu0
    %v11183 = vadd.f32 0.0, %v11182
    %v11184 = vpop.f32.mrb[0].mxu0
    %v11185 = vpop.f32.mrb[0].mxu0
    %v11186 = vadd.f32 0.0, %v11185
    %v11187 = vpop.f32.mrb[0].mxu0
    %11188 = vmatprep.mubr.bf16.mxu0 0
    %11189 = vmatmul.mubr.bf16.gmra.mrb[0].mxu0 %v10951
    %v11190 = vpop.f32.mrb[0].mxu0
    %v11191 = vadd.f32 0.0, %v11190
    %v11192 = vpop.f32.mrb[0].mxu0
    %v11193 = vpop.f32.mrb[0].mxu0
    %v11194 = vadd.f32 0.0, %v11193
    %v11195 = vpop.f32.mrb[0].mxu0
    %11196 = vmatprep.mubr.bf16.mxu0 0
    %11197 = vmatmul.mubr.bf16.gmra.mrb[0].mxu0 %v10954
    %v11198 = vpop.f32.mrb[0].mxu0
    %v11199 = vadd.f32 0.0, %v11198
    %v11200 = vpop.f32.mrb[0].mxu0
    %v11201 = vpop.f32.mrb[0].mxu0
    %v11202 = vadd.f32 0.0, %v11201
    %v11203 = vpop.f32.mrb[0].mxu0
    %11204 = vmatprep.mubr.bf16.mxu0 0
    %11205 = vmatmul.mubr.bf16.gmra.mrb[0].mxu0 %v10957
    %v11206 = vpop.f32.mrb[0].mxu0
    %v11207 = vadd.f32 0.0, %v11206
    %v11208 = vpop.f32.mrb[0].mxu0
    %v11209 = vpop.f32.mrb[0].mxu0
    %v11210 = vadd.f32 0.0, %v11209
    %v11211 = vpop.f32.mrb[0].mxu0
    %11212 = vmatprep.mubr.bf16.mxu0 0
    %11213 = vmatmul.mubr.bf16.gmra.mrb[0].mxu0 %v10960
    %v11214 = vpop.f32.mrb[0].mxu0
    %v11215 = vadd.f32 0.0, %v11214
    %v11216 = vpop.f32.mrb[0].mxu0
    %v11217 = vpop.f32.mrb[0].mxu0
    %v11218 = vadd.f32 0.0, %v11217
    %v11219 = vpop.f32.mrb[0].mxu0
    %11220 = vmatprep.mubr.bf16.mxu0 0
    %11221 = vmatmul.mubr.bf16.gmra.mrb[0].mxu0 %v10963
    %v11222 = vpop.f32.mrb[0].mxu0
    %v11223 = vadd.f32 0.0, %v11222
    %v11224 = vpop.f32.mrb[0].mxu0
    %v11225 = vpop.f32.mrb[0].mxu0
    %v11226 = vadd.f32 0.0, %v11225
    %v11227 = vpop.f32.mrb[0].mxu0
    %11228 = vmatprep.mubr.bf16.mxu0 0
    %11229 = vmatmul.mubr.bf16.gmra.mrb[0].mxu0 %v10966
    %v11230 = vpop.f32.mrb[0].mxu0
    %v11231 = vadd.f32 0.0, %v11230
    %v11232 = vpop.f32.mrb[0].mxu0
    %v11233 = vpop.f32.mrb[0].mxu0
    %v11234 = vadd.f32 0.0, %v11233
    %v11235 = vpop.f32.mrb[0].mxu0
    %11236 = vmatprep.mubr.bf16.mxu0 0
    %11237 = vmatmul.mubr.bf16.gmra.mrb[0].mxu0 %v10969
    %v11238 = vpop.f32.mrb[0].mxu0
    %v11239 = vadd.f32 0.0, %v11238
    %v11240 = vpop.f32.mrb[0].mxu0
    %v11241 = vpop.f32.mrb[0].mxu0
    %v11242 = vadd.f32 0.0, %v11241
    %v11243 = vpop.f32.mrb[0].mxu0
    %11244 = vmatprep.mubr.bf16.mxu0 0
    %11245 = vmatmul.mubr.bf16.gmra.mrb[0].mxu0 %v10972
    %v11246 = vpop.f32.mrb[0].mxu0
    %v11247 = vadd.f32 0.0, %v11246
    %v11248 = vpop.f32.mrb[0].mxu0
    %v11249 = vpop.f32.mrb[0].mxu0
    %v11250 = vadd.f32 0.0, %v11249
    %v11251 = vpop.f32.mrb[0].mxu0
    %11252 = vmatprep.mubr.bf16.mxu0 0
    %11253 = vmatmul.mubr.bf16.gmra.mrb[0].mxu0 %v10975
    %v11254 = vpop.f32.mrb[0].mxu0
    %v11255 = vadd.f32 0.0, %v11254
    %v11256 = vpop.f32.mrb[0].mxu0
    %v11257 = vpop.f32.mrb[0].mxu0
    %v11258 = vadd.f32 0.0, %v11257
    %v11259 = vpop.f32.mrb[0].mxu0
    %11260 = vmatprep.mubr.bf16.mxu0 0
    %11261 = vmatmul.mubr.bf16.gmra.mrb[0].mxu0 %v10978
    %v11262 = vpop.f32.mrb[0].mxu0
    %v11263 = vadd.f32 0.0, %v11262
    %v11264 = vpop.f32.mrb[0].mxu0
    %v11265 = vpop.f32.mrb[0].mxu0
    %v11266 = vadd.f32 0.0, %v11265
    %v11267 = vpop.f32.mrb[0].mxu0
    %11268 = vdwg.mxu0
    %v11269 = vadd.f32 %v10355, %v11015
    %v11270 = vadd.f32 %v10356, %v11018
    %v11271 = vadd.f32 %v10357, %v11023
    %v11272 = vadd.f32 %v10358, %v11026
    %v11273 = vadd.f32 %v10359, %v11031
    %v11274 = vadd.f32 %v10360, %v11034
    %v11275 = vadd.f32 %v10361, %v11039
    %v11276 = vadd.f32 %v10362, %v11042
    %v11277 = vadd.f32 %v10363, %v11047
    %v11278 = vadd.f32 %v10364, %v11050
    %v11279 = vadd.f32 %v10365, %v11055
    %v11280 = vadd.f32 %v10366, %v11058
    %v11281 = vadd.f32 %v10367, %v11063
    %v11282 = vadd.f32 %v10368, %v11066
    %v11283 = vadd.f32 %v10369, %v11071
    %v11284 = vadd.f32 %v10370, %v11074
    %v11285 = vadd.f32 %v10371, %v11079
    %v11286 = vadd.f32 %v10372, %v11082
    %v11287 = vadd.f32 %v10373, %v11087
    %v11288 = vadd.f32 %v10374, %v11090
    %v11289 = vadd.f32 %v10375, %v11095
    %v11290 = vadd.f32 %v10376, %v11098
    %v11291 = vadd.f32 %v10377, %v11103
    %v11292 = vadd.f32 %v10378, %v11106
    %v11293 = vadd.f32 %v10379, %v11111
    %v11294 = vadd.f32 %v10380, %v11114
    %v11295 = vadd.f32 %v10381, %v11119
    %v11296 = vadd.f32 %v10382, %v11122
    %v11297 = vadd.f32 %v10383, %v11127
    %v11298 = vadd.f32 %v10384, %v11130
    %v11299 = vadd.f32 %v10385, %v11135
    %v11300 = vadd.f32 %v10386, %v11138
    %v11301 = vadd.f32 %v10387, %v11143
    %v11302 = vadd.f32 %v10388, %v11146
    %v11303 = vadd.f32 %v10389, %v11151
    %v11304 = vadd.f32 %v10390, %v11154
    %v11305 = vadd.f32 %v10391, %v11159
    %v11306 = vadd.f32 %v10392, %v11162
    %v11307 = vadd.f32 %v10393, %v11167
    %v11308 = vadd.f32 %v10394, %v11170
    %v11309 = vadd.f32 %v10395, %v11175
    %v11310 = vadd.f32 %v10396, %v11178
    %v11311 = vadd.f32 %v10397, %v11183
    %v11312 = vadd.f32 %v10398, %v11186
    %v11313 = vadd.f32 %v10399, %v11191
    %v11314 = vadd.f32 %v10400, %v11194
    %v11315 = vadd.f32 %v10401, %v11199
    %v11316 = vadd.f32 %v10402, %v11202
    %v11317 = vadd.f32 %v10403, %v11207
    %v11318 = vadd.f32 %v10404, %v11210
    %v11319 = vadd.f32 %v10405, %v11215
    %v11320 = vadd.f32 %v10406, %v11218
    %v11321 = vadd.f32 %v10407, %v11223
    %v11322 = vadd.f32 %v10408, %v11226
    %v11323 = vadd.f32 %v10409, %v11231
    %v11324 = vadd.f32 %v10410, %v11234
    %v11325 = vadd.f32 %v10411, %v11239
    %v11326 = vadd.f32 %v10412, %v11242
    %v11327 = vadd.f32 %v10413, %v11247
    %v11328 = vadd.f32 %v10414, %v11250
    %v11329 = vadd.f32 %v10415, %v11255
    %v11330 = vadd.f32 %v10416, %v11258
    %v11331 = vadd.f32 %v10417, %v11263
    %v11332 = vadd.f32 %v10418, %v11266
    %v11333 = vld [vmem:[%s6] sm:$0x1]
    %v11334 = vld [vmem:[%s7] sm:$0x1]
    %v11335 = vsel %vm523, %v11269, 0.0
    %v11336 = vsel %vm523, %v11270, 0.0
    %v11337 = vadd.f32 %v11335, %v11336
    %v11338 = vsel %vm523, %v11271, 0.0
    %v11339 = vadd.f32 %v11337, %v11338
    %v11340 = vsel %vm523, %v11272, 0.0
    %v11341 = vadd.f32 %v11339, %v11340
    %v11342 = vsel %vm523, %v11273, 0.0
    %v11343 = vadd.f32 %v11341, %v11342
    %v11344 = vsel %vm523, %v11274, 0.0
    %v11345 = vadd.f32 %v11343, %v11344
    %v11346 = vsel %vm523, %v11275, 0.0
    %v11347 = vadd.f32 %v11345, %v11346
    %v11348 = vsel %vm523, %v11276, 0.0
    %v11349 = vadd.f32 %v11347, %v11348
    %v11350 = vsel %vm523, %v11277, 0.0
    %v11351 = vadd.f32 %v11349, %v11350
    %v11352 = vsel %vm523, %v11278, 0.0
    %v11353 = vadd.f32 %v11351, %v11352
    %v11354 = vsel %vm523, %v11279, 0.0
    %v11355 = vadd.f32 %v11353, %v11354
    %v11356 = vsel %vm523, %v11280, 0.0
    %v11357 = vadd.f32 %v11355, %v11356
    %v11358 = vsel %vm523, %v11281, 0.0
    %v11359 = vadd.f32 %v11357, %v11358
    %v11360 = vsel %vm523, %v11282, 0.0
    %v11361 = vadd.f32 %v11359, %v11360
    %v11362 = vsel %vm523, %v11283, 0.0
    %v11363 = vadd.f32 %v11361, %v11362
    %v11364 = vsel %vm523, %v11284, 0.0
    %v11365 = vadd.f32 %v11363, %v11364
    %v11366 = vsel %vm523, %v11285, 0.0
    %v11367 = vadd.f32 %v11365, %v11366
    %v11368 = vsel %vm523, %v11286, 0.0
    %v11369 = vadd.f32 %v11367, %v11368
    %v11370 = vsel %vm523, %v11287, 0.0
    %v11371 = vadd.f32 %v11369, %v11370
    %v11372 = vsel %vm523, %v11288, 0.0
    %v11373 = vadd.f32 %v11371, %v11372
    %v11374 = vsel %vm523, %v11289, 0.0
    %v11375 = vadd.f32 %v11373, %v11374
    %v11376 = vsel %vm523, %v11290, 0.0
    %v11377 = vadd.f32 %v11375, %v11376
    %v11378 = vsel %vm523, %v11291, 0.0
    %v11379 = vadd.f32 %v11377, %v11378
    %v11380 = vsel %vm523, %v11292, 0.0
    %v11381 = vadd.f32 %v11379, %v11380
    %v11382 = vsel %vm523, %v11293, 0.0
    %v11383 = vadd.f32 %v11381, %v11382
    %v11384 = vsel %vm523, %v11294, 0.0
    %v11385 = vadd.f32 %v11383, %v11384
    %v11386 = vsel %vm523, %v11295, 0.0
    %v11387 = vadd.f32 %v11385, %v11386
    %v11388 = vsel %vm523, %v11296, 0.0
    %v11389 = vadd.f32 %v11387, %v11388
    %v11390 = vsel %vm523, %v11297, 0.0
    %v11391 = vadd.f32 %v11389, %v11390
    %v11392 = vsel %vm523, %v11298, 0.0
    %v11393 = vadd.f32 %v11391, %v11392
    %v11394 = vsel %vm523, %v11299, 0.0
    %v11395 = vadd.f32 %v11393, %v11394
    %v11396 = vsel %vm523, %v11300, 0.0
    %v11397 = vadd.f32 %v11395, %v11396
    %v11398 = vrot.slane %v11397, 4
    %v11399 = vadd.f32 %v11397, %v11398
    %v11400 = vrot.slane %v11399, 2
    %v11401 = vadd.f32 %v11399, %v11400
    %v11402 = vrot.slane %v11401, 1
    %v11403 = vadd.f32 %v11401, %v11402
    %v11404 = vsel %vm523, %v11301, 0.0
    %v11405 = vsel %vm523, %v11302, 0.0
    %v11406 = vadd.f32 %v11404, %v11405
    %v11407 = vsel %vm523, %v11303, 0.0
    %v11408 = vadd.f32 %v11406, %v11407
    %v11409 = vsel %vm523, %v11304, 0.0
    %v11410 = vadd.f32 %v11408, %v11409
    %v11411 = vsel %vm523, %v11305, 0.0
    %v11412 = vadd.f32 %v11410, %v11411
    %v11413 = vsel %vm523, %v11306, 0.0
    %v11414 = vadd.f32 %v11412, %v11413
    %v11415 = vsel %vm523, %v11307, 0.0
    %v11416 = vadd.f32 %v11414, %v11415
    %v11417 = vsel %vm523, %v11308, 0.0
    %v11418 = vadd.f32 %v11416, %v11417
    %v11419 = vsel %vm523, %v11309, 0.0
    %v11420 = vadd.f32 %v11418, %v11419
    %v11421 = vsel %vm523, %v11310, 0.0
    %v11422 = vadd.f32 %v11420, %v11421
    %v11423 = vsel %vm523, %v11311, 0.0
    %v11424 = vadd.f32 %v11422, %v11423
    %v11425 = vsel %vm523, %v11312, 0.0
    %v11426 = vadd.f32 %v11424, %v11425
    %v11427 = vsel %vm523, %v11313, 0.0
    %v11428 = vadd.f32 %v11426, %v11427
    %v11429 = vsel %vm523, %v11314, 0.0
    %v11430 = vadd.f32 %v11428, %v11429
    %v11431 = vsel %vm523, %v11315, 0.0
    %v11432 = vadd.f32 %v11430, %v11431
    %v11433 = vsel %vm523, %v11316, 0.0
    %v11434 = vadd.f32 %v11432, %v11433
    %v11435 = vsel %vm523, %v11317, 0.0
    %v11436 = vadd.f32 %v11434, %v11435
    %v11437 = vsel %vm523, %v11318, 0.0
    %v11438 = vadd.f32 %v11436, %v11437
    %v11439 = vsel %vm523, %v11319, 0.0
    %v11440 = vadd.f32 %v11438, %v11439
    %v11441 = vsel %vm523, %v11320, 0.0
    %v11442 = vadd.f32 %v11440, %v11441
    %v11443 = vsel %vm523, %v11321, 0.0
    %v11444 = vadd.f32 %v11442, %v11443
    %v11445 = vsel %vm523, %v11322, 0.0
    %v11446 = vadd.f32 %v11444, %v11445
    %v11447 = vsel %vm523, %v11323, 0.0
    %v11448 = vadd.f32 %v11446, %v11447
    %v11449 = vsel %vm523, %v11324, 0.0
    %v11450 = vadd.f32 %v11448, %v11449
    %v11451 = vsel %vm523, %v11325, 0.0
    %v11452 = vadd.f32 %v11450, %v11451
    %v11453 = vsel %vm523, %v11326, 0.0
    %v11454 = vadd.f32 %v11452, %v11453
    %v11455 = vsel %vm523, %v11327, 0.0
    %v11456 = vadd.f32 %v11454, %v11455
    %v11457 = vsel %vm523, %v11328, 0.0
    %v11458 = vadd.f32 %v11456, %v11457
    %v11459 = vsel %vm523, %v11329, 0.0
    %v11460 = vadd.f32 %v11458, %v11459
    %v11461 = vsel %vm523, %v11330, 0.0
    %v11462 = vadd.f32 %v11460, %v11461
    %v11463 = vsel %vm523, %v11331, 0.0
    %v11464 = vadd.f32 %v11462, %v11463
    %v11465 = vsel %vm523, %v11332, 0.0
    %v11466 = vadd.f32 %v11464, %v11465
    %v11467 = vrot.slane %v11466, 4
    %v11468 = vadd.f32 %v11466, %v11467
    %v11469 = vrot.slane %v11468, 2
    %v11470 = vadd.f32 %v11468, %v11469
    %v11471 = vrot.slane %v11470, 1
    %v11472 = vadd.f32 %v11470, %v11471
    %v11473 = vmul.f32 %v11403, %v662
    %v11474 = vmul.f32 %v11472, %v662
    %v11475 = vsub.f32 %v11269, %v11473
    %v11476 = vsub.f32 %v11270, %v11473
    %v11477 = vsub.f32 %v11271, %v11473
    %v11478 = vsub.f32 %v11272, %v11473
    %v11479 = vsub.f32 %v11273, %v11473
    %v11480 = vsub.f32 %v11274, %v11473
    %v11481 = vsub.f32 %v11275, %v11473
    %v11482 = vsub.f32 %v11276, %v11473
    %v11483 = vsub.f32 %v11277, %v11473
    %v11484 = vsub.f32 %v11278, %v11473
    %v11485 = vsub.f32 %v11279, %v11473
    %v11486 = vsub.f32 %v11280, %v11473
    %v11487 = vsub.f32 %v11281, %v11473
    %v11488 = vsub.f32 %v11282, %v11473
    %v11489 = vsub.f32 %v11283, %v11473
    %v11490 = vsub.f32 %v11284, %v11473
    %v11491 = vsub.f32 %v11285, %v11473
    %v11492 = vsub.f32 %v11286, %v11473
    %v11493 = vsub.f32 %v11287, %v11473
    %v11494 = vsub.f32 %v11288, %v11473
    %v11495 = vsub.f32 %v11289, %v11473
    %v11496 = vsub.f32 %v11290, %v11473
    %v11497 = vsub.f32 %v11291, %v11473
    %v11498 = vsub.f32 %v11292, %v11473
    %v11499 = vsub.f32 %v11293, %v11473
    %v11500 = vsub.f32 %v11294, %v11473
    %v11501 = vsub.f32 %v11295, %v11473
    %v11502 = vsub.f32 %v11296, %v11473
    %v11503 = vsub.f32 %v11297, %v11473
    %v11504 = vsub.f32 %v11298, %v11473
    %v11505 = vsub.f32 %v11299, %v11473
    %v11506 = vsub.f32 %v11300, %v11473
    %v11507 = vsub.f32 %v11301, %v11474
    %v11508 = vsub.f32 %v11302, %v11474
    %v11509 = vsub.f32 %v11303, %v11474
    %v11510 = vsub.f32 %v11304, %v11474
    %v11511 = vsub.f32 %v11305, %v11474
    %v11512 = vsub.f32 %v11306, %v11474
    %v11513 = vsub.f32 %v11307, %v11474
    %v11514 = vsub.f32 %v11308, %v11474
    %v11515 = vsub.f32 %v11309, %v11474
    %v11516 = vsub.f32 %v11310, %v11474
    %v11517 = vsub.f32 %v11311, %v11474
    %v11518 = vsub.f32 %v11312, %v11474
    %v11519 = vsub.f32 %v11313, %v11474
    %v11520 = vsub.f32 %v11314, %v11474
    %v11521 = vsub.f32 %v11315, %v11474
    %v11522 = vsub.f32 %v11316, %v11474
    %v11523 = vsub.f32 %v11317, %v11474
    %v11524 = vsub.f32 %v11318, %v11474
    %v11525 = vsub.f32 %v11319, %v11474
    %v11526 = vsub.f32 %v11320, %v11474
    %v11527 = vsub.f32 %v11321, %v11474
    %v11528 = vsub.f32 %v11322, %v11474
    %v11529 = vsub.f32 %v11323, %v11474
    %v11530 = vsub.f32 %v11324, %v11474
    %v11531 = vsub.f32 %v11325, %v11474
    %v11532 = vsub.f32 %v11326, %v11474
    %v11533 = vsub.f32 %v11327, %v11474
    %v11534 = vsub.f32 %v11328, %v11474
    %v11535 = vsub.f32 %v11329, %v11474
    %v11536 = vsub.f32 %v11330, %v11474
    %v11537 = vsub.f32 %v11331, %v11474
    %v11538 = vsub.f32 %v11332, %v11474
    %v11539 = vmul.f32 %v11475, %v11475
    %v11540 = vmul.f32 %v11476, %v11476
    %v11541 = vmul.f32 %v11477, %v11477
    %v11542 = vmul.f32 %v11478, %v11478
    %v11543 = vmul.f32 %v11479, %v11479
    %v11544 = vmul.f32 %v11480, %v11480
    %v11545 = vmul.f32 %v11481, %v11481
    %v11546 = vmul.f32 %v11482, %v11482
    %v11547 = vmul.f32 %v11483, %v11483
    %v11548 = vmul.f32 %v11484, %v11484
    %v11549 = vmul.f32 %v11485, %v11485
    %v11550 = vmul.f32 %v11486, %v11486
    %v11551 = vmul.f32 %v11487, %v11487
    %v11552 = vmul.f32 %v11488, %v11488
    %v11553 = vmul.f32 %v11489, %v11489
    %v11554 = vmul.f32 %v11490, %v11490
    %v11555 = vmul.f32 %v11491, %v11491
    %v11556 = vmul.f32 %v11492, %v11492
    %v11557 = vmul.f32 %v11493, %v11493
    %v11558 = vmul.f32 %v11494, %v11494
    %v11559 = vmul.f32 %v11495, %v11495
    %v11560 = vmul.f32 %v11496, %v11496
    %v11561 = vmul.f32 %v11497, %v11497
    %v11562 = vmul.f32 %v11498, %v11498
    %v11563 = vmul.f32 %v11499, %v11499
    %v11564 = vmul.f32 %v11500, %v11500
    %v11565 = vmul.f32 %v11501, %v11501
    %v11566 = vmul.f32 %v11502, %v11502
    %v11567 = vmul.f32 %v11503, %v11503
    %v11568 = vmul.f32 %v11504, %v11504
    %v11569 = vmul.f32 %v11505, %v11505
    %v11570 = vmul.f32 %v11506, %v11506
    %v11571 = vmul.f32 %v11507, %v11507
    %v11572 = vmul.f32 %v11508, %v11508
    %v11573 = vmul.f32 %v11509, %v11509
    %v11574 = vmul.f32 %v11510, %v11510
    %v11575 = vmul.f32 %v11511, %v11511
    %v11576 = vmul.f32 %v11512, %v11512
    %v11577 = vmul.f32 %v11513, %v11513
    %v11578 = vmul.f32 %v11514, %v11514
    %v11579 = vmul.f32 %v11515, %v11515
    %v11580 = vmul.f32 %v11516, %v11516
    %v11581 = vmul.f32 %v11517, %v11517
    %v11582 = vmul.f32 %v11518, %v11518
    %v11583 = vmul.f32 %v11519, %v11519
    %v11584 = vmul.f32 %v11520, %v11520
    %v11585 = vmul.f32 %v11521, %v11521
    %v11586 = vmul.f32 %v11522, %v11522
    %v11587 = vmul.f32 %v11523, %v11523
    %v11588 = vmul.f32 %v11524, %v11524
    %v11589 = vmul.f32 %v11525, %v11525
    %v11590 = vmul.f32 %v11526, %v11526
    %v11591 = vmul.f32 %v11527, %v11527
    %v11592 = vmul.f32 %v11528, %v11528
    %v11593 = vmul.f32 %v11529, %v11529
    %v11594 = vmul.f32 %v11530, %v11530
    %v11595 = vmul.f32 %v11531, %v11531
    %v11596 = vmul.f32 %v11532, %v11532
    %v11597 = vmul.f32 %v11533, %v11533
    %v11598 = vmul.f32 %v11534, %v11534
    %v11599 = vmul.f32 %v11535, %v11535
    %v11600 = vmul.f32 %v11536, %v11536
    %v11601 = vmul.f32 %v11537, %v11537
    %v11602 = vmul.f32 %v11538, %v11538
    %v11603 = vsel %vm523, %v11539, 0.0
    %v11604 = vsel %vm523, %v11540, 0.0
    %v11605 = vadd.f32 %v11603, %v11604
    %v11606 = vsel %vm523, %v11541, 0.0
    %v11607 = vadd.f32 %v11605, %v11606
    %v11608 = vsel %vm523, %v11542, 0.0
    %v11609 = vadd.f32 %v11607, %v11608
    %v11610 = vsel %vm523, %v11543, 0.0
    %v11611 = vadd.f32 %v11609, %v11610
    %v11612 = vsel %vm523, %v11544, 0.0
    %v11613 = vadd.f32 %v11611, %v11612
    %v11614 = vsel %vm523, %v11545, 0.0
    %v11615 = vadd.f32 %v11613, %v11614
    %v11616 = vsel %vm523, %v11546, 0.0
    %v11617 = vadd.f32 %v11615, %v11616
    %v11618 = vsel %vm523, %v11547, 0.0
    %v11619 = vadd.f32 %v11617, %v11618
    %v11620 = vsel %vm523, %v11548, 0.0
    %v11621 = vadd.f32 %v11619, %v11620
    %v11622 = vsel %vm523, %v11549, 0.0
    %v11623 = vadd.f32 %v11621, %v11622
    %v11624 = vsel %vm523, %v11550, 0.0
    %v11625 = vadd.f32 %v11623, %v11624
    %v11626 = vsel %vm523, %v11551, 0.0
    %v11627 = vadd.f32 %v11625, %v11626
    %v11628 = vsel %vm523, %v11552, 0.0
    %v11629 = vadd.f32 %v11627, %v11628
    %v11630 = vsel %vm523, %v11553, 0.0
    %v11631 = vadd.f32 %v11629, %v11630
    %v11632 = vsel %vm523, %v11554, 0.0
    %v11633 = vadd.f32 %v11631, %v11632
    %v11634 = vsel %vm523, %v11555, 0.0
    %v11635 = vadd.f32 %v11633, %v11634
    %v11636 = vsel %vm523, %v11556, 0.0
    %v11637 = vadd.f32 %v11635, %v11636
    %v11638 = vsel %vm523, %v11557, 0.0
    %v11639 = vadd.f32 %v11637, %v11638
    %v11640 = vsel %vm523, %v11558, 0.0
    %v11641 = vadd.f32 %v11639, %v11640
    %v11642 = vsel %vm523, %v11559, 0.0
    %v11643 = vadd.f32 %v11641, %v11642
    %v11644 = vsel %vm523, %v11560, 0.0
    %v11645 = vadd.f32 %v11643, %v11644
    %v11646 = vsel %vm523, %v11561, 0.0
    %v11647 = vadd.f32 %v11645, %v11646
    %v11648 = vsel %vm523, %v11562, 0.0
    %v11649 = vadd.f32 %v11647, %v11648
    %v11650 = vsel %vm523, %v11563, 0.0
    %v11651 = vadd.f32 %v11649, %v11650
    %v11652 = vsel %vm523, %v11564, 0.0
    %v11653 = vadd.f32 %v11651, %v11652
    %v11654 = vsel %vm523, %v11565, 0.0
    %v11655 = vadd.f32 %v11653, %v11654
    %v11656 = vsel %vm523, %v11566, 0.0
    %v11657 = vadd.f32 %v11655, %v11656
    %v11658 = vsel %vm523, %v11567, 0.0
    %v11659 = vadd.f32 %v11657, %v11658
    %v11660 = vsel %vm523, %v11568, 0.0
    %v11661 = vadd.f32 %v11659, %v11660
    %v11662 = vsel %vm523, %v11569, 0.0
    %v11663 = vadd.f32 %v11661, %v11662
    %v11664 = vsel %vm523, %v11570, 0.0
    %v11665 = vadd.f32 %v11663, %v11664
    %v11666 = vrot.slane %v11665, 4
    %v11667 = vadd.f32 %v11665, %v11666
    %v11668 = vrot.slane %v11667, 2
    %v11669 = vadd.f32 %v11667, %v11668
    %v11670 = vrot.slane %v11669, 1
    %v11671 = vadd.f32 %v11669, %v11670
    %v11672 = vsel %vm523, %v11571, 0.0
    %v11673 = vsel %vm523, %v11572, 0.0
    %v11674 = vadd.f32 %v11672, %v11673
    %v11675 = vsel %vm523, %v11573, 0.0
    %v11676 = vadd.f32 %v11674, %v11675
    %v11677 = vsel %vm523, %v11574, 0.0
    %v11678 = vadd.f32 %v11676, %v11677
    %v11679 = vsel %vm523, %v11575, 0.0
    %v11680 = vadd.f32 %v11678, %v11679
    %v11681 = vsel %vm523, %v11576, 0.0
    %v11682 = vadd.f32 %v11680, %v11681
    %v11683 = vsel %vm523, %v11577, 0.0
    %v11684 = vadd.f32 %v11682, %v11683
    %v11685 = vsel %vm523, %v11578, 0.0
    %v11686 = vadd.f32 %v11684, %v11685
    %v11687 = vsel %vm523, %v11579, 0.0
    %v11688 = vadd.f32 %v11686, %v11687
    %v11689 = vsel %vm523, %v11580, 0.0
    %v11690 = vadd.f32 %v11688, %v11689
    %v11691 = vsel %vm523, %v11581, 0.0
    %v11692 = vadd.f32 %v11690, %v11691
    %v11693 = vsel %vm523, %v11582, 0.0
    %v11694 = vadd.f32 %v11692, %v11693
    %v11695 = vsel %vm523, %v11583, 0.0
    %v11696 = vadd.f32 %v11694, %v11695
    %v11697 = vsel %vm523, %v11584, 0.0
    %v11698 = vadd.f32 %v11696, %v11697
    %v11699 = vsel %vm523, %v11585, 0.0
    %v11700 = vadd.f32 %v11698, %v11699
    %v11701 = vsel %vm523, %v11586, 0.0
    %v11702 = vadd.f32 %v11700, %v11701
    %v11703 = vsel %vm523, %v11587, 0.0
    %v11704 = vadd.f32 %v11702, %v11703
    %v11705 = vsel %vm523, %v11588, 0.0
    %v11706 = vadd.f32 %v11704, %v11705
    %v11707 = vsel %vm523, %v11589, 0.0
    %v11708 = vadd.f32 %v11706, %v11707
    %v11709 = vsel %vm523, %v11590, 0.0
    %v11710 = vadd.f32 %v11708, %v11709
    %v11711 = vsel %vm523, %v11591, 0.0
    %v11712 = vadd.f32 %v11710, %v11711
    %v11713 = vsel %vm523, %v11592, 0.0
    %v11714 = vadd.f32 %v11712, %v11713
    %v11715 = vsel %vm523, %v11593, 0.0
    %v11716 = vadd.f32 %v11714, %v11715
    %v11717 = vsel %vm523, %v11594, 0.0
    %v11718 = vadd.f32 %v11716, %v11717
    %v11719 = vsel %vm523, %v11595, 0.0
    %v11720 = vadd.f32 %v11718, %v11719
    %v11721 = vsel %vm523, %v11596, 0.0
    %v11722 = vadd.f32 %v11720, %v11721
    %v11723 = vsel %vm523, %v11597, 0.0
    %v11724 = vadd.f32 %v11722, %v11723
    %v11725 = vsel %vm523, %v11598, 0.0
    %v11726 = vadd.f32 %v11724, %v11725
    %v11727 = vsel %vm523, %v11599, 0.0
    %v11728 = vadd.f32 %v11726, %v11727
    %v11729 = vsel %vm523, %v11600, 0.0
    %v11730 = vadd.f32 %v11728, %v11729
    %v11731 = vsel %vm523, %v11601, 0.0
    %v11732 = vadd.f32 %v11730, %v11731
    %v11733 = vsel %vm523, %v11602, 0.0
    %v11734 = vadd.f32 %v11732, %v11733
    %v11735 = vrot.slane %v11734, 4
    %v11736 = vadd.f32 %v11734, %v11735
    %v11737 = vrot.slane %v11736, 2
    %v11738 = vadd.f32 %v11736, %v11737
    %v11739 = vrot.slane %v11738, 1
    %v11740 = vadd.f32 %v11738, %v11739
    %v11741 = vmul.f32 %v11671, 0.003921569
    %v11742 = vmul.f32 %v11740, 0.003921569
    %v11743 = vmul.f32 %v11473, %v11473
    %v11744 = vmul.f32 %v11474, %v11474
    %v11745 = vadd.f32 %v11741, %v11743
    %v11746 = vadd.f32 %v11742, %v11744
    %v11747 = vsel %vm523, %v11473, 0.0
    %v11748 = vsel %vm523, %v11474, 0.0
    %v11749 = vadd.f32 %v11747, %v11748
    %v11750 = vmul.f32 %v11749, %v940
    %v11751 = vsel %vm523, %v11745, 0.0
    %v11752 = vsel %vm523, %v11746, 0.0
    %v11753 = vadd.f32 %v11751, %v11752
    %v11754 = vmul.f32 %v11753, %v940
    %v11755 = vmul.f32 %v11750, %v11750
    %v11756 = vsub.f32 %v11754, %v11755
    %v11757 = vmax.f32 %v11756, 0.0
    %v11758 = vmul.f32 %v950, %v11473
    %v11759 = vmul.f32 %v950, %v11474
    %v11760 = vmul.f32 %v953, %v11750
    %v11761 = vadd.f32 %v11758, %v11760
    %v11762 = vadd.f32 %v11759, %v11760
    %v11763 = vmul.f32 %v950, %v11741
    %v11764 = vmul.f32 %v950, %v11742
    %v11765 = vmul.f32 %v953, %v11757
    %v11766 = vadd.f32 %v11763, %v11765
    %v11767 = vadd.f32 %v11764, %v11765
    %v11768 = vadd.f32 %v11766, 1e-05
    %v11769 = vadd.f32 %v11767, 1e-05
    %v11770 = vrsqrt.pop %v11768
    %v11771 = vrsqrt.pop %v11769
    %v11772 = vmul.f32 %v11333, %v11770
    %v11773 = vmul.f32 %v11333, %v11771
    %v11774 = vmul.f32 %v11761, %v11772
    %v11775 = vmul.f32 %v11762, %v11773
    %v11776 = vsub.f32 %v11334, %v11774
    %v11777 = vsub.f32 %v11334, %v11775
    %v11780 = vlaneseq
    %v11781 = vshrl.u32 %v11780, 7
    %v11782 = vsub.s32 0, %v11781
    %v11783 = vrot.slane %v11772, %v11782
    %v11784 = vlaneseq
    %v11785 = vshrl.u32 %v11784, 7
    %v11786 = vsub.s32 0, %v11785
    %v11787 = vrot.slane %v11773, %v11786
    %v11790 = vmul.f32 %v11269, %v11783
    %v11791 = vmul.f32 %v11270, %v11783
    %v11792 = vmul.f32 %v11271, %v11783
    %v11793 = vmul.f32 %v11272, %v11783
    %v11794 = vmul.f32 %v11273, %v11783
    %v11795 = vmul.f32 %v11274, %v11783
    %v11796 = vmul.f32 %v11275, %v11783
    %v11797 = vmul.f32 %v11276, %v11783
    %v11798 = vmul.f32 %v11277, %v11783
    %v11799 = vmul.f32 %v11278, %v11783
    %v11800 = vmul.f32 %v11279, %v11783
    %v11801 = vmul.f32 %v11280, %v11783
    %v11802 = vmul.f32 %v11281, %v11783
    %v11803 = vmul.f32 %v11282, %v11783
    %v11804 = vmul.f32 %v11283, %v11783
    %v11805 = vmul.f32 %v11284, %v11783
    %v11806 = vmul.f32 %v11285, %v11783
    %v11807 = vmul.f32 %v11286, %v11783
    %v11808 = vmul.f32 %v11287, %v11783
    %v11809 = vmul.f32 %v11288, %v11783
    %v11810 = vmul.f32 %v11289, %v11783
    %v11811 = vmul.f32 %v11290, %v11783
    %v11812 = vmul.f32 %v11291, %v11783
    %v11813 = vmul.f32 %v11292, %v11783
    %v11814 = vmul.f32 %v11293, %v11783
    %v11815 = vmul.f32 %v11294, %v11783
    %v11816 = vmul.f32 %v11295, %v11783
    %v11817 = vmul.f32 %v11296, %v11783
    %v11818 = vmul.f32 %v11297, %v11783
    %v11819 = vmul.f32 %v11298, %v11783
    %v11820 = vmul.f32 %v11299, %v11783
    %v11821 = vmul.f32 %v11300, %v11783
    %v11822 = vmul.f32 %v11301, %v11787
    %v11823 = vmul.f32 %v11302, %v11787
    %v11824 = vmul.f32 %v11303, %v11787
    %v11825 = vmul.f32 %v11304, %v11787
    %v11826 = vmul.f32 %v11305, %v11787
    %v11827 = vmul.f32 %v11306, %v11787
    %v11828 = vmul.f32 %v11307, %v11787
    %v11829 = vmul.f32 %v11308, %v11787
    %v11830 = vmul.f32 %v11309, %v11787
    %v11831 = vmul.f32 %v11310, %v11787
    %v11832 = vmul.f32 %v11311, %v11787
    %v11833 = vmul.f32 %v11312, %v11787
    %v11834 = vmul.f32 %v11313, %v11787
    %v11835 = vmul.f32 %v11314, %v11787
    %v11836 = vmul.f32 %v11315, %v11787
    %v11837 = vmul.f32 %v11316, %v11787
    %v11838 = vmul.f32 %v11317, %v11787
    %v11839 = vmul.f32 %v11318, %v11787
    %v11840 = vmul.f32 %v11319, %v11787
    %v11841 = vmul.f32 %v11320, %v11787
    %v11842 = vmul.f32 %v11321, %v11787
    %v11843 = vmul.f32 %v11322, %v11787
    %v11844 = vmul.f32 %v11323, %v11787
    %v11845 = vmul.f32 %v11324, %v11787
    %v11846 = vmul.f32 %v11325, %v11787
    %v11847 = vmul.f32 %v11326, %v11787
    %v11848 = vmul.f32 %v11327, %v11787
    %v11849 = vmul.f32 %v11328, %v11787
    %v11850 = vmul.f32 %v11329, %v11787
    %v11851 = vmul.f32 %v11330, %v11787
    %v11852 = vmul.f32 %v11331, %v11787
    %v11853 = vmul.f32 %v11332, %v11787
    %v11856 = vlaneseq
    %v11857 = vshrl.u32 %v11856, 7
    %v11858 = vsub.s32 0, %v11857
    %v11859 = vrot.slane %v11776, %v11858
    %v11860 = vlaneseq
    %v11861 = vshrl.u32 %v11860, 7
    %v11862 = vsub.s32 0, %v11861
    %v11863 = vrot.slane %v11777, %v11862
    %v11866 = vadd.f32 %v11790, %v11859
    %v11867 = vadd.f32 %v11791, %v11859
    %v11868 = vadd.f32 %v11792, %v11859
    %v11869 = vadd.f32 %v11793, %v11859
    %v11870 = vadd.f32 %v11794, %v11859
    %v11871 = vadd.f32 %v11795, %v11859
    %v11872 = vadd.f32 %v11796, %v11859
    %v11873 = vadd.f32 %v11797, %v11859
    %v11874 = vadd.f32 %v11798, %v11859
    %v11875 = vadd.f32 %v11799, %v11859
    %v11876 = vadd.f32 %v11800, %v11859
    %v11877 = vadd.f32 %v11801, %v11859
    %v11878 = vadd.f32 %v11802, %v11859
    %v11879 = vadd.f32 %v11803, %v11859
    %v11880 = vadd.f32 %v11804, %v11859
    %v11881 = vadd.f32 %v11805, %v11859
    %v11882 = vadd.f32 %v11806, %v11859
    %v11883 = vadd.f32 %v11807, %v11859
    %v11884 = vadd.f32 %v11808, %v11859
    %v11885 = vadd.f32 %v11809, %v11859
    %v11886 = vadd.f32 %v11810, %v11859
    %v11887 = vadd.f32 %v11811, %v11859
    %v11888 = vadd.f32 %v11812, %v11859
    %v11889 = vadd.f32 %v11813, %v11859
    %v11890 = vadd.f32 %v11814, %v11859
    %v11891 = vadd.f32 %v11815, %v11859
    %v11892 = vadd.f32 %v11816, %v11859
    %v11893 = vadd.f32 %v11817, %v11859
    %v11894 = vadd.f32 %v11818, %v11859
    %v11895 = vadd.f32 %v11819, %v11859
    %v11896 = vadd.f32 %v11820, %v11859
    %v11897 = vadd.f32 %v11821, %v11859
    %v11898 = vadd.f32 %v11822, %v11863
    %v11899 = vadd.f32 %v11823, %v11863
    %v11900 = vadd.f32 %v11824, %v11863
    %v11901 = vadd.f32 %v11825, %v11863
    %v11902 = vadd.f32 %v11826, %v11863
    %v11903 = vadd.f32 %v11827, %v11863
    %v11904 = vadd.f32 %v11828, %v11863
    %v11905 = vadd.f32 %v11829, %v11863
    %v11906 = vadd.f32 %v11830, %v11863
    %v11907 = vadd.f32 %v11831, %v11863
    %v11908 = vadd.f32 %v11832, %v11863
    %v11909 = vadd.f32 %v11833, %v11863
    %v11910 = vadd.f32 %v11834, %v11863
    %v11911 = vadd.f32 %v11835, %v11863
    %v11912 = vadd.f32 %v11836, %v11863
    %v11913 = vadd.f32 %v11837, %v11863
    %v11914 = vadd.f32 %v11838, %v11863
    %v11915 = vadd.f32 %v11839, %v11863
    %v11916 = vadd.f32 %v11840, %v11863
    %v11917 = vadd.f32 %v11841, %v11863
    %v11918 = vadd.f32 %v11842, %v11863
    %v11919 = vadd.f32 %v11843, %v11863
    %v11920 = vadd.f32 %v11844, %v11863
    %v11921 = vadd.f32 %v11845, %v11863
    %v11922 = vadd.f32 %v11846, %v11863
    %v11923 = vadd.f32 %v11847, %v11863
    %v11924 = vadd.f32 %v11848, %v11863
    %v11925 = vadd.f32 %v11849, %v11863
    %v11926 = vadd.f32 %v11850, %v11863
    %v11927 = vadd.f32 %v11851, %v11863
    %v11928 = vadd.f32 %v11852, %v11863
    %v11929 = vadd.f32 %v11853, %v11863
    %v11930 = vmax.f32 %v11866, 0.0
    %v11931 = vmax.f32 %v11867, 0.0
    %v11932 = vmax.f32 %v11868, 0.0
    %v11933 = vmax.f32 %v11869, 0.0
    %v11934 = vmax.f32 %v11870, 0.0
    %v11935 = vmax.f32 %v11871, 0.0
    %v11936 = vmax.f32 %v11872, 0.0
    %v11937 = vmax.f32 %v11873, 0.0
    %v11938 = vmax.f32 %v11874, 0.0
    %v11939 = vmax.f32 %v11875, 0.0
    %v11940 = vmax.f32 %v11876, 0.0
    %v11941 = vmax.f32 %v11877, 0.0
    %v11942 = vmax.f32 %v11878, 0.0
    %v11943 = vmax.f32 %v11879, 0.0
    %v11944 = vmax.f32 %v11880, 0.0
    %v11945 = vmax.f32 %v11881, 0.0
    %v11946 = vmax.f32 %v11882, 0.0
    %v11947 = vmax.f32 %v11883, 0.0
    %v11948 = vmax.f32 %v11884, 0.0
    %v11949 = vmax.f32 %v11885, 0.0
    %v11950 = vmax.f32 %v11886, 0.0
    %v11951 = vmax.f32 %v11887, 0.0
    %v11952 = vmax.f32 %v11888, 0.0
    %v11953 = vmax.f32 %v11889, 0.0
    %v11954 = vmax.f32 %v11890, 0.0
    %v11955 = vmax.f32 %v11891, 0.0
    %v11956 = vmax.f32 %v11892, 0.0
    %v11957 = vmax.f32 %v11893, 0.0
    %v11958 = vmax.f32 %v11894, 0.0
    %v11959 = vmax.f32 %v11895, 0.0
    %v11960 = vmax.f32 %v11896, 0.0
    %v11961 = vmax.f32 %v11897, 0.0
    %v11962 = vmax.f32 %v11898, 0.0
    %v11963 = vmax.f32 %v11899, 0.0
    %v11964 = vmax.f32 %v11900, 0.0
    %v11965 = vmax.f32 %v11901, 0.0
    %v11966 = vmax.f32 %v11902, 0.0
    %v11967 = vmax.f32 %v11903, 0.0
    %v11968 = vmax.f32 %v11904, 0.0
    %v11969 = vmax.f32 %v11905, 0.0
    %v11970 = vmax.f32 %v11906, 0.0
    %v11971 = vmax.f32 %v11907, 0.0
    %v11972 = vmax.f32 %v11908, 0.0
    %v11973 = vmax.f32 %v11909, 0.0
    %v11974 = vmax.f32 %v11910, 0.0
    %v11975 = vmax.f32 %v11911, 0.0
    %v11976 = vmax.f32 %v11912, 0.0
    %v11977 = vmax.f32 %v11913, 0.0
    %v11978 = vmax.f32 %v11914, 0.0
    %v11979 = vmax.f32 %v11915, 0.0
    %v11980 = vmax.f32 %v11916, 0.0
    %v11981 = vmax.f32 %v11917, 0.0
    %v11982 = vmax.f32 %v11918, 0.0
    %v11983 = vmax.f32 %v11919, 0.0
    %v11984 = vmax.f32 %v11920, 0.0
    %v11985 = vmax.f32 %v11921, 0.0
    %v11986 = vmax.f32 %v11922, 0.0
    %v11987 = vmax.f32 %v11923, 0.0
    %v11988 = vmax.f32 %v11924, 0.0
    %v11989 = vmax.f32 %v11925, 0.0
    %v11990 = vmax.f32 %v11926, 0.0
    %v11991 = vmax.f32 %v11927, 0.0
    %v11992 = vmax.f32 %v11928, 0.0
    %v11993 = vmax.f32 %v11929, 0.0
    %v11994 = vpack.c.bf16 %v11931, %v11930
    %v11995 = vpack.c.bf16 %v11933, %v11932
    %v11996 = vpack.c.bf16 %v11935, %v11934
    %v11997 = vpack.c.bf16 %v11937, %v11936
    %v11998 = vpack.c.bf16 %v11939, %v11938
    %v11999 = vpack.c.bf16 %v11941, %v11940
    %v12000 = vpack.c.bf16 %v11943, %v11942
    %v12001 = vpack.c.bf16 %v11945, %v11944
    %v12002 = vpack.c.bf16 %v11947, %v11946
    %v12003 = vpack.c.bf16 %v11949, %v11948
    %v12004 = vpack.c.bf16 %v11951, %v11950
    %v12005 = vpack.c.bf16 %v11953, %v11952
    %v12006 = vpack.c.bf16 %v11955, %v11954
    %v12007 = vpack.c.bf16 %v11957, %v11956
    %v12008 = vpack.c.bf16 %v11959, %v11958
    %v12009 = vpack.c.bf16 %v11961, %v11960
    %v12010 = vpack.c.bf16 %v11963, %v11962
    %v12011 = vpack.c.bf16 %v11965, %v11964
    %v12012 = vpack.c.bf16 %v11967, %v11966
    %v12013 = vpack.c.bf16 %v11969, %v11968
    %v12014 = vpack.c.bf16 %v11971, %v11970
    %v12015 = vpack.c.bf16 %v11973, %v11972
    %v12016 = vpack.c.bf16 %v11975, %v11974
    %v12017 = vpack.c.bf16 %v11977, %v11976
    %v12018 = vpack.c.bf16 %v11979, %v11978
    %v12019 = vpack.c.bf16 %v11981, %v11980
    %v12020 = vpack.c.bf16 %v11983, %v11982
    %v12021 = vpack.c.bf16 %v11985, %v11984
    %v12022 = vpack.c.bf16 %v11987, %v11986
    %v12023 = vpack.c.bf16 %v11989, %v11988
    %v12024 = vpack.c.bf16 %v11991, %v11990
    %v12025 = vpack.c.bf16 %v11993, %v11992
    %v12026 = vld [vmem:[%s8] sm:$0xf]
    %v12027 = vld [vmem:[%s8 + $0x4] sm:$0xf]
    %v12028 = vld [vmem:[%s8 + $0x8] sm:$0xf]
    %v12029 = vld [vmem:[%s8 + $0xc] sm:$0xf]
    %v12034 = vunpack.c.l.b16 %v12026
    %v12035 = vunpack.c.l.b16 %v12027
    %v12036 = vunpack.c.l.b16 %v12028
    %v12037 = vunpack.c.l.b16 %v12029
    %v12038 = vpack.c.b16 %v12035, %v12034
    %v12039 = vpack.c.b16 %v12037, %v12036
    %v12043 = vsel %vm523, %v11994, 0
    %v12046 = vsel %vm523, %v11995, 0
    %v12049 = vsel %vm523, %v11996, 0
    %v12052 = vsel %vm523, %v11997, 0
    %v12055 = vsel %vm523, %v11998, 0
    %v12058 = vsel %vm523, %v11999, 0
    %v12061 = vsel %vm523, %v12000, 0
    %v12064 = vsel %vm523, %v12001, 0
    %v12067 = vsel %vm523, %v12002, 0
    %v12070 = vsel %vm523, %v12003, 0
    %v12073 = vsel %vm523, %v12004, 0
    %v12076 = vsel %vm523, %v12005, 0
    %v12079 = vsel %vm523, %v12006, 0
    %v12082 = vsel %vm523, %v12007, 0
    %v12085 = vsel %vm523, %v12008, 0
    %v12088 = vsel %vm523, %v12009, 0
    %v12091 = vsel %vm523, %v12010, 0
    %v12094 = vsel %vm523, %v12011, 0
    %v12097 = vsel %vm523, %v12012, 0
    %v12100 = vsel %vm523, %v12013, 0
    %v12103 = vsel %vm523, %v12014, 0
    %v12106 = vsel %vm523, %v12015, 0
    %v12109 = vsel %vm523, %v12016, 0
    %v12112 = vsel %vm523, %v12017, 0
    %v12115 = vsel %vm523, %v12018, 0
    %v12118 = vsel %vm523, %v12019, 0
    %v12121 = vsel %vm523, %v12020, 0
    %v12124 = vsel %vm523, %v12021, 0
    %v12127 = vsel %vm523, %v12022, 0
    %v12130 = vsel %vm523, %v12023, 0
    %v12133 = vsel %vm523, %v12024, 0
    %v12136 = vsel %vm523, %v12025, 0
    %12138 = vmatprep.subr.bf16.mxu0 0
    %12139 = vmatpush1.bf16.msra.mxu0 %v12038
    %12140 = vmatprep.subr.bf16.mxu0 0
    %12141 = vmatpush1.bf16.msra.mxu0 %v12039
    %12142 = vmatprep.subr.bf16.mxu0 0
    %12143 = vmatpush1.bf16.msra.mxu0 0
    %12144 = vmatprep.subr.bf16.mxu0 0
    %12145 = vmatpush1.bf16.msra.mxu0 0
    %12146 = vmatprep.subr.bf16.mxu0 0
    %12147 = vmatpush1.bf16.msra.mxu0 0
    %12148 = vmatprep.subr.bf16.mxu0 0
    %12149 = vmatpush1.bf16.msra.mxu0 0
    %12150 = vmatprep.subr.bf16.mxu0 0
    %12151 = vmatpush1.bf16.msra.mxu0 0
    %12152 = vmatprep.subr.bf16.mxu0 0
    %12153 = vmatpush1.bf16.msra.mxu0 0
    %12154 = vmatprep.subr.bf16.mxu0 0
    %12155 = vmatpush1.bf16.msra.mxu0 0
    %12156 = vmatprep.subr.bf16.mxu0 0
    %12157 = vmatpush1.bf16.msra.mxu0 0
    %12158 = vmatprep.subr.bf16.mxu0 0
    %12159 = vmatpush1.bf16.msra.mxu0 0
    %12160 = vmatprep.subr.bf16.mxu0 0
    %12161 = vmatpush1.bf16.msra.mxu0 0
    %12162 = vmatprep.subr.bf16.mxu0 0
    %12163 = vmatpush1.bf16.msra.mxu0 0
    %12164 = vmatprep.subr.bf16.mxu0 0
    %12165 = vmatpush1.bf16.msra.mxu0 0
    %12166 = vmatprep.subr.bf16.mxu0 0
    %12167 = vmatpush1.bf16.msra.mxu0 0
    %12168 = vmatprep.subr.bf16.mxu0 0
    %12169 = vmatpush1.bf16.msra.mxu0 0
    %12170 = vmatprep.mubr.bf16.mxu0 0
    %12171 = vmatmul.mubr.bf16.gmra.mrb[0].mxu0 %v12043
    %v12172 = vpop.f32.mrb[0].mxu0
    %v12173 = vadd.f32 0.0, %v12172
    %v12174 = vpop.f32.mrb[0].mxu0
    %v12175 = vpop.f32.mrb[0].mxu0
    %v12176 = vadd.f32 0.0, %v12175
    %v12177 = vpop.f32.mrb[0].mxu0
    %12178 = vmatprep.mubr.bf16.mxu0 0
    %12179 = vmatmul.mubr.bf16.gmra.mrb[0].mxu0 %v12046
    %v12180 = vpop.f32.mrb[0].mxu0
    %v12181 = vadd.f32 0.0, %v12180
    %v12182 = vpop.f32.mrb[0].mxu0
    %v12183 = vpop.f32.mrb[0].mxu0
    %v12184 = vadd.f32 0.0, %v12183
    %v12185 = vpop.f32.mrb[0].mxu0
    %12186 = vmatprep.mubr.bf16.mxu0 0
    %12187 = vmatmul.mubr.bf16.gmra.mrb[0].mxu0 %v12049
    %v12188 = vpop.f32.mrb[0].mxu0
    %v12189 = vadd.f32 0.0, %v12188
    %v12190 = vpop.f32.mrb[0].mxu0
    %v12191 = vpop.f32.mrb[0].mxu0
    %v12192 = vadd.f32 0.0, %v12191
    %v12193 = vpop.f32.mrb[0].mxu0
    %12194 = vmatprep.mubr.bf16.mxu0 0
    %12195 = vmatmul.mubr.bf16.gmra.mrb[0].mxu0 %v12052
    %v12196 = vpop.f32.mrb[0].mxu0
    %v12197 = vadd.f32 0.0, %v12196
    %v12198 = vpop.f32.mrb[0].mxu0
    %v12199 = vpop.f32.mrb[0].mxu0
    %v12200 = vadd.f32 0.0, %v12199
    %v12201 = vpop.f32.mrb[0].mxu0
    %12202 = vmatprep.mubr.bf16.mxu0 0
    %12203 = vmatmul.mubr.bf16.gmra.mrb[0].mxu0 %v12055
    %v12204 = vpop.f32.mrb[0].mxu0
    %v12205 = vadd.f32 0.0, %v12204
    %v12206 = vpop.f32.mrb[0].mxu0
    %v12207 = vpop.f32.mrb[0].mxu0
    %v12208 = vadd.f32 0.0, %v12207
    %v12209 = vpop.f32.mrb[0].mxu0
    %12210 = vmatprep.mubr.bf16.mxu0 0
    %12211 = vmatmul.mubr.bf16.gmra.mrb[0].mxu0 %v12058
    %v12212 = vpop.f32.mrb[0].mxu0
    %v12213 = vadd.f32 0.0, %v12212
    %v12214 = vpop.f32.mrb[0].mxu0
    %v12215 = vpop.f32.mrb[0].mxu0
    %v12216 = vadd.f32 0.0, %v12215
    %v12217 = vpop.f32.mrb[0].mxu0
    %12218 = vmatprep.mubr.bf16.mxu0 0
    %12219 = vmatmul.mubr.bf16.gmra.mrb[0].mxu0 %v12061
    %v12220 = vpop.f32.mrb[0].mxu0
    %v12221 = vadd.f32 0.0, %v12220
    %v12222 = vpop.f32.mrb[0].mxu0
    %v12223 = vpop.f32.mrb[0].mxu0
    %v12224 = vadd.f32 0.0, %v12223
    %v12225 = vpop.f32.mrb[0].mxu0
    %12226 = vmatprep.mubr.bf16.mxu0 0
    %12227 = vmatmul.mubr.bf16.gmra.mrb[0].mxu0 %v12064
    %v12228 = vpop.f32.mrb[0].mxu0
    %v12229 = vadd.f32 0.0, %v12228
    %v12230 = vpop.f32.mrb[0].mxu0
    %v12231 = vpop.f32.mrb[0].mxu0
    %v12232 = vadd.f32 0.0, %v12231
    %v12233 = vpop.f32.mrb[0].mxu0
    %12234 = vmatprep.mubr.bf16.mxu0 0
    %12235 = vmatmul.mubr.bf16.gmra.mrb[0].mxu0 %v12067
    %v12236 = vpop.f32.mrb[0].mxu0
    %v12237 = vadd.f32 0.0, %v12236
    %v12238 = vpop.f32.mrb[0].mxu0
    %v12239 = vpop.f32.mrb[0].mxu0
    %v12240 = vadd.f32 0.0, %v12239
    %v12241 = vpop.f32.mrb[0].mxu0
    %12242 = vmatprep.mubr.bf16.mxu0 0
    %12243 = vmatmul.mubr.bf16.gmra.mrb[0].mxu0 %v12070
    %v12244 = vpop.f32.mrb[0].mxu0
    %v12245 = vadd.f32 0.0, %v12244
    %v12246 = vpop.f32.mrb[0].mxu0
    %v12247 = vpop.f32.mrb[0].mxu0
    %v12248 = vadd.f32 0.0, %v12247
    %v12249 = vpop.f32.mrb[0].mxu0
    %12250 = vmatprep.mubr.bf16.mxu0 0
    %12251 = vmatmul.mubr.bf16.gmra.mrb[0].mxu0 %v12073
    %v12252 = vpop.f32.mrb[0].mxu0
    %v12253 = vadd.f32 0.0, %v12252
    %v12254 = vpop.f32.mrb[0].mxu0
    %v12255 = vpop.f32.mrb[0].mxu0
    %v12256 = vadd.f32 0.0, %v12255
    %v12257 = vpop.f32.mrb[0].mxu0
    %12258 = vmatprep.mubr.bf16.mxu0 0
    %12259 = vmatmul.mubr.bf16.gmra.mrb[0].mxu0 %v12076
    %v12260 = vpop.f32.mrb[0].mxu0
    %v12261 = vadd.f32 0.0, %v12260
    %v12262 = vpop.f32.mrb[0].mxu0
    %v12263 = vpop.f32.mrb[0].mxu0
    %v12264 = vadd.f32 0.0, %v12263
    %v12265 = vpop.f32.mrb[0].mxu0
    %12266 = vmatprep.mubr.bf16.mxu0 0
    %12267 = vmatmul.mubr.bf16.gmra.mrb[0].mxu0 %v12079
    %v12268 = vpop.f32.mrb[0].mxu0
    %v12269 = vadd.f32 0.0, %v12268
    %v12270 = vpop.f32.mrb[0].mxu0
    %v12271 = vpop.f32.mrb[0].mxu0
    %v12272 = vadd.f32 0.0, %v12271
    %v12273 = vpop.f32.mrb[0].mxu0
    %12274 = vmatprep.mubr.bf16.mxu0 0
    %12275 = vmatmul.mubr.bf16.gmra.mrb[0].mxu0 %v12082
    %v12276 = vpop.f32.mrb[0].mxu0
    %v12277 = vadd.f32 0.0, %v12276
    %v12278 = vpop.f32.mrb[0].mxu0
    %v12279 = vpop.f32.mrb[0].mxu0
    %v12280 = vadd.f32 0.0, %v12279
    %v12281 = vpop.f32.mrb[0].mxu0
    %12282 = vmatprep.mubr.bf16.mxu0 0
    %12283 = vmatmul.mubr.bf16.gmra.mrb[0].mxu0 %v12085
    %v12284 = vpop.f32.mrb[0].mxu0
    %v12285 = vadd.f32 0.0, %v12284
    %v12286 = vpop.f32.mrb[0].mxu0
    %v12287 = vpop.f32.mrb[0].mxu0
    %v12288 = vadd.f32 0.0, %v12287
    %v12289 = vpop.f32.mrb[0].mxu0
    %12290 = vmatprep.mubr.bf16.mxu0 0
    %12291 = vmatmul.mubr.bf16.gmra.mrb[0].mxu0 %v12088
    %v12292 = vpop.f32.mrb[0].mxu0
    %v12293 = vadd.f32 0.0, %v12292
    %v12294 = vpop.f32.mrb[0].mxu0
    %v12295 = vpop.f32.mrb[0].mxu0
    %v12296 = vadd.f32 0.0, %v12295
    %v12297 = vpop.f32.mrb[0].mxu0
    %12298 = vmatprep.mubr.bf16.mxu0 0
    %12299 = vmatmul.mubr.bf16.gmra.mrb[0].mxu0 %v12091
    %v12300 = vpop.f32.mrb[0].mxu0
    %v12301 = vadd.f32 0.0, %v12300
    %v12302 = vpop.f32.mrb[0].mxu0
    %v12303 = vpop.f32.mrb[0].mxu0
    %v12304 = vadd.f32 0.0, %v12303
    %v12305 = vpop.f32.mrb[0].mxu0
    %12306 = vmatprep.mubr.bf16.mxu0 0
    %12307 = vmatmul.mubr.bf16.gmra.mrb[0].mxu0 %v12094
    %v12308 = vpop.f32.mrb[0].mxu0
    %v12309 = vadd.f32 0.0, %v12308
    %v12310 = vpop.f32.mrb[0].mxu0
    %v12311 = vpop.f32.mrb[0].mxu0
    %v12312 = vadd.f32 0.0, %v12311
    %v12313 = vpop.f32.mrb[0].mxu0
    %12314 = vmatprep.mubr.bf16.mxu0 0
    %12315 = vmatmul.mubr.bf16.gmra.mrb[0].mxu0 %v12097
    %v12316 = vpop.f32.mrb[0].mxu0
    %v12317 = vadd.f32 0.0, %v12316
    %v12318 = vpop.f32.mrb[0].mxu0
    %v12319 = vpop.f32.mrb[0].mxu0
    %v12320 = vadd.f32 0.0, %v12319
    %v12321 = vpop.f32.mrb[0].mxu0
    %12322 = vmatprep.mubr.bf16.mxu0 0
    %12323 = vmatmul.mubr.bf16.gmra.mrb[0].mxu0 %v12100
    %v12324 = vpop.f32.mrb[0].mxu0
    %v12325 = vadd.f32 0.0, %v12324
    %v12326 = vpop.f32.mrb[0].mxu0
    %v12327 = vpop.f32.mrb[0].mxu0
    %v12328 = vadd.f32 0.0, %v12327
    %v12329 = vpop.f32.mrb[0].mxu0
    %12330 = vmatprep.mubr.bf16.mxu0 0
    %12331 = vmatmul.mubr.bf16.gmra.mrb[0].mxu0 %v12103
    %v12332 = vpop.f32.mrb[0].mxu0
    %v12333 = vadd.f32 0.0, %v12332
    %v12334 = vpop.f32.mrb[0].mxu0
    %v12335 = vpop.f32.mrb[0].mxu0
    %v12336 = vadd.f32 0.0, %v12335
    %v12337 = vpop.f32.mrb[0].mxu0
    %12338 = vmatprep.mubr.bf16.mxu0 0
    %12339 = vmatmul.mubr.bf16.gmra.mrb[0].mxu0 %v12106
    %v12340 = vpop.f32.mrb[0].mxu0
    %v12341 = vadd.f32 0.0, %v12340
    %v12342 = vpop.f32.mrb[0].mxu0
    %v12343 = vpop.f32.mrb[0].mxu0
    %v12344 = vadd.f32 0.0, %v12343
    %v12345 = vpop.f32.mrb[0].mxu0
    %12346 = vmatprep.mubr.bf16.mxu0 0
    %12347 = vmatmul.mubr.bf16.gmra.mrb[0].mxu0 %v12109
    %v12348 = vpop.f32.mrb[0].mxu0
    %v12349 = vadd.f32 0.0, %v12348
    %v12350 = vpop.f32.mrb[0].mxu0
    %v12351 = vpop.f32.mrb[0].mxu0
    %v12352 = vadd.f32 0.0, %v12351
    %v12353 = vpop.f32.mrb[0].mxu0
    %12354 = vmatprep.mubr.bf16.mxu0 0
    %12355 = vmatmul.mubr.bf16.gmra.mrb[0].mxu0 %v12112
    %v12356 = vpop.f32.mrb[0].mxu0
    %v12357 = vadd.f32 0.0, %v12356
    %v12358 = vpop.f32.mrb[0].mxu0
    %v12359 = vpop.f32.mrb[0].mxu0
    %v12360 = vadd.f32 0.0, %v12359
    %v12361 = vpop.f32.mrb[0].mxu0
    %12362 = vmatprep.mubr.bf16.mxu0 0
    %12363 = vmatmul.mubr.bf16.gmra.mrb[0].mxu0 %v12115
    %v12364 = vpop.f32.mrb[0].mxu0
    %v12365 = vadd.f32 0.0, %v12364
    %v12366 = vpop.f32.mrb[0].mxu0
    %v12367 = vpop.f32.mrb[0].mxu0
    %v12368 = vadd.f32 0.0, %v12367
    %v12369 = vpop.f32.mrb[0].mxu0
    %12370 = vmatprep.mubr.bf16.mxu0 0
    %12371 = vmatmul.mubr.bf16.gmra.mrb[0].mxu0 %v12118
    %v12372 = vpop.f32.mrb[0].mxu0
    %v12373 = vadd.f32 0.0, %v12372
    %v12374 = vpop.f32.mrb[0].mxu0
    %v12375 = vpop.f32.mrb[0].mxu0
    %v12376 = vadd.f32 0.0, %v12375
    %v12377 = vpop.f32.mrb[0].mxu0
    %12378 = vmatprep.mubr.bf16.mxu0 0
    %12379 = vmatmul.mubr.bf16.gmra.mrb[0].mxu0 %v12121
    %v12380 = vpop.f32.mrb[0].mxu0
    %v12381 = vadd.f32 0.0, %v12380
    %v12382 = vpop.f32.mrb[0].mxu0
    %v12383 = vpop.f32.mrb[0].mxu0
    %v12384 = vadd.f32 0.0, %v12383
    %v12385 = vpop.f32.mrb[0].mxu0
    %12386 = vmatprep.mubr.bf16.mxu0 0
    %12387 = vmatmul.mubr.bf16.gmra.mrb[0].mxu0 %v12124
    %v12388 = vpop.f32.mrb[0].mxu0
    %v12389 = vadd.f32 0.0, %v12388
    %v12390 = vpop.f32.mrb[0].mxu0
    %v12391 = vpop.f32.mrb[0].mxu0
    %v12392 = vadd.f32 0.0, %v12391
    %v12393 = vpop.f32.mrb[0].mxu0
    %12394 = vmatprep.mubr.bf16.mxu0 0
    %12395 = vmatmul.mubr.bf16.gmra.mrb[0].mxu0 %v12127
    %v12396 = vpop.f32.mrb[0].mxu0
    %v12397 = vadd.f32 0.0, %v12396
    %v12398 = vpop.f32.mrb[0].mxu0
    %v12399 = vpop.f32.mrb[0].mxu0
    %v12400 = vadd.f32 0.0, %v12399
    %v12401 = vpop.f32.mrb[0].mxu0
    %12402 = vmatprep.mubr.bf16.mxu0 0
    %12403 = vmatmul.mubr.bf16.gmra.mrb[0].mxu0 %v12130
    %v12404 = vpop.f32.mrb[0].mxu0
    %v12405 = vadd.f32 0.0, %v12404
    %v12406 = vpop.f32.mrb[0].mxu0
    %v12407 = vpop.f32.mrb[0].mxu0
    %v12408 = vadd.f32 0.0, %v12407
    %v12409 = vpop.f32.mrb[0].mxu0
    %12410 = vmatprep.mubr.bf16.mxu0 0
    %12411 = vmatmul.mubr.bf16.gmra.mrb[0].mxu0 %v12133
    %v12412 = vpop.f32.mrb[0].mxu0
    %v12413 = vadd.f32 0.0, %v12412
    %v12414 = vpop.f32.mrb[0].mxu0
    %v12415 = vpop.f32.mrb[0].mxu0
    %v12416 = vadd.f32 0.0, %v12415
    %v12417 = vpop.f32.mrb[0].mxu0
    %12418 = vmatprep.mubr.bf16.mxu0 0
    %12419 = vmatmul.mubr.bf16.gmra.mrb[0].mxu0 %v12136
    %v12420 = vpop.f32.mrb[0].mxu0
    %v12421 = vadd.f32 0.0, %v12420
    %v12422 = vpop.f32.mrb[0].mxu0
    %v12423 = vpop.f32.mrb[0].mxu0
    %v12424 = vadd.f32 0.0, %v12423
    %v12425 = vpop.f32.mrb[0].mxu0
    %12426 = vdwg.mxu0
    %v12427 = vld [vmem:[%s9] sm:$0x1]
    %v12428 = vld [vmem:[%s10] sm:$0x1]
    %v12429 = vadd.f32 %v12173, %v12176
    %v12430 = vadd.f32 %v12429, %v12181
    %v12431 = vadd.f32 %v12430, %v12184
    %v12432 = vadd.f32 %v12431, %v12189
    %v12433 = vadd.f32 %v12432, %v12192
    %v12434 = vadd.f32 %v12433, %v12197
    %v12435 = vadd.f32 %v12434, %v12200
    %v12436 = vadd.f32 %v12435, %v12205
    %v12437 = vadd.f32 %v12436, %v12208
    %v12438 = vadd.f32 %v12437, %v12213
    %v12439 = vadd.f32 %v12438, %v12216
    %v12440 = vadd.f32 %v12439, %v12221
    %v12441 = vadd.f32 %v12440, %v12224
    %v12442 = vadd.f32 %v12441, %v12229
    %v12443 = vadd.f32 %v12442, %v12232
    %v12444 = vadd.f32 %v12443, %v12237
    %v12445 = vadd.f32 %v12444, %v12240
    %v12446 = vadd.f32 %v12445, %v12245
    %v12447 = vadd.f32 %v12446, %v12248
    %v12448 = vadd.f32 %v12447, %v12253
    %v12449 = vadd.f32 %v12448, %v12256
    %v12450 = vadd.f32 %v12449, %v12261
    %v12451 = vadd.f32 %v12450, %v12264
    %v12452 = vadd.f32 %v12451, %v12269
    %v12453 = vadd.f32 %v12452, %v12272
    %v12454 = vadd.f32 %v12453, %v12277
    %v12455 = vadd.f32 %v12454, %v12280
    %v12456 = vadd.f32 %v12455, %v12285
    %v12457 = vadd.f32 %v12456, %v12288
    %v12458 = vadd.f32 %v12457, %v12293
    %v12459 = vadd.f32 %v12458, %v12296
    %v12460 = vrot.slane %v12459, 4
    %v12461 = vadd.f32 %v12459, %v12460
    %v12462 = vrot.slane %v12461, 2
    %v12463 = vadd.f32 %v12461, %v12462
    %v12464 = vrot.slane %v12463, 1
    %v12465 = vadd.f32 %v12463, %v12464
    %v12466 = vadd.f32 %v12301, %v12304
    %v12467 = vadd.f32 %v12466, %v12309
    %v12468 = vadd.f32 %v12467, %v12312
    %v12469 = vadd.f32 %v12468, %v12317
    %v12470 = vadd.f32 %v12469, %v12320
    %v12471 = vadd.f32 %v12470, %v12325
    %v12472 = vadd.f32 %v12471, %v12328
    %v12473 = vadd.f32 %v12472, %v12333
    %v12474 = vadd.f32 %v12473, %v12336
    %v12475 = vadd.f32 %v12474, %v12341
    %v12476 = vadd.f32 %v12475, %v12344
    %v12477 = vadd.f32 %v12476, %v12349
    %v12478 = vadd.f32 %v12477, %v12352
    %v12479 = vadd.f32 %v12478, %v12357
    %v12480 = vadd.f32 %v12479, %v12360
    %v12481 = vadd.f32 %v12480, %v12365
    %v12482 = vadd.f32 %v12481, %v12368
    %v12483 = vadd.f32 %v12482, %v12373
    %v12484 = vadd.f32 %v12483, %v12376
    %v12485 = vadd.f32 %v12484, %v12381
    %v12486 = vadd.f32 %v12485, %v12384
    %v12487 = vadd.f32 %v12486, %v12389
    %v12488 = vadd.f32 %v12487, %v12392
    %v12489 = vadd.f32 %v12488, %v12397
    %v12490 = vadd.f32 %v12489, %v12400
    %v12491 = vadd.f32 %v12490, %v12405
    %v12492 = vadd.f32 %v12491, %v12408
    %v12493 = vadd.f32 %v12492, %v12413
    %v12494 = vadd.f32 %v12493, %v12416
    %v12495 = vadd.f32 %v12494, %v12421
    %v12496 = vadd.f32 %v12495, %v12424
    %v12497 = vrot.slane %v12496, 4
    %v12498 = vadd.f32 %v12496, %v12497
    %v12499 = vrot.slane %v12498, 2
    %v12500 = vadd.f32 %v12498, %v12499
    %v12501 = vrot.slane %v12500, 1
    %v12502 = vadd.f32 %v12500, %v12501
    %v12503 = vmul.f32 %v12465, %v662
    %v12504 = vmul.f32 %v12502, %v662
    %v12505 = vsub.f32 %v12173, %v12503
    %v12506 = vsub.f32 %v12176, %v12503
    %v12507 = vsub.f32 %v12181, %v12503
    %v12508 = vsub.f32 %v12184, %v12503
    %v12509 = vsub.f32 %v12189, %v12503
    %v12510 = vsub.f32 %v12192, %v12503
    %v12511 = vsub.f32 %v12197, %v12503
    %v12512 = vsub.f32 %v12200, %v12503
    %v12513 = vsub.f32 %v12205, %v12503
    %v12514 = vsub.f32 %v12208, %v12503
    %v12515 = vsub.f32 %v12213, %v12503
    %v12516 = vsub.f32 %v12216, %v12503
    %v12517 = vsub.f32 %v12221, %v12503
    %v12518 = vsub.f32 %v12224, %v12503
    %v12519 = vsub.f32 %v12229, %v12503
    %v12520 = vsub.f32 %v12232, %v12503
    %v12521 = vsub.f32 %v12237, %v12503
    %v12522 = vsub.f32 %v12240, %v12503
    %v12523 = vsub.f32 %v12245, %v12503
    %v12524 = vsub.f32 %v12248, %v12503
    %v12525 = vsub.f32 %v12253, %v12503
    %v12526 = vsub.f32 %v12256, %v12503
    %v12527 = vsub.f32 %v12261, %v12503
    %v12528 = vsub.f32 %v12264, %v12503
    %v12529 = vsub.f32 %v12269, %v12503
    %v12530 = vsub.f32 %v12272, %v12503
    %v12531 = vsub.f32 %v12277, %v12503
    %v12532 = vsub.f32 %v12280, %v12503
    %v12533 = vsub.f32 %v12285, %v12503
    %v12534 = vsub.f32 %v12288, %v12503
    %v12535 = vsub.f32 %v12293, %v12503
    %v12536 = vsub.f32 %v12296, %v12503
    %v12537 = vsub.f32 %v12301, %v12504
    %v12538 = vsub.f32 %v12304, %v12504
    %v12539 = vsub.f32 %v12309, %v12504
    %v12540 = vsub.f32 %v12312, %v12504
    %v12541 = vsub.f32 %v12317, %v12504
    %v12542 = vsub.f32 %v12320, %v12504
    %v12543 = vsub.f32 %v12325, %v12504
    %v12544 = vsub.f32 %v12328, %v12504
    %v12545 = vsub.f32 %v12333, %v12504
    %v12546 = vsub.f32 %v12336, %v12504
    %v12547 = vsub.f32 %v12341, %v12504
    %v12548 = vsub.f32 %v12344, %v12504
    %v12549 = vsub.f32 %v12349, %v12504
    %v12550 = vsub.f32 %v12352, %v12504
    %v12551 = vsub.f32 %v12357, %v12504
    %v12552 = vsub.f32 %v12360, %v12504
    %v12553 = vsub.f32 %v12365, %v12504
    %v12554 = vsub.f32 %v12368, %v12504
    %v12555 = vsub.f32 %v12373, %v12504
    %v12556 = vsub.f32 %v12376, %v12504
    %v12557 = vsub.f32 %v12381, %v12504
    %v12558 = vsub.f32 %v12384, %v12504
    %v12559 = vsub.f32 %v12389, %v12504
    %v12560 = vsub.f32 %v12392, %v12504
    %v12561 = vsub.f32 %v12397, %v12504
    %v12562 = vsub.f32 %v12400, %v12504
    %v12563 = vsub.f32 %v12405, %v12504
    %v12564 = vsub.f32 %v12408, %v12504
    %v12565 = vsub.f32 %v12413, %v12504
    %v12566 = vsub.f32 %v12416, %v12504
    %v12567 = vsub.f32 %v12421, %v12504
    %v12568 = vsub.f32 %v12424, %v12504
    %v12569 = vmul.f32 %v12505, %v12505
    %v12570 = vmul.f32 %v12506, %v12506
    %v12571 = vmul.f32 %v12507, %v12507
    %v12572 = vmul.f32 %v12508, %v12508
    %v12573 = vmul.f32 %v12509, %v12509
    %v12574 = vmul.f32 %v12510, %v12510
    %v12575 = vmul.f32 %v12511, %v12511
    %v12576 = vmul.f32 %v12512, %v12512
    %v12577 = vmul.f32 %v12513, %v12513
    %v12578 = vmul.f32 %v12514, %v12514
    %v12579 = vmul.f32 %v12515, %v12515
    %v12580 = vmul.f32 %v12516, %v12516
    %v12581 = vmul.f32 %v12517, %v12517
    %v12582 = vmul.f32 %v12518, %v12518
    %v12583 = vmul.f32 %v12519, %v12519
    %v12584 = vmul.f32 %v12520, %v12520
    %v12585 = vmul.f32 %v12521, %v12521
    %v12586 = vmul.f32 %v12522, %v12522
    %v12587 = vmul.f32 %v12523, %v12523
    %v12588 = vmul.f32 %v12524, %v12524
    %v12589 = vmul.f32 %v12525, %v12525
    %v12590 = vmul.f32 %v12526, %v12526
    %v12591 = vmul.f32 %v12527, %v12527
    %v12592 = vmul.f32 %v12528, %v12528
    %v12593 = vmul.f32 %v12529, %v12529
    %v12594 = vmul.f32 %v12530, %v12530
    %v12595 = vmul.f32 %v12531, %v12531
    %v12596 = vmul.f32 %v12532, %v12532
    %v12597 = vmul.f32 %v12533, %v12533
    %v12598 = vmul.f32 %v12534, %v12534
    %v12599 = vmul.f32 %v12535, %v12535
    %v12600 = vmul.f32 %v12536, %v12536
    %v12601 = vmul.f32 %v12537, %v12537
    %v12602 = vmul.f32 %v12538, %v12538
    %v12603 = vmul.f32 %v12539, %v12539
    %v12604 = vmul.f32 %v12540, %v12540
    %v12605 = vmul.f32 %v12541, %v12541
    %v12606 = vmul.f32 %v12542, %v12542
    %v12607 = vmul.f32 %v12543, %v12543
    %v12608 = vmul.f32 %v12544, %v12544
    %v12609 = vmul.f32 %v12545, %v12545
    %v12610 = vmul.f32 %v12546, %v12546
    %v12611 = vmul.f32 %v12547, %v12547
    %v12612 = vmul.f32 %v12548, %v12548
    %v12613 = vmul.f32 %v12549, %v12549
    %v12614 = vmul.f32 %v12550, %v12550
    %v12615 = vmul.f32 %v12551, %v12551
    %v12616 = vmul.f32 %v12552, %v12552
    %v12617 = vmul.f32 %v12553, %v12553
    %v12618 = vmul.f32 %v12554, %v12554
    %v12619 = vmul.f32 %v12555, %v12555
    %v12620 = vmul.f32 %v12556, %v12556
    %v12621 = vmul.f32 %v12557, %v12557
    %v12622 = vmul.f32 %v12558, %v12558
    %v12623 = vmul.f32 %v12559, %v12559
    %v12624 = vmul.f32 %v12560, %v12560
    %v12625 = vmul.f32 %v12561, %v12561
    %v12626 = vmul.f32 %v12562, %v12562
    %v12627 = vmul.f32 %v12563, %v12563
    %v12628 = vmul.f32 %v12564, %v12564
    %v12629 = vmul.f32 %v12565, %v12565
    %v12630 = vmul.f32 %v12566, %v12566
    %v12631 = vmul.f32 %v12567, %v12567
    %v12632 = vmul.f32 %v12568, %v12568
    %v12633 = vadd.f32 %v12569, %v12570
    %v12634 = vadd.f32 %v12633, %v12571
    %v12635 = vadd.f32 %v12634, %v12572
    %v12636 = vadd.f32 %v12635, %v12573
    %v12637 = vadd.f32 %v12636, %v12574
    %v12638 = vadd.f32 %v12637, %v12575
    %v12639 = vadd.f32 %v12638, %v12576
    %v12640 = vadd.f32 %v12639, %v12577
    %v12641 = vadd.f32 %v12640, %v12578
    %v12642 = vadd.f32 %v12641, %v12579
    %v12643 = vadd.f32 %v12642, %v12580
    %v12644 = vadd.f32 %v12643, %v12581
    %v12645 = vadd.f32 %v12644, %v12582
    %v12646 = vadd.f32 %v12645, %v12583
    %v12647 = vadd.f32 %v12646, %v12584
    %v12648 = vadd.f32 %v12647, %v12585
    %v12649 = vadd.f32 %v12648, %v12586
    %v12650 = vadd.f32 %v12649, %v12587
    %v12651 = vadd.f32 %v12650, %v12588
    %v12652 = vadd.f32 %v12651, %v12589
    %v12653 = vadd.f32 %v12652, %v12590
    %v12654 = vadd.f32 %v12653, %v12591
    %v12655 = vadd.f32 %v12654, %v12592
    %v12656 = vadd.f32 %v12655, %v12593
    %v12657 = vadd.f32 %v12656, %v12594
    %v12658 = vadd.f32 %v12657, %v12595
    %v12659 = vadd.f32 %v12658, %v12596
    %v12660 = vadd.f32 %v12659, %v12597
    %v12661 = vadd.f32 %v12660, %v12598
    %v12662 = vadd.f32 %v12661, %v12599
    %v12663 = vadd.f32 %v12662, %v12600
    %v12664 = vrot.slane %v12663, 4
    %v12665 = vadd.f32 %v12663, %v12664
    %v12666 = vrot.slane %v12665, 2
    %v12667 = vadd.f32 %v12665, %v12666
    %v12668 = vrot.slane %v12667, 1
    %v12669 = vadd.f32 %v12667, %v12668
    %v12670 = vadd.f32 %v12601, %v12602
    %v12671 = vadd.f32 %v12670, %v12603
    %v12672 = vadd.f32 %v12671, %v12604
    %v12673 = vadd.f32 %v12672, %v12605
    %v12674 = vadd.f32 %v12673, %v12606
    %v12675 = vadd.f32 %v12674, %v12607
    %v12676 = vadd.f32 %v12675, %v12608
    %v12677 = vadd.f32 %v12676, %v12609
    %v12678 = vadd.f32 %v12677, %v12610
    %v12679 = vadd.f32 %v12678, %v12611
    %v12680 = vadd.f32 %v12679, %v12612
    %v12681 = vadd.f32 %v12680, %v12613
    %v12682 = vadd.f32 %v12681, %v12614
    %v12683 = vadd.f32 %v12682, %v12615
    %v12684 = vadd.f32 %v12683, %v12616
    %v12685 = vadd.f32 %v12684, %v12617
    %v12686 = vadd.f32 %v12685, %v12618
    %v12687 = vadd.f32 %v12686, %v12619
    %v12688 = vadd.f32 %v12687, %v12620
    %v12689 = vadd.f32 %v12688, %v12621
    %v12690 = vadd.f32 %v12689, %v12622
    %v12691 = vadd.f32 %v12690, %v12623
    %v12692 = vadd.f32 %v12691, %v12624
    %v12693 = vadd.f32 %v12692, %v12625
    %v12694 = vadd.f32 %v12693, %v12626
    %v12695 = vadd.f32 %v12694, %v12627
    %v12696 = vadd.f32 %v12695, %v12628
    %v12697 = vadd.f32 %v12696, %v12629
    %v12698 = vadd.f32 %v12697, %v12630
    %v12699 = vadd.f32 %v12698, %v12631
    %v12700 = vadd.f32 %v12699, %v12632
    %v12701 = vrot.slane %v12700, 4
    %v12702 = vadd.f32 %v12700, %v12701
    %v12703 = vrot.slane %v12702, 2
    %v12704 = vadd.f32 %v12702, %v12703
    %v12705 = vrot.slane %v12704, 1
    %v12706 = vadd.f32 %v12704, %v12705
    %v12707 = vmul.f32 %v12669, 0.003921569
    %v12708 = vmul.f32 %v12706, 0.003921569
    %v12709 = vmul.f32 %v12503, %v12503
    %v12710 = vmul.f32 %v12504, %v12504
    %v12711 = vadd.f32 %v12707, %v12709
    %v12712 = vadd.f32 %v12708, %v12710
    %v12713 = vadd.f32 %v12503, %v12504
    %v12714 = vmul.f32 %v12713, %v940
    %v12715 = vadd.f32 %v12711, %v12712
    %v12716 = vmul.f32 %v12715, %v940
    %v12717 = vmul.f32 %v12714, %v12714
    %v12718 = vsub.f32 %v12716, %v12717
    %v12719 = vmax.f32 %v12718, 0.0
    %v12720 = vmul.f32 %v950, %v12503
    %v12721 = vmul.f32 %v950, %v12504
    %v12722 = vmul.f32 %v953, %v12714
    %v12723 = vadd.f32 %v12720, %v12722
    %v12724 = vadd.f32 %v12721, %v12722
    %v12725 = vmul.f32 %v950, %v12707
    %v12726 = vmul.f32 %v950, %v12708
    %v12727 = vmul.f32 %v953, %v12719
    %v12728 = vadd.f32 %v12725, %v12727
    %v12729 = vadd.f32 %v12726, %v12727
    %v12730 = vadd.f32 %v12728, 1e-05
    %v12731 = vadd.f32 %v12729, 1e-05
    %v12732 = vrsqrt.pop %v12730
    %v12733 = vrsqrt.pop %v12731
    %v12734 = vmul.f32 %v12427, %v12732
    %v12735 = vmul.f32 %v12427, %v12733
    %v12736 = vmul.f32 %v12723, %v12734
    %v12737 = vmul.f32 %v12724, %v12735
    %v12738 = vsub.f32 %v12428, %v12736
    %v12739 = vsub.f32 %v12428, %v12737
    %v12742 = vlaneseq
    %v12743 = vshrl.u32 %v12742, 7
    %v12744 = vsub.s32 0, %v12743
    %v12745 = vrot.slane %v12734, %v12744
    %v12746 = vlaneseq
    %v12747 = vshrl.u32 %v12746, 7
    %v12748 = vsub.s32 0, %v12747
    %v12749 = vrot.slane %v12735, %v12748
    %v12752 = vmul.f32 %v12173, %v12745
    %v12753 = vmul.f32 %v12176, %v12745
    %v12754 = vmul.f32 %v12181, %v12745
    %v12755 = vmul.f32 %v12184, %v12745
    %v12756 = vmul.f32 %v12189, %v12745
    %v12757 = vmul.f32 %v12192, %v12745
    %v12758 = vmul.f32 %v12197, %v12745
    %v12759 = vmul.f32 %v12200, %v12745
    %v12760 = vmul.f32 %v12205, %v12745
    %v12761 = vmul.f32 %v12208, %v12745
    %v12762 = vmul.f32 %v12213, %v12745
    %v12763 = vmul.f32 %v12216, %v12745
    %v12764 = vmul.f32 %v12221, %v12745
    %v12765 = vmul.f32 %v12224, %v12745
    %v12766 = vmul.f32 %v12229, %v12745
    %v12767 = vmul.f32 %v12232, %v12745
    %v12768 = vmul.f32 %v12237, %v12745
    %v12769 = vmul.f32 %v12240, %v12745
    %v12770 = vmul.f32 %v12245, %v12745
    %v12771 = vmul.f32 %v12248, %v12745
    %v12772 = vmul.f32 %v12253, %v12745
    %v12773 = vmul.f32 %v12256, %v12745
    %v12774 = vmul.f32 %v12261, %v12745
    %v12775 = vmul.f32 %v12264, %v12745
    %v12776 = vmul.f32 %v12269, %v12745
    %v12777 = vmul.f32 %v12272, %v12745
    %v12778 = vmul.f32 %v12277, %v12745
    %v12779 = vmul.f32 %v12280, %v12745
    %v12780 = vmul.f32 %v12285, %v12745
    %v12781 = vmul.f32 %v12288, %v12745
    %v12782 = vmul.f32 %v12293, %v12745
    %v12783 = vmul.f32 %v12296, %v12745
    %v12784 = vmul.f32 %v12301, %v12749
    %v12785 = vmul.f32 %v12304, %v12749
    %v12786 = vmul.f32 %v12309, %v12749
    %v12787 = vmul.f32 %v12312, %v12749
    %v12788 = vmul.f32 %v12317, %v12749
    %v12789 = vmul.f32 %v12320, %v12749
    %v12790 = vmul.f32 %v12325, %v12749
    %v12791 = vmul.f32 %v12328, %v12749
    %v12792 = vmul.f32 %v12333, %v12749
    %v12793 = vmul.f32 %v12336, %v12749
    %v12794 = vmul.f32 %v12341, %v12749
    %v12795 = vmul.f32 %v12344, %v12749
    %v12796 = vmul.f32 %v12349, %v12749
    %v12797 = vmul.f32 %v12352, %v12749
    %v12798 = vmul.f32 %v12357, %v12749
    %v12799 = vmul.f32 %v12360, %v12749
    %v12800 = vmul.f32 %v12365, %v12749
    %v12801 = vmul.f32 %v12368, %v12749
    %v12802 = vmul.f32 %v12373, %v12749
    %v12803 = vmul.f32 %v12376, %v12749
    %v12804 = vmul.f32 %v12381, %v12749
    %v12805 = vmul.f32 %v12384, %v12749
    %v12806 = vmul.f32 %v12389, %v12749
    %v12807 = vmul.f32 %v12392, %v12749
    %v12808 = vmul.f32 %v12397, %v12749
    %v12809 = vmul.f32 %v12400, %v12749
    %v12810 = vmul.f32 %v12405, %v12749
    %v12811 = vmul.f32 %v12408, %v12749
    %v12812 = vmul.f32 %v12413, %v12749
    %v12813 = vmul.f32 %v12416, %v12749
    %v12814 = vmul.f32 %v12421, %v12749
    %v12815 = vmul.f32 %v12424, %v12749
    %v12818 = vlaneseq
    %v12819 = vshrl.u32 %v12818, 7
    %v12820 = vsub.s32 0, %v12819
    %v12821 = vrot.slane %v12738, %v12820
    %v12822 = vlaneseq
    %v12823 = vshrl.u32 %v12822, 7
    %v12824 = vsub.s32 0, %v12823
    %v12825 = vrot.slane %v12739, %v12824
    %v12828 = vadd.f32 %v12752, %v12821
    %v12829 = vadd.f32 %v12753, %v12821
    %v12830 = vadd.f32 %v12754, %v12821
    %v12831 = vadd.f32 %v12755, %v12821
    %v12832 = vadd.f32 %v12756, %v12821
    %v12833 = vadd.f32 %v12757, %v12821
    %v12834 = vadd.f32 %v12758, %v12821
    %v12835 = vadd.f32 %v12759, %v12821
    %v12836 = vadd.f32 %v12760, %v12821
    %v12837 = vadd.f32 %v12761, %v12821
    %v12838 = vadd.f32 %v12762, %v12821
    %v12839 = vadd.f32 %v12763, %v12821
    %v12840 = vadd.f32 %v12764, %v12821
    %v12841 = vadd.f32 %v12765, %v12821
    %v12842 = vadd.f32 %v12766, %v12821
    %v12843 = vadd.f32 %v12767, %v12821
    %v12844 = vadd.f32 %v12768, %v12821
    %v12845 = vadd.f32 %v12769, %v12821
    %v12846 = vadd.f32 %v12770, %v12821
    %v12847 = vadd.f32 %v12771, %v12821
    %v12848 = vadd.f32 %v12772, %v12821
    %v12849 = vadd.f32 %v12773, %v12821
    %v12850 = vadd.f32 %v12774, %v12821
    %v12851 = vadd.f32 %v12775, %v12821
    %v12852 = vadd.f32 %v12776, %v12821
    %v12853 = vadd.f32 %v12777, %v12821
    %v12854 = vadd.f32 %v12778, %v12821
    %v12855 = vadd.f32 %v12779, %v12821
    %v12856 = vadd.f32 %v12780, %v12821
    %v12857 = vadd.f32 %v12781, %v12821
    %v12858 = vadd.f32 %v12782, %v12821
    %v12859 = vadd.f32 %v12783, %v12821
    %v12860 = vadd.f32 %v12784, %v12825
    %v12861 = vadd.f32 %v12785, %v12825
    %v12862 = vadd.f32 %v12786, %v12825
    %v12863 = vadd.f32 %v12787, %v12825
    %v12864 = vadd.f32 %v12788, %v12825
    %v12865 = vadd.f32 %v12789, %v12825
    %v12866 = vadd.f32 %v12790, %v12825
    %v12867 = vadd.f32 %v12791, %v12825
    %v12868 = vadd.f32 %v12792, %v12825
    %v12869 = vadd.f32 %v12793, %v12825
    %v12870 = vadd.f32 %v12794, %v12825
    %v12871 = vadd.f32 %v12795, %v12825
    %v12872 = vadd.f32 %v12796, %v12825
    %v12873 = vadd.f32 %v12797, %v12825
    %v12874 = vadd.f32 %v12798, %v12825
    %v12875 = vadd.f32 %v12799, %v12825
    %v12876 = vadd.f32 %v12800, %v12825
    %v12877 = vadd.f32 %v12801, %v12825
    %v12878 = vadd.f32 %v12802, %v12825
    %v12879 = vadd.f32 %v12803, %v12825
    %v12880 = vadd.f32 %v12804, %v12825
    %v12881 = vadd.f32 %v12805, %v12825
    %v12882 = vadd.f32 %v12806, %v12825
    %v12883 = vadd.f32 %v12807, %v12825
    %v12884 = vadd.f32 %v12808, %v12825
    %v12885 = vadd.f32 %v12809, %v12825
    %v12886 = vadd.f32 %v12810, %v12825
    %v12887 = vadd.f32 %v12811, %v12825
    %v12888 = vadd.f32 %v12812, %v12825
    %v12889 = vadd.f32 %v12813, %v12825
    %v12890 = vadd.f32 %v12814, %v12825
    %v12891 = vadd.f32 %v12815, %v12825
    %v12892 = vadd.f32 %v12828, %v72
    %v12893 = vadd.f32 %v12829, %v73
    %v12894 = vadd.f32 %v12830, %v74
    %v12895 = vadd.f32 %v12831, %v75
    %v12896 = vadd.f32 %v12832, %v76
    %v12897 = vadd.f32 %v12833, %v77
    %v12898 = vadd.f32 %v12834, %v78
    %v12899 = vadd.f32 %v12835, %v79
    %v12900 = vadd.f32 %v12836, %v80
    %v12901 = vadd.f32 %v12837, %v81
    %v12902 = vadd.f32 %v12838, %v82
    %v12903 = vadd.f32 %v12839, %v83
    %v12904 = vadd.f32 %v12840, %v84
    %v12905 = vadd.f32 %v12841, %v85
    %v12906 = vadd.f32 %v12842, %v86
    %v12907 = vadd.f32 %v12843, %v87
    %v12908 = vadd.f32 %v12844, %v88
    %v12909 = vadd.f32 %v12845, %v89
    %v12910 = vadd.f32 %v12846, %v90
    %v12911 = vadd.f32 %v12847, %v91
    %v12912 = vadd.f32 %v12848, %v92
    %v12913 = vadd.f32 %v12849, %v93
    %v12914 = vadd.f32 %v12850, %v94
    %v12915 = vadd.f32 %v12851, %v95
    %v12916 = vadd.f32 %v12852, %v96
    %v12917 = vadd.f32 %v12853, %v97
    %v12918 = vadd.f32 %v12854, %v98
    %v12919 = vadd.f32 %v12855, %v99
    %v12920 = vadd.f32 %v12856, %v100
    %v12921 = vadd.f32 %v12857, %v101
    %v12922 = vadd.f32 %v12858, %v102
    %v12923 = vadd.f32 %v12859, %v103
    %v12924 = vadd.f32 %v12860, %v104
    %v12925 = vadd.f32 %v12861, %v105
    %v12926 = vadd.f32 %v12862, %v106
    %v12927 = vadd.f32 %v12863, %v107
    %v12928 = vadd.f32 %v12864, %v108
    %v12929 = vadd.f32 %v12865, %v109
    %v12930 = vadd.f32 %v12866, %v110
    %v12931 = vadd.f32 %v12867, %v111
    %v12932 = vadd.f32 %v12868, %v112
    %v12933 = vadd.f32 %v12869, %v113
    %v12934 = vadd.f32 %v12870, %v114
    %v12935 = vadd.f32 %v12871, %v115
    %v12936 = vadd.f32 %v12872, %v116
    %v12937 = vadd.f32 %v12873, %v117
    %v12938 = vadd.f32 %v12874, %v118
    %v12939 = vadd.f32 %v12875, %v119
    %v12940 = vadd.f32 %v12876, %v120
    %v12941 = vadd.f32 %v12877, %v121
    %v12942 = vadd.f32 %v12878, %v122
    %v12943 = vadd.f32 %v12879, %v123
    %v12944 = vadd.f32 %v12880, %v124
    %v12945 = vadd.f32 %v12881, %v125
    %v12946 = vadd.f32 %v12882, %v126
    %v12947 = vadd.f32 %v12883, %v127
    %v12948 = vadd.f32 %v12884, %v128
    %v12949 = vadd.f32 %v12885, %v129
    %v12950 = vadd.f32 %v12886, %v130
    %v12951 = vadd.f32 %v12887, %v131
    %v12952 = vadd.f32 %v12888, %v132
    %v12953 = vadd.f32 %v12889, %v133
    %v12954 = vadd.f32 %v12890, %v134
    %v12955 = vadd.f32 %v12891, %v135
    %v12956 = vmax.f32 %v12892, 0.0
    %v12957 = vmax.f32 %v12893, 0.0
    %v12958 = vmax.f32 %v12894, 0.0
    %v12959 = vmax.f32 %v12895, 0.0
    %v12960 = vmax.f32 %v12896, 0.0
    %v12961 = vmax.f32 %v12897, 0.0
    %v12962 = vmax.f32 %v12898, 0.0
    %v12963 = vmax.f32 %v12899, 0.0
    %v12964 = vmax.f32 %v12900, 0.0
    %v12965 = vmax.f32 %v12901, 0.0
    %v12966 = vmax.f32 %v12902, 0.0
    %v12967 = vmax.f32 %v12903, 0.0
    %v12968 = vmax.f32 %v12904, 0.0
    %v12969 = vmax.f32 %v12905, 0.0
    %v12970 = vmax.f32 %v12906, 0.0
    %v12971 = vmax.f32 %v12907, 0.0
    %v12972 = vmax.f32 %v12908, 0.0
    %v12973 = vmax.f32 %v12909, 0.0
    %v12974 = vmax.f32 %v12910, 0.0
    %v12975 = vmax.f32 %v12911, 0.0
    %v12976 = vmax.f32 %v12912, 0.0
    %v12977 = vmax.f32 %v12913, 0.0
    %v12978 = vmax.f32 %v12914, 0.0
    %v12979 = vmax.f32 %v12915, 0.0
    %v12980 = vmax.f32 %v12916, 0.0
    %v12981 = vmax.f32 %v12917, 0.0
    %v12982 = vmax.f32 %v12918, 0.0
    %v12983 = vmax.f32 %v12919, 0.0
    %v12984 = vmax.f32 %v12920, 0.0
    %v12985 = vmax.f32 %v12921, 0.0
    %v12986 = vmax.f32 %v12922, 0.0
    %v12987 = vmax.f32 %v12923, 0.0
    %v12988 = vmax.f32 %v12924, 0.0
    %v12989 = vmax.f32 %v12925, 0.0
    %v12990 = vmax.f32 %v12926, 0.0
    %v12991 = vmax.f32 %v12927, 0.0
    %v12992 = vmax.f32 %v12928, 0.0
    %v12993 = vmax.f32 %v12929, 0.0
    %v12994 = vmax.f32 %v12930, 0.0
    %v12995 = vmax.f32 %v12931, 0.0
    %v12996 = vmax.f32 %v12932, 0.0
    %v12997 = vmax.f32 %v12933, 0.0
    %v12998 = vmax.f32 %v12934, 0.0
    %v12999 = vmax.f32 %v12935, 0.0
    %v13000 = vmax.f32 %v12936, 0.0
    %v13001 = vmax.f32 %v12937, 0.0
    %v13002 = vmax.f32 %v12938, 0.0
    %v13003 = vmax.f32 %v12939, 0.0
    %v13004 = vmax.f32 %v12940, 0.0
    %v13005 = vmax.f32 %v12941, 0.0
    %v13006 = vmax.f32 %v12942, 0.0
    %v13007 = vmax.f32 %v12943, 0.0
    %v13008 = vmax.f32 %v12944, 0.0
    %v13009 = vmax.f32 %v12945, 0.0
    %v13010 = vmax.f32 %v12946, 0.0
    %v13011 = vmax.f32 %v12947, 0.0
    %v13012 = vmax.f32 %v12948, 0.0
    %v13013 = vmax.f32 %v12949, 0.0
    %v13014 = vmax.f32 %v12950, 0.0
    %v13015 = vmax.f32 %v12951, 0.0
    %v13016 = vmax.f32 %v12952, 0.0
    %v13017 = vmax.f32 %v12953, 0.0
    %v13018 = vmax.f32 %v12954, 0.0
    %v13019 = vmax.f32 %v12955, 0.0
    %13020 = vst [vmem:[#allocation9] sm:$0xff] %v12956
    %13021 = vst [vmem:[#allocation9 + $0x8] sm:$0xff] %v12957
    %13022 = vst [vmem:[#allocation9 + $0x10] sm:$0xff] %v12958
    %13023 = vst [vmem:[#allocation9 + $0x18] sm:$0xff] %v12959
    %13024 = vst [vmem:[#allocation9 + $0x20] sm:$0xff] %v12960
    %13025 = vst [vmem:[#allocation9 + $0x28] sm:$0xff] %v12961
    %13026 = vst [vmem:[#allocation9 + $0x30] sm:$0xff] %v12962
    %13027 = vst [vmem:[#allocation9 + $0x38] sm:$0xff] %v12963
    %13028 = vst [vmem:[#allocation9 + $0x40] sm:$0xff] %v12964
    %13029 = vst [vmem:[#allocation9 + $0x48] sm:$0xff] %v12965
    %13030 = vst [vmem:[#allocation9 + $0x50] sm:$0xff] %v12966
    %13031 = vst [vmem:[#allocation9 + $0x58] sm:$0xff] %v12967
    %13032 = vst [vmem:[#allocation9 + $0x60] sm:$0xff] %v12968
    %13033 = vst [vmem:[#allocation9 + $0x68] sm:$0xff] %v12969
    %13034 = vst [vmem:[#allocation9 + $0x70] sm:$0xff] %v12970
    %13035 = vst [vmem:[#allocation9 + $0x78] sm:$0xff] %v12971
    %13036 = vst [vmem:[#allocation9 + $0x80] sm:$0xff] %v12972
    %13037 = vst [vmem:[#allocation9 + $0x88] sm:$0xff] %v12973
    %13038 = vst [vmem:[#allocation9 + $0x90] sm:$0xff] %v12974
    %13039 = vst [vmem:[#allocation9 + $0x98] sm:$0xff] %v12975
    %13040 = vst [vmem:[#allocation9 + $0xa0] sm:$0xff] %v12976
    %13041 = vst [vmem:[#allocation9 + $0xa8] sm:$0xff] %v12977
    %13042 = vst [vmem:[#allocation9 + $0xb0] sm:$0xff] %v12978
    %13043 = vst [vmem:[#allocation9 + $0xb8] sm:$0xff] %v12979
    %13044 = vst [vmem:[#allocation9 + $0xc0] sm:$0xff] %v12980
    %13045 = vst [vmem:[#allocation9 + $0xc8] sm:$0xff] %v12981
    %13046 = vst [vmem:[#allocation9 + $0xd0] sm:$0xff] %v12982
    %13047 = vst [vmem:[#allocation9 + $0xd8] sm:$0xff] %v12983
    %13048 = vst [vmem:[#allocation9 + $0xe0] sm:$0xff] %v12984
    %13049 = vst [vmem:[#allocation9 + $0xe8] sm:$0xff] %v12985
    %13050 = vst [vmem:[#allocation9 + $0xf0] sm:$0xff] %v12986
    %13051 = vst [vmem:[#allocation9 + $0xf8] sm:$0xff] %v12987
    %13052 = vst [vmem:[#allocation9 + $0x100] sm:$0xff] %v12988
    %13053 = vst [vmem:[#allocation9 + $0x108] sm:$0xff] %v12989
    %13054 = vst [vmem:[#allocation9 + $0x110] sm:$0xff] %v12990
    %13055 = vst [vmem:[#allocation9 + $0x118] sm:$0xff] %v12991
    %13056 = vst [vmem:[#allocation9 + $0x120] sm:$0xff] %v12992
    %13057 = vst [vmem:[#allocation9 + $0x128] sm:$0xff] %v12993
    %13058 = vst [vmem:[#allocation9 + $0x130] sm:$0xff] %v12994
    %13059 = vst [vmem:[#allocation9 + $0x138] sm:$0xff] %v12995
    %13060 = vst [vmem:[#allocation9 + $0x140] sm:$0xff] %v12996
    %13061 = vst [vmem:[#allocation9 + $0x148] sm:$0xff] %v12997
    %13062 = vst [vmem:[#allocation9 + $0x150] sm:$0xff] %v12998
    %13063 = vst [vmem:[#allocation9 + $0x158] sm:$0xff] %v12999
    %13064 = vst [vmem:[#allocation9 + $0x160] sm:$0xff] %v13000
    %13065 = vst [vmem:[#allocation9 + $0x168] sm:$0xff] %v13001
    %13066 = vst [vmem:[#allocation9 + $0x170] sm:$0xff] %v13002
    %13067 = vst [vmem:[#allocation9 + $0x178] sm:$0xff] %v13003
    %13068 = vst [vmem:[#allocation9 + $0x180] sm:$0xff] %v13004
    %13069 = vst [vmem:[#allocation9 + $0x188] sm:$0xff] %v13005
    %13070 = vst [vmem:[#allocation9 + $0x190] sm:$0xff] %v13006
    %13071 = vst [vmem:[#allocation9 + $0x198] sm:$0xff] %v13007
    %13072 = vst [vmem:[#allocation9 + $0x1a0] sm:$0xff] %v13008
    %13073 = vst [vmem:[#allocation9 + $0x1a8] sm:$0xff] %v13009
    %13074 = vst [vmem:[#allocation9 + $0x1b0] sm:$0xff] %v13010
    %13075 = vst [vmem:[#allocation9 + $0x1b8] sm:$0xff] %v13011
    %13076 = vst [vmem:[#allocation9 + $0x1c0] sm:$0xff] %v13012
    %13077 = vst [vmem:[#allocation9 + $0x1c8] sm:$0xff] %v13013
    %13078 = vst [vmem:[#allocation9 + $0x1d0] sm:$0xff] %v13014
    %13079 = vst [vmem:[#allocation9 + $0x1d8] sm:$0xff] %v13015
    %13080 = vst [vmem:[#allocation9 + $0x1e0] sm:$0xff] %v13016
    %13081 = vst [vmem:[#allocation9 + $0x1e8] sm:$0xff] %v13017
    %13082 = vst [vmem:[#allocation9 + $0x1f0] sm:$0xff] %v13018
    %13083 = vst [vmem:[#allocation9 + $0x1f8] sm:$0xff] %v13019
    // Predicated region
    $region54: #{tpu_custom_call.1} parent=1 // pred_check
      _
    $region55: #{tpu_custom_call.1} parent=1 // pred_check_branch
      %13085 = sbr.rel (0) target = $region57
    $region56: #{tpu_custom_call.1} parent=1 // pred_region
      %s13087 = ssub.s32 8192, 8192
      %13088 = vsyncadd [#allocation6], %s13087
      %s13089 = sshll.u32 [#allocation9], 4
      %s13090 = int_to_ptr.vmem [resolvable:$true] %s13089
      %13095 = dma.vmem_to_hbm [thread:$0]  %s13090, 8192, %s11, [#allocation6], 128, 128, 8
    $region57: #{tpu_custom_call.1} parent=1 // pred_fallthru
      _
    // Predicated region
    $region58: #{tpu_custom_call.1} parent=1 // pred_check
      _
    $region59: #{tpu_custom_call.1} parent=1 // pred_check_branch
      %13097 = sbr.rel (0) target = $region61
    $region60: #{tpu_custom_call.1} parent=1 // pred_region
      %13098 = dma.done [#allocation6], 8192
    $region61: #{tpu_custom_call.1} parent=1 // pred_fallthru
      _
    %13099 = vsyncpa [#allocation5], 1
    %13100 = vsyncpa [#allocation8], 1
    %13101 = vsyncpa [#allocation6], 1

</llo_original>
